<compile_context>
chip_gen: v5e
topology: v5e:2x2
jax: 0.10.0
libtpu: 0.0.40
codegen_flags: <defaults>
</compile_context>

<pallas_src>
import jax
import jax.numpy as jnp
from jax.experimental import pallas as pl
from jax.experimental.pallas import tpu as pltpu

D_IN = 28 * 28       # 784
H = 800
D_OUT = 10
D_IN_PAD = 896       # 7 * 128
H_PAD = 896          # 7 * 128
D_OUT_PAD = 128      # lane-dense output
MIN_BT = 16          # bf16 minimum sublane tile


def _round_up(n, m):
    return ((n + m - 1) // m) * m


def _chip_info():
    """Returns (is_v7x, vmem_limit_bytes) for the current default backend."""
    kind = ""
    try:
        kind = str(jax.devices()[0].device_kind).lower()
    except Exception:
        pass
    is_v7 = "v7" in kind
    # v7x: 64 MiB physical VMEM per TC -> leave headroom; v5e/v6e: 128 MiB physical.
    vmem_limit = (48 << 20) if is_v7 else (64 << 20)
    return is_v7, vmem_limit


def mlp_kernel(x_ref, w1_ref, b1_ref, w2_ref, b2_ref, w3_ref, b3_ref, o_ref):
    # x / weights are bf16 (MXU fast path); accumulate in f32; bias + ReLU in f32.
    x = x_ref[...]                                                     # (bt, 896) bf16

    h1 = jnp.dot(x, w1_ref[...], preferred_element_type=jnp.float32) + b1_ref[...]
    h1 = jnp.maximum(h1, 0.0).astype(jnp.bfloat16)                     # (bt, 896)

    h2 = jnp.dot(h1, w2_ref[...], preferred_element_type=jnp.float32) + b2_ref[...]
    h2 = jnp.maximum(h2, 0.0).astype(jnp.bfloat16)                     # (bt, 896)

    out = jnp.dot(h2, w3_ref[...], preferred_element_type=jnp.float32) + b3_ref[...]
    o_ref[...] = out.astype(o_ref.dtype)                               # (bt, 128)


def prepare_params(params):
    """Pad weights to multiples of 128 and cast matmul operands to bf16 (done once)."""
    w1, b1, w2, b2, w3, b3 = params

    def pad2(a, rows, cols):
        return jnp.pad(a, ((0, rows - a.shape[0]), (0, cols - a.shape[1])))

    w1p = pad2(w1, D_IN_PAD, H_PAD).astype(jnp.bfloat16)
    w2p = pad2(w2, H_PAD, H_PAD).astype(jnp.bfloat16)
    w3p = pad2(w3, H_PAD, D_OUT_PAD).astype(jnp.bfloat16)
    b1p = pad2(b1, 1, H_PAD).astype(jnp.float32)
    b2p = pad2(b2, 1, H_PAD).astype(jnp.float32)
    b3p = pad2(b3, 1, D_OUT_PAD).astype(jnp.float32)
    return (w1p, b1p, w2p, b2p, w3p, b3p)


def _make_mlp_call(bt, b_pad, vmem_limit_bytes, single_buffer_weights):
    """Build the pallas_call for a given batch tile / padded batch."""

    def w_spec(shape):
        # Constant index_map: the block never changes across grid steps, so a
        # single pipeline buffer is enough (saves ~3.4 MiB of VMEM).
        if single_buffer_weights:
            return pl.BlockSpec(shape, lambda i: (0, 0), pipeline_mode=pl.Buffered(1))
        return pl.BlockSpec(shape, lambda i: (0, 0))

    return pl.pallas_call(
        mlp_kernel,
        out_shape=jax.ShapeDtypeStruct((b_pad, D_OUT_PAD), jnp.float32),
        grid_spec=pltpu.PrefetchScalarGridSpec(
            num_scalar_prefetch=0,
            grid=(b_pad // bt,),
            in_specs=[
                pl.BlockSpec((bt, D_IN_PAD), lambda i: (i, 0)),
                w_spec((D_IN_PAD, H_PAD)),
                w_spec((1, H_PAD)),
                w_spec((H_PAD, H_PAD)),
                w_spec((1, H_PAD)),
                w_spec((H_PAD, D_OUT_PAD)),
                w_spec((1, D_OUT_PAD)),
            ],
            out_specs=pl.BlockSpec((bt, D_OUT_PAD), lambda i: (i, 0)),
        ),
        compiler_params=pltpu.CompilerParams(
            dimension_semantics=("parallel",),
            vmem_limit_bytes=vmem_limit_bytes,
        ),
    )


def distil_model_forward(x_nchw, prepped_params, *, batch_tile=512):
    """x_nchw: (B, 1, 28, 28) float32. Returns logits (B, 10) float32."""
    w1, b1, w2, b2, w3, b3 = prepped_params
    B = x_nchw.shape[0]
    is_v7, vmem_limit = _chip_info()

    batch_tile = max(MIN_BT, _round_up(batch_tile, MIN_BT))

    # Batch-tile selection:
    #  * large batches: big 256-aligned tile to amortize per-grid-step overhead.
    #  * mid-size batches on v7x: split in two so both TensorCores get work.
    #  * otherwise (single-TC v5e/v6e, or tiny batch): one grid step, so the
    #    weights are DMA'd into VMEM exactly once.
    if B >= 2 * batch_tile:
        bt = batch_tile
    elif is_v7 and B >= 2 * MIN_BT:
        bt = _round_up(pl.cdiv(B, 2), MIN_BT)
    else:
        bt = _round_up(max(B, 1), MIN_BT)
    B_pad = _round_up(B, bt)

    # Flatten (same semantics as torch.flatten(x, 1)); cast to bf16 BEFORE padding,
    # then zero-pad batch + feature dims up to (B_pad, 896).
    x = x_nchw.reshape(B, D_IN).astype(jnp.bfloat16)
    x = jnp.pad(x, ((0, B_pad - B), (0, D_IN_PAD - D_IN)))

    args = (x, w1, b1, w2, b2, w3, b3)
    single_buf = hasattr(pl, "Buffered")
    try:
        out_padded = _make_mlp_call(bt, B_pad, vmem_limit, single_buf)(*args)
    except Exception:
        if not single_buf:
            raise
        # Fallback: if this Pallas version rejects Buffered(1) specs, use default
        # double-buffering (identical semantics, ~3.4 MiB more VMEM).
        out_padded = _make_mlp_call(bt, B_pad, vmem_limit, False)(*args)

    # Drop batch padding and the 10 -> 128 output padding.
    return out_padded[:B, :D_OUT]


def init_params(key):
    """Deterministic init matching PyTorch nn.Linear's U(-1/sqrt(fan_in), 1/sqrt(fan_in))."""
    def linear(key, fan_in, fan_out):
        kw, kb = jax.random.split(key)
        bound = 1.0 / jnp.sqrt(fan_in)
        # store weight as (in, out) so the kernel does x @ W
        w = jax.random.uniform(kw, (fan_in, fan_out), jnp.float32, -bound, bound)
        b = jax.random.uniform(kb, (1, fan_out), jnp.float32, -bound, bound)
        return w, b

    k1, k2, k3 = jax.random.split(key, 3)
    w1, b1 = linear(k1, D_IN, H)
    w2, b2 = linear(k2, H, H)
    w3, b3 = linear(k3, H, D_OUT)
    return (w1, b1, w2, b2, w3, b3)


def reference_forward(x_nchw, params):
    """Pure-JAX f32 reference (matches the PyTorch module)."""
    w1, b1, w2, b2, w3, b3 = params
    x = x_nchw.reshape(x_nchw.shape[0], -1)
    h1 = jnp.maximum(x @ w1 + b1, 0.0)
    h2 = jnp.maximum(h1 @ w2 + b2, 0.0)
    return h2 @ w3 + b3


if __name__ == "__main__":
    key = jax.random.PRNGKey(0)
    kx, kp = jax.random.split(key)

    # Small MNIST-style batch (B, 1, 28, 28).
    B = 16
    x = jax.random.normal(kx, (B, 1, 28, 28), jnp.float32)
    params = init_params(kp)
    prepped = prepare_params(params)

    out = distil_model_forward(x, prepped)
    out = jax.block_until_ready(out)

    ref = reference_forward(x, params)
    assert out.shape == (B, D_OUT)
    # bf16 matmul inputs => looser tolerance vs. the f32 reference.
    assert jnp.allclose(out, ref, atol=3e-2, rtol=3e-2), "mismatch vs reference"

    print("KERNEL_OK")
</pallas_src>

<mosaic_0001>
module attributes {stable_mosaic.version = 11 : i64} {
  func.func @mlp_kernel(%arg0: i32, %arg1: memref<16x896xbf16, #tpu.memory_space<vmem>>, %arg2: memref<896x896xbf16, #tpu.memory_space<vmem>>, %arg3: memref<1x896xf32, #tpu.memory_space<vmem>>, %arg4: memref<896x896xbf16, #tpu.memory_space<vmem>>, %arg5: memref<1x896xf32, #tpu.memory_space<vmem>>, %arg6: memref<896x128xbf16, #tpu.memory_space<vmem>>, %arg7: memref<1x128xf32, #tpu.memory_space<vmem>>, %arg8: memref<16x128xf32, #tpu.memory_space<vmem>>) attributes {dimension_semantics = [#tpu.dimension_semantics<parallel>], iteration_bounds = array<i64: 1>, scalar_prefetch = 0 : i64, scratch_operands = 0 : i64, tpu.core_type = #tpu.core_type<tc>, window_params = [{transform_indices = @transform_0, window_bounds = array<i64: 16, 896>}, {pipeline_mode = #tpu.pipeline_mode<synchronous>, transform_indices = @transform_1, window_bounds = array<i64: 896, 896>}, {pipeline_mode = #tpu.pipeline_mode<synchronous>, transform_indices = @transform_2, window_bounds = array<i64: 1, 896>}, {pipeline_mode = #tpu.pipeline_mode<synchronous>, transform_indices = @transform_3, window_bounds = array<i64: 896, 896>}, {pipeline_mode = #tpu.pipeline_mode<synchronous>, transform_indices = @transform_4, window_bounds = array<i64: 1, 896>}, {pipeline_mode = #tpu.pipeline_mode<synchronous>, transform_indices = @transform_5, window_bounds = array<i64: 896, 128>}, {pipeline_mode = #tpu.pipeline_mode<synchronous>, transform_indices = @transform_6, window_bounds = array<i64: 1, 128>}, {transform_indices = @transform_7, window_bounds = array<i64: 16, 128>}]} {
    %c0 = arith.constant 0 : index
    %c0_0 = arith.constant 0 : index
    %0 = vector.load %arg1[%c0, %c0_0] : memref<16x896xbf16, #tpu.memory_space<vmem>>, vector<16x896xbf16>
    %c0_1 = arith.constant 0 : index
    %c0_2 = arith.constant 0 : index
    %1 = vector.load %arg2[%c0_1, %c0_2] : memref<896x896xbf16, #tpu.memory_space<vmem>>, vector<896x896xbf16>
    %cst = arith.constant dense<0.000000e+00> : vector<16x896xf32>
    %2 = tpu.matmul %0, %1, %cst {dimension_numbers = #tpu.dot_dimension_numbers<[1], [0], [0], [1], [0, 0, 1, 1], [], []>} : vector<16x896xbf16>, vector<896x896xbf16>, vector<16x896xf32> -> vector<16x896xf32>
    %c0_3 = arith.constant 0 : index
    %c0_4 = arith.constant 0 : index
    %3 = vector.load %arg3[%c0_3, %c0_4] : memref<1x896xf32, #tpu.memory_space<vmem>>, vector<1x896xf32>
    %4 = vector.broadcast %3 : vector<1x896xf32> to vector<16x896xf32>
    %5 = arith.addf %2, %4 : vector<16x896xf32>
    %cst_5 = arith.constant 0.000000e+00 : f32
    %6 = vector.broadcast %cst_5 : f32 to vector<16x896xf32>
    %7 = arith.maximumf %5, %6 : vector<16x896xf32>
    %8 = arith.truncf %7 : vector<16x896xf32> to vector<16x896xbf16>
    %c0_6 = arith.constant 0 : index
    %c0_7 = arith.constant 0 : index
    %9 = vector.load %arg4[%c0_6, %c0_7] : memref<896x896xbf16, #tpu.memory_space<vmem>>, vector<896x896xbf16>
    %cst_8 = arith.constant dense<0.000000e+00> : vector<16x896xf32>
    %10 = tpu.matmul %8, %9, %cst_8 {dimension_numbers = #tpu.dot_dimension_numbers<[1], [0], [0], [1], [0, 0, 1, 1], [], []>} : vector<16x896xbf16>, vector<896x896xbf16>, vector<16x896xf32> -> vector<16x896xf32>
    %c0_9 = arith.constant 0 : index
    %c0_10 = arith.constant 0 : index
    %11 = vector.load %arg5[%c0_9, %c0_10] : memref<1x896xf32, #tpu.memory_space<vmem>>, vector<1x896xf32>
    %12 = vector.broadcast %11 : vector<1x896xf32> to vector<16x896xf32>
    %13 = arith.addf %10, %12 : vector<16x896xf32>
    %cst_11 = arith.constant 0.000000e+00 : f32
    %14 = vector.broadcast %cst_11 : f32 to vector<16x896xf32>
    %15 = arith.maximumf %13, %14 : vector<16x896xf32>
    %16 = arith.truncf %15 : vector<16x896xf32> to vector<16x896xbf16>
    %c0_12 = arith.constant 0 : index
    %c0_13 = arith.constant 0 : index
    %17 = vector.load %arg6[%c0_12, %c0_13] : memref<896x128xbf16, #tpu.memory_space<vmem>>, vector<896x128xbf16>
    %cst_14 = arith.constant dense<0.000000e+00> : vector<16x128xf32>
    %18 = tpu.matmul %16, %17, %cst_14 {dimension_numbers = #tpu.dot_dimension_numbers<[1], [0], [0], [1], [0, 0, 1, 1], [], []>} : vector<16x896xbf16>, vector<896x128xbf16>, vector<16x128xf32> -> vector<16x128xf32>
    %c0_15 = arith.constant 0 : index
    %c0_16 = arith.constant 0 : index
    %19 = vector.load %arg7[%c0_15, %c0_16] : memref<1x128xf32, #tpu.memory_space<vmem>>, vector<1x128xf32>
    %20 = vector.broadcast %19 : vector<1x128xf32> to vector<16x128xf32>
    %21 = arith.addf %18, %20 : vector<16x128xf32>
    %c0_17 = arith.constant 0 : index
    %c0_18 = arith.constant 0 : index
    %22 = vector.load %arg8[%c0_17, %c0_18] : memref<16x128xf32, #tpu.memory_space<vmem>>, vector<16x128xf32>
    tpu.vector_store %arg8[%c0_17, %c0_18], %21 {strides = array<i32>} : memref<16x128xf32, #tpu.memory_space<vmem>>, vector<16x128xf32>,
    return
  }
  func.func @transform_0(%arg0: i32) -> (i32, i32) {
    %c0_i32 = arith.constant 0 : i32
    %c0_i32_0 = arith.constant 0 : i32
    return %arg0, %c0_i32 : i32, i32
  }
  func.func @transform_1(%arg0: i32) -> (i32, i32) {
    %c0_i32 = arith.constant 0 : i32
    %c0_i32_0 = arith.constant 0 : i32
    %c0_i32_1 = arith.constant 0 : i32
    return %c0_i32, %c0_i32_0 : i32, i32
  }
  func.func @transform_2(%arg0: i32) -> (i32, i32) {
    %c0_i32 = arith.constant 0 : i32
    %c0_i32_0 = arith.constant 0 : i32
    %c0_i32_1 = arith.constant 0 : i32
    return %c0_i32, %c0_i32_0 : i32, i32
  }
  func.func @transform_3(%arg0: i32) -> (i32, i32) {
    %c0_i32 = arith.constant 0 : i32
    %c0_i32_0 = arith.constant 0 : i32
    %c0_i32_1 = arith.constant 0 : i32
    return %c0_i32, %c0_i32_0 : i32, i32
  }
  func.func @transform_4(%arg0: i32) -> (i32, i32) {
    %c0_i32 = arith.constant 0 : i32
    %c0_i32_0 = arith.constant 0 : i32
    %c0_i32_1 = arith.constant 0 : i32
    return %c0_i32, %c0_i32_0 : i32, i32
  }
  func.func @transform_5(%arg0: i32) -> (i32, i32) {
    %c0_i32 = arith.constant 0 : i32
    %c0_i32_0 = arith.constant 0 : i32
    %c0_i32_1 = arith.constant 0 : i32
    return %c0_i32, %c0_i32_0 : i32, i32
  }
  func.func @transform_6(%arg0: i32) -> (i32, i32) {
    %c0_i32 = arith.constant 0 : i32
    %c0_i32_0 = arith.constant 0 : i32
    %c0_i32_1 = arith.constant 0 : i32
    return %c0_i32, %c0_i32_0 : i32, i32
  }
  func.func @transform_7(%arg0: i32) -> (i32, i32) {
    %c0_i32 = arith.constant 0 : i32
    %c0_i32_0 = arith.constant 0 : i32
    return %arg0, %c0_i32 : i32, i32
  }
}

module attributes {stable_mosaic.version = 11 : i64} {
  func.func @mlp_kernel(%arg0: i32, %arg1: memref<16x896xbf16, #tpu.memory_space<vmem>>, %arg2: memref<896x896xbf16, #tpu.memory_space<vmem>>, %arg3: memref<1x896xf32, #tpu.memory_space<vmem>>, %arg4: memref<896x896xbf16, #tpu.memory_space<vmem>>, %arg5: memref<1x896xf32, #tpu.memory_space<vmem>>, %arg6: memref<896x128xbf16, #tpu.memory_space<vmem>>, %arg7: memref<1x128xf32, #tpu.memory_space<vmem>>, %arg8: memref<16x128xf32, #tpu.memory_space<vmem>>) attributes {dimension_semantics = [#tpu.dimension_semantics<parallel>], iteration_bounds = array<i64: 1>, scalar_prefetch = 0 : i64, scratch_operands = 0 : i64, tpu.core_type = #tpu.core_type<tc>, window_params = [{transform_indices = @transform_0, window_bounds = array<i64: 16, 896>}, {pipeline_mode = #tpu.pipeline_mode<synchronous>, transform_indices = @transform_1, window_bounds = array<i64: 896, 896>}, {pipeline_mode = #tpu.pipeline_mode<synchronous>, transform_indices = @transform_2, window_bounds = array<i64: 1, 896>}, {pipeline_mode = #tpu.pipeline_mode<synchronous>, transform_indices = @transform_3, window_bounds = array<i64: 896, 896>}, {pipeline_mode = #tpu.pipeline_mode<synchronous>, transform_indices = @transform_4, window_bounds = array<i64: 1, 896>}, {pipeline_mode = #tpu.pipeline_mode<synchronous>, transform_indices = @transform_5, window_bounds = array<i64: 896, 128>}, {pipeline_mode = #tpu.pipeline_mode<synchronous>, transform_indices = @transform_6, window_bounds = array<i64: 1, 128>}, {transform_indices = @transform_7, window_bounds = array<i64: 16, 128>}]} {
    %c0 = arith.constant 0 : index
    %c0_0 = arith.constant 0 : index
    %0 = vector.load %arg1[%c0, %c0_0] : memref<16x896xbf16, #tpu.memory_space<vmem>>, vector<16x896xbf16>
    %c0_1 = arith.constant 0 : index
    %c0_2 = arith.constant 0 : index
    %1 = vector.load %arg2[%c0_1, %c0_2] : memref<896x896xbf16, #tpu.memory_space<vmem>>, vector<896x896xbf16>
    %cst = arith.constant dense<0.000000e+00> : vector<16x896xf32>
    %2 = tpu.matmul %0, %1, %cst {dimension_numbers = #tpu.dot_dimension_numbers<[1], [0], [0], [1], [0, 0, 1, 1], [], []>} : vector<16x896xbf16>, vector<896x896xbf16>, vector<16x896xf32> -> vector<16x896xf32>
    %c0_3 = arith.constant 0 : index
    %c0_4 = arith.constant 0 : index
    %3 = vector.load %arg3[%c0_3, %c0_4] : memref<1x896xf32, #tpu.memory_space<vmem>>, vector<1x896xf32>
    %4 = vector.broadcast %3 : vector<1x896xf32> to vector<16x896xf32>
    %5 = arith.addf %2, %4 : vector<16x896xf32>
    %cst_5 = arith.constant 0.000000e+00 : f32
    %6 = vector.broadcast %cst_5 : f32 to vector<16x896xf32>
    %7 = arith.maximumf %5, %6 : vector<16x896xf32>
    %8 = arith.truncf %7 : vector<16x896xf32> to vector<16x896xbf16>
    %c0_6 = arith.constant 0 : index
    %c0_7 = arith.constant 0 : index
    %9 = vector.load %arg4[%c0_6, %c0_7] : memref<896x896xbf16, #tpu.memory_space<vmem>>, vector<896x896xbf16>
    %cst_8 = arith.constant dense<0.000000e+00> : vector<16x896xf32>
    %10 = tpu.matmul %8, %9, %cst_8 {dimension_numbers = #tpu.dot_dimension_numbers<[1], [0], [0], [1], [0, 0, 1, 1], [], []>} : vector<16x896xbf16>, vector<896x896xbf16>, vector<16x896xf32> -> vector<16x896xf32>
    %c0_9 = arith.constant 0 : index
    %c0_10 = arith.constant 0 : index
    %11 = vector.load %arg5[%c0_9, %c0_10] : memref<1x896xf32, #tpu.memory_space<vmem>>, vector<1x896xf32>
    %12 = vector.broadcast %11 : vector<1x896xf32> to vector<16x896xf32>
    %13 = arith.addf %10, %12 : vector<16x896xf32>
    %cst_11 = arith.constant 0.000000e+00 : f32
    %14 = vector.broadcast %cst_11 : f32 to vector<16x896xf32>
    %15 = arith.maximumf %13, %14 : vector<16x896xf32>
    %16 = arith.truncf %15 : vector<16x896xf32> to vector<16x896xbf16>
    %c0_12 = arith.constant 0 : index
    %c0_13 = arith.constant 0 : index
    %17 = vector.load %arg6[%c0_12, %c0_13] : memref<896x128xbf16, #tpu.memory_space<vmem>>, vector<896x128xbf16>
    %cst_14 = arith.constant dense<0.000000e+00> : vector<16x128xf32>
    %18 = tpu.matmul %16, %17, %cst_14 {dimension_numbers = #tpu.dot_dimension_numbers<[1], [0], [0], [1], [0, 0, 1, 1], [], []>} : vector<16x896xbf16>, vector<896x128xbf16>, vector<16x128xf32> -> vector<16x128xf32>
    %c0_15 = arith.constant 0 : index
    %c0_16 = arith.constant 0 : index
    %19 = vector.load %arg7[%c0_15, %c0_16] : memref<1x128xf32, #tpu.memory_space<vmem>>, vector<1x128xf32>
    %20 = vector.broadcast %19 : vector<1x128xf32> to vector<16x128xf32>
    %21 = arith.addf %18, %20 : vector<16x128xf32>
    %c0_17 = arith.constant 0 : index
    %c0_18 = arith.constant 0 : index
    %22 = vector.load %arg8[%c0_17, %c0_18] : memref<16x128xf32, #tpu.memory_space<vmem>>, vector<16x128xf32>
    tpu.vector_store %arg8[%c0_17, %c0_18], %21 {strides = array<i32>} : memref<16x128xf32, #tpu.memory_space<vmem>>, vector<16x128xf32>,
    return
  }
  func.func @transform_0(%arg0: i32) -> (i32, i32) {
    %c0_i32 = arith.constant 0 : i32
    %c0_i32_0 = arith.constant 0 : i32
    return %arg0, %c0_i32 : i32, i32
  }
  func.func @transform_1(%arg0: i32) -> (i32, i32) {
    %c0_i32 = arith.constant 0 : i32
    %c0_i32_0 = arith.constant 0 : i32
    %c0_i32_1 = arith.constant 0 : i32
    return %c0_i32, %c0_i32_0 : i32, i32
  }
  func.func @transform_2(%arg0: i32) -> (i32, i32) {
    %c0_i32 = arith.constant 0 : i32
    %c0_i32_0 = arith.constant 0 : i32
    %c0_i32_1 = arith.constant 0 : i32
    return %c0_i32, %c0_i32_0 : i32, i32
  }
  func.func @transform_3(%arg0: i32) -> (i32, i32) {
    %c0_i32 = arith.constant 0 : i32
    %c0_i32_0 = arith.constant 0 : i32
    %c0_i32_1 = arith.constant 0 : i32
    return %c0_i32, %c0_i32_0 : i32, i32
  }
  func.func @transform_4(%arg0: i32) -> (i32, i32) {
    %c0_i32 = arith.constant 0 : i32
    %c0_i32_0 = arith.constant 0 : i32
    %c0_i32_1 = arith.constant 0 : i32
    return %c0_i32, %c0_i32_0 : i32, i32
  }
  func.func @transform_5(%arg0: i32) -> (i32, i32) {
    %c0_i32 = arith.constant 0 : i32
    %c0_i32_0 = arith.constant 0 : i32
    %c0_i32_1 = arith.constant 0 : i32
    return %c0_i32, %c0_i32_0 : i32, i32
  }
  func.func @transform_6(%arg0: i32) -> (i32, i32) {
    %c0_i32 = arith.constant 0 : i32
    %c0_i32_0 = arith.constant 0 : i32
    %c0_i32_1 = arith.constant 0 : i32
    return %c0_i32, %c0_i32_0 : i32, i32
  }
  func.func @transform_7(%arg0: i32) -> (i32, i32) {
    %c0_i32 = arith.constant 0 : i32
    %c0_i32_0 = arith.constant 0 : i32
    return %arg0, %c0_i32 : i32, i32
  }
}

</mosaic_0001>

<llo_original>
// kernel: tpu_custom_call.1
$region0: #{tpu_custom_call.1}
  #allocation0 [shape = 'u32[]', space=smem, size = 0x4, offset = 0x4, fixed_abs, tag = 'smem constant byte address 0x4 - core index']
  #allocation1 [shape = 'u32[72,128]{1,0:T(1,128)}', space=vmem, size = 0x9000, scoped, tag = 'internal scratch']
  %s0 = inlined_call_operand.hbm [shape: bf16[16,896], index: 0, kind: input, shape index: {}]
  %s1 = inlined_call_operand.hbm [shape: bf16[896,896], index: 1, kind: input, shape index: {}]
  %s2 = inlined_call_operand.hbm [shape: f32[1,896], index: 2, kind: input, shape index: {}]
  %s3 = inlined_call_operand.hbm [shape: bf16[896,896], index: 3, kind: input, shape index: {}]
  %s4 = inlined_call_operand.hbm [shape: f32[1,896], index: 4, kind: input, shape index: {}]
  %s5 = inlined_call_operand.hbm [shape: bf16[896,128], index: 5, kind: input, shape index: {}]
  %s6 = inlined_call_operand.hbm [shape: f32[1,128], index: 6, kind: input, shape index: {}]
  %s7 = inlined_call_operand.hbm [shape: f32[16,128], index: 7, kind: output, shape index: {}]
  %s8 = sld [smem:[#allocation0]]
  $region66: #{tpu_custom_call.1} parent=0
    _
  %s10 = ssub.s32 1, %s8
  %s11 = scalar_select 0, %s10, %s8
  $region1: #{tpu_custom_call.1} parent=0
    #allocation2 [shape = 'u8[28672]{0}', space=vmem, size = 0x7000, scoped, tag = 'input window, operand 0, single buffered']
    #allocation3 [shape = 's32[1]{0}', space=sflag, size = 0x4, scoped, tag = 'scoped memory for tpu_custom_call.1']
    #allocation4 [shape = 's32[1]{0}', space=sflag, size = 0x4, scoped, tag = 'scoped memory for tpu_custom_call.1']
    #allocation5 [shape = 'u8[1605632]{0}', space=vmem, size = 0x188000, scoped, tag = 'input window, operand 1, single buffered']
    #allocation6 [shape = 's32[1]{0}', space=sflag, size = 0x4, scoped, tag = 'scoped memory for tpu_custom_call.1']
    #allocation7 [shape = 'u8[3584]{0}', space=vmem, size = 0x1000, scoped, tag = 'input window, operand 2, single buffered']
    #allocation8 [shape = 'u8[1605632]{0}', space=vmem, size = 0x188000, scoped, tag = 'input window, operand 3, single buffered']
    #allocation9 [shape = 's32[1]{0}', space=sflag, size = 0x4, scoped, tag = 'scoped memory for tpu_custom_call.1']
    #allocation10 [shape = 'u8[3584]{0}', space=vmem, size = 0x1000, scoped, tag = 'input window, operand 4, single buffered']
    #allocation11 [shape = 'u8[229376]{0}', space=vmem, size = 0x38000, scoped, tag = 'input window, operand 5, single buffered']
    #allocation12 [shape = 's32[1]{0}', space=sflag, size = 0x4, scoped, tag = 'scoped memory for tpu_custom_call.1']
    #allocation13 [shape = 'u8[512]{0}', space=vmem, size = 0x400, scoped, tag = 'input window, operand 6, single buffered']
    #allocation14 [shape = 'u8[8192]{0}', space=vmem, size = 0x2000, scoped, tag = 'output window, operand 0, single buffered']
    %12 = vsyncpa [#allocation3], 0
    %13 = vsyncpa [#allocation6], 0
    %14 = vsyncpa [#allocation9], 0
    %15 = vsyncpa [#allocation12], 0
    %16 = vsyncpa [#allocation4], 0
    // Predicated region
    $region2: #{tpu_custom_call.1} parent=1 // pred_check
      _
    $region3: #{tpu_custom_call.1} parent=1 // pred_check_branch
      %18 = sbr.rel (0) target = $region5
    $region4: #{tpu_custom_call.1} parent=1 // pred_region
      %20 = vsyncadd [#allocation3], 0
      %s21 = sshll.u32 %s0, 4
      %s22 = int_to_ptr.hbm [resolvable:$true] %s21
      %s23 = sshll.u32 [#allocation2], 4
      %s24 = int_to_ptr.vmem [resolvable:$true] %s23
      %29 = dma.hbm_to_vmem [thread:$0]  %s22, 896, %s24, [#allocation3], 448, 448, 28
    $region5: #{tpu_custom_call.1} parent=1 // pred_fallthru
      _
    // Predicated region
    $region6: #{tpu_custom_call.1} parent=1 // pred_check
      _
    $region7: #{tpu_custom_call.1} parent=1 // pred_check_branch
      %31 = sbr.rel (0) target = $region9
    $region8: #{tpu_custom_call.1} parent=1 // pred_region
      %33 = vsyncadd [#allocation6], 0
      %s34 = sshll.u32 %s1, 4
      %s35 = int_to_ptr.hbm [resolvable:$true] %s34
      %s36 = sshll.u32 [#allocation5], 4
      %s37 = int_to_ptr.vmem [resolvable:$true] %s36
      %42 = dma.hbm_to_vmem [thread:$0]  %s35, 50176, %s37, [#allocation6], 448, 448, 28
    $region9: #{tpu_custom_call.1} parent=1 // pred_fallthru
      _
    // Predicated region
    $region10: #{tpu_custom_call.1} parent=1 // pred_check
      _
    $region11: #{tpu_custom_call.1} parent=1 // pred_check_branch
      %44 = sbr.rel (0) target = $region13
    $region12: #{tpu_custom_call.1} parent=1 // pred_region
      %46 = vsyncadd [#allocation6], 0
      %s48 = sshll.u32 %s2, 4
      %s49 = int_to_ptr.hbm [resolvable:$true] %s48
      %s50 = sshll.u32 [#allocation7], 4
      %s51 = int_to_ptr.vmem [resolvable:$true] %s50
      %53 = dma.hbm_to_vmem [thread:$0]  %s49, 112, %s51, [#allocation6]
    $region13: #{tpu_custom_call.1} parent=1 // pred_fallthru
      _
    // Predicated region
    $region14: #{tpu_custom_call.1} parent=1 // pred_check
      _
    $region15: #{tpu_custom_call.1} parent=1 // pred_check_branch
      %55 = sbr.rel (0) target = $region17
    $region16: #{tpu_custom_call.1} parent=1 // pred_region
      %57 = vsyncadd [#allocation9], 0
      %s58 = sshll.u32 %s3, 4
      %s59 = int_to_ptr.hbm [resolvable:$true] %s58
      %s60 = sshll.u32 [#allocation8], 4
      %s61 = int_to_ptr.vmem [resolvable:$true] %s60
      %66 = dma.hbm_to_vmem [thread:$0]  %s59, 50176, %s61, [#allocation9], 448, 448, 28
    $region17: #{tpu_custom_call.1} parent=1 // pred_fallthru
      _
    // Predicated region
    $region18: #{tpu_custom_call.1} parent=1 // pred_check
      _
    $region19: #{tpu_custom_call.1} parent=1 // pred_check_branch
      %68 = sbr.rel (0) target = $region21
    $region20: #{tpu_custom_call.1} parent=1 // pred_region
      %70 = vsyncadd [#allocation9], 0
      %s72 = sshll.u32 %s4, 4
      %s73 = int_to_ptr.hbm [resolvable:$true] %s72
      %s74 = sshll.u32 [#allocation10], 4
      %s75 = int_to_ptr.vmem [resolvable:$true] %s74
      %77 = dma.hbm_to_vmem [thread:$0]  %s73, 112, %s75, [#allocation9]
    $region21: #{tpu_custom_call.1} parent=1 // pred_fallthru
      _
    // Predicated region
    $region22: #{tpu_custom_call.1} parent=1 // pred_check
      _
    $region23: #{tpu_custom_call.1} parent=1 // pred_check_branch
      %79 = sbr.rel (0) target = $region25
    $region24: #{tpu_custom_call.1} parent=1 // pred_region
      %81 = vsyncadd [#allocation12], 0
      %s82 = sshll.u32 %s5, 4
      %s83 = int_to_ptr.hbm [resolvable:$true] %s82
      %s84 = sshll.u32 [#allocation11], 4
      %s85 = int_to_ptr.vmem [resolvable:$true] %s84
      %90 = dma.hbm_to_vmem [thread:$0]  %s83, 7168, %s85, [#allocation12], 64, 64, 4
    $region25: #{tpu_custom_call.1} parent=1 // pred_fallthru
      _
    // Predicated region
    $region26: #{tpu_custom_call.1} parent=1 // pred_check
      _
    $region27: #{tpu_custom_call.1} parent=1 // pred_check_branch
      %92 = sbr.rel (0) target = $region29
    $region28: #{tpu_custom_call.1} parent=1 // pred_region
      %94 = vsyncadd [#allocation12], 0
      %s96 = sshll.u32 %s6, 4
      %s97 = int_to_ptr.hbm [resolvable:$true] %s96
      %s98 = sshll.u32 [#allocation13], 4
      %s99 = int_to_ptr.vmem [resolvable:$true] %s98
      %101 = dma.hbm_to_vmem [thread:$0]  %s97, 16, %s99, [#allocation12]
    $region29: #{tpu_custom_call.1} parent=1 // pred_fallthru
      _
    // Predicated region
    $region30: #{tpu_custom_call.1} parent=1 // pred_check
      _
    $region31: #{tpu_custom_call.1} parent=1 // pred_check_branch
      %103 = sbr.rel (0) target = $region33
    $region32: #{tpu_custom_call.1} parent=1 // pred_region
      %105 = dma.done [#allocation3], 896
    $region33: #{tpu_custom_call.1} parent=1 // pred_fallthru
      _
    // Predicated region
    $region34: #{tpu_custom_call.1} parent=1 // pred_check
      _
    $region35: #{tpu_custom_call.1} parent=1 // pred_check_branch
      %107 = sbr.rel (0) target = $region37
    $region36: #{tpu_custom_call.1} parent=1 // pred_region
      %109 = dma.done [#allocation6], 50176
    $region37: #{tpu_custom_call.1} parent=1 // pred_fallthru
      _
    // Predicated region
    $region38: #{tpu_custom_call.1} parent=1 // pred_check
      _
    $region39: #{tpu_custom_call.1} parent=1 // pred_check_branch
      %111 = sbr.rel (0) target = $region41
    $region40: #{tpu_custom_call.1} parent=1 // pred_region
      %113 = dma.done [#allocation6], 112
    $region41: #{tpu_custom_call.1} parent=1 // pred_fallthru
      _
    // Predicated region
    $region42: #{tpu_custom_call.1} parent=1 // pred_check
      _
    $region43: #{tpu_custom_call.1} parent=1 // pred_check_branch
      %115 = sbr.rel (0) target = $region45
    $region44: #{tpu_custom_call.1} parent=1 // pred_region
      %117 = dma.done [#allocation9], 50176
    $region45: #{tpu_custom_call.1} parent=1 // pred_fallthru
      _
    // Predicated region
    $region46: #{tpu_custom_call.1} parent=1 // pred_check
      _
    $region47: #{tpu_custom_call.1} parent=1 // pred_check_branch
      %119 = sbr.rel (0) target = $region49
    $region48: #{tpu_custom_call.1} parent=1 // pred_region
      %121 = dma.done [#allocation9], 112
    $region49: #{tpu_custom_call.1} parent=1 // pred_fallthru
      _
    // Predicated region
    $region50: #{tpu_custom_call.1} parent=1 // pred_check
      _
    $region51: #{tpu_custom_call.1} parent=1 // pred_check_branch
      %123 = sbr.rel (0) target = $region53
    $region52: #{tpu_custom_call.1} parent=1 // pred_region
      %125 = dma.done [#allocation12], 7168
    $region53: #{tpu_custom_call.1} parent=1 // pred_fallthru
      _
    // Predicated region
    $region54: #{tpu_custom_call.1} parent=1 // pred_check
      _
    $region55: #{tpu_custom_call.1} parent=1 // pred_check_branch
      %127 = sbr.rel (0) target = $region57
    $region56: #{tpu_custom_call.1} parent=1 // pred_region
      %129 = dma.done [#allocation12], 16
    $region57: #{tpu_custom_call.1} parent=1 // pred_fallthru
      _
    %v130 = vld [vmem:[#allocation2] sm:$0xff]
    %v131 = vld [vmem:[#allocation2 + $0x8] sm:$0xff]
    %v132 = vld [vmem:[#allocation2 + $0x10] sm:$0xff]
    %v133 = vld [vmem:[#allocation2 + $0x18] sm:$0xf]
    %v134 = vld [vmem:[#allocation2 + $0x1c] sm:$0xff]
    %v135 = vld [vmem:[#allocation2 + $0x24] sm:$0xff]
    %v136 = vld [vmem:[#allocation2 + $0x2c] sm:$0xff]
    %v137 = vld [vmem:[#allocation2 + $0x34] sm:$0xf]
    %v138 = vld [vmem:[#allocation5] sm:$0xff]
    %v139 = vld [vmem:[#allocation5 + $0x8] sm:$0xff]
    %v140 = vld [vmem:[#allocation5 + $0x10] sm:$0xff]
    %v141 = vld [vmem:[#allocation5 + $0x18] sm:$0xf]
    %v142 = vld [vmem:[#allocation5 + $0x1c] sm:$0xff]
    %v143 = vld [vmem:[#allocation5 + $0x24] sm:$0xff]
    %v144 = vld [vmem:[#allocation5 + $0x2c] sm:$0xff]
    %v145 = vld [vmem:[#allocation5 + $0x34] sm:$0xf]
    %v146 = vld [vmem:[#allocation5 + $0x38] sm:$0xff]
    %v147 = vld [vmem:[#allocation5 + $0x40] sm:$0xff]
    %v148 = vld [vmem:[#allocation5 + $0x48] sm:$0xff]
    %v149 = vld [vmem:[#allocation5 + $0x50] sm:$0xf]
    %v150 = vld [vmem:[#allocation5 + $0x54] sm:$0xff]
    %v151 = vld [vmem:[#allocation5 + $0x5c] sm:$0xff]
    %v152 = vld [vmem:[#allocation5 + $0x64] sm:$0xff]
    %v153 = vld [vmem:[#allocation5 + $0x6c] sm:$0xf]
    %v154 = vld [vmem:[#allocation5 + $0x70] sm:$0xff]
    %v155 = vld [vmem:[#allocation5 + $0x78] sm:$0xff]
    %v156 = vld [vmem:[#allocation5 + $0x80] sm:$0xff]
    %v157 = vld [vmem:[#allocation5 + $0x88] sm:$0xf]
    %v158 = vld [vmem:[#allocation5 + $0x8c] sm:$0xff]
    %v159 = vld [vmem:[#allocation5 + $0x94] sm:$0xff]
    %v160 = vld [vmem:[#allocation5 + $0x9c] sm:$0xff]
    %v161 = vld [vmem:[#allocation5 + $0xa4] sm:$0xf]
    %v162 = vld [vmem:[#allocation5 + $0xa8] sm:$0xff]
    %v163 = vld [vmem:[#allocation5 + $0xb0] sm:$0xff]
    %v164 = vld [vmem:[#allocation5 + $0xb8] sm:$0xff]
    %v165 = vld [vmem:[#allocation5 + $0xc0] sm:$0xf]
    %v166 = vld [vmem:[#allocation5 + $0xc4] sm:$0xff]
    %v167 = vld [vmem:[#allocation5 + $0xcc] sm:$0xff]
    %v168 = vld [vmem:[#allocation5 + $0xd4] sm:$0xff]
    %v169 = vld [vmem:[#allocation5 + $0xdc] sm:$0xf]
    %v170 = vld [vmem:[#allocation5 + $0xe0] sm:$0xff]
    %v171 = vld [vmem:[#allocation5 + $0xe8] sm:$0xff]
    %v172 = vld [vmem:[#allocation5 + $0xf0] sm:$0xff]
    %v173 = vld [vmem:[#allocation5 + $0xf8] sm:$0xf]
    %v174 = vld [vmem:[#allocation5 + $0xfc] sm:$0xff]
    %v175 = vld [vmem:[#allocation5 + $0x104] sm:$0xff]
    %v176 = vld [vmem:[#allocation5 + $0x10c] sm:$0xff]
    %v177 = vld [vmem:[#allocation5 + $0x114] sm:$0xf]
    %v178 = vld [vmem:[#allocation5 + $0x118] sm:$0xff]
    %v179 = vld [vmem:[#allocation5 + $0x120] sm:$0xff]
    %v180 = vld [vmem:[#allocation5 + $0x128] sm:$0xff]
    %v181 = vld [vmem:[#allocation5 + $0x130] sm:$0xf]
    %v182 = vld [vmem:[#allocation5 + $0x134] sm:$0xff]
    %v183 = vld [vmem:[#allocation5 + $0x13c] sm:$0xff]
    %v184 = vld [vmem:[#allocation5 + $0x144] sm:$0xff]
    %v185 = vld [vmem:[#allocation5 + $0x14c] sm:$0xf]
    %v186 = vld [vmem:[#allocation5 + $0x150] sm:$0xff]
    %v187 = vld [vmem:[#allocation5 + $0x158] sm:$0xff]
    %v188 = vld [vmem:[#allocation5 + $0x160] sm:$0xff]
    %v189 = vld [vmem:[#allocation5 + $0x168] sm:$0xf]
    %v190 = vld [vmem:[#allocation5 + $0x16c] sm:$0xff]
    %v191 = vld [vmem:[#allocation5 + $0x174] sm:$0xff]
    %v192 = vld [vmem:[#allocation5 + $0x17c] sm:$0xff]
    %v193 = vld [vmem:[#allocation5 + $0x184] sm:$0xf]
    %v194 = vld [vmem:[#allocation5 + $0x188] sm:$0xff]
    %v195 = vld [vmem:[#allocation5 + $0x190] sm:$0xff]
    %v196 = vld [vmem:[#allocation5 + $0x198] sm:$0xff]
    %v197 = vld [vmem:[#allocation5 + $0x1a0] sm:$0xf]
    %v198 = vld [vmem:[#allocation5 + $0x1a4] sm:$0xff]
    %v199 = vld [vmem:[#allocation5 + $0x1ac] sm:$0xff]
    %v200 = vld [vmem:[#allocation5 + $0x1b4] sm:$0xff]
    %v201 = vld [vmem:[#allocation5 + $0x1bc] sm:$0xf]
    %v202 = vld [vmem:[#allocation5 + $0x1c0] sm:$0xff]
    %v203 = vld [vmem:[#allocation5 + $0x1c8] sm:$0xff]
    %v204 = vld [vmem:[#allocation5 + $0x1d0] sm:$0xff]
    %v205 = vld [vmem:[#allocation5 + $0x1d8] sm:$0xf]
    %v206 = vld [vmem:[#allocation5 + $0x1dc] sm:$0xff]
    %v207 = vld [vmem:[#allocation5 + $0x1e4] sm:$0xff]
    %v208 = vld [vmem:[#allocation5 + $0x1ec] sm:$0xff]
    %v209 = vld [vmem:[#allocation5 + $0x1f4] sm:$0xf]
    %v210 = vld [vmem:[#allocation5 + $0x1f8] sm:$0xff]
    %v211 = vld [vmem:[#allocation5 + $0x200] sm:$0xff]
    %v212 = vld [vmem:[#allocation5 + $0x208] sm:$0xff]
    %v213 = vld [vmem:[#allocation5 + $0x210] sm:$0xf]
    %v214 = vld [vmem:[#allocation5 + $0x214] sm:$0xff]
    %v215 = vld [vmem:[#allocation5 + $0x21c] sm:$0xff]
    %v216 = vld [vmem:[#allocation5 + $0x224] sm:$0xff]
    %v217 = vld [vmem:[#allocation5 + $0x22c] sm:$0xf]
    %v218 = vld [vmem:[#allocation5 + $0x230] sm:$0xff]
    %v219 = vld [vmem:[#allocation5 + $0x238] sm:$0xff]
    %v220 = vld [vmem:[#allocation5 + $0x240] sm:$0xff]
    %v221 = vld [vmem:[#allocation5 + $0x248] sm:$0xf]
    %v222 = vld [vmem:[#allocation5 + $0x24c] sm:$0xff]
    %v223 = vld [vmem:[#allocation5 + $0x254] sm:$0xff]
    %v224 = vld [vmem:[#allocation5 + $0x25c] sm:$0xff]
    %v225 = vld [vmem:[#allocation5 + $0x264] sm:$0xf]
    %v226 = vld [vmem:[#allocation5 + $0x268] sm:$0xff]
    %v227 = vld [vmem:[#allocation5 + $0x270] sm:$0xff]
    %v228 = vld [vmem:[#allocation5 + $0x278] sm:$0xff]
    %v229 = vld [vmem:[#allocation5 + $0x280] sm:$0xf]
    %v230 = vld [vmem:[#allocation5 + $0x284] sm:$0xff]
    %v231 = vld [vmem:[#allocation5 + $0x28c] sm:$0xff]
    %v232 = vld [vmem:[#allocation5 + $0x294] sm:$0xff]
    %v233 = vld [vmem:[#allocation5 + $0x29c] sm:$0xf]
    %v234 = vld [vmem:[#allocation5 + $0x2a0] sm:$0xff]
    %v235 = vld [vmem:[#allocation5 + $0x2a8] sm:$0xff]
    %v236 = vld [vmem:[#allocation5 + $0x2b0] sm:$0xff]
    %v237 = vld [vmem:[#allocation5 + $0x2b8] sm:$0xf]
    %v238 = vld [vmem:[#allocation5 + $0x2bc] sm:$0xff]
    %v239 = vld [vmem:[#allocation5 + $0x2c4] sm:$0xff]
    %v240 = vld [vmem:[#allocation5 + $0x2cc] sm:$0xff]
    %v241 = vld [vmem:[#allocation5 + $0x2d4] sm:$0xf]
    %v242 = vld [vmem:[#allocation5 + $0x2d8] sm:$0xff]
    %v243 = vld [vmem:[#allocation5 + $0x2e0] sm:$0xff]
    %v244 = vld [vmem:[#allocation5 + $0x2e8] sm:$0xff]
    %v245 = vld [vmem:[#allocation5 + $0x2f0] sm:$0xf]
    %v246 = vld [vmem:[#allocation5 + $0x2f4] sm:$0xff]
    %v247 = vld [vmem:[#allocation5 + $0x2fc] sm:$0xff]
    %v248 = vld [vmem:[#allocation5 + $0x304] sm:$0xff]
    %v249 = vld [vmem:[#allocation5 + $0x30c] sm:$0xf]
    %v250 = vld [vmem:[#allocation5 + $0x310] sm:$0xff]
    %v251 = vld [vmem:[#allocation5 + $0x318] sm:$0xff]
    %v252 = vld [vmem:[#allocation5 + $0x320] sm:$0xff]
    %v253 = vld [vmem:[#allocation5 + $0x328] sm:$0xf]
    %v254 = vld [vmem:[#allocation5 + $0x32c] sm:$0xff]
    %v255 = vld [vmem:[#allocation5 + $0x334] sm:$0xff]
    %v256 = vld [vmem:[#allocation5 + $0x33c] sm:$0xff]
    %v257 = vld [vmem:[#allocation5 + $0x344] sm:$0xf]
    %v258 = vld [vmem:[#allocation5 + $0x348] sm:$0xff]
    %v259 = vld [vmem:[#allocation5 + $0x350] sm:$0xff]
    %v260 = vld [vmem:[#allocation5 + $0x358] sm:$0xff]
    %v261 = vld [vmem:[#allocation5 + $0x360] sm:$0xf]
    %v262 = vld [vmem:[#allocation5 + $0x364] sm:$0xff]
    %v263 = vld [vmem:[#allocation5 + $0x36c] sm:$0xff]
    %v264 = vld [vmem:[#allocation5 + $0x374] sm:$0xff]
    %v265 = vld [vmem:[#allocation5 + $0x37c] sm:$0xf]
    %v266 = vld [vmem:[#allocation5 + $0x380] sm:$0xff]
    %v267 = vld [vmem:[#allocation5 + $0x388] sm:$0xff]
    %v268 = vld [vmem:[#allocation5 + $0x390] sm:$0xff]
    %v269 = vld [vmem:[#allocation5 + $0x398] sm:$0xf]
    %v270 = vld [vmem:[#allocation5 + $0x39c] sm:$0xff]
    %v271 = vld [vmem:[#allocation5 + $0x3a4] sm:$0xff]
    %v272 = vld [vmem:[#allocation5 + $0x3ac] sm:$0xff]
    %v273 = vld [vmem:[#allocation5 + $0x3b4] sm:$0xf]
    %v274 = vld [vmem:[#allocation5 + $0x3b8] sm:$0xff]
    %v275 = vld [vmem:[#allocation5 + $0x3c0] sm:$0xff]
    %v276 = vld [vmem:[#allocation5 + $0x3c8] sm:$0xff]
    %v277 = vld [vmem:[#allocation5 + $0x3d0] sm:$0xf]
    %v278 = vld [vmem:[#allocation5 + $0x3d4] sm:$0xff]
    %v279 = vld [vmem:[#allocation5 + $0x3dc] sm:$0xff]
    %v280 = vld [vmem:[#allocation5 + $0x3e4] sm:$0xff]
    %v281 = vld [vmem:[#allocation5 + $0x3ec] sm:$0xf]
    %v282 = vld [vmem:[#allocation5 + $0x3f0] sm:$0xff]
    %v283 = vld [vmem:[#allocation5 + $0x3f8] sm:$0xff]
    %v284 = vld [vmem:[#allocation5 + $0x400] sm:$0xff]
    %v285 = vld [vmem:[#allocation5 + $0x408] sm:$0xf]
    %v286 = vld [vmem:[#allocation5 + $0x40c] sm:$0xff]
    %v287 = vld [vmem:[#allocation5 + $0x414] sm:$0xff]
    %v288 = vld [vmem:[#allocation5 + $0x41c] sm:$0xff]
    %v289 = vld [vmem:[#allocation5 + $0x424] sm:$0xf]
    %v290 = vld [vmem:[#allocation5 + $0x428] sm:$0xff]
    %v291 = vld [vmem:[#allocation5 + $0x430] sm:$0xff]
    %v292 = vld [vmem:[#allocation5 + $0x438] sm:$0xff]
    %v293 = vld [vmem:[#allocation5 + $0x440] sm:$0xf]
    %v294 = vld [vmem:[#allocation5 + $0x444] sm:$0xff]
    %v295 = vld [vmem:[#allocation5 + $0x44c] sm:$0xff]
    %v296 = vld [vmem:[#allocation5 + $0x454] sm:$0xff]
    %v297 = vld [vmem:[#allocation5 + $0x45c] sm:$0xf]
    %v298 = vld [vmem:[#allocation5 + $0x460] sm:$0xff]
    %v299 = vld [vmem:[#allocation5 + $0x468] sm:$0xff]
    %v300 = vld [vmem:[#allocation5 + $0x470] sm:$0xff]
    %v301 = vld [vmem:[#allocation5 + $0x478] sm:$0xf]
    %v302 = vld [vmem:[#allocation5 + $0x47c] sm:$0xff]
    %v303 = vld [vmem:[#allocation5 + $0x484] sm:$0xff]
    %v304 = vld [vmem:[#allocation5 + $0x48c] sm:$0xff]
    %v305 = vld [vmem:[#allocation5 + $0x494] sm:$0xf]
    %v306 = vld [vmem:[#allocation5 + $0x498] sm:$0xff]
    %v307 = vld [vmem:[#allocation5 + $0x4a0] sm:$0xff]
    %v308 = vld [vmem:[#allocation5 + $0x4a8] sm:$0xff]
    %v309 = vld [vmem:[#allocation5 + $0x4b0] sm:$0xf]
    %v310 = vld [vmem:[#allocation5 + $0x4b4] sm:$0xff]
    %v311 = vld [vmem:[#allocation5 + $0x4bc] sm:$0xff]
    %v312 = vld [vmem:[#allocation5 + $0x4c4] sm:$0xff]
    %v313 = vld [vmem:[#allocation5 + $0x4cc] sm:$0xf]
    %v314 = vld [vmem:[#allocation5 + $0x4d0] sm:$0xff]
    %v315 = vld [vmem:[#allocation5 + $0x4d8] sm:$0xff]
    %v316 = vld [vmem:[#allocation5 + $0x4e0] sm:$0xff]
    %v317 = vld [vmem:[#allocation5 + $0x4e8] sm:$0xf]
    %v318 = vld [vmem:[#allocation5 + $0x4ec] sm:$0xff]
    %v319 = vld [vmem:[#allocation5 + $0x4f4] sm:$0xff]
    %v320 = vld [vmem:[#allocation5 + $0x4fc] sm:$0xff]
    %v321 = vld [vmem:[#allocation5 + $0x504] sm:$0xf]
    %v322 = vld [vmem:[#allocation5 + $0x508] sm:$0xff]
    %v323 = vld [vmem:[#allocation5 + $0x510] sm:$0xff]
    %v324 = vld [vmem:[#allocation5 + $0x518] sm:$0xff]
    %v325 = vld [vmem:[#allocation5 + $0x520] sm:$0xf]
    %v326 = vld [vmem:[#allocation5 + $0x524] sm:$0xff]
    %v327 = vld [vmem:[#allocation5 + $0x52c] sm:$0xff]
    %v328 = vld [vmem:[#allocation5 + $0x534] sm:$0xff]
    %v329 = vld [vmem:[#allocation5 + $0x53c] sm:$0xf]
    %v330 = vld [vmem:[#allocation5 + $0x540] sm:$0xff]
    %v331 = vld [vmem:[#allocation5 + $0x548] sm:$0xff]
    %v332 = vld [vmem:[#allocation5 + $0x550] sm:$0xff]
    %v333 = vld [vmem:[#allocation5 + $0x558] sm:$0xf]
    %v334 = vld [vmem:[#allocation5 + $0x55c] sm:$0xff]
    %v335 = vld [vmem:[#allocation5 + $0x564] sm:$0xff]
    %v336 = vld [vmem:[#allocation5 + $0x56c] sm:$0xff]
    %v337 = vld [vmem:[#allocation5 + $0x574] sm:$0xf]
    %v338 = vld [vmem:[#allocation5 + $0x578] sm:$0xff]
    %v339 = vld [vmem:[#allocation5 + $0x580] sm:$0xff]
    %v340 = vld [vmem:[#allocation5 + $0x588] sm:$0xff]
    %v341 = vld [vmem:[#allocation5 + $0x590] sm:$0xf]
    %v342 = vld [vmem:[#allocation5 + $0x594] sm:$0xff]
    %v343 = vld [vmem:[#allocation5 + $0x59c] sm:$0xff]
    %v344 = vld [vmem:[#allocation5 + $0x5a4] sm:$0xff]
    %v345 = vld [vmem:[#allocation5 + $0x5ac] sm:$0xf]
    %v346 = vld [vmem:[#allocation5 + $0x5b0] sm:$0xff]
    %v347 = vld [vmem:[#allocation5 + $0x5b8] sm:$0xff]
    %v348 = vld [vmem:[#allocation5 + $0x5c0] sm:$0xff]
    %v349 = vld [vmem:[#allocation5 + $0x5c8] sm:$0xf]
    %v350 = vld [vmem:[#allocation5 + $0x5cc] sm:$0xff]
    %v351 = vld [vmem:[#allocation5 + $0x5d4] sm:$0xff]
    %v352 = vld [vmem:[#allocation5 + $0x5dc] sm:$0xff]
    %v353 = vld [vmem:[#allocation5 + $0x5e4] sm:$0xf]
    %v354 = vld [vmem:[#allocation5 + $0x5e8] sm:$0xff]
    %v355 = vld [vmem:[#allocation5 + $0x5f0] sm:$0xff]
    %v356 = vld [vmem:[#allocation5 + $0x5f8] sm:$0xff]
    %v357 = vld [vmem:[#allocation5 + $0x600] sm:$0xf]
    %v358 = vld [vmem:[#allocation5 + $0x604] sm:$0xff]
    %v359 = vld [vmem:[#allocation5 + $0x60c] sm:$0xff]
    %v360 = vld [vmem:[#allocation5 + $0x614] sm:$0xff]
    %v361 = vld [vmem:[#allocation5 + $0x61c] sm:$0xf]
    %v362 = vld [vmem:[#allocation5 + $0x620] sm:$0xff]
    %v363 = vld [vmem:[#allocation5 + $0x628] sm:$0xff]
    %v364 = vld [vmem:[#allocation5 + $0x630] sm:$0xff]
    %v365 = vld [vmem:[#allocation5 + $0x638] sm:$0xf]
    %v366 = vld [vmem:[#allocation5 + $0x63c] sm:$0xff]
    %v367 = vld [vmem:[#allocation5 + $0x644] sm:$0xff]
    %v368 = vld [vmem:[#allocation5 + $0x64c] sm:$0xff]
    %v369 = vld [vmem:[#allocation5 + $0x654] sm:$0xf]
    %v370 = vld [vmem:[#allocation5 + $0x658] sm:$0xff]
    %v371 = vld [vmem:[#allocation5 + $0x660] sm:$0xff]
    %v372 = vld [vmem:[#allocation5 + $0x668] sm:$0xff]
    %v373 = vld [vmem:[#allocation5 + $0x670] sm:$0xf]
    %v374 = vld [vmem:[#allocation5 + $0x674] sm:$0xff]
    %v375 = vld [vmem:[#allocation5 + $0x67c] sm:$0xff]
    %v376 = vld [vmem:[#allocation5 + $0x684] sm:$0xff]
    %v377 = vld [vmem:[#allocation5 + $0x68c] sm:$0xf]
    %v378 = vld [vmem:[#allocation5 + $0x690] sm:$0xff]
    %v379 = vld [vmem:[#allocation5 + $0x698] sm:$0xff]
    %v380 = vld [vmem:[#allocation5 + $0x6a0] sm:$0xff]
    %v381 = vld [vmem:[#allocation5 + $0x6a8] sm:$0xf]
    %v382 = vld [vmem:[#allocation5 + $0x6ac] sm:$0xff]
    %v383 = vld [vmem:[#allocation5 + $0x6b4] sm:$0xff]
    %v384 = vld [vmem:[#allocation5 + $0x6bc] sm:$0xff]
    %v385 = vld [vmem:[#allocation5 + $0x6c4] sm:$0xf]
    %v386 = vld [vmem:[#allocation5 + $0x6c8] sm:$0xff]
    %v387 = vld [vmem:[#allocation5 + $0x6d0] sm:$0xff]
    %v388 = vld [vmem:[#allocation5 + $0x6d8] sm:$0xff]
    %v389 = vld [vmem:[#allocation5 + $0x6e0] sm:$0xf]
    %v390 = vld [vmem:[#allocation5 + $0x6e4] sm:$0xff]
    %v391 = vld [vmem:[#allocation5 + $0x6ec] sm:$0xff]
    %v392 = vld [vmem:[#allocation5 + $0x6f4] sm:$0xff]
    %v393 = vld [vmem:[#allocation5 + $0x6fc] sm:$0xf]
    %v394 = vld [vmem:[#allocation5 + $0x700] sm:$0xff]
    %v395 = vld [vmem:[#allocation5 + $0x708] sm:$0xff]
    %v396 = vld [vmem:[#allocation5 + $0x710] sm:$0xff]
    %v397 = vld [vmem:[#allocation5 + $0x718] sm:$0xf]
    %v398 = vld [vmem:[#allocation5 + $0x71c] sm:$0xff]
    %v399 = vld [vmem:[#allocation5 + $0x724] sm:$0xff]
    %v400 = vld [vmem:[#allocation5 + $0x72c] sm:$0xff]
    %v401 = vld [vmem:[#allocation5 + $0x734] sm:$0xf]
    %v402 = vld [vmem:[#allocation5 + $0x738] sm:$0xff]
    %v403 = vld [vmem:[#allocation5 + $0x740] sm:$0xff]
    %v404 = vld [vmem:[#allocation5 + $0x748] sm:$0xff]
    %v405 = vld [vmem:[#allocation5 + $0x750] sm:$0xf]
    %v406 = vld [vmem:[#allocation5 + $0x754] sm:$0xff]
    %v407 = vld [vmem:[#allocation5 + $0x75c] sm:$0xff]
    %v408 = vld [vmem:[#allocation5 + $0x764] sm:$0xff]
    %v409 = vld [vmem:[#allocation5 + $0x76c] sm:$0xf]
    %v410 = vld [vmem:[#allocation5 + $0x770] sm:$0xff]
    %v411 = vld [vmem:[#allocation5 + $0x778] sm:$0xff]
    %v412 = vld [vmem:[#allocation5 + $0x780] sm:$0xff]
    %v413 = vld [vmem:[#allocation5 + $0x788] sm:$0xf]
    %v414 = vld [vmem:[#allocation5 + $0x78c] sm:$0xff]
    %v415 = vld [vmem:[#allocation5 + $0x794] sm:$0xff]
    %v416 = vld [vmem:[#allocation5 + $0x79c] sm:$0xff]
    %v417 = vld [vmem:[#allocation5 + $0x7a4] sm:$0xf]
    %v418 = vld [vmem:[#allocation5 + $0x7a8] sm:$0xff]
    %v419 = vld [vmem:[#allocation5 + $0x7b0] sm:$0xff]
    %v420 = vld [vmem:[#allocation5 + $0x7b8] sm:$0xff]
    %v421 = vld [vmem:[#allocation5 + $0x7c0] sm:$0xf]
    %v422 = vld [vmem:[#allocation5 + $0x7c4] sm:$0xff]
    %v423 = vld [vmem:[#allocation5 + $0x7cc] sm:$0xff]
    %v424 = vld [vmem:[#allocation5 + $0x7d4] sm:$0xff]
    %v425 = vld [vmem:[#allocation5 + $0x7dc] sm:$0xf]
    %v426 = vld [vmem:[#allocation5 + $0x7e0] sm:$0xff]
    %v427 = vld [vmem:[#allocation5 + $0x7e8] sm:$0xff]
    %v428 = vld [vmem:[#allocation5 + $0x7f0] sm:$0xff]
    %v429 = vld [vmem:[#allocation5 + $0x7f8] sm:$0xf]
    %v430 = vld [vmem:[#allocation5 + $0x7fc] sm:$0xff]
    %v431 = vld [vmem:[#allocation5 + $0x804] sm:$0xff]
    %v432 = vld [vmem:[#allocation5 + $0x80c] sm:$0xff]
    %v433 = vld [vmem:[#allocation5 + $0x814] sm:$0xf]
    %v434 = vld [vmem:[#allocation5 + $0x818] sm:$0xff]
    %v435 = vld [vmem:[#allocation5 + $0x820] sm:$0xff]
    %v436 = vld [vmem:[#allocation5 + $0x828] sm:$0xff]
    %v437 = vld [vmem:[#allocation5 + $0x830] sm:$0xf]
    %v438 = vld [vmem:[#allocation5 + $0x834] sm:$0xff]
    %v439 = vld [vmem:[#allocation5 + $0x83c] sm:$0xff]
    %v440 = vld [vmem:[#allocation5 + $0x844] sm:$0xff]
    %v441 = vld [vmem:[#allocation5 + $0x84c] sm:$0xf]
    %v442 = vld [vmem:[#allocation5 + $0x850] sm:$0xff]
    %v443 = vld [vmem:[#allocation5 + $0x858] sm:$0xff]
    %v444 = vld [vmem:[#allocation5 + $0x860] sm:$0xff]
    %v445 = vld [vmem:[#allocation5 + $0x868] sm:$0xf]
    %v446 = vld [vmem:[#allocation5 + $0x86c] sm:$0xff]
    %v447 = vld [vmem:[#allocation5 + $0x874] sm:$0xff]
    %v448 = vld [vmem:[#allocation5 + $0x87c] sm:$0xff]
    %v449 = vld [vmem:[#allocation5 + $0x884] sm:$0xf]
    %v450 = vld [vmem:[#allocation5 + $0x888] sm:$0xff]
    %v451 = vld [vmem:[#allocation5 + $0x890] sm:$0xff]
    %v452 = vld [vmem:[#allocation5 + $0x898] sm:$0xff]
    %v453 = vld [vmem:[#allocation5 + $0x8a0] sm:$0xf]
    %v454 = vld [vmem:[#allocation5 + $0x8a4] sm:$0xff]
    %v455 = vld [vmem:[#allocation5 + $0x8ac] sm:$0xff]
    %v456 = vld [vmem:[#allocation5 + $0x8b4] sm:$0xff]
    %v457 = vld [vmem:[#allocation5 + $0x8bc] sm:$0xf]
    %v458 = vld [vmem:[#allocation5 + $0x8c0] sm:$0xff]
    %v459 = vld [vmem:[#allocation5 + $0x8c8] sm:$0xff]
    %v460 = vld [vmem:[#allocation5 + $0x8d0] sm:$0xff]
    %v461 = vld [vmem:[#allocation5 + $0x8d8] sm:$0xf]
    %v462 = vld [vmem:[#allocation5 + $0x8dc] sm:$0xff]
    %v463 = vld [vmem:[#allocation5 + $0x8e4] sm:$0xff]
    %v464 = vld [vmem:[#allocation5 + $0x8ec] sm:$0xff]
    %v465 = vld [vmem:[#allocation5 + $0x8f4] sm:$0xf]
    %v466 = vld [vmem:[#allocation5 + $0x8f8] sm:$0xff]
    %v467 = vld [vmem:[#allocation5 + $0x900] sm:$0xff]
    %v468 = vld [vmem:[#allocation5 + $0x908] sm:$0xff]
    %v469 = vld [vmem:[#allocation5 + $0x910] sm:$0xf]
    %v470 = vld [vmem:[#allocation5 + $0x914] sm:$0xff]
    %v471 = vld [vmem:[#allocation5 + $0x91c] sm:$0xff]
    %v472 = vld [vmem:[#allocation5 + $0x924] sm:$0xff]
    %v473 = vld [vmem:[#allocation5 + $0x92c] sm:$0xf]
    %v474 = vld [vmem:[#allocation5 + $0x930] sm:$0xff]
    %v475 = vld [vmem:[#allocation5 + $0x938] sm:$0xff]
    %v476 = vld [vmem:[#allocation5 + $0x940] sm:$0xff]
    %v477 = vld [vmem:[#allocation5 + $0x948] sm:$0xf]
    %v478 = vld [vmem:[#allocation5 + $0x94c] sm:$0xff]
    %v479 = vld [vmem:[#allocation5 + $0x954] sm:$0xff]
    %v480 = vld [vmem:[#allocation5 + $0x95c] sm:$0xff]
    %v481 = vld [vmem:[#allocation5 + $0x964] sm:$0xf]
    %v482 = vld [vmem:[#allocation5 + $0x968] sm:$0xff]
    %v483 = vld [vmem:[#allocation5 + $0x970] sm:$0xff]
    %v484 = vld [vmem:[#allocation5 + $0x978] sm:$0xff]
    %v485 = vld [vmem:[#allocation5 + $0x980] sm:$0xf]
    %v486 = vld [vmem:[#allocation5 + $0x984] sm:$0xff]
    %v487 = vld [vmem:[#allocation5 + $0x98c] sm:$0xff]
    %v488 = vld [vmem:[#allocation5 + $0x994] sm:$0xff]
    %v489 = vld [vmem:[#allocation5 + $0x99c] sm:$0xf]
    %v490 = vld [vmem:[#allocation5 + $0x9a0] sm:$0xff]
    %v491 = vld [vmem:[#allocation5 + $0x9a8] sm:$0xff]
    %v492 = vld [vmem:[#allocation5 + $0x9b0] sm:$0xff]
    %v493 = vld [vmem:[#allocation5 + $0x9b8] sm:$0xf]
    %v494 = vld [vmem:[#allocation5 + $0x9bc] sm:$0xff]
    %v495 = vld [vmem:[#allocation5 + $0x9c4] sm:$0xff]
    %v496 = vld [vmem:[#allocation5 + $0x9cc] sm:$0xff]
    %v497 = vld [vmem:[#allocation5 + $0x9d4] sm:$0xf]
    %v498 = vld [vmem:[#allocation5 + $0x9d8] sm:$0xff]
    %v499 = vld [vmem:[#allocation5 + $0x9e0] sm:$0xff]
    %v500 = vld [vmem:[#allocation5 + $0x9e8] sm:$0xff]
    %v501 = vld [vmem:[#allocation5 + $0x9f0] sm:$0xf]
    %v502 = vld [vmem:[#allocation5 + $0x9f4] sm:$0xff]
    %v503 = vld [vmem:[#allocation5 + $0x9fc] sm:$0xff]
    %v504 = vld [vmem:[#allocation5 + $0xa04] sm:$0xff]
    %v505 = vld [vmem:[#allocation5 + $0xa0c] sm:$0xf]
    %v506 = vld [vmem:[#allocation5 + $0xa10] sm:$0xff]
    %v507 = vld [vmem:[#allocation5 + $0xa18] sm:$0xff]
    %v508 = vld [vmem:[#allocation5 + $0xa20] sm:$0xff]
    %v509 = vld [vmem:[#allocation5 + $0xa28] sm:$0xf]
    %v510 = vld [vmem:[#allocation5 + $0xa2c] sm:$0xff]
    %v511 = vld [vmem:[#allocation5 + $0xa34] sm:$0xff]
    %v512 = vld [vmem:[#allocation5 + $0xa3c] sm:$0xff]
    %v513 = vld [vmem:[#allocation5 + $0xa44] sm:$0xf]
    %v514 = vld [vmem:[#allocation5 + $0xa48] sm:$0xff]
    %v515 = vld [vmem:[#allocation5 + $0xa50] sm:$0xff]
    %v516 = vld [vmem:[#allocation5 + $0xa58] sm:$0xff]
    %v517 = vld [vmem:[#allocation5 + $0xa60] sm:$0xf]
    %v518 = vld [vmem:[#allocation5 + $0xa64] sm:$0xff]
    %v519 = vld [vmem:[#allocation5 + $0xa6c] sm:$0xff]
    %v520 = vld [vmem:[#allocation5 + $0xa74] sm:$0xff]
    %v521 = vld [vmem:[#allocation5 + $0xa7c] sm:$0xf]
    %v522 = vld [vmem:[#allocation5 + $0xa80] sm:$0xff]
    %v523 = vld [vmem:[#allocation5 + $0xa88] sm:$0xff]
    %v524 = vld [vmem:[#allocation5 + $0xa90] sm:$0xff]
    %v525 = vld [vmem:[#allocation5 + $0xa98] sm:$0xf]
    %v526 = vld [vmem:[#allocation5 + $0xa9c] sm:$0xff]
    %v527 = vld [vmem:[#allocation5 + $0xaa4] sm:$0xff]
    %v528 = vld [vmem:[#allocation5 + $0xaac] sm:$0xff]
    %v529 = vld [vmem:[#allocation5 + $0xab4] sm:$0xf]
    %v530 = vld [vmem:[#allocation5 + $0xab8] sm:$0xff]
    %v531 = vld [vmem:[#allocation5 + $0xac0] sm:$0xff]
    %v532 = vld [vmem:[#allocation5 + $0xac8] sm:$0xff]
    %v533 = vld [vmem:[#allocation5 + $0xad0] sm:$0xf]
    %v534 = vld [vmem:[#allocation5 + $0xad4] sm:$0xff]
    %v535 = vld [vmem:[#allocation5 + $0xadc] sm:$0xff]
    %v536 = vld [vmem:[#allocation5 + $0xae4] sm:$0xff]
    %v537 = vld [vmem:[#allocation5 + $0xaec] sm:$0xf]
    %v538 = vld [vmem:[#allocation5 + $0xaf0] sm:$0xff]
    %v539 = vld [vmem:[#allocation5 + $0xaf8] sm:$0xff]
    %v540 = vld [vmem:[#allocation5 + $0xb00] sm:$0xff]
    %v541 = vld [vmem:[#allocation5 + $0xb08] sm:$0xf]
    %v542 = vld [vmem:[#allocation5 + $0xb0c] sm:$0xff]
    %v543 = vld [vmem:[#allocation5 + $0xb14] sm:$0xff]
    %v544 = vld [vmem:[#allocation5 + $0xb1c] sm:$0xff]
    %v545 = vld [vmem:[#allocation5 + $0xb24] sm:$0xf]
    %v546 = vld [vmem:[#allocation5 + $0xb28] sm:$0xff]
    %v547 = vld [vmem:[#allocation5 + $0xb30] sm:$0xff]
    %v548 = vld [vmem:[#allocation5 + $0xb38] sm:$0xff]
    %v549 = vld [vmem:[#allocation5 + $0xb40] sm:$0xf]
    %v550 = vld [vmem:[#allocation5 + $0xb44] sm:$0xff]
    %v551 = vld [vmem:[#allocation5 + $0xb4c] sm:$0xff]
    %v552 = vld [vmem:[#allocation5 + $0xb54] sm:$0xff]
    %v553 = vld [vmem:[#allocation5 + $0xb5c] sm:$0xf]
    %v554 = vld [vmem:[#allocation5 + $0xb60] sm:$0xff]
    %v555 = vld [vmem:[#allocation5 + $0xb68] sm:$0xff]
    %v556 = vld [vmem:[#allocation5 + $0xb70] sm:$0xff]
    %v557 = vld [vmem:[#allocation5 + $0xb78] sm:$0xf]
    %v558 = vld [vmem:[#allocation5 + $0xb7c] sm:$0xff]
    %v559 = vld [vmem:[#allocation5 + $0xb84] sm:$0xff]
    %v560 = vld [vmem:[#allocation5 + $0xb8c] sm:$0xff]
    %v561 = vld [vmem:[#allocation5 + $0xb94] sm:$0xf]
    %v562 = vld [vmem:[#allocation5 + $0xb98] sm:$0xff]
    %v563 = vld [vmem:[#allocation5 + $0xba0] sm:$0xff]
    %v564 = vld [vmem:[#allocation5 + $0xba8] sm:$0xff]
    %v565 = vld [vmem:[#allocation5 + $0xbb0] sm:$0xf]
    %v566 = vld [vmem:[#allocation5 + $0xbb4] sm:$0xff]
    %v567 = vld [vmem:[#allocation5 + $0xbbc] sm:$0xff]
    %v568 = vld [vmem:[#allocation5 + $0xbc4] sm:$0xff]
    %v569 = vld [vmem:[#allocation5 + $0xbcc] sm:$0xf]
    %v570 = vld [vmem:[#allocation5 + $0xbd0] sm:$0xff]
    %v571 = vld [vmem:[#allocation5 + $0xbd8] sm:$0xff]
    %v572 = vld [vmem:[#allocation5 + $0xbe0] sm:$0xff]
    %v573 = vld [vmem:[#allocation5 + $0xbe8] sm:$0xf]
    %v574 = vld [vmem:[#allocation5 + $0xbec] sm:$0xff]
    %v575 = vld [vmem:[#allocation5 + $0xbf4] sm:$0xff]
    %v576 = vld [vmem:[#allocation5 + $0xbfc] sm:$0xff]
    %v577 = vld [vmem:[#allocation5 + $0xc04] sm:$0xf]
    %v578 = vld [vmem:[#allocation5 + $0xc08] sm:$0xff]
    %v579 = vld [vmem:[#allocation5 + $0xc10] sm:$0xff]
    %v580 = vld [vmem:[#allocation5 + $0xc18] sm:$0xff]
    %v581 = vld [vmem:[#allocation5 + $0xc20] sm:$0xf]
    %v582 = vld [vmem:[#allocation5 + $0xc24] sm:$0xff]
    %v583 = vld [vmem:[#allocation5 + $0xc2c] sm:$0xff]
    %v584 = vld [vmem:[#allocation5 + $0xc34] sm:$0xff]
    %v585 = vld [vmem:[#allocation5 + $0xc3c] sm:$0xf]
    %v586 = vld [vmem:[#allocation7] sm:$0xff]
    %v588 = vperm.slane %v586, 0
    %v589 = vperm.slane %v586, 1
    %v590 = vperm.slane %v586, 2
    %v591 = vperm.slane %v586, 3
    %v592 = vperm.slane %v586, 4
    %v593 = vperm.slane %v586, 5
    %v594 = vperm.slane %v586, 6
    %v610 = vunpack.c.l.b16 %v130
    %v611 = vunpack.c.h.b16 %v130
    %v612 = vunpack.c.l.b16 %v131
    %v613 = vunpack.c.h.b16 %v131
    %v614 = vunpack.c.l.b16 %v132
    %v615 = vunpack.c.h.b16 %v132
    %v616 = vunpack.c.l.b16 %v133
    %v617 = vunpack.c.l.b16 %v134
    %v618 = vunpack.c.h.b16 %v134
    %v619 = vunpack.c.l.b16 %v135
    %v620 = vunpack.c.h.b16 %v135
    %v621 = vunpack.c.l.b16 %v136
    %v622 = vunpack.c.h.b16 %v136
    %v623 = vunpack.c.l.b16 %v137
    %v624 = vpack.c.b16 %v617, %v610
    %v625 = vpack.c.b16 %v618, %v611
    %v626 = vpack.c.b16 %v619, %v612
    %v627 = vpack.c.b16 %v620, %v613
    %v628 = vpack.c.b16 %v621, %v614
    %v629 = vpack.c.b16 %v622, %v615
    %v630 = vpack.c.b16 %v623, %v616
    %v1086 = vunpack.c.l.b16 %v138
    %v1087 = vunpack.c.h.b16 %v138
    %v1088 = vunpack.c.l.b16 %v139
    %v1089 = vunpack.c.h.b16 %v139
    %v1090 = vunpack.c.l.b16 %v140
    %v1091 = vunpack.c.h.b16 %v140
    %v1092 = vunpack.c.l.b16 %v141
    %v1093 = vunpack.c.l.b16 %v142
    %v1094 = vunpack.c.h.b16 %v142
    %v1095 = vunpack.c.l.b16 %v143
    %v1096 = vunpack.c.h.b16 %v143
    %v1097 = vunpack.c.l.b16 %v144
    %v1098 = vunpack.c.h.b16 %v144
    %v1099 = vunpack.c.l.b16 %v145
    %v1100 = vunpack.c.l.b16 %v146
    %v1101 = vunpack.c.h.b16 %v146
    %v1102 = vunpack.c.l.b16 %v147
    %v1103 = vunpack.c.h.b16 %v147
    %v1104 = vunpack.c.l.b16 %v148
    %v1105 = vunpack.c.h.b16 %v148
    %v1106 = vunpack.c.l.b16 %v149
    %v1107 = vunpack.c.l.b16 %v150
    %v1108 = vunpack.c.h.b16 %v150
    %v1109 = vunpack.c.l.b16 %v151
    %v1110 = vunpack.c.h.b16 %v151
    %v1111 = vunpack.c.l.b16 %v152
    %v1112 = vunpack.c.h.b16 %v152
    %v1113 = vunpack.c.l.b16 %v153
    %v1114 = vunpack.c.l.b16 %v154
    %v1115 = vunpack.c.h.b16 %v154
    %v1116 = vunpack.c.l.b16 %v155
    %v1117 = vunpack.c.h.b16 %v155
    %v1118 = vunpack.c.l.b16 %v156
    %v1119 = vunpack.c.h.b16 %v156
    %v1120 = vunpack.c.l.b16 %v157
    %v1121 = vunpack.c.l.b16 %v158
    %v1122 = vunpack.c.h.b16 %v158
    %v1123 = vunpack.c.l.b16 %v159
    %v1124 = vunpack.c.h.b16 %v159
    %v1125 = vunpack.c.l.b16 %v160
    %v1126 = vunpack.c.h.b16 %v160
    %v1127 = vunpack.c.l.b16 %v161
    %v1128 = vunpack.c.l.b16 %v162
    %v1129 = vunpack.c.h.b16 %v162
    %v1130 = vunpack.c.l.b16 %v163
    %v1131 = vunpack.c.h.b16 %v163
    %v1132 = vunpack.c.l.b16 %v164
    %v1133 = vunpack.c.h.b16 %v164
    %v1134 = vunpack.c.l.b16 %v165
    %v1135 = vunpack.c.l.b16 %v166
    %v1136 = vunpack.c.h.b16 %v166
    %v1137 = vunpack.c.l.b16 %v167
    %v1138 = vunpack.c.h.b16 %v167
    %v1139 = vunpack.c.l.b16 %v168
    %v1140 = vunpack.c.h.b16 %v168
    %v1141 = vunpack.c.l.b16 %v169
    %v1142 = vunpack.c.l.b16 %v170
    %v1143 = vunpack.c.h.b16 %v170
    %v1144 = vunpack.c.l.b16 %v171
    %v1145 = vunpack.c.h.b16 %v171
    %v1146 = vunpack.c.l.b16 %v172
    %v1147 = vunpack.c.h.b16 %v172
    %v1148 = vunpack.c.l.b16 %v173
    %v1149 = vunpack.c.l.b16 %v174
    %v1150 = vunpack.c.h.b16 %v174
    %v1151 = vunpack.c.l.b16 %v175
    %v1152 = vunpack.c.h.b16 %v175
    %v1153 = vunpack.c.l.b16 %v176
    %v1154 = vunpack.c.h.b16 %v176
    %v1155 = vunpack.c.l.b16 %v177
    %v1156 = vunpack.c.l.b16 %v178
    %v1157 = vunpack.c.h.b16 %v178
    %v1158 = vunpack.c.l.b16 %v179
    %v1159 = vunpack.c.h.b16 %v179
    %v1160 = vunpack.c.l.b16 %v180
    %v1161 = vunpack.c.h.b16 %v180
    %v1162 = vunpack.c.l.b16 %v181
    %v1163 = vunpack.c.l.b16 %v182
    %v1164 = vunpack.c.h.b16 %v182
    %v1165 = vunpack.c.l.b16 %v183
    %v1166 = vunpack.c.h.b16 %v183
    %v1167 = vunpack.c.l.b16 %v184
    %v1168 = vunpack.c.h.b16 %v184
    %v1169 = vunpack.c.l.b16 %v185
    %v1170 = vunpack.c.l.b16 %v186
    %v1171 = vunpack.c.h.b16 %v186
    %v1172 = vunpack.c.l.b16 %v187
    %v1173 = vunpack.c.h.b16 %v187
    %v1174 = vunpack.c.l.b16 %v188
    %v1175 = vunpack.c.h.b16 %v188
    %v1176 = vunpack.c.l.b16 %v189
    %v1177 = vunpack.c.l.b16 %v190
    %v1178 = vunpack.c.h.b16 %v190
    %v1179 = vunpack.c.l.b16 %v191
    %v1180 = vunpack.c.h.b16 %v191
    %v1181 = vunpack.c.l.b16 %v192
    %v1182 = vunpack.c.h.b16 %v192
    %v1183 = vunpack.c.l.b16 %v193
    %v1184 = vunpack.c.l.b16 %v194
    %v1185 = vunpack.c.h.b16 %v194
    %v1186 = vunpack.c.l.b16 %v195
    %v1187 = vunpack.c.h.b16 %v195
    %v1188 = vunpack.c.l.b16 %v196
    %v1189 = vunpack.c.h.b16 %v196
    %v1190 = vunpack.c.l.b16 %v197
    %v1191 = vunpack.c.l.b16 %v198
    %v1192 = vunpack.c.h.b16 %v198
    %v1193 = vunpack.c.l.b16 %v199
    %v1194 = vunpack.c.h.b16 %v199
    %v1195 = vunpack.c.l.b16 %v200
    %v1196 = vunpack.c.h.b16 %v200
    %v1197 = vunpack.c.l.b16 %v201
    %v1198 = vunpack.c.l.b16 %v202
    %v1199 = vunpack.c.h.b16 %v202
    %v1200 = vunpack.c.l.b16 %v203
    %v1201 = vunpack.c.h.b16 %v203
    %v1202 = vunpack.c.l.b16 %v204
    %v1203 = vunpack.c.h.b16 %v204
    %v1204 = vunpack.c.l.b16 %v205
    %v1205 = vunpack.c.l.b16 %v206
    %v1206 = vunpack.c.h.b16 %v206
    %v1207 = vunpack.c.l.b16 %v207
    %v1208 = vunpack.c.h.b16 %v207
    %v1209 = vunpack.c.l.b16 %v208
    %v1210 = vunpack.c.h.b16 %v208
    %v1211 = vunpack.c.l.b16 %v209
    %v1212 = vunpack.c.l.b16 %v210
    %v1213 = vunpack.c.h.b16 %v210
    %v1214 = vunpack.c.l.b16 %v211
    %v1215 = vunpack.c.h.b16 %v211
    %v1216 = vunpack.c.l.b16 %v212
    %v1217 = vunpack.c.h.b16 %v212
    %v1218 = vunpack.c.l.b16 %v213
    %v1219 = vunpack.c.l.b16 %v214
    %v1220 = vunpack.c.h.b16 %v214
    %v1221 = vunpack.c.l.b16 %v215
    %v1222 = vunpack.c.h.b16 %v215
    %v1223 = vunpack.c.l.b16 %v216
    %v1224 = vunpack.c.h.b16 %v216
    %v1225 = vunpack.c.l.b16 %v217
    %v1226 = vunpack.c.l.b16 %v218
    %v1227 = vunpack.c.h.b16 %v218
    %v1228 = vunpack.c.l.b16 %v219
    %v1229 = vunpack.c.h.b16 %v219
    %v1230 = vunpack.c.l.b16 %v220
    %v1231 = vunpack.c.h.b16 %v220
    %v1232 = vunpack.c.l.b16 %v221
    %v1233 = vunpack.c.l.b16 %v222
    %v1234 = vunpack.c.h.b16 %v222
    %v1235 = vunpack.c.l.b16 %v223
    %v1236 = vunpack.c.h.b16 %v223
    %v1237 = vunpack.c.l.b16 %v224
    %v1238 = vunpack.c.h.b16 %v224
    %v1239 = vunpack.c.l.b16 %v225
    %v1240 = vunpack.c.l.b16 %v226
    %v1241 = vunpack.c.h.b16 %v226
    %v1242 = vunpack.c.l.b16 %v227
    %v1243 = vunpack.c.h.b16 %v227
    %v1244 = vunpack.c.l.b16 %v228
    %v1245 = vunpack.c.h.b16 %v228
    %v1246 = vunpack.c.l.b16 %v229
    %v1247 = vunpack.c.l.b16 %v230
    %v1248 = vunpack.c.h.b16 %v230
    %v1249 = vunpack.c.l.b16 %v231
    %v1250 = vunpack.c.h.b16 %v231
    %v1251 = vunpack.c.l.b16 %v232
    %v1252 = vunpack.c.h.b16 %v232
    %v1253 = vunpack.c.l.b16 %v233
    %v1254 = vunpack.c.l.b16 %v234
    %v1255 = vunpack.c.h.b16 %v234
    %v1256 = vunpack.c.l.b16 %v235
    %v1257 = vunpack.c.h.b16 %v235
    %v1258 = vunpack.c.l.b16 %v236
    %v1259 = vunpack.c.h.b16 %v236
    %v1260 = vunpack.c.l.b16 %v237
    %v1261 = vunpack.c.l.b16 %v238
    %v1262 = vunpack.c.h.b16 %v238
    %v1263 = vunpack.c.l.b16 %v239
    %v1264 = vunpack.c.h.b16 %v239
    %v1265 = vunpack.c.l.b16 %v240
    %v1266 = vunpack.c.h.b16 %v240
    %v1267 = vunpack.c.l.b16 %v241
    %v1268 = vunpack.c.l.b16 %v242
    %v1269 = vunpack.c.h.b16 %v242
    %v1270 = vunpack.c.l.b16 %v243
    %v1271 = vunpack.c.h.b16 %v243
    %v1272 = vunpack.c.l.b16 %v244
    %v1273 = vunpack.c.h.b16 %v244
    %v1274 = vunpack.c.l.b16 %v245
    %v1275 = vunpack.c.l.b16 %v246
    %v1276 = vunpack.c.h.b16 %v246
    %v1277 = vunpack.c.l.b16 %v247
    %v1278 = vunpack.c.h.b16 %v247
    %v1279 = vunpack.c.l.b16 %v248
    %v1280 = vunpack.c.h.b16 %v248
    %v1281 = vunpack.c.l.b16 %v249
    %v1282 = vunpack.c.l.b16 %v250
    %v1283 = vunpack.c.h.b16 %v250
    %v1284 = vunpack.c.l.b16 %v251
    %v1285 = vunpack.c.h.b16 %v251
    %v1286 = vunpack.c.l.b16 %v252
    %v1287 = vunpack.c.h.b16 %v252
    %v1288 = vunpack.c.l.b16 %v253
    %v1289 = vunpack.c.l.b16 %v254
    %v1290 = vunpack.c.h.b16 %v254
    %v1291 = vunpack.c.l.b16 %v255
    %v1292 = vunpack.c.h.b16 %v255
    %v1293 = vunpack.c.l.b16 %v256
    %v1294 = vunpack.c.h.b16 %v256
    %v1295 = vunpack.c.l.b16 %v257
    %v1296 = vunpack.c.l.b16 %v258
    %v1297 = vunpack.c.h.b16 %v258
    %v1298 = vunpack.c.l.b16 %v259
    %v1299 = vunpack.c.h.b16 %v259
    %v1300 = vunpack.c.l.b16 %v260
    %v1301 = vunpack.c.h.b16 %v260
    %v1302 = vunpack.c.l.b16 %v261
    %v1303 = vunpack.c.l.b16 %v262
    %v1304 = vunpack.c.h.b16 %v262
    %v1305 = vunpack.c.l.b16 %v263
    %v1306 = vunpack.c.h.b16 %v263
    %v1307 = vunpack.c.l.b16 %v264
    %v1308 = vunpack.c.h.b16 %v264
    %v1309 = vunpack.c.l.b16 %v265
    %v1310 = vunpack.c.l.b16 %v266
    %v1311 = vunpack.c.h.b16 %v266
    %v1312 = vunpack.c.l.b16 %v267
    %v1313 = vunpack.c.h.b16 %v267
    %v1314 = vunpack.c.l.b16 %v268
    %v1315 = vunpack.c.h.b16 %v268
    %v1316 = vunpack.c.l.b16 %v269
    %v1317 = vunpack.c.l.b16 %v270
    %v1318 = vunpack.c.h.b16 %v270
    %v1319 = vunpack.c.l.b16 %v271
    %v1320 = vunpack.c.h.b16 %v271
    %v1321 = vunpack.c.l.b16 %v272
    %v1322 = vunpack.c.h.b16 %v272
    %v1323 = vunpack.c.l.b16 %v273
    %v1324 = vunpack.c.l.b16 %v274
    %v1325 = vunpack.c.h.b16 %v274
    %v1326 = vunpack.c.l.b16 %v275
    %v1327 = vunpack.c.h.b16 %v275
    %v1328 = vunpack.c.l.b16 %v276
    %v1329 = vunpack.c.h.b16 %v276
    %v1330 = vunpack.c.l.b16 %v277
    %v1331 = vunpack.c.l.b16 %v278
    %v1332 = vunpack.c.h.b16 %v278
    %v1333 = vunpack.c.l.b16 %v279
    %v1334 = vunpack.c.h.b16 %v279
    %v1335 = vunpack.c.l.b16 %v280
    %v1336 = vunpack.c.h.b16 %v280
    %v1337 = vunpack.c.l.b16 %v281
    %v1338 = vunpack.c.l.b16 %v282
    %v1339 = vunpack.c.h.b16 %v282
    %v1340 = vunpack.c.l.b16 %v283
    %v1341 = vunpack.c.h.b16 %v283
    %v1342 = vunpack.c.l.b16 %v284
    %v1343 = vunpack.c.h.b16 %v284
    %v1344 = vunpack.c.l.b16 %v285
    %v1345 = vunpack.c.l.b16 %v286
    %v1346 = vunpack.c.h.b16 %v286
    %v1347 = vunpack.c.l.b16 %v287
    %v1348 = vunpack.c.h.b16 %v287
    %v1349 = vunpack.c.l.b16 %v288
    %v1350 = vunpack.c.h.b16 %v288
    %v1351 = vunpack.c.l.b16 %v289
    %v1352 = vunpack.c.l.b16 %v290
    %v1353 = vunpack.c.h.b16 %v290
    %v1354 = vunpack.c.l.b16 %v291
    %v1355 = vunpack.c.h.b16 %v291
    %v1356 = vunpack.c.l.b16 %v292
    %v1357 = vunpack.c.h.b16 %v292
    %v1358 = vunpack.c.l.b16 %v293
    %v1359 = vunpack.c.l.b16 %v294
    %v1360 = vunpack.c.h.b16 %v294
    %v1361 = vunpack.c.l.b16 %v295
    %v1362 = vunpack.c.h.b16 %v295
    %v1363 = vunpack.c.l.b16 %v296
    %v1364 = vunpack.c.h.b16 %v296
    %v1365 = vunpack.c.l.b16 %v297
    %v1366 = vunpack.c.l.b16 %v298
    %v1367 = vunpack.c.h.b16 %v298
    %v1368 = vunpack.c.l.b16 %v299
    %v1369 = vunpack.c.h.b16 %v299
    %v1370 = vunpack.c.l.b16 %v300
    %v1371 = vunpack.c.h.b16 %v300
    %v1372 = vunpack.c.l.b16 %v301
    %v1373 = vunpack.c.l.b16 %v302
    %v1374 = vunpack.c.h.b16 %v302
    %v1375 = vunpack.c.l.b16 %v303
    %v1376 = vunpack.c.h.b16 %v303
    %v1377 = vunpack.c.l.b16 %v304
    %v1378 = vunpack.c.h.b16 %v304
    %v1379 = vunpack.c.l.b16 %v305
    %v1380 = vunpack.c.l.b16 %v306
    %v1381 = vunpack.c.h.b16 %v306
    %v1382 = vunpack.c.l.b16 %v307
    %v1383 = vunpack.c.h.b16 %v307
    %v1384 = vunpack.c.l.b16 %v308
    %v1385 = vunpack.c.h.b16 %v308
    %v1386 = vunpack.c.l.b16 %v309
    %v1387 = vunpack.c.l.b16 %v310
    %v1388 = vunpack.c.h.b16 %v310
    %v1389 = vunpack.c.l.b16 %v311
    %v1390 = vunpack.c.h.b16 %v311
    %v1391 = vunpack.c.l.b16 %v312
    %v1392 = vunpack.c.h.b16 %v312
    %v1393 = vunpack.c.l.b16 %v313
    %v1394 = vunpack.c.l.b16 %v314
    %v1395 = vunpack.c.h.b16 %v314
    %v1396 = vunpack.c.l.b16 %v315
    %v1397 = vunpack.c.h.b16 %v315
    %v1398 = vunpack.c.l.b16 %v316
    %v1399 = vunpack.c.h.b16 %v316
    %v1400 = vunpack.c.l.b16 %v317
    %v1401 = vunpack.c.l.b16 %v318
    %v1402 = vunpack.c.h.b16 %v318
    %v1403 = vunpack.c.l.b16 %v319
    %v1404 = vunpack.c.h.b16 %v319
    %v1405 = vunpack.c.l.b16 %v320
    %v1406 = vunpack.c.h.b16 %v320
    %v1407 = vunpack.c.l.b16 %v321
    %v1408 = vunpack.c.l.b16 %v322
    %v1409 = vunpack.c.h.b16 %v322
    %v1410 = vunpack.c.l.b16 %v323
    %v1411 = vunpack.c.h.b16 %v323
    %v1412 = vunpack.c.l.b16 %v324
    %v1413 = vunpack.c.h.b16 %v324
    %v1414 = vunpack.c.l.b16 %v325
    %v1415 = vunpack.c.l.b16 %v326
    %v1416 = vunpack.c.h.b16 %v326
    %v1417 = vunpack.c.l.b16 %v327
    %v1418 = vunpack.c.h.b16 %v327
    %v1419 = vunpack.c.l.b16 %v328
    %v1420 = vunpack.c.h.b16 %v328
    %v1421 = vunpack.c.l.b16 %v329
    %v1422 = vunpack.c.l.b16 %v330
    %v1423 = vunpack.c.h.b16 %v330
    %v1424 = vunpack.c.l.b16 %v331
    %v1425 = vunpack.c.h.b16 %v331
    %v1426 = vunpack.c.l.b16 %v332
    %v1427 = vunpack.c.h.b16 %v332
    %v1428 = vunpack.c.l.b16 %v333
    %v1429 = vunpack.c.l.b16 %v334
    %v1430 = vunpack.c.h.b16 %v334
    %v1431 = vunpack.c.l.b16 %v335
    %v1432 = vunpack.c.h.b16 %v335
    %v1433 = vunpack.c.l.b16 %v336
    %v1434 = vunpack.c.h.b16 %v336
    %v1435 = vunpack.c.l.b16 %v337
    %v1436 = vunpack.c.l.b16 %v338
    %v1437 = vunpack.c.h.b16 %v338
    %v1438 = vunpack.c.l.b16 %v339
    %v1439 = vunpack.c.h.b16 %v339
    %v1440 = vunpack.c.l.b16 %v340
    %v1441 = vunpack.c.h.b16 %v340
    %v1442 = vunpack.c.l.b16 %v341
    %v1443 = vunpack.c.l.b16 %v342
    %v1444 = vunpack.c.h.b16 %v342
    %v1445 = vunpack.c.l.b16 %v343
    %v1446 = vunpack.c.h.b16 %v343
    %v1447 = vunpack.c.l.b16 %v344
    %v1448 = vunpack.c.h.b16 %v344
    %v1449 = vunpack.c.l.b16 %v345
    %v1450 = vunpack.c.l.b16 %v346
    %v1451 = vunpack.c.h.b16 %v346
    %v1452 = vunpack.c.l.b16 %v347
    %v1453 = vunpack.c.h.b16 %v347
    %v1454 = vunpack.c.l.b16 %v348
    %v1455 = vunpack.c.h.b16 %v348
    %v1456 = vunpack.c.l.b16 %v349
    %v1457 = vunpack.c.l.b16 %v350
    %v1458 = vunpack.c.h.b16 %v350
    %v1459 = vunpack.c.l.b16 %v351
    %v1460 = vunpack.c.h.b16 %v351
    %v1461 = vunpack.c.l.b16 %v352
    %v1462 = vunpack.c.h.b16 %v352
    %v1463 = vunpack.c.l.b16 %v353
    %v1464 = vunpack.c.l.b16 %v354
    %v1465 = vunpack.c.h.b16 %v354
    %v1466 = vunpack.c.l.b16 %v355
    %v1467 = vunpack.c.h.b16 %v355
    %v1468 = vunpack.c.l.b16 %v356
    %v1469 = vunpack.c.h.b16 %v356
    %v1470 = vunpack.c.l.b16 %v357
    %v1471 = vunpack.c.l.b16 %v358
    %v1472 = vunpack.c.h.b16 %v358
    %v1473 = vunpack.c.l.b16 %v359
    %v1474 = vunpack.c.h.b16 %v359
    %v1475 = vunpack.c.l.b16 %v360
    %v1476 = vunpack.c.h.b16 %v360
    %v1477 = vunpack.c.l.b16 %v361
    %v1478 = vunpack.c.l.b16 %v362
    %v1479 = vunpack.c.h.b16 %v362
    %v1480 = vunpack.c.l.b16 %v363
    %v1481 = vunpack.c.h.b16 %v363
    %v1482 = vunpack.c.l.b16 %v364
    %v1483 = vunpack.c.h.b16 %v364
    %v1484 = vunpack.c.l.b16 %v365
    %v1485 = vunpack.c.l.b16 %v366
    %v1486 = vunpack.c.h.b16 %v366
    %v1487 = vunpack.c.l.b16 %v367
    %v1488 = vunpack.c.h.b16 %v367
    %v1489 = vunpack.c.l.b16 %v368
    %v1490 = vunpack.c.h.b16 %v368
    %v1491 = vunpack.c.l.b16 %v369
    %v1492 = vunpack.c.l.b16 %v370
    %v1493 = vunpack.c.h.b16 %v370
    %v1494 = vunpack.c.l.b16 %v371
    %v1495 = vunpack.c.h.b16 %v371
    %v1496 = vunpack.c.l.b16 %v372
    %v1497 = vunpack.c.h.b16 %v372
    %v1498 = vunpack.c.l.b16 %v373
    %v1499 = vunpack.c.l.b16 %v374
    %v1500 = vunpack.c.h.b16 %v374
    %v1501 = vunpack.c.l.b16 %v375
    %v1502 = vunpack.c.h.b16 %v375
    %v1503 = vunpack.c.l.b16 %v376
    %v1504 = vunpack.c.h.b16 %v376
    %v1505 = vunpack.c.l.b16 %v377
    %v1506 = vunpack.c.l.b16 %v378
    %v1507 = vunpack.c.h.b16 %v378
    %v1508 = vunpack.c.l.b16 %v379
    %v1509 = vunpack.c.h.b16 %v379
    %v1510 = vunpack.c.l.b16 %v380
    %v1511 = vunpack.c.h.b16 %v380
    %v1512 = vunpack.c.l.b16 %v381
    %v1513 = vunpack.c.l.b16 %v382
    %v1514 = vunpack.c.h.b16 %v382
    %v1515 = vunpack.c.l.b16 %v383
    %v1516 = vunpack.c.h.b16 %v383
    %v1517 = vunpack.c.l.b16 %v384
    %v1518 = vunpack.c.h.b16 %v384
    %v1519 = vunpack.c.l.b16 %v385
    %v1520 = vunpack.c.l.b16 %v386
    %v1521 = vunpack.c.h.b16 %v386
    %v1522 = vunpack.c.l.b16 %v387
    %v1523 = vunpack.c.h.b16 %v387
    %v1524 = vunpack.c.l.b16 %v388
    %v1525 = vunpack.c.h.b16 %v388
    %v1526 = vunpack.c.l.b16 %v389
    %v1527 = vunpack.c.l.b16 %v390
    %v1528 = vunpack.c.h.b16 %v390
    %v1529 = vunpack.c.l.b16 %v391
    %v1530 = vunpack.c.h.b16 %v391
    %v1531 = vunpack.c.l.b16 %v392
    %v1532 = vunpack.c.h.b16 %v392
    %v1533 = vunpack.c.l.b16 %v393
    %v1534 = vunpack.c.l.b16 %v394
    %v1535 = vunpack.c.h.b16 %v394
    %v1536 = vunpack.c.l.b16 %v395
    %v1537 = vunpack.c.h.b16 %v395
    %v1538 = vunpack.c.l.b16 %v396
    %v1539 = vunpack.c.h.b16 %v396
    %v1540 = vunpack.c.l.b16 %v397
    %v1541 = vunpack.c.l.b16 %v398
    %v1542 = vunpack.c.h.b16 %v398
    %v1543 = vunpack.c.l.b16 %v399
    %v1544 = vunpack.c.h.b16 %v399
    %v1545 = vunpack.c.l.b16 %v400
    %v1546 = vunpack.c.h.b16 %v400
    %v1547 = vunpack.c.l.b16 %v401
    %v1548 = vunpack.c.l.b16 %v402
    %v1549 = vunpack.c.h.b16 %v402
    %v1550 = vunpack.c.l.b16 %v403
    %v1551 = vunpack.c.h.b16 %v403
    %v1552 = vunpack.c.l.b16 %v404
    %v1553 = vunpack.c.h.b16 %v404
    %v1554 = vunpack.c.l.b16 %v405
    %v1555 = vunpack.c.l.b16 %v406
    %v1556 = vunpack.c.h.b16 %v406
    %v1557 = vunpack.c.l.b16 %v407
    %v1558 = vunpack.c.h.b16 %v407
    %v1559 = vunpack.c.l.b16 %v408
    %v1560 = vunpack.c.h.b16 %v408
    %v1561 = vunpack.c.l.b16 %v409
    %v1562 = vunpack.c.l.b16 %v410
    %v1563 = vunpack.c.h.b16 %v410
    %v1564 = vunpack.c.l.b16 %v411
    %v1565 = vunpack.c.h.b16 %v411
    %v1566 = vunpack.c.l.b16 %v412
    %v1567 = vunpack.c.h.b16 %v412
    %v1568 = vunpack.c.l.b16 %v413
    %v1569 = vunpack.c.l.b16 %v414
    %v1570 = vunpack.c.h.b16 %v414
    %v1571 = vunpack.c.l.b16 %v415
    %v1572 = vunpack.c.h.b16 %v415
    %v1573 = vunpack.c.l.b16 %v416
    %v1574 = vunpack.c.h.b16 %v416
    %v1575 = vunpack.c.l.b16 %v417
    %v1576 = vunpack.c.l.b16 %v418
    %v1577 = vunpack.c.h.b16 %v418
    %v1578 = vunpack.c.l.b16 %v419
    %v1579 = vunpack.c.h.b16 %v419
    %v1580 = vunpack.c.l.b16 %v420
    %v1581 = vunpack.c.h.b16 %v420
    %v1582 = vunpack.c.l.b16 %v421
    %v1583 = vunpack.c.l.b16 %v422
    %v1584 = vunpack.c.h.b16 %v422
    %v1585 = vunpack.c.l.b16 %v423
    %v1586 = vunpack.c.h.b16 %v423
    %v1587 = vunpack.c.l.b16 %v424
    %v1588 = vunpack.c.h.b16 %v424
    %v1589 = vunpack.c.l.b16 %v425
    %v1590 = vunpack.c.l.b16 %v426
    %v1591 = vunpack.c.h.b16 %v426
    %v1592 = vunpack.c.l.b16 %v427
    %v1593 = vunpack.c.h.b16 %v427
    %v1594 = vunpack.c.l.b16 %v428
    %v1595 = vunpack.c.h.b16 %v428
    %v1596 = vunpack.c.l.b16 %v429
    %v1597 = vunpack.c.l.b16 %v430
    %v1598 = vunpack.c.h.b16 %v430
    %v1599 = vunpack.c.l.b16 %v431
    %v1600 = vunpack.c.h.b16 %v431
    %v1601 = vunpack.c.l.b16 %v432
    %v1602 = vunpack.c.h.b16 %v432
    %v1603 = vunpack.c.l.b16 %v433
    %v1604 = vunpack.c.l.b16 %v434
    %v1605 = vunpack.c.h.b16 %v434
    %v1606 = vunpack.c.l.b16 %v435
    %v1607 = vunpack.c.h.b16 %v435
    %v1608 = vunpack.c.l.b16 %v436
    %v1609 = vunpack.c.h.b16 %v436
    %v1610 = vunpack.c.l.b16 %v437
    %v1611 = vunpack.c.l.b16 %v438
    %v1612 = vunpack.c.h.b16 %v438
    %v1613 = vunpack.c.l.b16 %v439
    %v1614 = vunpack.c.h.b16 %v439
    %v1615 = vunpack.c.l.b16 %v440
    %v1616 = vunpack.c.h.b16 %v440
    %v1617 = vunpack.c.l.b16 %v441
    %v1618 = vunpack.c.l.b16 %v442
    %v1619 = vunpack.c.h.b16 %v442
    %v1620 = vunpack.c.l.b16 %v443
    %v1621 = vunpack.c.h.b16 %v443
    %v1622 = vunpack.c.l.b16 %v444
    %v1623 = vunpack.c.h.b16 %v444
    %v1624 = vunpack.c.l.b16 %v445
    %v1625 = vunpack.c.l.b16 %v446
    %v1626 = vunpack.c.h.b16 %v446
    %v1627 = vunpack.c.l.b16 %v447
    %v1628 = vunpack.c.h.b16 %v447
    %v1629 = vunpack.c.l.b16 %v448
    %v1630 = vunpack.c.h.b16 %v448
    %v1631 = vunpack.c.l.b16 %v449
    %v1632 = vunpack.c.l.b16 %v450
    %v1633 = vunpack.c.h.b16 %v450
    %v1634 = vunpack.c.l.b16 %v451
    %v1635 = vunpack.c.h.b16 %v451
    %v1636 = vunpack.c.l.b16 %v452
    %v1637 = vunpack.c.h.b16 %v452
    %v1638 = vunpack.c.l.b16 %v453
    %v1639 = vunpack.c.l.b16 %v454
    %v1640 = vunpack.c.h.b16 %v454
    %v1641 = vunpack.c.l.b16 %v455
    %v1642 = vunpack.c.h.b16 %v455
    %v1643 = vunpack.c.l.b16 %v456
    %v1644 = vunpack.c.h.b16 %v456
    %v1645 = vunpack.c.l.b16 %v457
    %v1646 = vunpack.c.l.b16 %v458
    %v1647 = vunpack.c.h.b16 %v458
    %v1648 = vunpack.c.l.b16 %v459
    %v1649 = vunpack.c.h.b16 %v459
    %v1650 = vunpack.c.l.b16 %v460
    %v1651 = vunpack.c.h.b16 %v460
    %v1652 = vunpack.c.l.b16 %v461
    %v1653 = vunpack.c.l.b16 %v462
    %v1654 = vunpack.c.h.b16 %v462
    %v1655 = vunpack.c.l.b16 %v463
    %v1656 = vunpack.c.h.b16 %v463
    %v1657 = vunpack.c.l.b16 %v464
    %v1658 = vunpack.c.h.b16 %v464
    %v1659 = vunpack.c.l.b16 %v465
    %v1660 = vunpack.c.l.b16 %v466
    %v1661 = vunpack.c.h.b16 %v466
    %v1662 = vunpack.c.l.b16 %v467
    %v1663 = vunpack.c.h.b16 %v467
    %v1664 = vunpack.c.l.b16 %v468
    %v1665 = vunpack.c.h.b16 %v468
    %v1666 = vunpack.c.l.b16 %v469
    %v1667 = vunpack.c.l.b16 %v470
    %v1668 = vunpack.c.h.b16 %v470
    %v1669 = vunpack.c.l.b16 %v471
    %v1670 = vunpack.c.h.b16 %v471
    %v1671 = vunpack.c.l.b16 %v472
    %v1672 = vunpack.c.h.b16 %v472
    %v1673 = vunpack.c.l.b16 %v473
    %v1674 = vunpack.c.l.b16 %v474
    %v1675 = vunpack.c.h.b16 %v474
    %v1676 = vunpack.c.l.b16 %v475
    %v1677 = vunpack.c.h.b16 %v475
    %v1678 = vunpack.c.l.b16 %v476
    %v1679 = vunpack.c.h.b16 %v476
    %v1680 = vunpack.c.l.b16 %v477
    %v1681 = vunpack.c.l.b16 %v478
    %v1682 = vunpack.c.h.b16 %v478
    %v1683 = vunpack.c.l.b16 %v479
    %v1684 = vunpack.c.h.b16 %v479
    %v1685 = vunpack.c.l.b16 %v480
    %v1686 = vunpack.c.h.b16 %v480
    %v1687 = vunpack.c.l.b16 %v481
    %v1688 = vunpack.c.l.b16 %v482
    %v1689 = vunpack.c.h.b16 %v482
    %v1690 = vunpack.c.l.b16 %v483
    %v1691 = vunpack.c.h.b16 %v483
    %v1692 = vunpack.c.l.b16 %v484
    %v1693 = vunpack.c.h.b16 %v484
    %v1694 = vunpack.c.l.b16 %v485
    %v1695 = vunpack.c.l.b16 %v486
    %v1696 = vunpack.c.h.b16 %v486
    %v1697 = vunpack.c.l.b16 %v487
    %v1698 = vunpack.c.h.b16 %v487
    %v1699 = vunpack.c.l.b16 %v488
    %v1700 = vunpack.c.h.b16 %v488
    %v1701 = vunpack.c.l.b16 %v489
    %v1702 = vunpack.c.l.b16 %v490
    %v1703 = vunpack.c.h.b16 %v490
    %v1704 = vunpack.c.l.b16 %v491
    %v1705 = vunpack.c.h.b16 %v491
    %v1706 = vunpack.c.l.b16 %v492
    %v1707 = vunpack.c.h.b16 %v492
    %v1708 = vunpack.c.l.b16 %v493
    %v1709 = vunpack.c.l.b16 %v494
    %v1710 = vunpack.c.h.b16 %v494
    %v1711 = vunpack.c.l.b16 %v495
    %v1712 = vunpack.c.h.b16 %v495
    %v1713 = vunpack.c.l.b16 %v496
    %v1714 = vunpack.c.h.b16 %v496
    %v1715 = vunpack.c.l.b16 %v497
    %v1716 = vunpack.c.l.b16 %v498
    %v1717 = vunpack.c.h.b16 %v498
    %v1718 = vunpack.c.l.b16 %v499
    %v1719 = vunpack.c.h.b16 %v499
    %v1720 = vunpack.c.l.b16 %v500
    %v1721 = vunpack.c.h.b16 %v500
    %v1722 = vunpack.c.l.b16 %v501
    %v1723 = vunpack.c.l.b16 %v502
    %v1724 = vunpack.c.h.b16 %v502
    %v1725 = vunpack.c.l.b16 %v503
    %v1726 = vunpack.c.h.b16 %v503
    %v1727 = vunpack.c.l.b16 %v504
    %v1728 = vunpack.c.h.b16 %v504
    %v1729 = vunpack.c.l.b16 %v505
    %v1730 = vunpack.c.l.b16 %v506
    %v1731 = vunpack.c.h.b16 %v506
    %v1732 = vunpack.c.l.b16 %v507
    %v1733 = vunpack.c.h.b16 %v507
    %v1734 = vunpack.c.l.b16 %v508
    %v1735 = vunpack.c.h.b16 %v508
    %v1736 = vunpack.c.l.b16 %v509
    %v1737 = vunpack.c.l.b16 %v510
    %v1738 = vunpack.c.h.b16 %v510
    %v1739 = vunpack.c.l.b16 %v511
    %v1740 = vunpack.c.h.b16 %v511
    %v1741 = vunpack.c.l.b16 %v512
    %v1742 = vunpack.c.h.b16 %v512
    %v1743 = vunpack.c.l.b16 %v513
    %v1744 = vunpack.c.l.b16 %v514
    %v1745 = vunpack.c.h.b16 %v514
    %v1746 = vunpack.c.l.b16 %v515
    %v1747 = vunpack.c.h.b16 %v515
    %v1748 = vunpack.c.l.b16 %v516
    %v1749 = vunpack.c.h.b16 %v516
    %v1750 = vunpack.c.l.b16 %v517
    %v1751 = vunpack.c.l.b16 %v518
    %v1752 = vunpack.c.h.b16 %v518
    %v1753 = vunpack.c.l.b16 %v519
    %v1754 = vunpack.c.h.b16 %v519
    %v1755 = vunpack.c.l.b16 %v520
    %v1756 = vunpack.c.h.b16 %v520
    %v1757 = vunpack.c.l.b16 %v521
    %v1758 = vunpack.c.l.b16 %v522
    %v1759 = vunpack.c.h.b16 %v522
    %v1760 = vunpack.c.l.b16 %v523
    %v1761 = vunpack.c.h.b16 %v523
    %v1762 = vunpack.c.l.b16 %v524
    %v1763 = vunpack.c.h.b16 %v524
    %v1764 = vunpack.c.l.b16 %v525
    %v1765 = vunpack.c.l.b16 %v526
    %v1766 = vunpack.c.h.b16 %v526
    %v1767 = vunpack.c.l.b16 %v527
    %v1768 = vunpack.c.h.b16 %v527
    %v1769 = vunpack.c.l.b16 %v528
    %v1770 = vunpack.c.h.b16 %v528
    %v1771 = vunpack.c.l.b16 %v529
    %v1772 = vunpack.c.l.b16 %v530
    %v1773 = vunpack.c.h.b16 %v530
    %v1774 = vunpack.c.l.b16 %v531
    %v1775 = vunpack.c.h.b16 %v531
    %v1776 = vunpack.c.l.b16 %v532
    %v1777 = vunpack.c.h.b16 %v532
    %v1778 = vunpack.c.l.b16 %v533
    %v1779 = vunpack.c.l.b16 %v534
    %v1780 = vunpack.c.h.b16 %v534
    %v1781 = vunpack.c.l.b16 %v535
    %v1782 = vunpack.c.h.b16 %v535
    %v1783 = vunpack.c.l.b16 %v536
    %v1784 = vunpack.c.h.b16 %v536
    %v1785 = vunpack.c.l.b16 %v537
    %v1786 = vunpack.c.l.b16 %v538
    %v1787 = vunpack.c.h.b16 %v538
    %v1788 = vunpack.c.l.b16 %v539
    %v1789 = vunpack.c.h.b16 %v539
    %v1790 = vunpack.c.l.b16 %v540
    %v1791 = vunpack.c.h.b16 %v540
    %v1792 = vunpack.c.l.b16 %v541
    %v1793 = vunpack.c.l.b16 %v542
    %v1794 = vunpack.c.h.b16 %v542
    %v1795 = vunpack.c.l.b16 %v543
    %v1796 = vunpack.c.h.b16 %v543
    %v1797 = vunpack.c.l.b16 %v544
    %v1798 = vunpack.c.h.b16 %v544
    %v1799 = vunpack.c.l.b16 %v545
    %v1800 = vunpack.c.l.b16 %v546
    %v1801 = vunpack.c.h.b16 %v546
    %v1802 = vunpack.c.l.b16 %v547
    %v1803 = vunpack.c.h.b16 %v547
    %v1804 = vunpack.c.l.b16 %v548
    %v1805 = vunpack.c.h.b16 %v548
    %v1806 = vunpack.c.l.b16 %v549
    %v1807 = vunpack.c.l.b16 %v550
    %v1808 = vunpack.c.h.b16 %v550
    %v1809 = vunpack.c.l.b16 %v551
    %v1810 = vunpack.c.h.b16 %v551
    %v1811 = vunpack.c.l.b16 %v552
    %v1812 = vunpack.c.h.b16 %v552
    %v1813 = vunpack.c.l.b16 %v553
    %v1814 = vunpack.c.l.b16 %v554
    %v1815 = vunpack.c.h.b16 %v554
    %v1816 = vunpack.c.l.b16 %v555
    %v1817 = vunpack.c.h.b16 %v555
    %v1818 = vunpack.c.l.b16 %v556
    %v1819 = vunpack.c.h.b16 %v556
    %v1820 = vunpack.c.l.b16 %v557
    %v1821 = vunpack.c.l.b16 %v558
    %v1822 = vunpack.c.h.b16 %v558
    %v1823 = vunpack.c.l.b16 %v559
    %v1824 = vunpack.c.h.b16 %v559
    %v1825 = vunpack.c.l.b16 %v560
    %v1826 = vunpack.c.h.b16 %v560
    %v1827 = vunpack.c.l.b16 %v561
    %v1828 = vunpack.c.l.b16 %v562
    %v1829 = vunpack.c.h.b16 %v562
    %v1830 = vunpack.c.l.b16 %v563
    %v1831 = vunpack.c.h.b16 %v563
    %v1832 = vunpack.c.l.b16 %v564
    %v1833 = vunpack.c.h.b16 %v564
    %v1834 = vunpack.c.l.b16 %v565
    %v1835 = vunpack.c.l.b16 %v566
    %v1836 = vunpack.c.h.b16 %v566
    %v1837 = vunpack.c.l.b16 %v567
    %v1838 = vunpack.c.h.b16 %v567
    %v1839 = vunpack.c.l.b16 %v568
    %v1840 = vunpack.c.h.b16 %v568
    %v1841 = vunpack.c.l.b16 %v569
    %v1842 = vunpack.c.l.b16 %v570
    %v1843 = vunpack.c.h.b16 %v570
    %v1844 = vunpack.c.l.b16 %v571
    %v1845 = vunpack.c.h.b16 %v571
    %v1846 = vunpack.c.l.b16 %v572
    %v1847 = vunpack.c.h.b16 %v572
    %v1848 = vunpack.c.l.b16 %v573
    %v1849 = vunpack.c.l.b16 %v574
    %v1850 = vunpack.c.h.b16 %v574
    %v1851 = vunpack.c.l.b16 %v575
    %v1852 = vunpack.c.h.b16 %v575
    %v1853 = vunpack.c.l.b16 %v576
    %v1854 = vunpack.c.h.b16 %v576
    %v1855 = vunpack.c.l.b16 %v577
    %v1856 = vunpack.c.l.b16 %v578
    %v1857 = vunpack.c.h.b16 %v578
    %v1858 = vunpack.c.l.b16 %v579
    %v1859 = vunpack.c.h.b16 %v579
    %v1860 = vunpack.c.l.b16 %v580
    %v1861 = vunpack.c.h.b16 %v580
    %v1862 = vunpack.c.l.b16 %v581
    %v1863 = vunpack.c.l.b16 %v582
    %v1864 = vunpack.c.h.b16 %v582
    %v1865 = vunpack.c.l.b16 %v583
    %v1866 = vunpack.c.h.b16 %v583
    %v1867 = vunpack.c.l.b16 %v584
    %v1868 = vunpack.c.h.b16 %v584
    %v1869 = vunpack.c.l.b16 %v585
    %v1870 = vpack.c.b16 %v1093, %v1086
    %v1871 = vpack.c.b16 %v1094, %v1087
    %v1872 = vpack.c.b16 %v1095, %v1088
    %v1873 = vpack.c.b16 %v1096, %v1089
    %v1874 = vpack.c.b16 %v1097, %v1090
    %v1875 = vpack.c.b16 %v1098, %v1091
    %v1876 = vpack.c.b16 %v1099, %v1092
    %v1877 = vpack.c.b16 %v1107, %v1100
    %v1878 = vpack.c.b16 %v1108, %v1101
    %v1879 = vpack.c.b16 %v1109, %v1102
    %v1880 = vpack.c.b16 %v1110, %v1103
    %v1881 = vpack.c.b16 %v1111, %v1104
    %v1882 = vpack.c.b16 %v1112, %v1105
    %v1883 = vpack.c.b16 %v1113, %v1106
    %v1884 = vpack.c.b16 %v1121, %v1114
    %v1885 = vpack.c.b16 %v1122, %v1115
    %v1886 = vpack.c.b16 %v1123, %v1116
    %v1887 = vpack.c.b16 %v1124, %v1117
    %v1888 = vpack.c.b16 %v1125, %v1118
    %v1889 = vpack.c.b16 %v1126, %v1119
    %v1890 = vpack.c.b16 %v1127, %v1120
    %v1891 = vpack.c.b16 %v1135, %v1128
    %v1892 = vpack.c.b16 %v1136, %v1129
    %v1893 = vpack.c.b16 %v1137, %v1130
    %v1894 = vpack.c.b16 %v1138, %v1131
    %v1895 = vpack.c.b16 %v1139, %v1132
    %v1896 = vpack.c.b16 %v1140, %v1133
    %v1897 = vpack.c.b16 %v1141, %v1134
    %v1898 = vpack.c.b16 %v1149, %v1142
    %v1899 = vpack.c.b16 %v1150, %v1143
    %v1900 = vpack.c.b16 %v1151, %v1144
    %v1901 = vpack.c.b16 %v1152, %v1145
    %v1902 = vpack.c.b16 %v1153, %v1146
    %v1903 = vpack.c.b16 %v1154, %v1147
    %v1904 = vpack.c.b16 %v1155, %v1148
    %v1905 = vpack.c.b16 %v1163, %v1156
    %v1906 = vpack.c.b16 %v1164, %v1157
    %v1907 = vpack.c.b16 %v1165, %v1158
    %v1908 = vpack.c.b16 %v1166, %v1159
    %v1909 = vpack.c.b16 %v1167, %v1160
    %v1910 = vpack.c.b16 %v1168, %v1161
    %v1911 = vpack.c.b16 %v1169, %v1162
    %v1912 = vpack.c.b16 %v1177, %v1170
    %v1913 = vpack.c.b16 %v1178, %v1171
    %v1914 = vpack.c.b16 %v1179, %v1172
    %v1915 = vpack.c.b16 %v1180, %v1173
    %v1916 = vpack.c.b16 %v1181, %v1174
    %v1917 = vpack.c.b16 %v1182, %v1175
    %v1918 = vpack.c.b16 %v1183, %v1176
    %v1919 = vpack.c.b16 %v1191, %v1184
    %v1920 = vpack.c.b16 %v1192, %v1185
    %v1921 = vpack.c.b16 %v1193, %v1186
    %v1922 = vpack.c.b16 %v1194, %v1187
    %v1923 = vpack.c.b16 %v1195, %v1188
    %v1924 = vpack.c.b16 %v1196, %v1189
    %v1925 = vpack.c.b16 %v1197, %v1190
    %v1926 = vpack.c.b16 %v1205, %v1198
    %v1927 = vpack.c.b16 %v1206, %v1199
    %v1928 = vpack.c.b16 %v1207, %v1200
    %v1929 = vpack.c.b16 %v1208, %v1201
    %v1930 = vpack.c.b16 %v1209, %v1202
    %v1931 = vpack.c.b16 %v1210, %v1203
    %v1932 = vpack.c.b16 %v1211, %v1204
    %v1933 = vpack.c.b16 %v1219, %v1212
    %v1934 = vpack.c.b16 %v1220, %v1213
    %v1935 = vpack.c.b16 %v1221, %v1214
    %v1936 = vpack.c.b16 %v1222, %v1215
    %v1937 = vpack.c.b16 %v1223, %v1216
    %v1938 = vpack.c.b16 %v1224, %v1217
    %v1939 = vpack.c.b16 %v1225, %v1218
    %v1940 = vpack.c.b16 %v1233, %v1226
    %v1941 = vpack.c.b16 %v1234, %v1227
    %v1942 = vpack.c.b16 %v1235, %v1228
    %v1943 = vpack.c.b16 %v1236, %v1229
    %v1944 = vpack.c.b16 %v1237, %v1230
    %v1945 = vpack.c.b16 %v1238, %v1231
    %v1946 = vpack.c.b16 %v1239, %v1232
    %v1947 = vpack.c.b16 %v1247, %v1240
    %v1948 = vpack.c.b16 %v1248, %v1241
    %v1949 = vpack.c.b16 %v1249, %v1242
    %v1950 = vpack.c.b16 %v1250, %v1243
    %v1951 = vpack.c.b16 %v1251, %v1244
    %v1952 = vpack.c.b16 %v1252, %v1245
    %v1953 = vpack.c.b16 %v1253, %v1246
    %v1954 = vpack.c.b16 %v1261, %v1254
    %v1955 = vpack.c.b16 %v1262, %v1255
    %v1956 = vpack.c.b16 %v1263, %v1256
    %v1957 = vpack.c.b16 %v1264, %v1257
    %v1958 = vpack.c.b16 %v1265, %v1258
    %v1959 = vpack.c.b16 %v1266, %v1259
    %v1960 = vpack.c.b16 %v1267, %v1260
    %v1961 = vpack.c.b16 %v1275, %v1268
    %v1962 = vpack.c.b16 %v1276, %v1269
    %v1963 = vpack.c.b16 %v1277, %v1270
    %v1964 = vpack.c.b16 %v1278, %v1271
    %v1965 = vpack.c.b16 %v1279, %v1272
    %v1966 = vpack.c.b16 %v1280, %v1273
    %v1967 = vpack.c.b16 %v1281, %v1274
    %v1968 = vpack.c.b16 %v1289, %v1282
    %v1969 = vpack.c.b16 %v1290, %v1283
    %v1970 = vpack.c.b16 %v1291, %v1284
    %v1971 = vpack.c.b16 %v1292, %v1285
    %v1972 = vpack.c.b16 %v1293, %v1286
    %v1973 = vpack.c.b16 %v1294, %v1287
    %v1974 = vpack.c.b16 %v1295, %v1288
    %v1975 = vpack.c.b16 %v1303, %v1296
    %v1976 = vpack.c.b16 %v1304, %v1297
    %v1977 = vpack.c.b16 %v1305, %v1298
    %v1978 = vpack.c.b16 %v1306, %v1299
    %v1979 = vpack.c.b16 %v1307, %v1300
    %v1980 = vpack.c.b16 %v1308, %v1301
    %v1981 = vpack.c.b16 %v1309, %v1302
    %v1982 = vpack.c.b16 %v1317, %v1310
    %v1983 = vpack.c.b16 %v1318, %v1311
    %v1984 = vpack.c.b16 %v1319, %v1312
    %v1985 = vpack.c.b16 %v1320, %v1313
    %v1986 = vpack.c.b16 %v1321, %v1314
    %v1987 = vpack.c.b16 %v1322, %v1315
    %v1988 = vpack.c.b16 %v1323, %v1316
    %v1989 = vpack.c.b16 %v1331, %v1324
    %v1990 = vpack.c.b16 %v1332, %v1325
    %v1991 = vpack.c.b16 %v1333, %v1326
    %v1992 = vpack.c.b16 %v1334, %v1327
    %v1993 = vpack.c.b16 %v1335, %v1328
    %v1994 = vpack.c.b16 %v1336, %v1329
    %v1995 = vpack.c.b16 %v1337, %v1330
    %v1996 = vpack.c.b16 %v1345, %v1338
    %v1997 = vpack.c.b16 %v1346, %v1339
    %v1998 = vpack.c.b16 %v1347, %v1340
    %v1999 = vpack.c.b16 %v1348, %v1341
    %v2000 = vpack.c.b16 %v1349, %v1342
    %v2001 = vpack.c.b16 %v1350, %v1343
    %v2002 = vpack.c.b16 %v1351, %v1344
    %v2003 = vpack.c.b16 %v1359, %v1352
    %v2004 = vpack.c.b16 %v1360, %v1353
    %v2005 = vpack.c.b16 %v1361, %v1354
    %v2006 = vpack.c.b16 %v1362, %v1355
    %v2007 = vpack.c.b16 %v1363, %v1356
    %v2008 = vpack.c.b16 %v1364, %v1357
    %v2009 = vpack.c.b16 %v1365, %v1358
    %v2010 = vpack.c.b16 %v1373, %v1366
    %v2011 = vpack.c.b16 %v1374, %v1367
    %v2012 = vpack.c.b16 %v1375, %v1368
    %v2013 = vpack.c.b16 %v1376, %v1369
    %v2014 = vpack.c.b16 %v1377, %v1370
    %v2015 = vpack.c.b16 %v1378, %v1371
    %v2016 = vpack.c.b16 %v1379, %v1372
    %v2017 = vpack.c.b16 %v1387, %v1380
    %v2018 = vpack.c.b16 %v1388, %v1381
    %v2019 = vpack.c.b16 %v1389, %v1382
    %v2020 = vpack.c.b16 %v1390, %v1383
    %v2021 = vpack.c.b16 %v1391, %v1384
    %v2022 = vpack.c.b16 %v1392, %v1385
    %v2023 = vpack.c.b16 %v1393, %v1386
    %v2024 = vpack.c.b16 %v1401, %v1394
    %v2025 = vpack.c.b16 %v1402, %v1395
    %v2026 = vpack.c.b16 %v1403, %v1396
    %v2027 = vpack.c.b16 %v1404, %v1397
    %v2028 = vpack.c.b16 %v1405, %v1398
    %v2029 = vpack.c.b16 %v1406, %v1399
    %v2030 = vpack.c.b16 %v1407, %v1400
    %v2031 = vpack.c.b16 %v1415, %v1408
    %v2032 = vpack.c.b16 %v1416, %v1409
    %v2033 = vpack.c.b16 %v1417, %v1410
    %v2034 = vpack.c.b16 %v1418, %v1411
    %v2035 = vpack.c.b16 %v1419, %v1412
    %v2036 = vpack.c.b16 %v1420, %v1413
    %v2037 = vpack.c.b16 %v1421, %v1414
    %v2038 = vpack.c.b16 %v1429, %v1422
    %v2039 = vpack.c.b16 %v1430, %v1423
    %v2040 = vpack.c.b16 %v1431, %v1424
    %v2041 = vpack.c.b16 %v1432, %v1425
    %v2042 = vpack.c.b16 %v1433, %v1426
    %v2043 = vpack.c.b16 %v1434, %v1427
    %v2044 = vpack.c.b16 %v1435, %v1428
    %v2045 = vpack.c.b16 %v1443, %v1436
    %v2046 = vpack.c.b16 %v1444, %v1437
    %v2047 = vpack.c.b16 %v1445, %v1438
    %v2048 = vpack.c.b16 %v1446, %v1439
    %v2049 = vpack.c.b16 %v1447, %v1440
    %v2050 = vpack.c.b16 %v1448, %v1441
    %v2051 = vpack.c.b16 %v1449, %v1442
    %v2052 = vpack.c.b16 %v1457, %v1450
    %v2053 = vpack.c.b16 %v1458, %v1451
    %v2054 = vpack.c.b16 %v1459, %v1452
    %v2055 = vpack.c.b16 %v1460, %v1453
    %v2056 = vpack.c.b16 %v1461, %v1454
    %v2057 = vpack.c.b16 %v1462, %v1455
    %v2058 = vpack.c.b16 %v1463, %v1456
    %v2059 = vpack.c.b16 %v1471, %v1464
    %v2060 = vpack.c.b16 %v1472, %v1465
    %v2061 = vpack.c.b16 %v1473, %v1466
    %v2062 = vpack.c.b16 %v1474, %v1467
    %v2063 = vpack.c.b16 %v1475, %v1468
    %v2064 = vpack.c.b16 %v1476, %v1469
    %v2065 = vpack.c.b16 %v1477, %v1470
    %v2066 = vpack.c.b16 %v1485, %v1478
    %v2067 = vpack.c.b16 %v1486, %v1479
    %v2068 = vpack.c.b16 %v1487, %v1480
    %v2069 = vpack.c.b16 %v1488, %v1481
    %v2070 = vpack.c.b16 %v1489, %v1482
    %v2071 = vpack.c.b16 %v1490, %v1483
    %v2072 = vpack.c.b16 %v1491, %v1484
    %v2073 = vpack.c.b16 %v1499, %v1492
    %v2074 = vpack.c.b16 %v1500, %v1493
    %v2075 = vpack.c.b16 %v1501, %v1494
    %v2076 = vpack.c.b16 %v1502, %v1495
    %v2077 = vpack.c.b16 %v1503, %v1496
    %v2078 = vpack.c.b16 %v1504, %v1497
    %v2079 = vpack.c.b16 %v1505, %v1498
    %v2080 = vpack.c.b16 %v1513, %v1506
    %v2081 = vpack.c.b16 %v1514, %v1507
    %v2082 = vpack.c.b16 %v1515, %v1508
    %v2083 = vpack.c.b16 %v1516, %v1509
    %v2084 = vpack.c.b16 %v1517, %v1510
    %v2085 = vpack.c.b16 %v1518, %v1511
    %v2086 = vpack.c.b16 %v1519, %v1512
    %v2087 = vpack.c.b16 %v1527, %v1520
    %v2088 = vpack.c.b16 %v1528, %v1521
    %v2089 = vpack.c.b16 %v1529, %v1522
    %v2090 = vpack.c.b16 %v1530, %v1523
    %v2091 = vpack.c.b16 %v1531, %v1524
    %v2092 = vpack.c.b16 %v1532, %v1525
    %v2093 = vpack.c.b16 %v1533, %v1526
    %v2094 = vpack.c.b16 %v1541, %v1534
    %v2095 = vpack.c.b16 %v1542, %v1535
    %v2096 = vpack.c.b16 %v1543, %v1536
    %v2097 = vpack.c.b16 %v1544, %v1537
    %v2098 = vpack.c.b16 %v1545, %v1538
    %v2099 = vpack.c.b16 %v1546, %v1539
    %v2100 = vpack.c.b16 %v1547, %v1540
    %v2101 = vpack.c.b16 %v1555, %v1548
    %v2102 = vpack.c.b16 %v1556, %v1549
    %v2103 = vpack.c.b16 %v1557, %v1550
    %v2104 = vpack.c.b16 %v1558, %v1551
    %v2105 = vpack.c.b16 %v1559, %v1552
    %v2106 = vpack.c.b16 %v1560, %v1553
    %v2107 = vpack.c.b16 %v1561, %v1554
    %v2108 = vpack.c.b16 %v1569, %v1562
    %v2109 = vpack.c.b16 %v1570, %v1563
    %v2110 = vpack.c.b16 %v1571, %v1564
    %v2111 = vpack.c.b16 %v1572, %v1565
    %v2112 = vpack.c.b16 %v1573, %v1566
    %v2113 = vpack.c.b16 %v1574, %v1567
    %v2114 = vpack.c.b16 %v1575, %v1568
    %v2115 = vpack.c.b16 %v1583, %v1576
    %v2116 = vpack.c.b16 %v1584, %v1577
    %v2117 = vpack.c.b16 %v1585, %v1578
    %v2118 = vpack.c.b16 %v1586, %v1579
    %v2119 = vpack.c.b16 %v1587, %v1580
    %v2120 = vpack.c.b16 %v1588, %v1581
    %v2121 = vpack.c.b16 %v1589, %v1582
    %v2122 = vpack.c.b16 %v1597, %v1590
    %v2123 = vpack.c.b16 %v1598, %v1591
    %v2124 = vpack.c.b16 %v1599, %v1592
    %v2125 = vpack.c.b16 %v1600, %v1593
    %v2126 = vpack.c.b16 %v1601, %v1594
    %v2127 = vpack.c.b16 %v1602, %v1595
    %v2128 = vpack.c.b16 %v1603, %v1596
    %v2129 = vpack.c.b16 %v1611, %v1604
    %v2130 = vpack.c.b16 %v1612, %v1605
    %v2131 = vpack.c.b16 %v1613, %v1606
    %v2132 = vpack.c.b16 %v1614, %v1607
    %v2133 = vpack.c.b16 %v1615, %v1608
    %v2134 = vpack.c.b16 %v1616, %v1609
    %v2135 = vpack.c.b16 %v1617, %v1610
    %v2136 = vpack.c.b16 %v1625, %v1618
    %v2137 = vpack.c.b16 %v1626, %v1619
    %v2138 = vpack.c.b16 %v1627, %v1620
    %v2139 = vpack.c.b16 %v1628, %v1621
    %v2140 = vpack.c.b16 %v1629, %v1622
    %v2141 = vpack.c.b16 %v1630, %v1623
    %v2142 = vpack.c.b16 %v1631, %v1624
    %v2143 = vpack.c.b16 %v1639, %v1632
    %v2144 = vpack.c.b16 %v1640, %v1633
    %v2145 = vpack.c.b16 %v1641, %v1634
    %v2146 = vpack.c.b16 %v1642, %v1635
    %v2147 = vpack.c.b16 %v1643, %v1636
    %v2148 = vpack.c.b16 %v1644, %v1637
    %v2149 = vpack.c.b16 %v1645, %v1638
    %v2150 = vpack.c.b16 %v1653, %v1646
    %v2151 = vpack.c.b16 %v1654, %v1647
    %v2152 = vpack.c.b16 %v1655, %v1648
    %v2153 = vpack.c.b16 %v1656, %v1649
    %v2154 = vpack.c.b16 %v1657, %v1650
    %v2155 = vpack.c.b16 %v1658, %v1651
    %v2156 = vpack.c.b16 %v1659, %v1652
    %v2157 = vpack.c.b16 %v1667, %v1660
    %v2158 = vpack.c.b16 %v1668, %v1661
    %v2159 = vpack.c.b16 %v1669, %v1662
    %v2160 = vpack.c.b16 %v1670, %v1663
    %v2161 = vpack.c.b16 %v1671, %v1664
    %v2162 = vpack.c.b16 %v1672, %v1665
    %v2163 = vpack.c.b16 %v1673, %v1666
    %v2164 = vpack.c.b16 %v1681, %v1674
    %v2165 = vpack.c.b16 %v1682, %v1675
    %v2166 = vpack.c.b16 %v1683, %v1676
    %v2167 = vpack.c.b16 %v1684, %v1677
    %v2168 = vpack.c.b16 %v1685, %v1678
    %v2169 = vpack.c.b16 %v1686, %v1679
    %v2170 = vpack.c.b16 %v1687, %v1680
    %v2171 = vpack.c.b16 %v1695, %v1688
    %v2172 = vpack.c.b16 %v1696, %v1689
    %v2173 = vpack.c.b16 %v1697, %v1690
    %v2174 = vpack.c.b16 %v1698, %v1691
    %v2175 = vpack.c.b16 %v1699, %v1692
    %v2176 = vpack.c.b16 %v1700, %v1693
    %v2177 = vpack.c.b16 %v1701, %v1694
    %v2178 = vpack.c.b16 %v1709, %v1702
    %v2179 = vpack.c.b16 %v1710, %v1703
    %v2180 = vpack.c.b16 %v1711, %v1704
    %v2181 = vpack.c.b16 %v1712, %v1705
    %v2182 = vpack.c.b16 %v1713, %v1706
    %v2183 = vpack.c.b16 %v1714, %v1707
    %v2184 = vpack.c.b16 %v1715, %v1708
    %v2185 = vpack.c.b16 %v1723, %v1716
    %v2186 = vpack.c.b16 %v1724, %v1717
    %v2187 = vpack.c.b16 %v1725, %v1718
    %v2188 = vpack.c.b16 %v1726, %v1719
    %v2189 = vpack.c.b16 %v1727, %v1720
    %v2190 = vpack.c.b16 %v1728, %v1721
    %v2191 = vpack.c.b16 %v1729, %v1722
    %v2192 = vpack.c.b16 %v1737, %v1730
    %v2193 = vpack.c.b16 %v1738, %v1731
    %v2194 = vpack.c.b16 %v1739, %v1732
    %v2195 = vpack.c.b16 %v1740, %v1733
    %v2196 = vpack.c.b16 %v1741, %v1734
    %v2197 = vpack.c.b16 %v1742, %v1735
    %v2198 = vpack.c.b16 %v1743, %v1736
    %v2199 = vpack.c.b16 %v1751, %v1744
    %v2200 = vpack.c.b16 %v1752, %v1745
    %v2201 = vpack.c.b16 %v1753, %v1746
    %v2202 = vpack.c.b16 %v1754, %v1747
    %v2203 = vpack.c.b16 %v1755, %v1748
    %v2204 = vpack.c.b16 %v1756, %v1749
    %v2205 = vpack.c.b16 %v1757, %v1750
    %v2206 = vpack.c.b16 %v1765, %v1758
    %v2207 = vpack.c.b16 %v1766, %v1759
    %v2208 = vpack.c.b16 %v1767, %v1760
    %v2209 = vpack.c.b16 %v1768, %v1761
    %v2210 = vpack.c.b16 %v1769, %v1762
    %v2211 = vpack.c.b16 %v1770, %v1763
    %v2212 = vpack.c.b16 %v1771, %v1764
    %v2213 = vpack.c.b16 %v1779, %v1772
    %v2214 = vpack.c.b16 %v1780, %v1773
    %v2215 = vpack.c.b16 %v1781, %v1774
    %v2216 = vpack.c.b16 %v1782, %v1775
    %v2217 = vpack.c.b16 %v1783, %v1776
    %v2218 = vpack.c.b16 %v1784, %v1777
    %v2219 = vpack.c.b16 %v1785, %v1778
    %v2220 = vpack.c.b16 %v1793, %v1786
    %v2221 = vpack.c.b16 %v1794, %v1787
    %v2222 = vpack.c.b16 %v1795, %v1788
    %v2223 = vpack.c.b16 %v1796, %v1789
    %v2224 = vpack.c.b16 %v1797, %v1790
    %v2225 = vpack.c.b16 %v1798, %v1791
    %v2226 = vpack.c.b16 %v1799, %v1792
    %v2227 = vpack.c.b16 %v1807, %v1800
    %v2228 = vpack.c.b16 %v1808, %v1801
    %v2229 = vpack.c.b16 %v1809, %v1802
    %v2230 = vpack.c.b16 %v1810, %v1803
    %v2231 = vpack.c.b16 %v1811, %v1804
    %v2232 = vpack.c.b16 %v1812, %v1805
    %v2233 = vpack.c.b16 %v1813, %v1806
    %v2234 = vpack.c.b16 %v1821, %v1814
    %v2235 = vpack.c.b16 %v1822, %v1815
    %v2236 = vpack.c.b16 %v1823, %v1816
    %v2237 = vpack.c.b16 %v1824, %v1817
    %v2238 = vpack.c.b16 %v1825, %v1818
    %v2239 = vpack.c.b16 %v1826, %v1819
    %v2240 = vpack.c.b16 %v1827, %v1820
    %v2241 = vpack.c.b16 %v1835, %v1828
    %v2242 = vpack.c.b16 %v1836, %v1829
    %v2243 = vpack.c.b16 %v1837, %v1830
    %v2244 = vpack.c.b16 %v1838, %v1831
    %v2245 = vpack.c.b16 %v1839, %v1832
    %v2246 = vpack.c.b16 %v1840, %v1833
    %v2247 = vpack.c.b16 %v1841, %v1834
    %v2248 = vpack.c.b16 %v1849, %v1842
    %v2249 = vpack.c.b16 %v1850, %v1843
    %v2250 = vpack.c.b16 %v1851, %v1844
    %v2251 = vpack.c.b16 %v1852, %v1845
    %v2252 = vpack.c.b16 %v1853, %v1846
    %v2253 = vpack.c.b16 %v1854, %v1847
    %v2254 = vpack.c.b16 %v1855, %v1848
    %v2255 = vpack.c.b16 %v1863, %v1856
    %v2256 = vpack.c.b16 %v1864, %v1857
    %v2257 = vpack.c.b16 %v1865, %v1858
    %v2258 = vpack.c.b16 %v1866, %v1859
    %v2259 = vpack.c.b16 %v1867, %v1860
    %v2260 = vpack.c.b16 %v1868, %v1861
    %v2261 = vpack.c.b16 %v1869, %v1862
    %2654 = vmatpush.bf16.msra.mxu0 %v1919
    %2655 = vmatpush.bf16.msra.mxu0 %v1912
    %2656 = vmatpush.bf16.msra.mxu0 %v1905
    %2657 = vmatpush.bf16.msra.mxu0 %v1898
    %2658 = vmatpush.bf16.msra.mxu0 %v1891
    %2659 = vmatpush.bf16.msra.mxu0 %v1884
    %2660 = vmatpush.bf16.msra.mxu0 %v1877
    %2661 = vmatpush.bf16.msra.mxu0 %v1870
    %2662 = vmatmul.bf16.gmra.mxu0 %v624
    %v2663 = vpop.f32.mrf.mxu0
    %v2664 = vadd.f32 %v588, %v2663
    %v2665 = vpop.f32.mrf.mxu0
    %v2666 = vadd.f32 %v588, %v2665
    %2667 = vdwg.mxu0
    %2668 = vmatpush.bf16.msra.mxu0 %v1975
    %2669 = vmatpush.bf16.msra.mxu0 %v1968
    %2670 = vmatpush.bf16.msra.mxu0 %v1961
    %2671 = vmatpush.bf16.msra.mxu0 %v1954
    %2672 = vmatpush.bf16.msra.mxu0 %v1947
    %2673 = vmatpush.bf16.msra.mxu0 %v1940
    %2674 = vmatpush.bf16.msra.mxu0 %v1933
    %2675 = vmatpush.bf16.msra.mxu0 %v1926
    %2676 = vmatmul.bf16.gmra.mxu0 %v625
    %v2677 = vpop.f32.mrf.mxu0
    %v2678 = vadd.f32 %v2664, %v2677
    %v2679 = vpop.f32.mrf.mxu0
    %v2680 = vadd.f32 %v2666, %v2679
    %2681 = vdwg.mxu0
    %2682 = vmatpush.bf16.msra.mxu0 %v2031
    %2683 = vmatpush.bf16.msra.mxu0 %v2024
    %2684 = vmatpush.bf16.msra.mxu0 %v2017
    %2685 = vmatpush.bf16.msra.mxu0 %v2010
    %2686 = vmatpush.bf16.msra.mxu0 %v2003
    %2687 = vmatpush.bf16.msra.mxu0 %v1996
    %2688 = vmatpush.bf16.msra.mxu0 %v1989
    %2689 = vmatpush.bf16.msra.mxu0 %v1982
    %2690 = vmatmul.bf16.gmra.mxu0 %v626
    %v2691 = vpop.f32.mrf.mxu0
    %v2692 = vadd.f32 %v2678, %v2691
    %v2693 = vpop.f32.mrf.mxu0
    %v2694 = vadd.f32 %v2680, %v2693
    %2695 = vdwg.mxu0
    %2696 = vmatpush.bf16.msra.mxu0 %v2087
    %2697 = vmatpush.bf16.msra.mxu0 %v2080
    %2698 = vmatpush.bf16.msra.mxu0 %v2073
    %2699 = vmatpush.bf16.msra.mxu0 %v2066
    %2700 = vmatpush.bf16.msra.mxu0 %v2059
    %2701 = vmatpush.bf16.msra.mxu0 %v2052
    %2702 = vmatpush.bf16.msra.mxu0 %v2045
    %2703 = vmatpush.bf16.msra.mxu0 %v2038
    %2704 = vmatmul.bf16.gmra.mxu0 %v627
    %v2705 = vpop.f32.mrf.mxu0
    %v2706 = vadd.f32 %v2692, %v2705
    %v2707 = vpop.f32.mrf.mxu0
    %v2708 = vadd.f32 %v2694, %v2707
    %2709 = vdwg.mxu0
    %2710 = vmatpush.bf16.msra.mxu0 %v2143
    %2711 = vmatpush.bf16.msra.mxu0 %v2136
    %2712 = vmatpush.bf16.msra.mxu0 %v2129
    %2713 = vmatpush.bf16.msra.mxu0 %v2122
    %2714 = vmatpush.bf16.msra.mxu0 %v2115
    %2715 = vmatpush.bf16.msra.mxu0 %v2108
    %2716 = vmatpush.bf16.msra.mxu0 %v2101
    %2717 = vmatpush.bf16.msra.mxu0 %v2094
    %2718 = vmatmul.bf16.gmra.mxu0 %v628
    %v2719 = vpop.f32.mrf.mxu0
    %v2720 = vadd.f32 %v2706, %v2719
    %v2721 = vpop.f32.mrf.mxu0
    %v2722 = vadd.f32 %v2708, %v2721
    %2723 = vdwg.mxu0
    %2724 = vmatpush.bf16.msra.mxu0 %v2199
    %2725 = vmatpush.bf16.msra.mxu0 %v2192
    %2726 = vmatpush.bf16.msra.mxu0 %v2185
    %2727 = vmatpush.bf16.msra.mxu0 %v2178
    %2728 = vmatpush.bf16.msra.mxu0 %v2171
    %2729 = vmatpush.bf16.msra.mxu0 %v2164
    %2730 = vmatpush.bf16.msra.mxu0 %v2157
    %2731 = vmatpush.bf16.msra.mxu0 %v2150
    %2732 = vmatmul.bf16.gmra.mxu0 %v629
    %v2733 = vpop.f32.mrf.mxu0
    %v2734 = vadd.f32 %v2720, %v2733
    %v2735 = vpop.f32.mrf.mxu0
    %v2736 = vadd.f32 %v2722, %v2735
    %2737 = vdwg.mxu0
    %2738 = vmatpush.bf16.msra.mxu0 %v2255
    %2739 = vmatpush.bf16.msra.mxu0 %v2248
    %2740 = vmatpush.bf16.msra.mxu0 %v2241
    %2741 = vmatpush.bf16.msra.mxu0 %v2234
    %2742 = vmatpush.bf16.msra.mxu0 %v2227
    %2743 = vmatpush.bf16.msra.mxu0 %v2220
    %2744 = vmatpush.bf16.msra.mxu0 %v2213
    %2745 = vmatpush.bf16.msra.mxu0 %v2206
    %2746 = vmatmul.bf16.gmra.mxu0 %v630
    %v2747 = vpop.f32.mrf.mxu0
    %v2748 = vadd.f32 %v2734, %v2747
    %v2749 = vpop.f32.mrf.mxu0
    %v2750 = vadd.f32 %v2736, %v2749
    %2751 = vdwg.mxu0
    %2752 = vmatpush.bf16.msra.mxu0 %v1920
    %2753 = vmatpush.bf16.msra.mxu0 %v1913
    %2754 = vmatpush.bf16.msra.mxu0 %v1906
    %2755 = vmatpush.bf16.msra.mxu0 %v1899
    %2756 = vmatpush.bf16.msra.mxu0 %v1892
    %2757 = vmatpush.bf16.msra.mxu0 %v1885
    %2758 = vmatpush.bf16.msra.mxu0 %v1878
    %2759 = vmatpush.bf16.msra.mxu0 %v1871
    %2760 = vmatmul.bf16.gmra.mxu0 %v624
    %v2761 = vpop.f32.mrf.mxu0
    %v2762 = vadd.f32 %v589, %v2761
    %v2763 = vpop.f32.mrf.mxu0
    %v2764 = vadd.f32 %v589, %v2763
    %2765 = vdwg.mxu0
    %2766 = vmatpush.bf16.msra.mxu0 %v1976
    %2767 = vmatpush.bf16.msra.mxu0 %v1969
    %2768 = vmatpush.bf16.msra.mxu0 %v1962
    %2769 = vmatpush.bf16.msra.mxu0 %v1955
    %2770 = vmatpush.bf16.msra.mxu0 %v1948
    %2771 = vmatpush.bf16.msra.mxu0 %v1941
    %2772 = vmatpush.bf16.msra.mxu0 %v1934
    %2773 = vmatpush.bf16.msra.mxu0 %v1927
    %2774 = vmatmul.bf16.gmra.mxu0 %v625
    %v2775 = vpop.f32.mrf.mxu0
    %v2776 = vadd.f32 %v2762, %v2775
    %v2777 = vpop.f32.mrf.mxu0
    %v2778 = vadd.f32 %v2764, %v2777
    %2779 = vdwg.mxu0
    %2780 = vmatpush.bf16.msra.mxu0 %v2032
    %2781 = vmatpush.bf16.msra.mxu0 %v2025
    %2782 = vmatpush.bf16.msra.mxu0 %v2018
    %2783 = vmatpush.bf16.msra.mxu0 %v2011
    %2784 = vmatpush.bf16.msra.mxu0 %v2004
    %2785 = vmatpush.bf16.msra.mxu0 %v1997
    %2786 = vmatpush.bf16.msra.mxu0 %v1990
    %2787 = vmatpush.bf16.msra.mxu0 %v1983
    %2788 = vmatmul.bf16.gmra.mxu0 %v626
    %v2789 = vpop.f32.mrf.mxu0
    %v2790 = vadd.f32 %v2776, %v2789
    %v2791 = vpop.f32.mrf.mxu0
    %v2792 = vadd.f32 %v2778, %v2791
    %2793 = vdwg.mxu0
    %2794 = vmatpush.bf16.msra.mxu0 %v2088
    %2795 = vmatpush.bf16.msra.mxu0 %v2081
    %2796 = vmatpush.bf16.msra.mxu0 %v2074
    %2797 = vmatpush.bf16.msra.mxu0 %v2067
    %2798 = vmatpush.bf16.msra.mxu0 %v2060
    %2799 = vmatpush.bf16.msra.mxu0 %v2053
    %2800 = vmatpush.bf16.msra.mxu0 %v2046
    %2801 = vmatpush.bf16.msra.mxu0 %v2039
    %2802 = vmatmul.bf16.gmra.mxu0 %v627
    %v2803 = vpop.f32.mrf.mxu0
    %v2804 = vadd.f32 %v2790, %v2803
    %v2805 = vpop.f32.mrf.mxu0
    %v2806 = vadd.f32 %v2792, %v2805
    %2807 = vdwg.mxu0
    %2808 = vmatpush.bf16.msra.mxu0 %v2144
    %2809 = vmatpush.bf16.msra.mxu0 %v2137
    %2810 = vmatpush.bf16.msra.mxu0 %v2130
    %2811 = vmatpush.bf16.msra.mxu0 %v2123
    %2812 = vmatpush.bf16.msra.mxu0 %v2116
    %2813 = vmatpush.bf16.msra.mxu0 %v2109
    %2814 = vmatpush.bf16.msra.mxu0 %v2102
    %2815 = vmatpush.bf16.msra.mxu0 %v2095
    %2816 = vmatmul.bf16.gmra.mxu0 %v628
    %v2817 = vpop.f32.mrf.mxu0
    %v2818 = vadd.f32 %v2804, %v2817
    %v2819 = vpop.f32.mrf.mxu0
    %v2820 = vadd.f32 %v2806, %v2819
    %2821 = vdwg.mxu0
    %2822 = vmatpush.bf16.msra.mxu0 %v2200
    %2823 = vmatpush.bf16.msra.mxu0 %v2193
    %2824 = vmatpush.bf16.msra.mxu0 %v2186
    %2825 = vmatpush.bf16.msra.mxu0 %v2179
    %2826 = vmatpush.bf16.msra.mxu0 %v2172
    %2827 = vmatpush.bf16.msra.mxu0 %v2165
    %2828 = vmatpush.bf16.msra.mxu0 %v2158
    %2829 = vmatpush.bf16.msra.mxu0 %v2151
    %2830 = vmatmul.bf16.gmra.mxu0 %v629
    %v2831 = vpop.f32.mrf.mxu0
    %v2832 = vadd.f32 %v2818, %v2831
    %v2833 = vpop.f32.mrf.mxu0
    %v2834 = vadd.f32 %v2820, %v2833
    %2835 = vdwg.mxu0
    %2836 = vmatpush.bf16.msra.mxu0 %v2256
    %2837 = vmatpush.bf16.msra.mxu0 %v2249
    %2838 = vmatpush.bf16.msra.mxu0 %v2242
    %2839 = vmatpush.bf16.msra.mxu0 %v2235
    %2840 = vmatpush.bf16.msra.mxu0 %v2228
    %2841 = vmatpush.bf16.msra.mxu0 %v2221
    %2842 = vmatpush.bf16.msra.mxu0 %v2214
    %2843 = vmatpush.bf16.msra.mxu0 %v2207
    %2844 = vmatmul.bf16.gmra.mxu0 %v630
    %v2845 = vpop.f32.mrf.mxu0
    %v2846 = vadd.f32 %v2832, %v2845
    %v2847 = vpop.f32.mrf.mxu0
    %v2848 = vadd.f32 %v2834, %v2847
    %2849 = vdwg.mxu0
    %2850 = vmatpush.bf16.msra.mxu0 %v1921
    %2851 = vmatpush.bf16.msra.mxu0 %v1914
    %2852 = vmatpush.bf16.msra.mxu0 %v1907
    %2853 = vmatpush.bf16.msra.mxu0 %v1900
    %2854 = vmatpush.bf16.msra.mxu0 %v1893
    %2855 = vmatpush.bf16.msra.mxu0 %v1886
    %2856 = vmatpush.bf16.msra.mxu0 %v1879
    %2857 = vmatpush.bf16.msra.mxu0 %v1872
    %2858 = vmatmul.bf16.gmra.mxu0 %v624
    %v2859 = vpop.f32.mrf.mxu0
    %v2860 = vadd.f32 %v590, %v2859
    %v2861 = vpop.f32.mrf.mxu0
    %v2862 = vadd.f32 %v590, %v2861
    %2863 = vdwg.mxu0
    %2864 = vmatpush.bf16.msra.mxu0 %v1977
    %2865 = vmatpush.bf16.msra.mxu0 %v1970
    %2866 = vmatpush.bf16.msra.mxu0 %v1963
    %2867 = vmatpush.bf16.msra.mxu0 %v1956
    %2868 = vmatpush.bf16.msra.mxu0 %v1949
    %2869 = vmatpush.bf16.msra.mxu0 %v1942
    %2870 = vmatpush.bf16.msra.mxu0 %v1935
    %2871 = vmatpush.bf16.msra.mxu0 %v1928
    %2872 = vmatmul.bf16.gmra.mxu0 %v625
    %v2873 = vpop.f32.mrf.mxu0
    %v2874 = vadd.f32 %v2860, %v2873
    %v2875 = vpop.f32.mrf.mxu0
    %v2876 = vadd.f32 %v2862, %v2875
    %2877 = vdwg.mxu0
    %2878 = vmatpush.bf16.msra.mxu0 %v2033
    %2879 = vmatpush.bf16.msra.mxu0 %v2026
    %2880 = vmatpush.bf16.msra.mxu0 %v2019
    %2881 = vmatpush.bf16.msra.mxu0 %v2012
    %2882 = vmatpush.bf16.msra.mxu0 %v2005
    %2883 = vmatpush.bf16.msra.mxu0 %v1998
    %2884 = vmatpush.bf16.msra.mxu0 %v1991
    %2885 = vmatpush.bf16.msra.mxu0 %v1984
    %2886 = vmatmul.bf16.gmra.mxu0 %v626
    %v2887 = vpop.f32.mrf.mxu0
    %v2888 = vadd.f32 %v2874, %v2887
    %v2889 = vpop.f32.mrf.mxu0
    %v2890 = vadd.f32 %v2876, %v2889
    %2891 = vdwg.mxu0
    %2892 = vmatpush.bf16.msra.mxu0 %v2089
    %2893 = vmatpush.bf16.msra.mxu0 %v2082
    %2894 = vmatpush.bf16.msra.mxu0 %v2075
    %2895 = vmatpush.bf16.msra.mxu0 %v2068
    %2896 = vmatpush.bf16.msra.mxu0 %v2061
    %2897 = vmatpush.bf16.msra.mxu0 %v2054
    %2898 = vmatpush.bf16.msra.mxu0 %v2047
    %2899 = vmatpush.bf16.msra.mxu0 %v2040
    %2900 = vmatmul.bf16.gmra.mxu0 %v627
    %v2901 = vpop.f32.mrf.mxu0
    %v2902 = vadd.f32 %v2888, %v2901
    %v2903 = vpop.f32.mrf.mxu0
    %v2904 = vadd.f32 %v2890, %v2903
    %2905 = vdwg.mxu0
    %2906 = vmatpush.bf16.msra.mxu0 %v2145
    %2907 = vmatpush.bf16.msra.mxu0 %v2138
    %2908 = vmatpush.bf16.msra.mxu0 %v2131
    %2909 = vmatpush.bf16.msra.mxu0 %v2124
    %2910 = vmatpush.bf16.msra.mxu0 %v2117
    %2911 = vmatpush.bf16.msra.mxu0 %v2110
    %2912 = vmatpush.bf16.msra.mxu0 %v2103
    %2913 = vmatpush.bf16.msra.mxu0 %v2096
    %2914 = vmatmul.bf16.gmra.mxu0 %v628
    %v2915 = vpop.f32.mrf.mxu0
    %v2916 = vadd.f32 %v2902, %v2915
    %v2917 = vpop.f32.mrf.mxu0
    %v2918 = vadd.f32 %v2904, %v2917
    %2919 = vdwg.mxu0
    %2920 = vmatpush.bf16.msra.mxu0 %v2201
    %2921 = vmatpush.bf16.msra.mxu0 %v2194
    %2922 = vmatpush.bf16.msra.mxu0 %v2187
    %2923 = vmatpush.bf16.msra.mxu0 %v2180
    %2924 = vmatpush.bf16.msra.mxu0 %v2173
    %2925 = vmatpush.bf16.msra.mxu0 %v2166
    %2926 = vmatpush.bf16.msra.mxu0 %v2159
    %2927 = vmatpush.bf16.msra.mxu0 %v2152
    %2928 = vmatmul.bf16.gmra.mxu0 %v629
    %v2929 = vpop.f32.mrf.mxu0
    %v2930 = vadd.f32 %v2916, %v2929
    %v2931 = vpop.f32.mrf.mxu0
    %v2932 = vadd.f32 %v2918, %v2931
    %2933 = vdwg.mxu0
    %2934 = vmatpush.bf16.msra.mxu0 %v2257
    %2935 = vmatpush.bf16.msra.mxu0 %v2250
    %2936 = vmatpush.bf16.msra.mxu0 %v2243
    %2937 = vmatpush.bf16.msra.mxu0 %v2236
    %2938 = vmatpush.bf16.msra.mxu0 %v2229
    %2939 = vmatpush.bf16.msra.mxu0 %v2222
    %2940 = vmatpush.bf16.msra.mxu0 %v2215
    %2941 = vmatpush.bf16.msra.mxu0 %v2208
    %2942 = vmatmul.bf16.gmra.mxu0 %v630
    %v2943 = vpop.f32.mrf.mxu0
    %v2944 = vadd.f32 %v2930, %v2943
    %v2945 = vpop.f32.mrf.mxu0
    %v2946 = vadd.f32 %v2932, %v2945
    %2947 = vdwg.mxu0
    %2948 = vmatpush.bf16.msra.mxu0 %v1922
    %2949 = vmatpush.bf16.msra.mxu0 %v1915
    %2950 = vmatpush.bf16.msra.mxu0 %v1908
    %2951 = vmatpush.bf16.msra.mxu0 %v1901
    %2952 = vmatpush.bf16.msra.mxu0 %v1894
    %2953 = vmatpush.bf16.msra.mxu0 %v1887
    %2954 = vmatpush.bf16.msra.mxu0 %v1880
    %2955 = vmatpush.bf16.msra.mxu0 %v1873
    %2956 = vmatmul.bf16.gmra.mxu0 %v624
    %v2957 = vpop.f32.mrf.mxu0
    %v2958 = vadd.f32 %v591, %v2957
    %v2959 = vpop.f32.mrf.mxu0
    %v2960 = vadd.f32 %v591, %v2959
    %2961 = vdwg.mxu0
    %2962 = vmatpush.bf16.msra.mxu0 %v1978
    %2963 = vmatpush.bf16.msra.mxu0 %v1971
    %2964 = vmatpush.bf16.msra.mxu0 %v1964
    %2965 = vmatpush.bf16.msra.mxu0 %v1957
    %2966 = vmatpush.bf16.msra.mxu0 %v1950
    %2967 = vmatpush.bf16.msra.mxu0 %v1943
    %2968 = vmatpush.bf16.msra.mxu0 %v1936
    %2969 = vmatpush.bf16.msra.mxu0 %v1929
    %2970 = vmatmul.bf16.gmra.mxu0 %v625
    %v2971 = vpop.f32.mrf.mxu0
    %v2972 = vadd.f32 %v2958, %v2971
    %v2973 = vpop.f32.mrf.mxu0
    %v2974 = vadd.f32 %v2960, %v2973
    %2975 = vdwg.mxu0
    %2976 = vmatpush.bf16.msra.mxu0 %v2034
    %2977 = vmatpush.bf16.msra.mxu0 %v2027
    %2978 = vmatpush.bf16.msra.mxu0 %v2020
    %2979 = vmatpush.bf16.msra.mxu0 %v2013
    %2980 = vmatpush.bf16.msra.mxu0 %v2006
    %2981 = vmatpush.bf16.msra.mxu0 %v1999
    %2982 = vmatpush.bf16.msra.mxu0 %v1992
    %2983 = vmatpush.bf16.msra.mxu0 %v1985
    %2984 = vmatmul.bf16.gmra.mxu0 %v626
    %v2985 = vpop.f32.mrf.mxu0
    %v2986 = vadd.f32 %v2972, %v2985
    %v2987 = vpop.f32.mrf.mxu0
    %v2988 = vadd.f32 %v2974, %v2987
    %2989 = vdwg.mxu0
    %2990 = vmatpush.bf16.msra.mxu0 %v2090
    %2991 = vmatpush.bf16.msra.mxu0 %v2083
    %2992 = vmatpush.bf16.msra.mxu0 %v2076
    %2993 = vmatpush.bf16.msra.mxu0 %v2069
    %2994 = vmatpush.bf16.msra.mxu0 %v2062
    %2995 = vmatpush.bf16.msra.mxu0 %v2055
    %2996 = vmatpush.bf16.msra.mxu0 %v2048
    %2997 = vmatpush.bf16.msra.mxu0 %v2041
    %2998 = vmatmul.bf16.gmra.mxu0 %v627
    %v2999 = vpop.f32.mrf.mxu0
    %v3000 = vadd.f32 %v2986, %v2999
    %v3001 = vpop.f32.mrf.mxu0
    %v3002 = vadd.f32 %v2988, %v3001
    %3003 = vdwg.mxu0
    %3004 = vmatpush.bf16.msra.mxu0 %v2146
    %3005 = vmatpush.bf16.msra.mxu0 %v2139
    %3006 = vmatpush.bf16.msra.mxu0 %v2132
    %3007 = vmatpush.bf16.msra.mxu0 %v2125
    %3008 = vmatpush.bf16.msra.mxu0 %v2118
    %3009 = vmatpush.bf16.msra.mxu0 %v2111
    %3010 = vmatpush.bf16.msra.mxu0 %v2104
    %3011 = vmatpush.bf16.msra.mxu0 %v2097
    %3012 = vmatmul.bf16.gmra.mxu0 %v628
    %v3013 = vpop.f32.mrf.mxu0
    %v3014 = vadd.f32 %v3000, %v3013
    %v3015 = vpop.f32.mrf.mxu0
    %v3016 = vadd.f32 %v3002, %v3015
    %3017 = vdwg.mxu0
    %3018 = vmatpush.bf16.msra.mxu0 %v2202
    %3019 = vmatpush.bf16.msra.mxu0 %v2195
    %3020 = vmatpush.bf16.msra.mxu0 %v2188
    %3021 = vmatpush.bf16.msra.mxu0 %v2181
    %3022 = vmatpush.bf16.msra.mxu0 %v2174
    %3023 = vmatpush.bf16.msra.mxu0 %v2167
    %3024 = vmatpush.bf16.msra.mxu0 %v2160
    %3025 = vmatpush.bf16.msra.mxu0 %v2153
    %3026 = vmatmul.bf16.gmra.mxu0 %v629
    %v3027 = vpop.f32.mrf.mxu0
    %v3028 = vadd.f32 %v3014, %v3027
    %v3029 = vpop.f32.mrf.mxu0
    %v3030 = vadd.f32 %v3016, %v3029
    %3031 = vdwg.mxu0
    %3032 = vmatpush.bf16.msra.mxu0 %v2258
    %3033 = vmatpush.bf16.msra.mxu0 %v2251
    %3034 = vmatpush.bf16.msra.mxu0 %v2244
    %3035 = vmatpush.bf16.msra.mxu0 %v2237
    %3036 = vmatpush.bf16.msra.mxu0 %v2230
    %3037 = vmatpush.bf16.msra.mxu0 %v2223
    %3038 = vmatpush.bf16.msra.mxu0 %v2216
    %3039 = vmatpush.bf16.msra.mxu0 %v2209
    %3040 = vmatmul.bf16.gmra.mxu0 %v630
    %v3041 = vpop.f32.mrf.mxu0
    %v3042 = vadd.f32 %v3028, %v3041
    %v3043 = vpop.f32.mrf.mxu0
    %v3044 = vadd.f32 %v3030, %v3043
    %3045 = vdwg.mxu0
    %3046 = vmatpush.bf16.msra.mxu0 %v1923
    %3047 = vmatpush.bf16.msra.mxu0 %v1916
    %3048 = vmatpush.bf16.msra.mxu0 %v1909
    %3049 = vmatpush.bf16.msra.mxu0 %v1902
    %3050 = vmatpush.bf16.msra.mxu0 %v1895
    %3051 = vmatpush.bf16.msra.mxu0 %v1888
    %3052 = vmatpush.bf16.msra.mxu0 %v1881
    %3053 = vmatpush.bf16.msra.mxu0 %v1874
    %3054 = vmatmul.bf16.gmra.mxu0 %v624
    %v3055 = vpop.f32.mrf.mxu0
    %v3056 = vadd.f32 %v592, %v3055
    %v3057 = vpop.f32.mrf.mxu0
    %v3058 = vadd.f32 %v592, %v3057
    %3059 = vdwg.mxu0
    %3060 = vmatpush.bf16.msra.mxu0 %v1979
    %3061 = vmatpush.bf16.msra.mxu0 %v1972
    %3062 = vmatpush.bf16.msra.mxu0 %v1965
    %3063 = vmatpush.bf16.msra.mxu0 %v1958
    %3064 = vmatpush.bf16.msra.mxu0 %v1951
    %3065 = vmatpush.bf16.msra.mxu0 %v1944
    %3066 = vmatpush.bf16.msra.mxu0 %v1937
    %3067 = vmatpush.bf16.msra.mxu0 %v1930
    %3068 = vmatmul.bf16.gmra.mxu0 %v625
    %v3069 = vpop.f32.mrf.mxu0
    %v3070 = vadd.f32 %v3056, %v3069
    %v3071 = vpop.f32.mrf.mxu0
    %v3072 = vadd.f32 %v3058, %v3071
    %3073 = vdwg.mxu0
    %3074 = vmatpush.bf16.msra.mxu0 %v2035
    %3075 = vmatpush.bf16.msra.mxu0 %v2028
    %3076 = vmatpush.bf16.msra.mxu0 %v2021
    %3077 = vmatpush.bf16.msra.mxu0 %v2014
    %3078 = vmatpush.bf16.msra.mxu0 %v2007
    %3079 = vmatpush.bf16.msra.mxu0 %v2000
    %3080 = vmatpush.bf16.msra.mxu0 %v1993
    %3081 = vmatpush.bf16.msra.mxu0 %v1986
    %3082 = vmatmul.bf16.gmra.mxu0 %v626
    %v3083 = vpop.f32.mrf.mxu0
    %v3084 = vadd.f32 %v3070, %v3083
    %v3085 = vpop.f32.mrf.mxu0
    %v3086 = vadd.f32 %v3072, %v3085
    %3087 = vdwg.mxu0
    %3088 = vmatpush.bf16.msra.mxu0 %v2091
    %3089 = vmatpush.bf16.msra.mxu0 %v2084
    %3090 = vmatpush.bf16.msra.mxu0 %v2077
    %3091 = vmatpush.bf16.msra.mxu0 %v2070
    %3092 = vmatpush.bf16.msra.mxu0 %v2063
    %3093 = vmatpush.bf16.msra.mxu0 %v2056
    %3094 = vmatpush.bf16.msra.mxu0 %v2049
    %3095 = vmatpush.bf16.msra.mxu0 %v2042
    %3096 = vmatmul.bf16.gmra.mxu0 %v627
    %v3097 = vpop.f32.mrf.mxu0
    %v3098 = vadd.f32 %v3084, %v3097
    %v3099 = vpop.f32.mrf.mxu0
    %v3100 = vadd.f32 %v3086, %v3099
    %3101 = vdwg.mxu0
    %3102 = vmatpush.bf16.msra.mxu0 %v2147
    %3103 = vmatpush.bf16.msra.mxu0 %v2140
    %3104 = vmatpush.bf16.msra.mxu0 %v2133
    %3105 = vmatpush.bf16.msra.mxu0 %v2126
    %3106 = vmatpush.bf16.msra.mxu0 %v2119
    %3107 = vmatpush.bf16.msra.mxu0 %v2112
    %3108 = vmatpush.bf16.msra.mxu0 %v2105
    %3109 = vmatpush.bf16.msra.mxu0 %v2098
    %3110 = vmatmul.bf16.gmra.mxu0 %v628
    %v3111 = vpop.f32.mrf.mxu0
    %v3112 = vadd.f32 %v3098, %v3111
    %v3113 = vpop.f32.mrf.mxu0
    %v3114 = vadd.f32 %v3100, %v3113
    %3115 = vdwg.mxu0
    %3116 = vmatpush.bf16.msra.mxu0 %v2203
    %3117 = vmatpush.bf16.msra.mxu0 %v2196
    %3118 = vmatpush.bf16.msra.mxu0 %v2189
    %3119 = vmatpush.bf16.msra.mxu0 %v2182
    %3120 = vmatpush.bf16.msra.mxu0 %v2175
    %3121 = vmatpush.bf16.msra.mxu0 %v2168
    %3122 = vmatpush.bf16.msra.mxu0 %v2161
    %3123 = vmatpush.bf16.msra.mxu0 %v2154
    %3124 = vmatmul.bf16.gmra.mxu0 %v629
    %v3125 = vpop.f32.mrf.mxu0
    %v3126 = vadd.f32 %v3112, %v3125
    %v3127 = vpop.f32.mrf.mxu0
    %v3128 = vadd.f32 %v3114, %v3127
    %3129 = vdwg.mxu0
    %3130 = vmatpush.bf16.msra.mxu0 %v2259
    %3131 = vmatpush.bf16.msra.mxu0 %v2252
    %3132 = vmatpush.bf16.msra.mxu0 %v2245
    %3133 = vmatpush.bf16.msra.mxu0 %v2238
    %3134 = vmatpush.bf16.msra.mxu0 %v2231
    %3135 = vmatpush.bf16.msra.mxu0 %v2224
    %3136 = vmatpush.bf16.msra.mxu0 %v2217
    %3137 = vmatpush.bf16.msra.mxu0 %v2210
    %3138 = vmatmul.bf16.gmra.mxu0 %v630
    %v3139 = vpop.f32.mrf.mxu0
    %v3140 = vadd.f32 %v3126, %v3139
    %v3141 = vpop.f32.mrf.mxu0
    %v3142 = vadd.f32 %v3128, %v3141
    %3143 = vdwg.mxu0
    %3144 = vmatpush.bf16.msra.mxu0 %v1924
    %3145 = vmatpush.bf16.msra.mxu0 %v1917
    %3146 = vmatpush.bf16.msra.mxu0 %v1910
    %3147 = vmatpush.bf16.msra.mxu0 %v1903
    %3148 = vmatpush.bf16.msra.mxu0 %v1896
    %3149 = vmatpush.bf16.msra.mxu0 %v1889
    %3150 = vmatpush.bf16.msra.mxu0 %v1882
    %3151 = vmatpush.bf16.msra.mxu0 %v1875
    %3152 = vmatmul.bf16.gmra.mxu0 %v624
    %v3153 = vpop.f32.mrf.mxu0
    %v3154 = vadd.f32 %v593, %v3153
    %v3155 = vpop.f32.mrf.mxu0
    %v3156 = vadd.f32 %v593, %v3155
    %3157 = vdwg.mxu0
    %3158 = vmatpush.bf16.msra.mxu0 %v1980
    %3159 = vmatpush.bf16.msra.mxu0 %v1973
    %3160 = vmatpush.bf16.msra.mxu0 %v1966
    %3161 = vmatpush.bf16.msra.mxu0 %v1959
    %3162 = vmatpush.bf16.msra.mxu0 %v1952
    %3163 = vmatpush.bf16.msra.mxu0 %v1945
    %3164 = vmatpush.bf16.msra.mxu0 %v1938
    %3165 = vmatpush.bf16.msra.mxu0 %v1931
    %3166 = vmatmul.bf16.gmra.mxu0 %v625
    %v3167 = vpop.f32.mrf.mxu0
    %v3168 = vadd.f32 %v3154, %v3167
    %v3169 = vpop.f32.mrf.mxu0
    %v3170 = vadd.f32 %v3156, %v3169
    %3171 = vdwg.mxu0
    %3172 = vmatpush.bf16.msra.mxu0 %v2036
    %3173 = vmatpush.bf16.msra.mxu0 %v2029
    %3174 = vmatpush.bf16.msra.mxu0 %v2022
    %3175 = vmatpush.bf16.msra.mxu0 %v2015
    %3176 = vmatpush.bf16.msra.mxu0 %v2008
    %3177 = vmatpush.bf16.msra.mxu0 %v2001
    %3178 = vmatpush.bf16.msra.mxu0 %v1994
    %3179 = vmatpush.bf16.msra.mxu0 %v1987
    %3180 = vmatmul.bf16.gmra.mxu0 %v626
    %v3181 = vpop.f32.mrf.mxu0
    %v3182 = vadd.f32 %v3168, %v3181
    %v3183 = vpop.f32.mrf.mxu0
    %v3184 = vadd.f32 %v3170, %v3183
    %3185 = vdwg.mxu0
    %3186 = vmatpush.bf16.msra.mxu0 %v2092
    %3187 = vmatpush.bf16.msra.mxu0 %v2085
    %3188 = vmatpush.bf16.msra.mxu0 %v2078
    %3189 = vmatpush.bf16.msra.mxu0 %v2071
    %3190 = vmatpush.bf16.msra.mxu0 %v2064
    %3191 = vmatpush.bf16.msra.mxu0 %v2057
    %3192 = vmatpush.bf16.msra.mxu0 %v2050
    %3193 = vmatpush.bf16.msra.mxu0 %v2043
    %3194 = vmatmul.bf16.gmra.mxu0 %v627
    %v3195 = vpop.f32.mrf.mxu0
    %v3196 = vadd.f32 %v3182, %v3195
    %v3197 = vpop.f32.mrf.mxu0
    %v3198 = vadd.f32 %v3184, %v3197
    %3199 = vdwg.mxu0
    %3200 = vmatpush.bf16.msra.mxu0 %v2148
    %3201 = vmatpush.bf16.msra.mxu0 %v2141
    %3202 = vmatpush.bf16.msra.mxu0 %v2134
    %3203 = vmatpush.bf16.msra.mxu0 %v2127
    %3204 = vmatpush.bf16.msra.mxu0 %v2120
    %3205 = vmatpush.bf16.msra.mxu0 %v2113
    %3206 = vmatpush.bf16.msra.mxu0 %v2106
    %3207 = vmatpush.bf16.msra.mxu0 %v2099
    %3208 = vmatmul.bf16.gmra.mxu0 %v628
    %v3209 = vpop.f32.mrf.mxu0
    %v3210 = vadd.f32 %v3196, %v3209
    %v3211 = vpop.f32.mrf.mxu0
    %v3212 = vadd.f32 %v3198, %v3211
    %3213 = vdwg.mxu0
    %3214 = vmatpush.bf16.msra.mxu0 %v2204
    %3215 = vmatpush.bf16.msra.mxu0 %v2197
    %3216 = vmatpush.bf16.msra.mxu0 %v2190
    %3217 = vmatpush.bf16.msra.mxu0 %v2183
    %3218 = vmatpush.bf16.msra.mxu0 %v2176
    %3219 = vmatpush.bf16.msra.mxu0 %v2169
    %3220 = vmatpush.bf16.msra.mxu0 %v2162
    %3221 = vmatpush.bf16.msra.mxu0 %v2155
    %3222 = vmatmul.bf16.gmra.mxu0 %v629
    %v3223 = vpop.f32.mrf.mxu0
    %v3224 = vadd.f32 %v3210, %v3223
    %v3225 = vpop.f32.mrf.mxu0
    %v3226 = vadd.f32 %v3212, %v3225
    %3227 = vdwg.mxu0
    %3228 = vmatpush.bf16.msra.mxu0 %v2260
    %3229 = vmatpush.bf16.msra.mxu0 %v2253
    %3230 = vmatpush.bf16.msra.mxu0 %v2246
    %3231 = vmatpush.bf16.msra.mxu0 %v2239
    %3232 = vmatpush.bf16.msra.mxu0 %v2232
    %3233 = vmatpush.bf16.msra.mxu0 %v2225
    %3234 = vmatpush.bf16.msra.mxu0 %v2218
    %3235 = vmatpush.bf16.msra.mxu0 %v2211
    %3236 = vmatmul.bf16.gmra.mxu0 %v630
    %v3237 = vpop.f32.mrf.mxu0
    %v3238 = vadd.f32 %v3224, %v3237
    %v3239 = vpop.f32.mrf.mxu0
    %v3240 = vadd.f32 %v3226, %v3239
    %3241 = vdwg.mxu0
    %3242 = vmatpush.bf16.msra.mxu0 %v1925
    %3243 = vmatpush.bf16.msra.mxu0 %v1918
    %3244 = vmatpush.bf16.msra.mxu0 %v1911
    %3245 = vmatpush.bf16.msra.mxu0 %v1904
    %3246 = vmatpush.bf16.msra.mxu0 %v1897
    %3247 = vmatpush.bf16.msra.mxu0 %v1890
    %3248 = vmatpush.bf16.msra.mxu0 %v1883
    %3249 = vmatpush.bf16.msra.mxu0 %v1876
    %3250 = vmatmul.bf16.gmra.mxu0 %v624
    %v3251 = vpop.f32.mrf.mxu0
    %v3252 = vadd.f32 %v594, %v3251
    %v3253 = vpop.f32.mrf.mxu0
    %v3254 = vadd.f32 %v594, %v3253
    %3255 = vdwg.mxu0
    %3256 = vmatpush.bf16.msra.mxu0 %v1981
    %3257 = vmatpush.bf16.msra.mxu0 %v1974
    %3258 = vmatpush.bf16.msra.mxu0 %v1967
    %3259 = vmatpush.bf16.msra.mxu0 %v1960
    %3260 = vmatpush.bf16.msra.mxu0 %v1953
    %3261 = vmatpush.bf16.msra.mxu0 %v1946
    %3262 = vmatpush.bf16.msra.mxu0 %v1939
    %3263 = vmatpush.bf16.msra.mxu0 %v1932
    %3264 = vmatmul.bf16.gmra.mxu0 %v625
    %v3265 = vpop.f32.mrf.mxu0
    %v3266 = vadd.f32 %v3252, %v3265
    %v3267 = vpop.f32.mrf.mxu0
    %v3268 = vadd.f32 %v3254, %v3267
    %3269 = vdwg.mxu0
    %3270 = vmatpush.bf16.msra.mxu0 %v2037
    %3271 = vmatpush.bf16.msra.mxu0 %v2030
    %3272 = vmatpush.bf16.msra.mxu0 %v2023
    %3273 = vmatpush.bf16.msra.mxu0 %v2016
    %3274 = vmatpush.bf16.msra.mxu0 %v2009
    %3275 = vmatpush.bf16.msra.mxu0 %v2002
    %3276 = vmatpush.bf16.msra.mxu0 %v1995
    %3277 = vmatpush.bf16.msra.mxu0 %v1988
    %3278 = vmatmul.bf16.gmra.mxu0 %v626
    %v3279 = vpop.f32.mrf.mxu0
    %v3280 = vadd.f32 %v3266, %v3279
    %v3281 = vpop.f32.mrf.mxu0
    %v3282 = vadd.f32 %v3268, %v3281
    %3283 = vdwg.mxu0
    %3284 = vmatpush.bf16.msra.mxu0 %v2093
    %3285 = vmatpush.bf16.msra.mxu0 %v2086
    %3286 = vmatpush.bf16.msra.mxu0 %v2079
    %3287 = vmatpush.bf16.msra.mxu0 %v2072
    %3288 = vmatpush.bf16.msra.mxu0 %v2065
    %3289 = vmatpush.bf16.msra.mxu0 %v2058
    %3290 = vmatpush.bf16.msra.mxu0 %v2051
    %3291 = vmatpush.bf16.msra.mxu0 %v2044
    %3292 = vmatmul.bf16.gmra.mxu0 %v627
    %v3293 = vpop.f32.mrf.mxu0
    %v3294 = vadd.f32 %v3280, %v3293
    %v3295 = vpop.f32.mrf.mxu0
    %v3296 = vadd.f32 %v3282, %v3295
    %3297 = vdwg.mxu0
    %3298 = vmatpush.bf16.msra.mxu0 %v2149
    %3299 = vmatpush.bf16.msra.mxu0 %v2142
    %3300 = vmatpush.bf16.msra.mxu0 %v2135
    %3301 = vmatpush.bf16.msra.mxu0 %v2128
    %3302 = vmatpush.bf16.msra.mxu0 %v2121
    %3303 = vmatpush.bf16.msra.mxu0 %v2114
    %3304 = vmatpush.bf16.msra.mxu0 %v2107
    %3305 = vmatpush.bf16.msra.mxu0 %v2100
    %3306 = vmatmul.bf16.gmra.mxu0 %v628
    %v3307 = vpop.f32.mrf.mxu0
    %v3308 = vadd.f32 %v3294, %v3307
    %v3309 = vpop.f32.mrf.mxu0
    %v3310 = vadd.f32 %v3296, %v3309
    %3311 = vdwg.mxu0
    %3312 = vmatpush.bf16.msra.mxu0 %v2205
    %3313 = vmatpush.bf16.msra.mxu0 %v2198
    %3314 = vmatpush.bf16.msra.mxu0 %v2191
    %3315 = vmatpush.bf16.msra.mxu0 %v2184
    %3316 = vmatpush.bf16.msra.mxu0 %v2177
    %3317 = vmatpush.bf16.msra.mxu0 %v2170
    %3318 = vmatpush.bf16.msra.mxu0 %v2163
    %3319 = vmatpush.bf16.msra.mxu0 %v2156
    %3320 = vmatmul.bf16.gmra.mxu0 %v629
    %v3321 = vpop.f32.mrf.mxu0
    %v3322 = vadd.f32 %v3308, %v3321
    %v3323 = vpop.f32.mrf.mxu0
    %v3324 = vadd.f32 %v3310, %v3323
    %3325 = vdwg.mxu0
    %3326 = vmatpush.bf16.msra.mxu0 %v2261
    %3327 = vmatpush.bf16.msra.mxu0 %v2254
    %3328 = vmatpush.bf16.msra.mxu0 %v2247
    %3329 = vmatpush.bf16.msra.mxu0 %v2240
    %3330 = vmatpush.bf16.msra.mxu0 %v2233
    %3331 = vmatpush.bf16.msra.mxu0 %v2226
    %3332 = vmatpush.bf16.msra.mxu0 %v2219
    %3333 = vmatpush.bf16.msra.mxu0 %v2212
    %3334 = vmatmul.bf16.gmra.mxu0 %v630
    %v3335 = vpop.f32.mrf.mxu0
    %v3336 = vadd.f32 %v3322, %v3335
    %v3337 = vpop.f32.mrf.mxu0
    %v3338 = vadd.f32 %v3324, %v3337
    %3339 = vdwg.mxu0
    %v3340 = vmax.f32 %v2748, 0.0
    %v3341 = vmax.f32 %v2846, 0.0
    %v3342 = vmax.f32 %v2944, 0.0
    %v3343 = vmax.f32 %v3042, 0.0
    %v3344 = vmax.f32 %v3140, 0.0
    %v3345 = vmax.f32 %v3238, 0.0
    %v3346 = vmax.f32 %v3336, 0.0
    %v3347 = vmax.f32 %v2750, 0.0
    %v3348 = vmax.f32 %v2848, 0.0
    %v3349 = vmax.f32 %v2946, 0.0
    %v3350 = vmax.f32 %v3044, 0.0
    %v3351 = vmax.f32 %v3142, 0.0
    %v3352 = vmax.f32 %v3240, 0.0
    %v3353 = vmax.f32 %v3338, 0.0
    %v3354 = vpack.c.bf16 %v3347, %v3340
    %v3355 = vpack.c.bf16 %v3348, %v3341
    %v3356 = vpack.c.bf16 %v3349, %v3342
    %v3357 = vpack.c.bf16 %v3350, %v3343
    %v3358 = vpack.c.bf16 %v3351, %v3344
    %v3359 = vpack.c.bf16 %v3352, %v3345
    %v3360 = vpack.c.bf16 %v3353, %v3346
    %v3361 = vld [vmem:[#allocation8] sm:$0xff]
    %v3362 = vld [vmem:[#allocation8 + $0x8] sm:$0xff]
    %v3363 = vld [vmem:[#allocation8 + $0x10] sm:$0xff]
    %v3364 = vld [vmem:[#allocation8 + $0x18] sm:$0xf]
    %v3365 = vld [vmem:[#allocation8 + $0x1c] sm:$0xff]
    %v3366 = vld [vmem:[#allocation8 + $0x24] sm:$0xff]
    %v3367 = vld [vmem:[#allocation8 + $0x2c] sm:$0xff]
    %v3368 = vld [vmem:[#allocation8 + $0x34] sm:$0xf]
    %v3369 = vld [vmem:[#allocation8 + $0x38] sm:$0xff]
    %v3370 = vld [vmem:[#allocation8 + $0x40] sm:$0xff]
    %v3371 = vld [vmem:[#allocation8 + $0x48] sm:$0xff]
    %v3372 = vld [vmem:[#allocation8 + $0x50] sm:$0xf]
    %v3373 = vld [vmem:[#allocation8 + $0x54] sm:$0xff]
    %v3374 = vld [vmem:[#allocation8 + $0x5c] sm:$0xff]
    %v3375 = vld [vmem:[#allocation8 + $0x64] sm:$0xff]
    %v3376 = vld [vmem:[#allocation8 + $0x6c] sm:$0xf]
    %v3377 = vld [vmem:[#allocation8 + $0x70] sm:$0xff]
    %v3378 = vld [vmem:[#allocation8 + $0x78] sm:$0xff]
    %v3379 = vld [vmem:[#allocation8 + $0x80] sm:$0xff]
    %v3380 = vld [vmem:[#allocation8 + $0x88] sm:$0xf]
    %v3381 = vld [vmem:[#allocation8 + $0x8c] sm:$0xff]
    %v3382 = vld [vmem:[#allocation8 + $0x94] sm:$0xff]
    %v3383 = vld [vmem:[#allocation8 + $0x9c] sm:$0xff]
    %v3384 = vld [vmem:[#allocation8 + $0xa4] sm:$0xf]
    %v3385 = vld [vmem:[#allocation8 + $0xa8] sm:$0xff]
    %v3386 = vld [vmem:[#allocation8 + $0xb0] sm:$0xff]
    %v3387 = vld [vmem:[#allocation8 + $0xb8] sm:$0xff]
    %v3388 = vld [vmem:[#allocation8 + $0xc0] sm:$0xf]
    %v3389 = vld [vmem:[#allocation8 + $0xc4] sm:$0xff]
    %v3390 = vld [vmem:[#allocation8 + $0xcc] sm:$0xff]
    %v3391 = vld [vmem:[#allocation8 + $0xd4] sm:$0xff]
    %v3392 = vld [vmem:[#allocation8 + $0xdc] sm:$0xf]
    %v3393 = vld [vmem:[#allocation8 + $0xe0] sm:$0xff]
    %v3394 = vld [vmem:[#allocation8 + $0xe8] sm:$0xff]
    %v3395 = vld [vmem:[#allocation8 + $0xf0] sm:$0xff]
    %v3396 = vld [vmem:[#allocation8 + $0xf8] sm:$0xf]
    %v3397 = vld [vmem:[#allocation8 + $0xfc] sm:$0xff]
    %v3398 = vld [vmem:[#allocation8 + $0x104] sm:$0xff]
    %v3399 = vld [vmem:[#allocation8 + $0x10c] sm:$0xff]
    %v3400 = vld [vmem:[#allocation8 + $0x114] sm:$0xf]
    %v3401 = vld [vmem:[#allocation8 + $0x118] sm:$0xff]
    %v3402 = vld [vmem:[#allocation8 + $0x120] sm:$0xff]
    %v3403 = vld [vmem:[#allocation8 + $0x128] sm:$0xff]
    %v3404 = vld [vmem:[#allocation8 + $0x130] sm:$0xf]
    %v3405 = vld [vmem:[#allocation8 + $0x134] sm:$0xff]
    %v3406 = vld [vmem:[#allocation8 + $0x13c] sm:$0xff]
    %v3407 = vld [vmem:[#allocation8 + $0x144] sm:$0xff]
    %v3408 = vld [vmem:[#allocation8 + $0x14c] sm:$0xf]
    %v3409 = vld [vmem:[#allocation8 + $0x150] sm:$0xff]
    %v3410 = vld [vmem:[#allocation8 + $0x158] sm:$0xff]
    %v3411 = vld [vmem:[#allocation8 + $0x160] sm:$0xff]
    %v3412 = vld [vmem:[#allocation8 + $0x168] sm:$0xf]
    %v3413 = vld [vmem:[#allocation8 + $0x16c] sm:$0xff]
    %v3414 = vld [vmem:[#allocation8 + $0x174] sm:$0xff]
    %v3415 = vld [vmem:[#allocation8 + $0x17c] sm:$0xff]
    %v3416 = vld [vmem:[#allocation8 + $0x184] sm:$0xf]
    %v3417 = vld [vmem:[#allocation8 + $0x188] sm:$0xff]
    %v3418 = vld [vmem:[#allocation8 + $0x190] sm:$0xff]
    %v3419 = vld [vmem:[#allocation8 + $0x198] sm:$0xff]
    %v3420 = vld [vmem:[#allocation8 + $0x1a0] sm:$0xf]
    %v3421 = vld [vmem:[#allocation8 + $0x1a4] sm:$0xff]
    %v3422 = vld [vmem:[#allocation8 + $0x1ac] sm:$0xff]
    %v3423 = vld [vmem:[#allocation8 + $0x1b4] sm:$0xff]
    %v3424 = vld [vmem:[#allocation8 + $0x1bc] sm:$0xf]
    %v3425 = vld [vmem:[#allocation8 + $0x1c0] sm:$0xff]
    %v3426 = vld [vmem:[#allocation8 + $0x1c8] sm:$0xff]
    %v3427 = vld [vmem:[#allocation8 + $0x1d0] sm:$0xff]
    %v3428 = vld [vmem:[#allocation8 + $0x1d8] sm:$0xf]
    %v3429 = vld [vmem:[#allocation8 + $0x1dc] sm:$0xff]
    %v3430 = vld [vmem:[#allocation8 + $0x1e4] sm:$0xff]
    %v3431 = vld [vmem:[#allocation8 + $0x1ec] sm:$0xff]
    %v3432 = vld [vmem:[#allocation8 + $0x1f4] sm:$0xf]
    %v3433 = vld [vmem:[#allocation8 + $0x1f8] sm:$0xff]
    %v3434 = vld [vmem:[#allocation8 + $0x200] sm:$0xff]
    %v3435 = vld [vmem:[#allocation8 + $0x208] sm:$0xff]
    %v3436 = vld [vmem:[#allocation8 + $0x210] sm:$0xf]
    %v3437 = vld [vmem:[#allocation8 + $0x214] sm:$0xff]
    %v3438 = vld [vmem:[#allocation8 + $0x21c] sm:$0xff]
    %v3439 = vld [vmem:[#allocation8 + $0x224] sm:$0xff]
    %v3440 = vld [vmem:[#allocation8 + $0x22c] sm:$0xf]
    %v3441 = vld [vmem:[#allocation8 + $0x230] sm:$0xff]
    %v3442 = vld [vmem:[#allocation8 + $0x238] sm:$0xff]
    %v3443 = vld [vmem:[#allocation8 + $0x240] sm:$0xff]
    %v3444 = vld [vmem:[#allocation8 + $0x248] sm:$0xf]
    %v3445 = vld [vmem:[#allocation8 + $0x24c] sm:$0xff]
    %v3446 = vld [vmem:[#allocation8 + $0x254] sm:$0xff]
    %v3447 = vld [vmem:[#allocation8 + $0x25c] sm:$0xff]
    %v3448 = vld [vmem:[#allocation8 + $0x264] sm:$0xf]
    %v3449 = vld [vmem:[#allocation8 + $0x268] sm:$0xff]
    %v3450 = vld [vmem:[#allocation8 + $0x270] sm:$0xff]
    %v3451 = vld [vmem:[#allocation8 + $0x278] sm:$0xff]
    %v3452 = vld [vmem:[#allocation8 + $0x280] sm:$0xf]
    %v3453 = vld [vmem:[#allocation8 + $0x284] sm:$0xff]
    %v3454 = vld [vmem:[#allocation8 + $0x28c] sm:$0xff]
    %v3455 = vld [vmem:[#allocation8 + $0x294] sm:$0xff]
    %v3456 = vld [vmem:[#allocation8 + $0x29c] sm:$0xf]
    %v3457 = vld [vmem:[#allocation8 + $0x2a0] sm:$0xff]
    %v3458 = vld [vmem:[#allocation8 + $0x2a8] sm:$0xff]
    %v3459 = vld [vmem:[#allocation8 + $0x2b0] sm:$0xff]
    %v3460 = vld [vmem:[#allocation8 + $0x2b8] sm:$0xf]
    %v3461 = vld [vmem:[#allocation8 + $0x2bc] sm:$0xff]
    %v3462 = vld [vmem:[#allocation8 + $0x2c4] sm:$0xff]
    %v3463 = vld [vmem:[#allocation8 + $0x2cc] sm:$0xff]
    %v3464 = vld [vmem:[#allocation8 + $0x2d4] sm:$0xf]
    %v3465 = vld [vmem:[#allocation8 + $0x2d8] sm:$0xff]
    %v3466 = vld [vmem:[#allocation8 + $0x2e0] sm:$0xff]
    %v3467 = vld [vmem:[#allocation8 + $0x2e8] sm:$0xff]
    %v3468 = vld [vmem:[#allocation8 + $0x2f0] sm:$0xf]
    %v3469 = vld [vmem:[#allocation8 + $0x2f4] sm:$0xff]
    %v3470 = vld [vmem:[#allocation8 + $0x2fc] sm:$0xff]
    %v3471 = vld [vmem:[#allocation8 + $0x304] sm:$0xff]
    %v3472 = vld [vmem:[#allocation8 + $0x30c] sm:$0xf]
    %v3473 = vld [vmem:[#allocation8 + $0x310] sm:$0xff]
    %v3474 = vld [vmem:[#allocation8 + $0x318] sm:$0xff]
    %v3475 = vld [vmem:[#allocation8 + $0x320] sm:$0xff]
    %v3476 = vld [vmem:[#allocation8 + $0x328] sm:$0xf]
    %v3477 = vld [vmem:[#allocation8 + $0x32c] sm:$0xff]
    %v3478 = vld [vmem:[#allocation8 + $0x334] sm:$0xff]
    %v3479 = vld [vmem:[#allocation8 + $0x33c] sm:$0xff]
    %v3480 = vld [vmem:[#allocation8 + $0x344] sm:$0xf]
    %v3481 = vld [vmem:[#allocation8 + $0x348] sm:$0xff]
    %v3482 = vld [vmem:[#allocation8 + $0x350] sm:$0xff]
    %v3483 = vld [vmem:[#allocation8 + $0x358] sm:$0xff]
    %v3484 = vld [vmem:[#allocation8 + $0x360] sm:$0xf]
    %v3485 = vld [vmem:[#allocation8 + $0x364] sm:$0xff]
    %v3486 = vld [vmem:[#allocation8 + $0x36c] sm:$0xff]
    %v3487 = vld [vmem:[#allocation8 + $0x374] sm:$0xff]
    %v3488 = vld [vmem:[#allocation8 + $0x37c] sm:$0xf]
    %v3489 = vld [vmem:[#allocation8 + $0x380] sm:$0xff]
    %v3490 = vld [vmem:[#allocation8 + $0x388] sm:$0xff]
    %v3491 = vld [vmem:[#allocation8 + $0x390] sm:$0xff]
    %v3492 = vld [vmem:[#allocation8 + $0x398] sm:$0xf]
    %v3493 = vld [vmem:[#allocation8 + $0x39c] sm:$0xff]
    %v3494 = vld [vmem:[#allocation8 + $0x3a4] sm:$0xff]
    %v3495 = vld [vmem:[#allocation8 + $0x3ac] sm:$0xff]
    %v3496 = vld [vmem:[#allocation8 + $0x3b4] sm:$0xf]
    %v3497 = vld [vmem:[#allocation8 + $0x3b8] sm:$0xff]
    %v3498 = vld [vmem:[#allocation8 + $0x3c0] sm:$0xff]
    %v3499 = vld [vmem:[#allocation8 + $0x3c8] sm:$0xff]
    %v3500 = vld [vmem:[#allocation8 + $0x3d0] sm:$0xf]
    %v3501 = vld [vmem:[#allocation8 + $0x3d4] sm:$0xff]
    %v3502 = vld [vmem:[#allocation8 + $0x3dc] sm:$0xff]
    %v3503 = vld [vmem:[#allocation8 + $0x3e4] sm:$0xff]
    %v3504 = vld [vmem:[#allocation8 + $0x3ec] sm:$0xf]
    %v3505 = vld [vmem:[#allocation8 + $0x3f0] sm:$0xff]
    %v3506 = vld [vmem:[#allocation8 + $0x3f8] sm:$0xff]
    %v3507 = vld [vmem:[#allocation8 + $0x400] sm:$0xff]
    %v3508 = vld [vmem:[#allocation8 + $0x408] sm:$0xf]
    %v3509 = vld [vmem:[#allocation8 + $0x40c] sm:$0xff]
    %v3510 = vld [vmem:[#allocation8 + $0x414] sm:$0xff]
    %v3511 = vld [vmem:[#allocation8 + $0x41c] sm:$0xff]
    %v3512 = vld [vmem:[#allocation8 + $0x424] sm:$0xf]
    %v3513 = vld [vmem:[#allocation8 + $0x428] sm:$0xff]
    %v3514 = vld [vmem:[#allocation8 + $0x430] sm:$0xff]
    %v3515 = vld [vmem:[#allocation8 + $0x438] sm:$0xff]
    %v3516 = vld [vmem:[#allocation8 + $0x440] sm:$0xf]
    %v3517 = vld [vmem:[#allocation8 + $0x444] sm:$0xff]
    %v3518 = vld [vmem:[#allocation8 + $0x44c] sm:$0xff]
    %v3519 = vld [vmem:[#allocation8 + $0x454] sm:$0xff]
    %v3520 = vld [vmem:[#allocation8 + $0x45c] sm:$0xf]
    %v3521 = vld [vmem:[#allocation8 + $0x460] sm:$0xff]
    %v3522 = vld [vmem:[#allocation8 + $0x468] sm:$0xff]
    %v3523 = vld [vmem:[#allocation8 + $0x470] sm:$0xff]
    %v3524 = vld [vmem:[#allocation8 + $0x478] sm:$0xf]
    %v3525 = vld [vmem:[#allocation8 + $0x47c] sm:$0xff]
    %v3526 = vld [vmem:[#allocation8 + $0x484] sm:$0xff]
    %v3527 = vld [vmem:[#allocation8 + $0x48c] sm:$0xff]
    %v3528 = vld [vmem:[#allocation8 + $0x494] sm:$0xf]
    %v3529 = vld [vmem:[#allocation8 + $0x498] sm:$0xff]
    %v3530 = vld [vmem:[#allocation8 + $0x4a0] sm:$0xff]
    %v3531 = vld [vmem:[#allocation8 + $0x4a8] sm:$0xff]
    %v3532 = vld [vmem:[#allocation8 + $0x4b0] sm:$0xf]
    %v3533 = vld [vmem:[#allocation8 + $0x4b4] sm:$0xff]
    %v3534 = vld [vmem:[#allocation8 + $0x4bc] sm:$0xff]
    %v3535 = vld [vmem:[#allocation8 + $0x4c4] sm:$0xff]
    %v3536 = vld [vmem:[#allocation8 + $0x4cc] sm:$0xf]
    %v3537 = vld [vmem:[#allocation8 + $0x4d0] sm:$0xff]
    %v3538 = vld [vmem:[#allocation8 + $0x4d8] sm:$0xff]
    %v3539 = vld [vmem:[#allocation8 + $0x4e0] sm:$0xff]
    %v3540 = vld [vmem:[#allocation8 + $0x4e8] sm:$0xf]
    %v3541 = vld [vmem:[#allocation8 + $0x4ec] sm:$0xff]
    %v3542 = vld [vmem:[#allocation8 + $0x4f4] sm:$0xff]
    %v3543 = vld [vmem:[#allocation8 + $0x4fc] sm:$0xff]
    %v3544 = vld [vmem:[#allocation8 + $0x504] sm:$0xf]
    %v3545 = vld [vmem:[#allocation8 + $0x508] sm:$0xff]
    %v3546 = vld [vmem:[#allocation8 + $0x510] sm:$0xff]
    %v3547 = vld [vmem:[#allocation8 + $0x518] sm:$0xff]
    %v3548 = vld [vmem:[#allocation8 + $0x520] sm:$0xf]
    %v3549 = vld [vmem:[#allocation8 + $0x524] sm:$0xff]
    %v3550 = vld [vmem:[#allocation8 + $0x52c] sm:$0xff]
    %v3551 = vld [vmem:[#allocation8 + $0x534] sm:$0xff]
    %v3552 = vld [vmem:[#allocation8 + $0x53c] sm:$0xf]
    %v3553 = vld [vmem:[#allocation8 + $0x540] sm:$0xff]
    %v3554 = vld [vmem:[#allocation8 + $0x548] sm:$0xff]
    %v3555 = vld [vmem:[#allocation8 + $0x550] sm:$0xff]
    %v3556 = vld [vmem:[#allocation8 + $0x558] sm:$0xf]
    %v3557 = vld [vmem:[#allocation8 + $0x55c] sm:$0xff]
    %v3558 = vld [vmem:[#allocation8 + $0x564] sm:$0xff]
    %v3559 = vld [vmem:[#allocation8 + $0x56c] sm:$0xff]
    %v3560 = vld [vmem:[#allocation8 + $0x574] sm:$0xf]
    %v3561 = vld [vmem:[#allocation8 + $0x578] sm:$0xff]
    %v3562 = vld [vmem:[#allocation8 + $0x580] sm:$0xff]
    %v3563 = vld [vmem:[#allocation8 + $0x588] sm:$0xff]
    %v3564 = vld [vmem:[#allocation8 + $0x590] sm:$0xf]
    %v3565 = vld [vmem:[#allocation8 + $0x594] sm:$0xff]
    %v3566 = vld [vmem:[#allocation8 + $0x59c] sm:$0xff]
    %v3567 = vld [vmem:[#allocation8 + $0x5a4] sm:$0xff]
    %v3568 = vld [vmem:[#allocation8 + $0x5ac] sm:$0xf]
    %v3569 = vld [vmem:[#allocation8 + $0x5b0] sm:$0xff]
    %v3570 = vld [vmem:[#allocation8 + $0x5b8] sm:$0xff]
    %v3571 = vld [vmem:[#allocation8 + $0x5c0] sm:$0xff]
    %v3572 = vld [vmem:[#allocation8 + $0x5c8] sm:$0xf]
    %v3573 = vld [vmem:[#allocation8 + $0x5cc] sm:$0xff]
    %v3574 = vld [vmem:[#allocation8 + $0x5d4] sm:$0xff]
    %v3575 = vld [vmem:[#allocation8 + $0x5dc] sm:$0xff]
    %v3576 = vld [vmem:[#allocation8 + $0x5e4] sm:$0xf]
    %v3577 = vld [vmem:[#allocation8 + $0x5e8] sm:$0xff]
    %v3578 = vld [vmem:[#allocation8 + $0x5f0] sm:$0xff]
    %v3579 = vld [vmem:[#allocation8 + $0x5f8] sm:$0xff]
    %v3580 = vld [vmem:[#allocation8 + $0x600] sm:$0xf]
    %v3581 = vld [vmem:[#allocation8 + $0x604] sm:$0xff]
    %v3582 = vld [vmem:[#allocation8 + $0x60c] sm:$0xff]
    %v3583 = vld [vmem:[#allocation8 + $0x614] sm:$0xff]
    %v3584 = vld [vmem:[#allocation8 + $0x61c] sm:$0xf]
    %v3585 = vld [vmem:[#allocation8 + $0x620] sm:$0xff]
    %v3586 = vld [vmem:[#allocation8 + $0x628] sm:$0xff]
    %v3587 = vld [vmem:[#allocation8 + $0x630] sm:$0xff]
    %v3588 = vld [vmem:[#allocation8 + $0x638] sm:$0xf]
    %v3589 = vld [vmem:[#allocation8 + $0x63c] sm:$0xff]
    %v3590 = vld [vmem:[#allocation8 + $0x644] sm:$0xff]
    %v3591 = vld [vmem:[#allocation8 + $0x64c] sm:$0xff]
    %v3592 = vld [vmem:[#allocation8 + $0x654] sm:$0xf]
    %v3593 = vld [vmem:[#allocation8 + $0x658] sm:$0xff]
    %v3594 = vld [vmem:[#allocation8 + $0x660] sm:$0xff]
    %v3595 = vld [vmem:[#allocation8 + $0x668] sm:$0xff]
    %v3596 = vld [vmem:[#allocation8 + $0x670] sm:$0xf]
    %v3597 = vld [vmem:[#allocation8 + $0x674] sm:$0xff]
    %v3598 = vld [vmem:[#allocation8 + $0x67c] sm:$0xff]
    %v3599 = vld [vmem:[#allocation8 + $0x684] sm:$0xff]
    %v3600 = vld [vmem:[#allocation8 + $0x68c] sm:$0xf]
    %v3601 = vld [vmem:[#allocation8 + $0x690] sm:$0xff]
    %v3602 = vld [vmem:[#allocation8 + $0x698] sm:$0xff]
    %v3603 = vld [vmem:[#allocation8 + $0x6a0] sm:$0xff]
    %v3604 = vld [vmem:[#allocation8 + $0x6a8] sm:$0xf]
    %v3605 = vld [vmem:[#allocation8 + $0x6ac] sm:$0xff]
    %v3606 = vld [vmem:[#allocation8 + $0x6b4] sm:$0xff]
    %v3607 = vld [vmem:[#allocation8 + $0x6bc] sm:$0xff]
    %v3608 = vld [vmem:[#allocation8 + $0x6c4] sm:$0xf]
    %v3609 = vld [vmem:[#allocation8 + $0x6c8] sm:$0xff]
    %v3610 = vld [vmem:[#allocation8 + $0x6d0] sm:$0xff]
    %v3611 = vld [vmem:[#allocation8 + $0x6d8] sm:$0xff]
    %v3612 = vld [vmem:[#allocation8 + $0x6e0] sm:$0xf]
    %v3613 = vld [vmem:[#allocation8 + $0x6e4] sm:$0xff]
    %v3614 = vld [vmem:[#allocation8 + $0x6ec] sm:$0xff]
    %v3615 = vld [vmem:[#allocation8 + $0x6f4] sm:$0xff]
    %v3616 = vld [vmem:[#allocation8 + $0x6fc] sm:$0xf]
    %v3617 = vld [vmem:[#allocation8 + $0x700] sm:$0xff]
    %v3618 = vld [vmem:[#allocation8 + $0x708] sm:$0xff]
    %v3619 = vld [vmem:[#allocation8 + $0x710] sm:$0xff]
    %v3620 = vld [vmem:[#allocation8 + $0x718] sm:$0xf]
    %v3621 = vld [vmem:[#allocation8 + $0x71c] sm:$0xff]
    %v3622 = vld [vmem:[#allocation8 + $0x724] sm:$0xff]
    %v3623 = vld [vmem:[#allocation8 + $0x72c] sm:$0xff]
    %v3624 = vld [vmem:[#allocation8 + $0x734] sm:$0xf]
    %v3625 = vld [vmem:[#allocation8 + $0x738] sm:$0xff]
    %v3626 = vld [vmem:[#allocation8 + $0x740] sm:$0xff]
    %v3627 = vld [vmem:[#allocation8 + $0x748] sm:$0xff]
    %v3628 = vld [vmem:[#allocation8 + $0x750] sm:$0xf]
    %v3629 = vld [vmem:[#allocation8 + $0x754] sm:$0xff]
    %v3630 = vld [vmem:[#allocation8 + $0x75c] sm:$0xff]
    %v3631 = vld [vmem:[#allocation8 + $0x764] sm:$0xff]
    %v3632 = vld [vmem:[#allocation8 + $0x76c] sm:$0xf]
    %v3633 = vld [vmem:[#allocation8 + $0x770] sm:$0xff]
    %v3634 = vld [vmem:[#allocation8 + $0x778] sm:$0xff]
    %v3635 = vld [vmem:[#allocation8 + $0x780] sm:$0xff]
    %v3636 = vld [vmem:[#allocation8 + $0x788] sm:$0xf]
    %v3637 = vld [vmem:[#allocation8 + $0x78c] sm:$0xff]
    %v3638 = vld [vmem:[#allocation8 + $0x794] sm:$0xff]
    %v3639 = vld [vmem:[#allocation8 + $0x79c] sm:$0xff]
    %v3640 = vld [vmem:[#allocation8 + $0x7a4] sm:$0xf]
    %v3641 = vld [vmem:[#allocation8 + $0x7a8] sm:$0xff]
    %v3642 = vld [vmem:[#allocation8 + $0x7b0] sm:$0xff]
    %v3643 = vld [vmem:[#allocation8 + $0x7b8] sm:$0xff]
    %v3644 = vld [vmem:[#allocation8 + $0x7c0] sm:$0xf]
    %v3645 = vld [vmem:[#allocation8 + $0x7c4] sm:$0xff]
    %v3646 = vld [vmem:[#allocation8 + $0x7cc] sm:$0xff]
    %v3647 = vld [vmem:[#allocation8 + $0x7d4] sm:$0xff]
    %v3648 = vld [vmem:[#allocation8 + $0x7dc] sm:$0xf]
    %v3649 = vld [vmem:[#allocation8 + $0x7e0] sm:$0xff]
    %v3650 = vld [vmem:[#allocation8 + $0x7e8] sm:$0xff]
    %v3651 = vld [vmem:[#allocation8 + $0x7f0] sm:$0xff]
    %v3652 = vld [vmem:[#allocation8 + $0x7f8] sm:$0xf]
    %v3653 = vld [vmem:[#allocation8 + $0x7fc] sm:$0xff]
    %v3654 = vld [vmem:[#allocation8 + $0x804] sm:$0xff]
    %v3655 = vld [vmem:[#allocation8 + $0x80c] sm:$0xff]
    %v3656 = vld [vmem:[#allocation8 + $0x814] sm:$0xf]
    %v3657 = vld [vmem:[#allocation8 + $0x818] sm:$0xff]
    %v3658 = vld [vmem:[#allocation8 + $0x820] sm:$0xff]
    %v3659 = vld [vmem:[#allocation8 + $0x828] sm:$0xff]
    %v3660 = vld [vmem:[#allocation8 + $0x830] sm:$0xf]
    %v3661 = vld [vmem:[#allocation8 + $0x834] sm:$0xff]
    %v3662 = vld [vmem:[#allocation8 + $0x83c] sm:$0xff]
    %v3663 = vld [vmem:[#allocation8 + $0x844] sm:$0xff]
    %v3664 = vld [vmem:[#allocation8 + $0x84c] sm:$0xf]
    %v3665 = vld [vmem:[#allocation8 + $0x850] sm:$0xff]
    %v3666 = vld [vmem:[#allocation8 + $0x858] sm:$0xff]
    %v3667 = vld [vmem:[#allocation8 + $0x860] sm:$0xff]
    %v3668 = vld [vmem:[#allocation8 + $0x868] sm:$0xf]
    %v3669 = vld [vmem:[#allocation8 + $0x86c] sm:$0xff]
    %v3670 = vld [vmem:[#allocation8 + $0x874] sm:$0xff]
    %v3671 = vld [vmem:[#allocation8 + $0x87c] sm:$0xff]
    %v3672 = vld [vmem:[#allocation8 + $0x884] sm:$0xf]
    %v3673 = vld [vmem:[#allocation8 + $0x888] sm:$0xff]
    %v3674 = vld [vmem:[#allocation8 + $0x890] sm:$0xff]
    %v3675 = vld [vmem:[#allocation8 + $0x898] sm:$0xff]
    %v3676 = vld [vmem:[#allocation8 + $0x8a0] sm:$0xf]
    %v3677 = vld [vmem:[#allocation8 + $0x8a4] sm:$0xff]
    %v3678 = vld [vmem:[#allocation8 + $0x8ac] sm:$0xff]
    %v3679 = vld [vmem:[#allocation8 + $0x8b4] sm:$0xff]
    %v3680 = vld [vmem:[#allocation8 + $0x8bc] sm:$0xf]
    %v3681 = vld [vmem:[#allocation8 + $0x8c0] sm:$0xff]
    %v3682 = vld [vmem:[#allocation8 + $0x8c8] sm:$0xff]
    %v3683 = vld [vmem:[#allocation8 + $0x8d0] sm:$0xff]
    %v3684 = vld [vmem:[#allocation8 + $0x8d8] sm:$0xf]
    %v3685 = vld [vmem:[#allocation8 + $0x8dc] sm:$0xff]
    %v3686 = vld [vmem:[#allocation8 + $0x8e4] sm:$0xff]
    %v3687 = vld [vmem:[#allocation8 + $0x8ec] sm:$0xff]
    %v3688 = vld [vmem:[#allocation8 + $0x8f4] sm:$0xf]
    %v3689 = vld [vmem:[#allocation8 + $0x8f8] sm:$0xff]
    %v3690 = vld [vmem:[#allocation8 + $0x900] sm:$0xff]
    %v3691 = vld [vmem:[#allocation8 + $0x908] sm:$0xff]
    %v3692 = vld [vmem:[#allocation8 + $0x910] sm:$0xf]
    %v3693 = vld [vmem:[#allocation8 + $0x914] sm:$0xff]
    %v3694 = vld [vmem:[#allocation8 + $0x91c] sm:$0xff]
    %v3695 = vld [vmem:[#allocation8 + $0x924] sm:$0xff]
    %v3696 = vld [vmem:[#allocation8 + $0x92c] sm:$0xf]
    %v3697 = vld [vmem:[#allocation8 + $0x930] sm:$0xff]
    %v3698 = vld [vmem:[#allocation8 + $0x938] sm:$0xff]
    %v3699 = vld [vmem:[#allocation8 + $0x940] sm:$0xff]
    %v3700 = vld [vmem:[#allocation8 + $0x948] sm:$0xf]
    %v3701 = vld [vmem:[#allocation8 + $0x94c] sm:$0xff]
    %v3702 = vld [vmem:[#allocation8 + $0x954] sm:$0xff]
    %v3703 = vld [vmem:[#allocation8 + $0x95c] sm:$0xff]
    %v3704 = vld [vmem:[#allocation8 + $0x964] sm:$0xf]
    %v3705 = vld [vmem:[#allocation8 + $0x968] sm:$0xff]
    %v3706 = vld [vmem:[#allocation8 + $0x970] sm:$0xff]
    %v3707 = vld [vmem:[#allocation8 + $0x978] sm:$0xff]
    %v3708 = vld [vmem:[#allocation8 + $0x980] sm:$0xf]
    %v3709 = vld [vmem:[#allocation8 + $0x984] sm:$0xff]
    %v3710 = vld [vmem:[#allocation8 + $0x98c] sm:$0xff]
    %v3711 = vld [vmem:[#allocation8 + $0x994] sm:$0xff]
    %v3712 = vld [vmem:[#allocation8 + $0x99c] sm:$0xf]
    %v3713 = vld [vmem:[#allocation8 + $0x9a0] sm:$0xff]
    %v3714 = vld [vmem:[#allocation8 + $0x9a8] sm:$0xff]
    %v3715 = vld [vmem:[#allocation8 + $0x9b0] sm:$0xff]
    %v3716 = vld [vmem:[#allocation8 + $0x9b8] sm:$0xf]
    %v3717 = vld [vmem:[#allocation8 + $0x9bc] sm:$0xff]
    %v3718 = vld [vmem:[#allocation8 + $0x9c4] sm:$0xff]
    %v3719 = vld [vmem:[#allocation8 + $0x9cc] sm:$0xff]
    %v3720 = vld [vmem:[#allocation8 + $0x9d4] sm:$0xf]
    %v3721 = vld [vmem:[#allocation8 + $0x9d8] sm:$0xff]
    %v3722 = vld [vmem:[#allocation8 + $0x9e0] sm:$0xff]
    %v3723 = vld [vmem:[#allocation8 + $0x9e8] sm:$0xff]
    %v3724 = vld [vmem:[#allocation8 + $0x9f0] sm:$0xf]
    %v3725 = vld [vmem:[#allocation8 + $0x9f4] sm:$0xff]
    %v3726 = vld [vmem:[#allocation8 + $0x9fc] sm:$0xff]
    %v3727 = vld [vmem:[#allocation8 + $0xa04] sm:$0xff]
    %v3728 = vld [vmem:[#allocation8 + $0xa0c] sm:$0xf]
    %v3729 = vld [vmem:[#allocation8 + $0xa10] sm:$0xff]
    %v3730 = vld [vmem:[#allocation8 + $0xa18] sm:$0xff]
    %v3731 = vld [vmem:[#allocation8 + $0xa20] sm:$0xff]
    %v3732 = vld [vmem:[#allocation8 + $0xa28] sm:$0xf]
    %v3733 = vld [vmem:[#allocation8 + $0xa2c] sm:$0xff]
    %v3734 = vld [vmem:[#allocation8 + $0xa34] sm:$0xff]
    %v3735 = vld [vmem:[#allocation8 + $0xa3c] sm:$0xff]
    %v3736 = vld [vmem:[#allocation8 + $0xa44] sm:$0xf]
    %v3737 = vld [vmem:[#allocation8 + $0xa48] sm:$0xff]
    %v3738 = vld [vmem:[#allocation8 + $0xa50] sm:$0xff]
    %v3739 = vld [vmem:[#allocation8 + $0xa58] sm:$0xff]
    %v3740 = vld [vmem:[#allocation8 + $0xa60] sm:$0xf]
    %v3741 = vld [vmem:[#allocation8 + $0xa64] sm:$0xff]
    %v3742 = vld [vmem:[#allocation8 + $0xa6c] sm:$0xff]
    %v3743 = vld [vmem:[#allocation8 + $0xa74] sm:$0xff]
    %v3744 = vld [vmem:[#allocation8 + $0xa7c] sm:$0xf]
    %v3745 = vld [vmem:[#allocation8 + $0xa80] sm:$0xff]
    %v3746 = vld [vmem:[#allocation8 + $0xa88] sm:$0xff]
    %v3747 = vld [vmem:[#allocation8 + $0xa90] sm:$0xff]
    %v3748 = vld [vmem:[#allocation8 + $0xa98] sm:$0xf]
    %v3749 = vld [vmem:[#allocation8 + $0xa9c] sm:$0xff]
    %v3750 = vld [vmem:[#allocation8 + $0xaa4] sm:$0xff]
    %v3751 = vld [vmem:[#allocation8 + $0xaac] sm:$0xff]
    %v3752 = vld [vmem:[#allocation8 + $0xab4] sm:$0xf]
    %v3753 = vld [vmem:[#allocation8 + $0xab8] sm:$0xff]
    %v3754 = vld [vmem:[#allocation8 + $0xac0] sm:$0xff]
    %v3755 = vld [vmem:[#allocation8 + $0xac8] sm:$0xff]
    %v3756 = vld [vmem:[#allocation8 + $0xad0] sm:$0xf]
    %v3757 = vld [vmem:[#allocation8 + $0xad4] sm:$0xff]
    %v3758 = vld [vmem:[#allocation8 + $0xadc] sm:$0xff]
    %v3759 = vld [vmem:[#allocation8 + $0xae4] sm:$0xff]
    %v3760 = vld [vmem:[#allocation8 + $0xaec] sm:$0xf]
    %v3761 = vld [vmem:[#allocation8 + $0xaf0] sm:$0xff]
    %v3762 = vld [vmem:[#allocation8 + $0xaf8] sm:$0xff]
    %v3763 = vld [vmem:[#allocation8 + $0xb00] sm:$0xff]
    %v3764 = vld [vmem:[#allocation8 + $0xb08] sm:$0xf]
    %v3765 = vld [vmem:[#allocation8 + $0xb0c] sm:$0xff]
    %v3766 = vld [vmem:[#allocation8 + $0xb14] sm:$0xff]
    %v3767 = vld [vmem:[#allocation8 + $0xb1c] sm:$0xff]
    %v3768 = vld [vmem:[#allocation8 + $0xb24] sm:$0xf]
    %v3769 = vld [vmem:[#allocation8 + $0xb28] sm:$0xff]
    %v3770 = vld [vmem:[#allocation8 + $0xb30] sm:$0xff]
    %v3771 = vld [vmem:[#allocation8 + $0xb38] sm:$0xff]
    %v3772 = vld [vmem:[#allocation8 + $0xb40] sm:$0xf]
    %v3773 = vld [vmem:[#allocation8 + $0xb44] sm:$0xff]
    %v3774 = vld [vmem:[#allocation8 + $0xb4c] sm:$0xff]
    %v3775 = vld [vmem:[#allocation8 + $0xb54] sm:$0xff]
    %v3776 = vld [vmem:[#allocation8 + $0xb5c] sm:$0xf]
    %v3777 = vld [vmem:[#allocation8 + $0xb60] sm:$0xff]
    %v3778 = vld [vmem:[#allocation8 + $0xb68] sm:$0xff]
    %v3779 = vld [vmem:[#allocation8 + $0xb70] sm:$0xff]
    %v3780 = vld [vmem:[#allocation8 + $0xb78] sm:$0xf]
    %v3781 = vld [vmem:[#allocation8 + $0xb7c] sm:$0xff]
    %v3782 = vld [vmem:[#allocation8 + $0xb84] sm:$0xff]
    %v3783 = vld [vmem:[#allocation8 + $0xb8c] sm:$0xff]
    %v3784 = vld [vmem:[#allocation8 + $0xb94] sm:$0xf]
    %v3785 = vld [vmem:[#allocation8 + $0xb98] sm:$0xff]
    %v3786 = vld [vmem:[#allocation8 + $0xba0] sm:$0xff]
    %v3787 = vld [vmem:[#allocation8 + $0xba8] sm:$0xff]
    %v3788 = vld [vmem:[#allocation8 + $0xbb0] sm:$0xf]
    %v3789 = vld [vmem:[#allocation8 + $0xbb4] sm:$0xff]
    %v3790 = vld [vmem:[#allocation8 + $0xbbc] sm:$0xff]
    %v3791 = vld [vmem:[#allocation8 + $0xbc4] sm:$0xff]
    %v3792 = vld [vmem:[#allocation8 + $0xbcc] sm:$0xf]
    %v3793 = vld [vmem:[#allocation8 + $0xbd0] sm:$0xff]
    %v3794 = vld [vmem:[#allocation8 + $0xbd8] sm:$0xff]
    %v3795 = vld [vmem:[#allocation8 + $0xbe0] sm:$0xff]
    %v3796 = vld [vmem:[#allocation8 + $0xbe8] sm:$0xf]
    %v3797 = vld [vmem:[#allocation8 + $0xbec] sm:$0xff]
    %v3798 = vld [vmem:[#allocation8 + $0xbf4] sm:$0xff]
    %v3799 = vld [vmem:[#allocation8 + $0xbfc] sm:$0xff]
    %v3800 = vld [vmem:[#allocation8 + $0xc04] sm:$0xf]
    %v3801 = vld [vmem:[#allocation8 + $0xc08] sm:$0xff]
    %v3802 = vld [vmem:[#allocation8 + $0xc10] sm:$0xff]
    %v3803 = vld [vmem:[#allocation8 + $0xc18] sm:$0xff]
    %v3804 = vld [vmem:[#allocation8 + $0xc20] sm:$0xf]
    %v3805 = vld [vmem:[#allocation8 + $0xc24] sm:$0xff]
    %v3806 = vld [vmem:[#allocation8 + $0xc2c] sm:$0xff]
    %v3807 = vld [vmem:[#allocation8 + $0xc34] sm:$0xff]
    %v3808 = vld [vmem:[#allocation8 + $0xc3c] sm:$0xf]
    %v3809 = vld [vmem:[#allocation10] sm:$0xff]
    %v3811 = vperm.slane %v3809, 0
    %v3812 = vperm.slane %v3809, 1
    %v3813 = vperm.slane %v3809, 2
    %v3814 = vperm.slane %v3809, 3
    %v3815 = vperm.slane %v3809, 4
    %v3816 = vperm.slane %v3809, 5
    %v3817 = vperm.slane %v3809, 6
    %v4273 = vunpack.c.l.b16 %v3361
    %v4274 = vunpack.c.h.b16 %v3361
    %v4275 = vunpack.c.l.b16 %v3362
    %v4276 = vunpack.c.h.b16 %v3362
    %v4277 = vunpack.c.l.b16 %v3363
    %v4278 = vunpack.c.h.b16 %v3363
    %v4279 = vunpack.c.l.b16 %v3364
    %v4280 = vunpack.c.l.b16 %v3365
    %v4281 = vunpack.c.h.b16 %v3365
    %v4282 = vunpack.c.l.b16 %v3366
    %v4283 = vunpack.c.h.b16 %v3366
    %v4284 = vunpack.c.l.b16 %v3367
    %v4285 = vunpack.c.h.b16 %v3367
    %v4286 = vunpack.c.l.b16 %v3368
    %v4287 = vunpack.c.l.b16 %v3369
    %v4288 = vunpack.c.h.b16 %v3369
    %v4289 = vunpack.c.l.b16 %v3370
    %v4290 = vunpack.c.h.b16 %v3370
    %v4291 = vunpack.c.l.b16 %v3371
    %v4292 = vunpack.c.h.b16 %v3371
    %v4293 = vunpack.c.l.b16 %v3372
    %v4294 = vunpack.c.l.b16 %v3373
    %v4295 = vunpack.c.h.b16 %v3373
    %v4296 = vunpack.c.l.b16 %v3374
    %v4297 = vunpack.c.h.b16 %v3374
    %v4298 = vunpack.c.l.b16 %v3375
    %v4299 = vunpack.c.h.b16 %v3375
    %v4300 = vunpack.c.l.b16 %v3376
    %v4301 = vunpack.c.l.b16 %v3377
    %v4302 = vunpack.c.h.b16 %v3377
    %v4303 = vunpack.c.l.b16 %v3378
    %v4304 = vunpack.c.h.b16 %v3378
    %v4305 = vunpack.c.l.b16 %v3379
    %v4306 = vunpack.c.h.b16 %v3379
    %v4307 = vunpack.c.l.b16 %v3380
    %v4308 = vunpack.c.l.b16 %v3381
    %v4309 = vunpack.c.h.b16 %v3381
    %v4310 = vunpack.c.l.b16 %v3382
    %v4311 = vunpack.c.h.b16 %v3382
    %v4312 = vunpack.c.l.b16 %v3383
    %v4313 = vunpack.c.h.b16 %v3383
    %v4314 = vunpack.c.l.b16 %v3384
    %v4315 = vunpack.c.l.b16 %v3385
    %v4316 = vunpack.c.h.b16 %v3385
    %v4317 = vunpack.c.l.b16 %v3386
    %v4318 = vunpack.c.h.b16 %v3386
    %v4319 = vunpack.c.l.b16 %v3387
    %v4320 = vunpack.c.h.b16 %v3387
    %v4321 = vunpack.c.l.b16 %v3388
    %v4322 = vunpack.c.l.b16 %v3389
    %v4323 = vunpack.c.h.b16 %v3389
    %v4324 = vunpack.c.l.b16 %v3390
    %v4325 = vunpack.c.h.b16 %v3390
    %v4326 = vunpack.c.l.b16 %v3391
    %v4327 = vunpack.c.h.b16 %v3391
    %v4328 = vunpack.c.l.b16 %v3392
    %v4329 = vunpack.c.l.b16 %v3393
    %v4330 = vunpack.c.h.b16 %v3393
    %v4331 = vunpack.c.l.b16 %v3394
    %v4332 = vunpack.c.h.b16 %v3394
    %v4333 = vunpack.c.l.b16 %v3395
    %v4334 = vunpack.c.h.b16 %v3395
    %v4335 = vunpack.c.l.b16 %v3396
    %v4336 = vunpack.c.l.b16 %v3397
    %v4337 = vunpack.c.h.b16 %v3397
    %v4338 = vunpack.c.l.b16 %v3398
    %v4339 = vunpack.c.h.b16 %v3398
    %v4340 = vunpack.c.l.b16 %v3399
    %v4341 = vunpack.c.h.b16 %v3399
    %v4342 = vunpack.c.l.b16 %v3400
    %v4343 = vunpack.c.l.b16 %v3401
    %v4344 = vunpack.c.h.b16 %v3401
    %v4345 = vunpack.c.l.b16 %v3402
    %v4346 = vunpack.c.h.b16 %v3402
    %v4347 = vunpack.c.l.b16 %v3403
    %v4348 = vunpack.c.h.b16 %v3403
    %v4349 = vunpack.c.l.b16 %v3404
    %v4350 = vunpack.c.l.b16 %v3405
    %v4351 = vunpack.c.h.b16 %v3405
    %v4352 = vunpack.c.l.b16 %v3406
    %v4353 = vunpack.c.h.b16 %v3406
    %v4354 = vunpack.c.l.b16 %v3407
    %v4355 = vunpack.c.h.b16 %v3407
    %v4356 = vunpack.c.l.b16 %v3408
    %v4357 = vunpack.c.l.b16 %v3409
    %v4358 = vunpack.c.h.b16 %v3409
    %v4359 = vunpack.c.l.b16 %v3410
    %v4360 = vunpack.c.h.b16 %v3410
    %v4361 = vunpack.c.l.b16 %v3411
    %v4362 = vunpack.c.h.b16 %v3411
    %v4363 = vunpack.c.l.b16 %v3412
    %v4364 = vunpack.c.l.b16 %v3413
    %v4365 = vunpack.c.h.b16 %v3413
    %v4366 = vunpack.c.l.b16 %v3414
    %v4367 = vunpack.c.h.b16 %v3414
    %v4368 = vunpack.c.l.b16 %v3415
    %v4369 = vunpack.c.h.b16 %v3415
    %v4370 = vunpack.c.l.b16 %v3416
    %v4371 = vunpack.c.l.b16 %v3417
    %v4372 = vunpack.c.h.b16 %v3417
    %v4373 = vunpack.c.l.b16 %v3418
    %v4374 = vunpack.c.h.b16 %v3418
    %v4375 = vunpack.c.l.b16 %v3419
    %v4376 = vunpack.c.h.b16 %v3419
    %v4377 = vunpack.c.l.b16 %v3420
    %v4378 = vunpack.c.l.b16 %v3421
    %v4379 = vunpack.c.h.b16 %v3421
    %v4380 = vunpack.c.l.b16 %v3422
    %v4381 = vunpack.c.h.b16 %v3422
    %v4382 = vunpack.c.l.b16 %v3423
    %v4383 = vunpack.c.h.b16 %v3423
    %v4384 = vunpack.c.l.b16 %v3424
    %v4385 = vunpack.c.l.b16 %v3425
    %v4386 = vunpack.c.h.b16 %v3425
    %v4387 = vunpack.c.l.b16 %v3426
    %v4388 = vunpack.c.h.b16 %v3426
    %v4389 = vunpack.c.l.b16 %v3427
    %v4390 = vunpack.c.h.b16 %v3427
    %v4391 = vunpack.c.l.b16 %v3428
    %v4392 = vunpack.c.l.b16 %v3429
    %v4393 = vunpack.c.h.b16 %v3429
    %v4394 = vunpack.c.l.b16 %v3430
    %v4395 = vunpack.c.h.b16 %v3430
    %v4396 = vunpack.c.l.b16 %v3431
    %v4397 = vunpack.c.h.b16 %v3431
    %v4398 = vunpack.c.l.b16 %v3432
    %v4399 = vunpack.c.l.b16 %v3433
    %v4400 = vunpack.c.h.b16 %v3433
    %v4401 = vunpack.c.l.b16 %v3434
    %v4402 = vunpack.c.h.b16 %v3434
    %v4403 = vunpack.c.l.b16 %v3435
    %v4404 = vunpack.c.h.b16 %v3435
    %v4405 = vunpack.c.l.b16 %v3436
    %v4406 = vunpack.c.l.b16 %v3437
    %v4407 = vunpack.c.h.b16 %v3437
    %v4408 = vunpack.c.l.b16 %v3438
    %v4409 = vunpack.c.h.b16 %v3438
    %v4410 = vunpack.c.l.b16 %v3439
    %v4411 = vunpack.c.h.b16 %v3439
    %v4412 = vunpack.c.l.b16 %v3440
    %v4413 = vunpack.c.l.b16 %v3441
    %v4414 = vunpack.c.h.b16 %v3441
    %v4415 = vunpack.c.l.b16 %v3442
    %v4416 = vunpack.c.h.b16 %v3442
    %v4417 = vunpack.c.l.b16 %v3443
    %v4418 = vunpack.c.h.b16 %v3443
    %v4419 = vunpack.c.l.b16 %v3444
    %v4420 = vunpack.c.l.b16 %v3445
    %v4421 = vunpack.c.h.b16 %v3445
    %v4422 = vunpack.c.l.b16 %v3446
    %v4423 = vunpack.c.h.b16 %v3446
    %v4424 = vunpack.c.l.b16 %v3447
    %v4425 = vunpack.c.h.b16 %v3447
    %v4426 = vunpack.c.l.b16 %v3448
    %v4427 = vunpack.c.l.b16 %v3449
    %v4428 = vunpack.c.h.b16 %v3449
    %v4429 = vunpack.c.l.b16 %v3450
    %v4430 = vunpack.c.h.b16 %v3450
    %v4431 = vunpack.c.l.b16 %v3451
    %v4432 = vunpack.c.h.b16 %v3451
    %v4433 = vunpack.c.l.b16 %v3452
    %v4434 = vunpack.c.l.b16 %v3453
    %v4435 = vunpack.c.h.b16 %v3453
    %v4436 = vunpack.c.l.b16 %v3454
    %v4437 = vunpack.c.h.b16 %v3454
    %v4438 = vunpack.c.l.b16 %v3455
    %v4439 = vunpack.c.h.b16 %v3455
    %v4440 = vunpack.c.l.b16 %v3456
    %v4441 = vunpack.c.l.b16 %v3457
    %v4442 = vunpack.c.h.b16 %v3457
    %v4443 = vunpack.c.l.b16 %v3458
    %v4444 = vunpack.c.h.b16 %v3458
    %v4445 = vunpack.c.l.b16 %v3459
    %v4446 = vunpack.c.h.b16 %v3459
    %v4447 = vunpack.c.l.b16 %v3460
    %v4448 = vunpack.c.l.b16 %v3461
    %v4449 = vunpack.c.h.b16 %v3461
    %v4450 = vunpack.c.l.b16 %v3462
    %v4451 = vunpack.c.h.b16 %v3462
    %v4452 = vunpack.c.l.b16 %v3463
    %v4453 = vunpack.c.h.b16 %v3463
    %v4454 = vunpack.c.l.b16 %v3464
    %v4455 = vunpack.c.l.b16 %v3465
    %v4456 = vunpack.c.h.b16 %v3465
    %v4457 = vunpack.c.l.b16 %v3466
    %v4458 = vunpack.c.h.b16 %v3466
    %v4459 = vunpack.c.l.b16 %v3467
    %v4460 = vunpack.c.h.b16 %v3467
    %v4461 = vunpack.c.l.b16 %v3468
    %v4462 = vunpack.c.l.b16 %v3469
    %v4463 = vunpack.c.h.b16 %v3469
    %v4464 = vunpack.c.l.b16 %v3470
    %v4465 = vunpack.c.h.b16 %v3470
    %v4466 = vunpack.c.l.b16 %v3471
    %v4467 = vunpack.c.h.b16 %v3471
    %v4468 = vunpack.c.l.b16 %v3472
    %v4469 = vunpack.c.l.b16 %v3473
    %v4470 = vunpack.c.h.b16 %v3473
    %v4471 = vunpack.c.l.b16 %v3474
    %v4472 = vunpack.c.h.b16 %v3474
    %v4473 = vunpack.c.l.b16 %v3475
    %v4474 = vunpack.c.h.b16 %v3475
    %v4475 = vunpack.c.l.b16 %v3476
    %v4476 = vunpack.c.l.b16 %v3477
    %v4477 = vunpack.c.h.b16 %v3477
    %v4478 = vunpack.c.l.b16 %v3478
    %v4479 = vunpack.c.h.b16 %v3478
    %v4480 = vunpack.c.l.b16 %v3479
    %v4481 = vunpack.c.h.b16 %v3479
    %v4482 = vunpack.c.l.b16 %v3480
    %v4483 = vunpack.c.l.b16 %v3481
    %v4484 = vunpack.c.h.b16 %v3481
    %v4485 = vunpack.c.l.b16 %v3482
    %v4486 = vunpack.c.h.b16 %v3482
    %v4487 = vunpack.c.l.b16 %v3483
    %v4488 = vunpack.c.h.b16 %v3483
    %v4489 = vunpack.c.l.b16 %v3484
    %v4490 = vunpack.c.l.b16 %v3485
    %v4491 = vunpack.c.h.b16 %v3485
    %v4492 = vunpack.c.l.b16 %v3486
    %v4493 = vunpack.c.h.b16 %v3486
    %v4494 = vunpack.c.l.b16 %v3487
    %v4495 = vunpack.c.h.b16 %v3487
    %v4496 = vunpack.c.l.b16 %v3488
    %v4497 = vunpack.c.l.b16 %v3489
    %v4498 = vunpack.c.h.b16 %v3489
    %v4499 = vunpack.c.l.b16 %v3490
    %v4500 = vunpack.c.h.b16 %v3490
    %v4501 = vunpack.c.l.b16 %v3491
    %v4502 = vunpack.c.h.b16 %v3491
    %v4503 = vunpack.c.l.b16 %v3492
    %v4504 = vunpack.c.l.b16 %v3493
    %v4505 = vunpack.c.h.b16 %v3493
    %v4506 = vunpack.c.l.b16 %v3494
    %v4507 = vunpack.c.h.b16 %v3494
    %v4508 = vunpack.c.l.b16 %v3495
    %v4509 = vunpack.c.h.b16 %v3495
    %v4510 = vunpack.c.l.b16 %v3496
    %v4511 = vunpack.c.l.b16 %v3497
    %v4512 = vunpack.c.h.b16 %v3497
    %v4513 = vunpack.c.l.b16 %v3498
    %v4514 = vunpack.c.h.b16 %v3498
    %v4515 = vunpack.c.l.b16 %v3499
    %v4516 = vunpack.c.h.b16 %v3499
    %v4517 = vunpack.c.l.b16 %v3500
    %v4518 = vunpack.c.l.b16 %v3501
    %v4519 = vunpack.c.h.b16 %v3501
    %v4520 = vunpack.c.l.b16 %v3502
    %v4521 = vunpack.c.h.b16 %v3502
    %v4522 = vunpack.c.l.b16 %v3503
    %v4523 = vunpack.c.h.b16 %v3503
    %v4524 = vunpack.c.l.b16 %v3504
    %v4525 = vunpack.c.l.b16 %v3505
    %v4526 = vunpack.c.h.b16 %v3505
    %v4527 = vunpack.c.l.b16 %v3506
    %v4528 = vunpack.c.h.b16 %v3506
    %v4529 = vunpack.c.l.b16 %v3507
    %v4530 = vunpack.c.h.b16 %v3507
    %v4531 = vunpack.c.l.b16 %v3508
    %v4532 = vunpack.c.l.b16 %v3509
    %v4533 = vunpack.c.h.b16 %v3509
    %v4534 = vunpack.c.l.b16 %v3510
    %v4535 = vunpack.c.h.b16 %v3510
    %v4536 = vunpack.c.l.b16 %v3511
    %v4537 = vunpack.c.h.b16 %v3511
    %v4538 = vunpack.c.l.b16 %v3512
    %v4539 = vunpack.c.l.b16 %v3513
    %v4540 = vunpack.c.h.b16 %v3513
    %v4541 = vunpack.c.l.b16 %v3514
    %v4542 = vunpack.c.h.b16 %v3514
    %v4543 = vunpack.c.l.b16 %v3515
    %v4544 = vunpack.c.h.b16 %v3515
    %v4545 = vunpack.c.l.b16 %v3516
    %v4546 = vunpack.c.l.b16 %v3517
    %v4547 = vunpack.c.h.b16 %v3517
    %v4548 = vunpack.c.l.b16 %v3518
    %v4549 = vunpack.c.h.b16 %v3518
    %v4550 = vunpack.c.l.b16 %v3519
    %v4551 = vunpack.c.h.b16 %v3519
    %v4552 = vunpack.c.l.b16 %v3520
    %v4553 = vunpack.c.l.b16 %v3521
    %v4554 = vunpack.c.h.b16 %v3521
    %v4555 = vunpack.c.l.b16 %v3522
    %v4556 = vunpack.c.h.b16 %v3522
    %v4557 = vunpack.c.l.b16 %v3523
    %v4558 = vunpack.c.h.b16 %v3523
    %v4559 = vunpack.c.l.b16 %v3524
    %v4560 = vunpack.c.l.b16 %v3525
    %v4561 = vunpack.c.h.b16 %v3525
    %v4562 = vunpack.c.l.b16 %v3526
    %v4563 = vunpack.c.h.b16 %v3526
    %v4564 = vunpack.c.l.b16 %v3527
    %v4565 = vunpack.c.h.b16 %v3527
    %v4566 = vunpack.c.l.b16 %v3528
    %v4567 = vunpack.c.l.b16 %v3529
    %v4568 = vunpack.c.h.b16 %v3529
    %v4569 = vunpack.c.l.b16 %v3530
    %v4570 = vunpack.c.h.b16 %v3530
    %v4571 = vunpack.c.l.b16 %v3531
    %v4572 = vunpack.c.h.b16 %v3531
    %v4573 = vunpack.c.l.b16 %v3532
    %v4574 = vunpack.c.l.b16 %v3533
    %v4575 = vunpack.c.h.b16 %v3533
    %v4576 = vunpack.c.l.b16 %v3534
    %v4577 = vunpack.c.h.b16 %v3534
    %v4578 = vunpack.c.l.b16 %v3535
    %v4579 = vunpack.c.h.b16 %v3535
    %v4580 = vunpack.c.l.b16 %v3536
    %v4581 = vunpack.c.l.b16 %v3537
    %v4582 = vunpack.c.h.b16 %v3537
    %v4583 = vunpack.c.l.b16 %v3538
    %v4584 = vunpack.c.h.b16 %v3538
    %v4585 = vunpack.c.l.b16 %v3539
    %v4586 = vunpack.c.h.b16 %v3539
    %v4587 = vunpack.c.l.b16 %v3540
    %v4588 = vunpack.c.l.b16 %v3541
    %v4589 = vunpack.c.h.b16 %v3541
    %v4590 = vunpack.c.l.b16 %v3542
    %v4591 = vunpack.c.h.b16 %v3542
    %v4592 = vunpack.c.l.b16 %v3543
    %v4593 = vunpack.c.h.b16 %v3543
    %v4594 = vunpack.c.l.b16 %v3544
    %v4595 = vunpack.c.l.b16 %v3545
    %v4596 = vunpack.c.h.b16 %v3545
    %v4597 = vunpack.c.l.b16 %v3546
    %v4598 = vunpack.c.h.b16 %v3546
    %v4599 = vunpack.c.l.b16 %v3547
    %v4600 = vunpack.c.h.b16 %v3547
    %v4601 = vunpack.c.l.b16 %v3548
    %v4602 = vunpack.c.l.b16 %v3549
    %v4603 = vunpack.c.h.b16 %v3549
    %v4604 = vunpack.c.l.b16 %v3550
    %v4605 = vunpack.c.h.b16 %v3550
    %v4606 = vunpack.c.l.b16 %v3551
    %v4607 = vunpack.c.h.b16 %v3551
    %v4608 = vunpack.c.l.b16 %v3552
    %v4609 = vunpack.c.l.b16 %v3553
    %v4610 = vunpack.c.h.b16 %v3553
    %v4611 = vunpack.c.l.b16 %v3554
    %v4612 = vunpack.c.h.b16 %v3554
    %v4613 = vunpack.c.l.b16 %v3555
    %v4614 = vunpack.c.h.b16 %v3555
    %v4615 = vunpack.c.l.b16 %v3556
    %v4616 = vunpack.c.l.b16 %v3557
    %v4617 = vunpack.c.h.b16 %v3557
    %v4618 = vunpack.c.l.b16 %v3558
    %v4619 = vunpack.c.h.b16 %v3558
    %v4620 = vunpack.c.l.b16 %v3559
    %v4621 = vunpack.c.h.b16 %v3559
    %v4622 = vunpack.c.l.b16 %v3560
    %v4623 = vunpack.c.l.b16 %v3561
    %v4624 = vunpack.c.h.b16 %v3561
    %v4625 = vunpack.c.l.b16 %v3562
    %v4626 = vunpack.c.h.b16 %v3562
    %v4627 = vunpack.c.l.b16 %v3563
    %v4628 = vunpack.c.h.b16 %v3563
    %v4629 = vunpack.c.l.b16 %v3564
    %v4630 = vunpack.c.l.b16 %v3565
    %v4631 = vunpack.c.h.b16 %v3565
    %v4632 = vunpack.c.l.b16 %v3566
    %v4633 = vunpack.c.h.b16 %v3566
    %v4634 = vunpack.c.l.b16 %v3567
    %v4635 = vunpack.c.h.b16 %v3567
    %v4636 = vunpack.c.l.b16 %v3568
    %v4637 = vunpack.c.l.b16 %v3569
    %v4638 = vunpack.c.h.b16 %v3569
    %v4639 = vunpack.c.l.b16 %v3570
    %v4640 = vunpack.c.h.b16 %v3570
    %v4641 = vunpack.c.l.b16 %v3571
    %v4642 = vunpack.c.h.b16 %v3571
    %v4643 = vunpack.c.l.b16 %v3572
    %v4644 = vunpack.c.l.b16 %v3573
    %v4645 = vunpack.c.h.b16 %v3573
    %v4646 = vunpack.c.l.b16 %v3574
    %v4647 = vunpack.c.h.b16 %v3574
    %v4648 = vunpack.c.l.b16 %v3575
    %v4649 = vunpack.c.h.b16 %v3575
    %v4650 = vunpack.c.l.b16 %v3576
    %v4651 = vunpack.c.l.b16 %v3577
    %v4652 = vunpack.c.h.b16 %v3577
    %v4653 = vunpack.c.l.b16 %v3578
    %v4654 = vunpack.c.h.b16 %v3578
    %v4655 = vunpack.c.l.b16 %v3579
    %v4656 = vunpack.c.h.b16 %v3579
    %v4657 = vunpack.c.l.b16 %v3580
    %v4658 = vunpack.c.l.b16 %v3581
    %v4659 = vunpack.c.h.b16 %v3581
    %v4660 = vunpack.c.l.b16 %v3582
    %v4661 = vunpack.c.h.b16 %v3582
    %v4662 = vunpack.c.l.b16 %v3583
    %v4663 = vunpack.c.h.b16 %v3583
    %v4664 = vunpack.c.l.b16 %v3584
    %v4665 = vunpack.c.l.b16 %v3585
    %v4666 = vunpack.c.h.b16 %v3585
    %v4667 = vunpack.c.l.b16 %v3586
    %v4668 = vunpack.c.h.b16 %v3586
    %v4669 = vunpack.c.l.b16 %v3587
    %v4670 = vunpack.c.h.b16 %v3587
    %v4671 = vunpack.c.l.b16 %v3588
    %v4672 = vunpack.c.l.b16 %v3589
    %v4673 = vunpack.c.h.b16 %v3589
    %v4674 = vunpack.c.l.b16 %v3590
    %v4675 = vunpack.c.h.b16 %v3590
    %v4676 = vunpack.c.l.b16 %v3591
    %v4677 = vunpack.c.h.b16 %v3591
    %v4678 = vunpack.c.l.b16 %v3592
    %v4679 = vunpack.c.l.b16 %v3593
    %v4680 = vunpack.c.h.b16 %v3593
    %v4681 = vunpack.c.l.b16 %v3594
    %v4682 = vunpack.c.h.b16 %v3594
    %v4683 = vunpack.c.l.b16 %v3595
    %v4684 = vunpack.c.h.b16 %v3595
    %v4685 = vunpack.c.l.b16 %v3596
    %v4686 = vunpack.c.l.b16 %v3597
    %v4687 = vunpack.c.h.b16 %v3597
    %v4688 = vunpack.c.l.b16 %v3598
    %v4689 = vunpack.c.h.b16 %v3598
    %v4690 = vunpack.c.l.b16 %v3599
    %v4691 = vunpack.c.h.b16 %v3599
    %v4692 = vunpack.c.l.b16 %v3600
    %v4693 = vunpack.c.l.b16 %v3601
    %v4694 = vunpack.c.h.b16 %v3601
    %v4695 = vunpack.c.l.b16 %v3602
    %v4696 = vunpack.c.h.b16 %v3602
    %v4697 = vunpack.c.l.b16 %v3603
    %v4698 = vunpack.c.h.b16 %v3603
    %v4699 = vunpack.c.l.b16 %v3604
    %v4700 = vunpack.c.l.b16 %v3605
    %v4701 = vunpack.c.h.b16 %v3605
    %v4702 = vunpack.c.l.b16 %v3606
    %v4703 = vunpack.c.h.b16 %v3606
    %v4704 = vunpack.c.l.b16 %v3607
    %v4705 = vunpack.c.h.b16 %v3607
    %v4706 = vunpack.c.l.b16 %v3608
    %v4707 = vunpack.c.l.b16 %v3609
    %v4708 = vunpack.c.h.b16 %v3609
    %v4709 = vunpack.c.l.b16 %v3610
    %v4710 = vunpack.c.h.b16 %v3610
    %v4711 = vunpack.c.l.b16 %v3611
    %v4712 = vunpack.c.h.b16 %v3611
    %v4713 = vunpack.c.l.b16 %v3612
    %v4714 = vunpack.c.l.b16 %v3613
    %v4715 = vunpack.c.h.b16 %v3613
    %v4716 = vunpack.c.l.b16 %v3614
    %v4717 = vunpack.c.h.b16 %v3614
    %v4718 = vunpack.c.l.b16 %v3615
    %v4719 = vunpack.c.h.b16 %v3615
    %v4720 = vunpack.c.l.b16 %v3616
    %v4721 = vunpack.c.l.b16 %v3617
    %v4722 = vunpack.c.h.b16 %v3617
    %v4723 = vunpack.c.l.b16 %v3618
    %v4724 = vunpack.c.h.b16 %v3618
    %v4725 = vunpack.c.l.b16 %v3619
    %v4726 = vunpack.c.h.b16 %v3619
    %v4727 = vunpack.c.l.b16 %v3620
    %v4728 = vunpack.c.l.b16 %v3621
    %v4729 = vunpack.c.h.b16 %v3621
    %v4730 = vunpack.c.l.b16 %v3622
    %v4731 = vunpack.c.h.b16 %v3622
    %v4732 = vunpack.c.l.b16 %v3623
    %v4733 = vunpack.c.h.b16 %v3623
    %v4734 = vunpack.c.l.b16 %v3624
    %v4735 = vunpack.c.l.b16 %v3625
    %v4736 = vunpack.c.h.b16 %v3625
    %v4737 = vunpack.c.l.b16 %v3626
    %v4738 = vunpack.c.h.b16 %v3626
    %v4739 = vunpack.c.l.b16 %v3627
    %v4740 = vunpack.c.h.b16 %v3627
    %v4741 = vunpack.c.l.b16 %v3628
    %v4742 = vunpack.c.l.b16 %v3629
    %v4743 = vunpack.c.h.b16 %v3629
    %v4744 = vunpack.c.l.b16 %v3630
    %v4745 = vunpack.c.h.b16 %v3630
    %v4746 = vunpack.c.l.b16 %v3631
    %v4747 = vunpack.c.h.b16 %v3631
    %v4748 = vunpack.c.l.b16 %v3632
    %v4749 = vunpack.c.l.b16 %v3633
    %v4750 = vunpack.c.h.b16 %v3633
    %v4751 = vunpack.c.l.b16 %v3634
    %v4752 = vunpack.c.h.b16 %v3634
    %v4753 = vunpack.c.l.b16 %v3635
    %v4754 = vunpack.c.h.b16 %v3635
    %v4755 = vunpack.c.l.b16 %v3636
    %v4756 = vunpack.c.l.b16 %v3637
    %v4757 = vunpack.c.h.b16 %v3637
    %v4758 = vunpack.c.l.b16 %v3638
    %v4759 = vunpack.c.h.b16 %v3638
    %v4760 = vunpack.c.l.b16 %v3639
    %v4761 = vunpack.c.h.b16 %v3639
    %v4762 = vunpack.c.l.b16 %v3640
    %v4763 = vunpack.c.l.b16 %v3641
    %v4764 = vunpack.c.h.b16 %v3641
    %v4765 = vunpack.c.l.b16 %v3642
    %v4766 = vunpack.c.h.b16 %v3642
    %v4767 = vunpack.c.l.b16 %v3643
    %v4768 = vunpack.c.h.b16 %v3643
    %v4769 = vunpack.c.l.b16 %v3644
    %v4770 = vunpack.c.l.b16 %v3645
    %v4771 = vunpack.c.h.b16 %v3645
    %v4772 = vunpack.c.l.b16 %v3646
    %v4773 = vunpack.c.h.b16 %v3646
    %v4774 = vunpack.c.l.b16 %v3647
    %v4775 = vunpack.c.h.b16 %v3647
    %v4776 = vunpack.c.l.b16 %v3648
    %v4777 = vunpack.c.l.b16 %v3649
    %v4778 = vunpack.c.h.b16 %v3649
    %v4779 = vunpack.c.l.b16 %v3650
    %v4780 = vunpack.c.h.b16 %v3650
    %v4781 = vunpack.c.l.b16 %v3651
    %v4782 = vunpack.c.h.b16 %v3651
    %v4783 = vunpack.c.l.b16 %v3652
    %v4784 = vunpack.c.l.b16 %v3653
    %v4785 = vunpack.c.h.b16 %v3653
    %v4786 = vunpack.c.l.b16 %v3654
    %v4787 = vunpack.c.h.b16 %v3654
    %v4788 = vunpack.c.l.b16 %v3655
    %v4789 = vunpack.c.h.b16 %v3655
    %v4790 = vunpack.c.l.b16 %v3656
    %v4791 = vunpack.c.l.b16 %v3657
    %v4792 = vunpack.c.h.b16 %v3657
    %v4793 = vunpack.c.l.b16 %v3658
    %v4794 = vunpack.c.h.b16 %v3658
    %v4795 = vunpack.c.l.b16 %v3659
    %v4796 = vunpack.c.h.b16 %v3659
    %v4797 = vunpack.c.l.b16 %v3660
    %v4798 = vunpack.c.l.b16 %v3661
    %v4799 = vunpack.c.h.b16 %v3661
    %v4800 = vunpack.c.l.b16 %v3662
    %v4801 = vunpack.c.h.b16 %v3662
    %v4802 = vunpack.c.l.b16 %v3663
    %v4803 = vunpack.c.h.b16 %v3663
    %v4804 = vunpack.c.l.b16 %v3664
    %v4805 = vunpack.c.l.b16 %v3665
    %v4806 = vunpack.c.h.b16 %v3665
    %v4807 = vunpack.c.l.b16 %v3666
    %v4808 = vunpack.c.h.b16 %v3666
    %v4809 = vunpack.c.l.b16 %v3667
    %v4810 = vunpack.c.h.b16 %v3667
    %v4811 = vunpack.c.l.b16 %v3668
    %v4812 = vunpack.c.l.b16 %v3669
    %v4813 = vunpack.c.h.b16 %v3669
    %v4814 = vunpack.c.l.b16 %v3670
    %v4815 = vunpack.c.h.b16 %v3670
    %v4816 = vunpack.c.l.b16 %v3671
    %v4817 = vunpack.c.h.b16 %v3671
    %v4818 = vunpack.c.l.b16 %v3672
    %v4819 = vunpack.c.l.b16 %v3673
    %v4820 = vunpack.c.h.b16 %v3673
    %v4821 = vunpack.c.l.b16 %v3674
    %v4822 = vunpack.c.h.b16 %v3674
    %v4823 = vunpack.c.l.b16 %v3675
    %v4824 = vunpack.c.h.b16 %v3675
    %v4825 = vunpack.c.l.b16 %v3676
    %v4826 = vunpack.c.l.b16 %v3677
    %v4827 = vunpack.c.h.b16 %v3677
    %v4828 = vunpack.c.l.b16 %v3678
    %v4829 = vunpack.c.h.b16 %v3678
    %v4830 = vunpack.c.l.b16 %v3679
    %v4831 = vunpack.c.h.b16 %v3679
    %v4832 = vunpack.c.l.b16 %v3680
    %v4833 = vunpack.c.l.b16 %v3681
    %v4834 = vunpack.c.h.b16 %v3681
    %v4835 = vunpack.c.l.b16 %v3682
    %v4836 = vunpack.c.h.b16 %v3682
    %v4837 = vunpack.c.l.b16 %v3683
    %v4838 = vunpack.c.h.b16 %v3683
    %v4839 = vunpack.c.l.b16 %v3684
    %v4840 = vunpack.c.l.b16 %v3685
    %v4841 = vunpack.c.h.b16 %v3685
    %v4842 = vunpack.c.l.b16 %v3686
    %v4843 = vunpack.c.h.b16 %v3686
    %v4844 = vunpack.c.l.b16 %v3687
    %v4845 = vunpack.c.h.b16 %v3687
    %v4846 = vunpack.c.l.b16 %v3688
    %v4847 = vunpack.c.l.b16 %v3689
    %v4848 = vunpack.c.h.b16 %v3689
    %v4849 = vunpack.c.l.b16 %v3690
    %v4850 = vunpack.c.h.b16 %v3690
    %v4851 = vunpack.c.l.b16 %v3691
    %v4852 = vunpack.c.h.b16 %v3691
    %v4853 = vunpack.c.l.b16 %v3692
    %v4854 = vunpack.c.l.b16 %v3693
    %v4855 = vunpack.c.h.b16 %v3693
    %v4856 = vunpack.c.l.b16 %v3694
    %v4857 = vunpack.c.h.b16 %v3694
    %v4858 = vunpack.c.l.b16 %v3695
    %v4859 = vunpack.c.h.b16 %v3695
    %v4860 = vunpack.c.l.b16 %v3696
    %v4861 = vunpack.c.l.b16 %v3697
    %v4862 = vunpack.c.h.b16 %v3697
    %v4863 = vunpack.c.l.b16 %v3698
    %v4864 = vunpack.c.h.b16 %v3698
    %v4865 = vunpack.c.l.b16 %v3699
    %v4866 = vunpack.c.h.b16 %v3699
    %v4867 = vunpack.c.l.b16 %v3700
    %v4868 = vunpack.c.l.b16 %v3701
    %v4869 = vunpack.c.h.b16 %v3701
    %v4870 = vunpack.c.l.b16 %v3702
    %v4871 = vunpack.c.h.b16 %v3702
    %v4872 = vunpack.c.l.b16 %v3703
    %v4873 = vunpack.c.h.b16 %v3703
    %v4874 = vunpack.c.l.b16 %v3704
    %v4875 = vunpack.c.l.b16 %v3705
    %v4876 = vunpack.c.h.b16 %v3705
    %v4877 = vunpack.c.l.b16 %v3706
    %v4878 = vunpack.c.h.b16 %v3706
    %v4879 = vunpack.c.l.b16 %v3707
    %v4880 = vunpack.c.h.b16 %v3707
    %v4881 = vunpack.c.l.b16 %v3708
    %v4882 = vunpack.c.l.b16 %v3709
    %v4883 = vunpack.c.h.b16 %v3709
    %v4884 = vunpack.c.l.b16 %v3710
    %v4885 = vunpack.c.h.b16 %v3710
    %v4886 = vunpack.c.l.b16 %v3711
    %v4887 = vunpack.c.h.b16 %v3711
    %v4888 = vunpack.c.l.b16 %v3712
    %v4889 = vunpack.c.l.b16 %v3713
    %v4890 = vunpack.c.h.b16 %v3713
    %v4891 = vunpack.c.l.b16 %v3714
    %v4892 = vunpack.c.h.b16 %v3714
    %v4893 = vunpack.c.l.b16 %v3715
    %v4894 = vunpack.c.h.b16 %v3715
    %v4895 = vunpack.c.l.b16 %v3716
    %v4896 = vunpack.c.l.b16 %v3717
    %v4897 = vunpack.c.h.b16 %v3717
    %v4898 = vunpack.c.l.b16 %v3718
    %v4899 = vunpack.c.h.b16 %v3718
    %v4900 = vunpack.c.l.b16 %v3719
    %v4901 = vunpack.c.h.b16 %v3719
    %v4902 = vunpack.c.l.b16 %v3720
    %v4903 = vunpack.c.l.b16 %v3721
    %v4904 = vunpack.c.h.b16 %v3721
    %v4905 = vunpack.c.l.b16 %v3722
    %v4906 = vunpack.c.h.b16 %v3722
    %v4907 = vunpack.c.l.b16 %v3723
    %v4908 = vunpack.c.h.b16 %v3723
    %v4909 = vunpack.c.l.b16 %v3724
    %v4910 = vunpack.c.l.b16 %v3725
    %v4911 = vunpack.c.h.b16 %v3725
    %v4912 = vunpack.c.l.b16 %v3726
    %v4913 = vunpack.c.h.b16 %v3726
    %v4914 = vunpack.c.l.b16 %v3727
    %v4915 = vunpack.c.h.b16 %v3727
    %v4916 = vunpack.c.l.b16 %v3728
    %v4917 = vunpack.c.l.b16 %v3729
    %v4918 = vunpack.c.h.b16 %v3729
    %v4919 = vunpack.c.l.b16 %v3730
    %v4920 = vunpack.c.h.b16 %v3730
    %v4921 = vunpack.c.l.b16 %v3731
    %v4922 = vunpack.c.h.b16 %v3731
    %v4923 = vunpack.c.l.b16 %v3732
    %v4924 = vunpack.c.l.b16 %v3733
    %v4925 = vunpack.c.h.b16 %v3733
    %v4926 = vunpack.c.l.b16 %v3734
    %v4927 = vunpack.c.h.b16 %v3734
    %v4928 = vunpack.c.l.b16 %v3735
    %v4929 = vunpack.c.h.b16 %v3735
    %v4930 = vunpack.c.l.b16 %v3736
    %v4931 = vunpack.c.l.b16 %v3737
    %v4932 = vunpack.c.h.b16 %v3737
    %v4933 = vunpack.c.l.b16 %v3738
    %v4934 = vunpack.c.h.b16 %v3738
    %v4935 = vunpack.c.l.b16 %v3739
    %v4936 = vunpack.c.h.b16 %v3739
    %v4937 = vunpack.c.l.b16 %v3740
    %v4938 = vunpack.c.l.b16 %v3741
    %v4939 = vunpack.c.h.b16 %v3741
    %v4940 = vunpack.c.l.b16 %v3742
    %v4941 = vunpack.c.h.b16 %v3742
    %v4942 = vunpack.c.l.b16 %v3743
    %v4943 = vunpack.c.h.b16 %v3743
    %v4944 = vunpack.c.l.b16 %v3744
    %v4945 = vunpack.c.l.b16 %v3745
    %v4946 = vunpack.c.h.b16 %v3745
    %v4947 = vunpack.c.l.b16 %v3746
    %v4948 = vunpack.c.h.b16 %v3746
    %v4949 = vunpack.c.l.b16 %v3747
    %v4950 = vunpack.c.h.b16 %v3747
    %v4951 = vunpack.c.l.b16 %v3748
    %v4952 = vunpack.c.l.b16 %v3749
    %v4953 = vunpack.c.h.b16 %v3749
    %v4954 = vunpack.c.l.b16 %v3750
    %v4955 = vunpack.c.h.b16 %v3750
    %v4956 = vunpack.c.l.b16 %v3751
    %v4957 = vunpack.c.h.b16 %v3751
    %v4958 = vunpack.c.l.b16 %v3752
    %v4959 = vunpack.c.l.b16 %v3753
    %v4960 = vunpack.c.h.b16 %v3753
    %v4961 = vunpack.c.l.b16 %v3754
    %v4962 = vunpack.c.h.b16 %v3754
    %v4963 = vunpack.c.l.b16 %v3755
    %v4964 = vunpack.c.h.b16 %v3755
    %v4965 = vunpack.c.l.b16 %v3756
    %v4966 = vunpack.c.l.b16 %v3757
    %v4967 = vunpack.c.h.b16 %v3757
    %v4968 = vunpack.c.l.b16 %v3758
    %v4969 = vunpack.c.h.b16 %v3758
    %v4970 = vunpack.c.l.b16 %v3759
    %v4971 = vunpack.c.h.b16 %v3759
    %v4972 = vunpack.c.l.b16 %v3760
    %v4973 = vunpack.c.l.b16 %v3761
    %v4974 = vunpack.c.h.b16 %v3761
    %v4975 = vunpack.c.l.b16 %v3762
    %v4976 = vunpack.c.h.b16 %v3762
    %v4977 = vunpack.c.l.b16 %v3763
    %v4978 = vunpack.c.h.b16 %v3763
    %v4979 = vunpack.c.l.b16 %v3764
    %v4980 = vunpack.c.l.b16 %v3765
    %v4981 = vunpack.c.h.b16 %v3765
    %v4982 = vunpack.c.l.b16 %v3766
    %v4983 = vunpack.c.h.b16 %v3766
    %v4984 = vunpack.c.l.b16 %v3767
    %v4985 = vunpack.c.h.b16 %v3767
    %v4986 = vunpack.c.l.b16 %v3768
    %v4987 = vunpack.c.l.b16 %v3769
    %v4988 = vunpack.c.h.b16 %v3769
    %v4989 = vunpack.c.l.b16 %v3770
    %v4990 = vunpack.c.h.b16 %v3770
    %v4991 = vunpack.c.l.b16 %v3771
    %v4992 = vunpack.c.h.b16 %v3771
    %v4993 = vunpack.c.l.b16 %v3772
    %v4994 = vunpack.c.l.b16 %v3773
    %v4995 = vunpack.c.h.b16 %v3773
    %v4996 = vunpack.c.l.b16 %v3774
    %v4997 = vunpack.c.h.b16 %v3774
    %v4998 = vunpack.c.l.b16 %v3775
    %v4999 = vunpack.c.h.b16 %v3775
    %v5000 = vunpack.c.l.b16 %v3776
    %v5001 = vunpack.c.l.b16 %v3777
    %v5002 = vunpack.c.h.b16 %v3777
    %v5003 = vunpack.c.l.b16 %v3778
    %v5004 = vunpack.c.h.b16 %v3778
    %v5005 = vunpack.c.l.b16 %v3779
    %v5006 = vunpack.c.h.b16 %v3779
    %v5007 = vunpack.c.l.b16 %v3780
    %v5008 = vunpack.c.l.b16 %v3781
    %v5009 = vunpack.c.h.b16 %v3781
    %v5010 = vunpack.c.l.b16 %v3782
    %v5011 = vunpack.c.h.b16 %v3782
    %v5012 = vunpack.c.l.b16 %v3783
    %v5013 = vunpack.c.h.b16 %v3783
    %v5014 = vunpack.c.l.b16 %v3784
    %v5015 = vunpack.c.l.b16 %v3785
    %v5016 = vunpack.c.h.b16 %v3785
    %v5017 = vunpack.c.l.b16 %v3786
    %v5018 = vunpack.c.h.b16 %v3786
    %v5019 = vunpack.c.l.b16 %v3787
    %v5020 = vunpack.c.h.b16 %v3787
    %v5021 = vunpack.c.l.b16 %v3788
    %v5022 = vunpack.c.l.b16 %v3789
    %v5023 = vunpack.c.h.b16 %v3789
    %v5024 = vunpack.c.l.b16 %v3790
    %v5025 = vunpack.c.h.b16 %v3790
    %v5026 = vunpack.c.l.b16 %v3791
    %v5027 = vunpack.c.h.b16 %v3791
    %v5028 = vunpack.c.l.b16 %v3792
    %v5029 = vunpack.c.l.b16 %v3793
    %v5030 = vunpack.c.h.b16 %v3793
    %v5031 = vunpack.c.l.b16 %v3794
    %v5032 = vunpack.c.h.b16 %v3794
    %v5033 = vunpack.c.l.b16 %v3795
    %v5034 = vunpack.c.h.b16 %v3795
    %v5035 = vunpack.c.l.b16 %v3796
    %v5036 = vunpack.c.l.b16 %v3797
    %v5037 = vunpack.c.h.b16 %v3797
    %v5038 = vunpack.c.l.b16 %v3798
    %v5039 = vunpack.c.h.b16 %v3798
    %v5040 = vunpack.c.l.b16 %v3799
    %v5041 = vunpack.c.h.b16 %v3799
    %v5042 = vunpack.c.l.b16 %v3800
    %v5043 = vunpack.c.l.b16 %v3801
    %v5044 = vunpack.c.h.b16 %v3801
    %v5045 = vunpack.c.l.b16 %v3802
    %v5046 = vunpack.c.h.b16 %v3802
    %v5047 = vunpack.c.l.b16 %v3803
    %v5048 = vunpack.c.h.b16 %v3803
    %v5049 = vunpack.c.l.b16 %v3804
    %v5050 = vunpack.c.l.b16 %v3805
    %v5051 = vunpack.c.h.b16 %v3805
    %v5052 = vunpack.c.l.b16 %v3806
    %v5053 = vunpack.c.h.b16 %v3806
    %v5054 = vunpack.c.l.b16 %v3807
    %v5055 = vunpack.c.h.b16 %v3807
    %v5056 = vunpack.c.l.b16 %v3808
    %v5057 = vpack.c.b16 %v4280, %v4273
    %v5058 = vpack.c.b16 %v4281, %v4274
    %v5059 = vpack.c.b16 %v4282, %v4275
    %v5060 = vpack.c.b16 %v4283, %v4276
    %v5061 = vpack.c.b16 %v4284, %v4277
    %v5062 = vpack.c.b16 %v4285, %v4278
    %v5063 = vpack.c.b16 %v4286, %v4279
    %v5064 = vpack.c.b16 %v4294, %v4287
    %v5065 = vpack.c.b16 %v4295, %v4288
    %v5066 = vpack.c.b16 %v4296, %v4289
    %v5067 = vpack.c.b16 %v4297, %v4290
    %v5068 = vpack.c.b16 %v4298, %v4291
    %v5069 = vpack.c.b16 %v4299, %v4292
    %v5070 = vpack.c.b16 %v4300, %v4293
    %v5071 = vpack.c.b16 %v4308, %v4301
    %v5072 = vpack.c.b16 %v4309, %v4302
    %v5073 = vpack.c.b16 %v4310, %v4303
    %v5074 = vpack.c.b16 %v4311, %v4304
    %v5075 = vpack.c.b16 %v4312, %v4305
    %v5076 = vpack.c.b16 %v4313, %v4306
    %v5077 = vpack.c.b16 %v4314, %v4307
    %v5078 = vpack.c.b16 %v4322, %v4315
    %v5079 = vpack.c.b16 %v4323, %v4316
    %v5080 = vpack.c.b16 %v4324, %v4317
    %v5081 = vpack.c.b16 %v4325, %v4318
    %v5082 = vpack.c.b16 %v4326, %v4319
    %v5083 = vpack.c.b16 %v4327, %v4320
    %v5084 = vpack.c.b16 %v4328, %v4321
    %v5085 = vpack.c.b16 %v4336, %v4329
    %v5086 = vpack.c.b16 %v4337, %v4330
    %v5087 = vpack.c.b16 %v4338, %v4331
    %v5088 = vpack.c.b16 %v4339, %v4332
    %v5089 = vpack.c.b16 %v4340, %v4333
    %v5090 = vpack.c.b16 %v4341, %v4334
    %v5091 = vpack.c.b16 %v4342, %v4335
    %v5092 = vpack.c.b16 %v4350, %v4343
    %v5093 = vpack.c.b16 %v4351, %v4344
    %v5094 = vpack.c.b16 %v4352, %v4345
    %v5095 = vpack.c.b16 %v4353, %v4346
    %v5096 = vpack.c.b16 %v4354, %v4347
    %v5097 = vpack.c.b16 %v4355, %v4348
    %v5098 = vpack.c.b16 %v4356, %v4349
    %v5099 = vpack.c.b16 %v4364, %v4357
    %v5100 = vpack.c.b16 %v4365, %v4358
    %v5101 = vpack.c.b16 %v4366, %v4359
    %v5102 = vpack.c.b16 %v4367, %v4360
    %v5103 = vpack.c.b16 %v4368, %v4361
    %v5104 = vpack.c.b16 %v4369, %v4362
    %v5105 = vpack.c.b16 %v4370, %v4363
    %v5106 = vpack.c.b16 %v4378, %v4371
    %v5107 = vpack.c.b16 %v4379, %v4372
    %v5108 = vpack.c.b16 %v4380, %v4373
    %v5109 = vpack.c.b16 %v4381, %v4374
    %v5110 = vpack.c.b16 %v4382, %v4375
    %v5111 = vpack.c.b16 %v4383, %v4376
    %v5112 = vpack.c.b16 %v4384, %v4377
    %v5113 = vpack.c.b16 %v4392, %v4385
    %v5114 = vpack.c.b16 %v4393, %v4386
    %v5115 = vpack.c.b16 %v4394, %v4387
    %v5116 = vpack.c.b16 %v4395, %v4388
    %v5117 = vpack.c.b16 %v4396, %v4389
    %v5118 = vpack.c.b16 %v4397, %v4390
    %v5119 = vpack.c.b16 %v4398, %v4391
    %v5120 = vpack.c.b16 %v4406, %v4399
    %v5121 = vpack.c.b16 %v4407, %v4400
    %v5122 = vpack.c.b16 %v4408, %v4401
    %v5123 = vpack.c.b16 %v4409, %v4402
    %v5124 = vpack.c.b16 %v4410, %v4403
    %v5125 = vpack.c.b16 %v4411, %v4404
    %v5126 = vpack.c.b16 %v4412, %v4405
    %v5127 = vpack.c.b16 %v4420, %v4413
    %v5128 = vpack.c.b16 %v4421, %v4414
    %v5129 = vpack.c.b16 %v4422, %v4415
    %v5130 = vpack.c.b16 %v4423, %v4416
    %v5131 = vpack.c.b16 %v4424, %v4417
    %v5132 = vpack.c.b16 %v4425, %v4418
    %v5133 = vpack.c.b16 %v4426, %v4419
    %v5134 = vpack.c.b16 %v4434, %v4427
    %v5135 = vpack.c.b16 %v4435, %v4428
    %v5136 = vpack.c.b16 %v4436, %v4429
    %v5137 = vpack.c.b16 %v4437, %v4430
    %v5138 = vpack.c.b16 %v4438, %v4431
    %v5139 = vpack.c.b16 %v4439, %v4432
    %v5140 = vpack.c.b16 %v4440, %v4433
    %v5141 = vpack.c.b16 %v4448, %v4441
    %v5142 = vpack.c.b16 %v4449, %v4442
    %v5143 = vpack.c.b16 %v4450, %v4443
    %v5144 = vpack.c.b16 %v4451, %v4444
    %v5145 = vpack.c.b16 %v4452, %v4445
    %v5146 = vpack.c.b16 %v4453, %v4446
    %v5147 = vpack.c.b16 %v4454, %v4447
    %v5148 = vpack.c.b16 %v4462, %v4455
    %v5149 = vpack.c.b16 %v4463, %v4456
    %v5150 = vpack.c.b16 %v4464, %v4457
    %v5151 = vpack.c.b16 %v4465, %v4458
    %v5152 = vpack.c.b16 %v4466, %v4459
    %v5153 = vpack.c.b16 %v4467, %v4460
    %v5154 = vpack.c.b16 %v4468, %v4461
    %v5155 = vpack.c.b16 %v4476, %v4469
    %v5156 = vpack.c.b16 %v4477, %v4470
    %v5157 = vpack.c.b16 %v4478, %v4471
    %v5158 = vpack.c.b16 %v4479, %v4472
    %v5159 = vpack.c.b16 %v4480, %v4473
    %v5160 = vpack.c.b16 %v4481, %v4474
    %v5161 = vpack.c.b16 %v4482, %v4475
    %v5162 = vpack.c.b16 %v4490, %v4483
    %v5163 = vpack.c.b16 %v4491, %v4484
    %v5164 = vpack.c.b16 %v4492, %v4485
    %v5165 = vpack.c.b16 %v4493, %v4486
    %v5166 = vpack.c.b16 %v4494, %v4487
    %v5167 = vpack.c.b16 %v4495, %v4488
    %v5168 = vpack.c.b16 %v4496, %v4489
    %v5169 = vpack.c.b16 %v4504, %v4497
    %v5170 = vpack.c.b16 %v4505, %v4498
    %v5171 = vpack.c.b16 %v4506, %v4499
    %v5172 = vpack.c.b16 %v4507, %v4500
    %v5173 = vpack.c.b16 %v4508, %v4501
    %v5174 = vpack.c.b16 %v4509, %v4502
    %v5175 = vpack.c.b16 %v4510, %v4503
    %v5176 = vpack.c.b16 %v4518, %v4511
    %v5177 = vpack.c.b16 %v4519, %v4512
    %v5178 = vpack.c.b16 %v4520, %v4513
    %v5179 = vpack.c.b16 %v4521, %v4514
    %v5180 = vpack.c.b16 %v4522, %v4515
    %v5181 = vpack.c.b16 %v4523, %v4516
    %v5182 = vpack.c.b16 %v4524, %v4517
    %v5183 = vpack.c.b16 %v4532, %v4525
    %v5184 = vpack.c.b16 %v4533, %v4526
    %v5185 = vpack.c.b16 %v4534, %v4527
    %v5186 = vpack.c.b16 %v4535, %v4528
    %v5187 = vpack.c.b16 %v4536, %v4529
    %v5188 = vpack.c.b16 %v4537, %v4530
    %v5189 = vpack.c.b16 %v4538, %v4531
    %v5190 = vpack.c.b16 %v4546, %v4539
    %v5191 = vpack.c.b16 %v4547, %v4540
    %v5192 = vpack.c.b16 %v4548, %v4541
    %v5193 = vpack.c.b16 %v4549, %v4542
    %v5194 = vpack.c.b16 %v4550, %v4543
    %v5195 = vpack.c.b16 %v4551, %v4544
    %v5196 = vpack.c.b16 %v4552, %v4545
    %v5197 = vpack.c.b16 %v4560, %v4553
    %v5198 = vpack.c.b16 %v4561, %v4554
    %v5199 = vpack.c.b16 %v4562, %v4555
    %v5200 = vpack.c.b16 %v4563, %v4556
    %v5201 = vpack.c.b16 %v4564, %v4557
    %v5202 = vpack.c.b16 %v4565, %v4558
    %v5203 = vpack.c.b16 %v4566, %v4559
    %v5204 = vpack.c.b16 %v4574, %v4567
    %v5205 = vpack.c.b16 %v4575, %v4568
    %v5206 = vpack.c.b16 %v4576, %v4569
    %v5207 = vpack.c.b16 %v4577, %v4570
    %v5208 = vpack.c.b16 %v4578, %v4571
    %v5209 = vpack.c.b16 %v4579, %v4572
    %v5210 = vpack.c.b16 %v4580, %v4573
    %v5211 = vpack.c.b16 %v4588, %v4581
    %v5212 = vpack.c.b16 %v4589, %v4582
    %v5213 = vpack.c.b16 %v4590, %v4583
    %v5214 = vpack.c.b16 %v4591, %v4584
    %v5215 = vpack.c.b16 %v4592, %v4585
    %v5216 = vpack.c.b16 %v4593, %v4586
    %v5217 = vpack.c.b16 %v4594, %v4587
    %v5218 = vpack.c.b16 %v4602, %v4595
    %v5219 = vpack.c.b16 %v4603, %v4596
    %v5220 = vpack.c.b16 %v4604, %v4597
    %v5221 = vpack.c.b16 %v4605, %v4598
    %v5222 = vpack.c.b16 %v4606, %v4599
    %v5223 = vpack.c.b16 %v4607, %v4600
    %v5224 = vpack.c.b16 %v4608, %v4601
    %v5225 = vpack.c.b16 %v4616, %v4609
    %v5226 = vpack.c.b16 %v4617, %v4610
    %v5227 = vpack.c.b16 %v4618, %v4611
    %v5228 = vpack.c.b16 %v4619, %v4612
    %v5229 = vpack.c.b16 %v4620, %v4613
    %v5230 = vpack.c.b16 %v4621, %v4614
    %v5231 = vpack.c.b16 %v4622, %v4615
    %v5232 = vpack.c.b16 %v4630, %v4623
    %v5233 = vpack.c.b16 %v4631, %v4624
    %v5234 = vpack.c.b16 %v4632, %v4625
    %v5235 = vpack.c.b16 %v4633, %v4626
    %v5236 = vpack.c.b16 %v4634, %v4627
    %v5237 = vpack.c.b16 %v4635, %v4628
    %v5238 = vpack.c.b16 %v4636, %v4629
    %v5239 = vpack.c.b16 %v4644, %v4637
    %v5240 = vpack.c.b16 %v4645, %v4638
    %v5241 = vpack.c.b16 %v4646, %v4639
    %v5242 = vpack.c.b16 %v4647, %v4640
    %v5243 = vpack.c.b16 %v4648, %v4641
    %v5244 = vpack.c.b16 %v4649, %v4642
    %v5245 = vpack.c.b16 %v4650, %v4643
    %v5246 = vpack.c.b16 %v4658, %v4651
    %v5247 = vpack.c.b16 %v4659, %v4652
    %v5248 = vpack.c.b16 %v4660, %v4653
    %v5249 = vpack.c.b16 %v4661, %v4654
    %v5250 = vpack.c.b16 %v4662, %v4655
    %v5251 = vpack.c.b16 %v4663, %v4656
    %v5252 = vpack.c.b16 %v4664, %v4657
    %v5253 = vpack.c.b16 %v4672, %v4665
    %v5254 = vpack.c.b16 %v4673, %v4666
    %v5255 = vpack.c.b16 %v4674, %v4667
    %v5256 = vpack.c.b16 %v4675, %v4668
    %v5257 = vpack.c.b16 %v4676, %v4669
    %v5258 = vpack.c.b16 %v4677, %v4670
    %v5259 = vpack.c.b16 %v4678, %v4671
    %v5260 = vpack.c.b16 %v4686, %v4679
    %v5261 = vpack.c.b16 %v4687, %v4680
    %v5262 = vpack.c.b16 %v4688, %v4681
    %v5263 = vpack.c.b16 %v4689, %v4682
    %v5264 = vpack.c.b16 %v4690, %v4683
    %v5265 = vpack.c.b16 %v4691, %v4684
    %v5266 = vpack.c.b16 %v4692, %v4685
    %v5267 = vpack.c.b16 %v4700, %v4693
    %v5268 = vpack.c.b16 %v4701, %v4694
    %v5269 = vpack.c.b16 %v4702, %v4695
    %v5270 = vpack.c.b16 %v4703, %v4696
    %v5271 = vpack.c.b16 %v4704, %v4697
    %v5272 = vpack.c.b16 %v4705, %v4698
    %v5273 = vpack.c.b16 %v4706, %v4699
    %v5274 = vpack.c.b16 %v4714, %v4707
    %v5275 = vpack.c.b16 %v4715, %v4708
    %v5276 = vpack.c.b16 %v4716, %v4709
    %v5277 = vpack.c.b16 %v4717, %v4710
    %v5278 = vpack.c.b16 %v4718, %v4711
    %v5279 = vpack.c.b16 %v4719, %v4712
    %v5280 = vpack.c.b16 %v4720, %v4713
    %v5281 = vpack.c.b16 %v4728, %v4721
    %v5282 = vpack.c.b16 %v4729, %v4722
    %v5283 = vpack.c.b16 %v4730, %v4723
    %v5284 = vpack.c.b16 %v4731, %v4724
    %v5285 = vpack.c.b16 %v4732, %v4725
    %v5286 = vpack.c.b16 %v4733, %v4726
    %v5287 = vpack.c.b16 %v4734, %v4727
    %v5288 = vpack.c.b16 %v4742, %v4735
    %v5289 = vpack.c.b16 %v4743, %v4736
    %v5290 = vpack.c.b16 %v4744, %v4737
    %v5291 = vpack.c.b16 %v4745, %v4738
    %v5292 = vpack.c.b16 %v4746, %v4739
    %v5293 = vpack.c.b16 %v4747, %v4740
    %v5294 = vpack.c.b16 %v4748, %v4741
    %v5295 = vpack.c.b16 %v4756, %v4749
    %v5296 = vpack.c.b16 %v4757, %v4750
    %v5297 = vpack.c.b16 %v4758, %v4751
    %v5298 = vpack.c.b16 %v4759, %v4752
    %v5299 = vpack.c.b16 %v4760, %v4753
    %v5300 = vpack.c.b16 %v4761, %v4754
    %v5301 = vpack.c.b16 %v4762, %v4755
    %v5302 = vpack.c.b16 %v4770, %v4763
    %v5303 = vpack.c.b16 %v4771, %v4764
    %v5304 = vpack.c.b16 %v4772, %v4765
    %v5305 = vpack.c.b16 %v4773, %v4766
    %v5306 = vpack.c.b16 %v4774, %v4767
    %v5307 = vpack.c.b16 %v4775, %v4768
    %v5308 = vpack.c.b16 %v4776, %v4769
    %v5309 = vpack.c.b16 %v4784, %v4777
    %v5310 = vpack.c.b16 %v4785, %v4778
    %v5311 = vpack.c.b16 %v4786, %v4779
    %v5312 = vpack.c.b16 %v4787, %v4780
    %v5313 = vpack.c.b16 %v4788, %v4781
    %v5314 = vpack.c.b16 %v4789, %v4782
    %v5315 = vpack.c.b16 %v4790, %v4783
    %v5316 = vpack.c.b16 %v4798, %v4791
    %v5317 = vpack.c.b16 %v4799, %v4792
    %v5318 = vpack.c.b16 %v4800, %v4793
    %v5319 = vpack.c.b16 %v4801, %v4794
    %v5320 = vpack.c.b16 %v4802, %v4795
    %v5321 = vpack.c.b16 %v4803, %v4796
    %v5322 = vpack.c.b16 %v4804, %v4797
    %v5323 = vpack.c.b16 %v4812, %v4805
    %v5324 = vpack.c.b16 %v4813, %v4806
    %v5325 = vpack.c.b16 %v4814, %v4807
    %v5326 = vpack.c.b16 %v4815, %v4808
    %v5327 = vpack.c.b16 %v4816, %v4809
    %v5328 = vpack.c.b16 %v4817, %v4810
    %v5329 = vpack.c.b16 %v4818, %v4811
    %v5330 = vpack.c.b16 %v4826, %v4819
    %v5331 = vpack.c.b16 %v4827, %v4820
    %v5332 = vpack.c.b16 %v4828, %v4821
    %v5333 = vpack.c.b16 %v4829, %v4822
    %v5334 = vpack.c.b16 %v4830, %v4823
    %v5335 = vpack.c.b16 %v4831, %v4824
    %v5336 = vpack.c.b16 %v4832, %v4825
    %v5337 = vpack.c.b16 %v4840, %v4833
    %v5338 = vpack.c.b16 %v4841, %v4834
    %v5339 = vpack.c.b16 %v4842, %v4835
    %v5340 = vpack.c.b16 %v4843, %v4836
    %v5341 = vpack.c.b16 %v4844, %v4837
    %v5342 = vpack.c.b16 %v4845, %v4838
    %v5343 = vpack.c.b16 %v4846, %v4839
    %v5344 = vpack.c.b16 %v4854, %v4847
    %v5345 = vpack.c.b16 %v4855, %v4848
    %v5346 = vpack.c.b16 %v4856, %v4849
    %v5347 = vpack.c.b16 %v4857, %v4850
    %v5348 = vpack.c.b16 %v4858, %v4851
    %v5349 = vpack.c.b16 %v4859, %v4852
    %v5350 = vpack.c.b16 %v4860, %v4853
    %v5351 = vpack.c.b16 %v4868, %v4861
    %v5352 = vpack.c.b16 %v4869, %v4862
    %v5353 = vpack.c.b16 %v4870, %v4863
    %v5354 = vpack.c.b16 %v4871, %v4864
    %v5355 = vpack.c.b16 %v4872, %v4865
    %v5356 = vpack.c.b16 %v4873, %v4866
    %v5357 = vpack.c.b16 %v4874, %v4867
    %v5358 = vpack.c.b16 %v4882, %v4875
    %v5359 = vpack.c.b16 %v4883, %v4876
    %v5360 = vpack.c.b16 %v4884, %v4877
    %v5361 = vpack.c.b16 %v4885, %v4878
    %v5362 = vpack.c.b16 %v4886, %v4879
    %v5363 = vpack.c.b16 %v4887, %v4880
    %v5364 = vpack.c.b16 %v4888, %v4881
    %v5365 = vpack.c.b16 %v4896, %v4889
    %v5366 = vpack.c.b16 %v4897, %v4890
    %v5367 = vpack.c.b16 %v4898, %v4891
    %v5368 = vpack.c.b16 %v4899, %v4892
    %v5369 = vpack.c.b16 %v4900, %v4893
    %v5370 = vpack.c.b16 %v4901, %v4894
    %v5371 = vpack.c.b16 %v4902, %v4895
    %v5372 = vpack.c.b16 %v4910, %v4903
    %v5373 = vpack.c.b16 %v4911, %v4904
    %v5374 = vpack.c.b16 %v4912, %v4905
    %v5375 = vpack.c.b16 %v4913, %v4906
    %v5376 = vpack.c.b16 %v4914, %v4907
    %v5377 = vpack.c.b16 %v4915, %v4908
    %v5378 = vpack.c.b16 %v4916, %v4909
    %v5379 = vpack.c.b16 %v4924, %v4917
    %v5380 = vpack.c.b16 %v4925, %v4918
    %v5381 = vpack.c.b16 %v4926, %v4919
    %v5382 = vpack.c.b16 %v4927, %v4920
    %v5383 = vpack.c.b16 %v4928, %v4921
    %v5384 = vpack.c.b16 %v4929, %v4922
    %v5385 = vpack.c.b16 %v4930, %v4923
    %v5386 = vpack.c.b16 %v4938, %v4931
    %v5387 = vpack.c.b16 %v4939, %v4932
    %v5388 = vpack.c.b16 %v4940, %v4933
    %v5389 = vpack.c.b16 %v4941, %v4934
    %v5390 = vpack.c.b16 %v4942, %v4935
    %v5391 = vpack.c.b16 %v4943, %v4936
    %v5392 = vpack.c.b16 %v4944, %v4937
    %v5393 = vpack.c.b16 %v4952, %v4945
    %v5394 = vpack.c.b16 %v4953, %v4946
    %v5395 = vpack.c.b16 %v4954, %v4947
    %v5396 = vpack.c.b16 %v4955, %v4948
    %v5397 = vpack.c.b16 %v4956, %v4949
    %v5398 = vpack.c.b16 %v4957, %v4950
    %v5399 = vpack.c.b16 %v4958, %v4951
    %v5400 = vpack.c.b16 %v4966, %v4959
    %v5401 = vpack.c.b16 %v4967, %v4960
    %v5402 = vpack.c.b16 %v4968, %v4961
    %v5403 = vpack.c.b16 %v4969, %v4962
    %v5404 = vpack.c.b16 %v4970, %v4963
    %v5405 = vpack.c.b16 %v4971, %v4964
    %v5406 = vpack.c.b16 %v4972, %v4965
    %v5407 = vpack.c.b16 %v4980, %v4973
    %v5408 = vpack.c.b16 %v4981, %v4974
    %v5409 = vpack.c.b16 %v4982, %v4975
    %v5410 = vpack.c.b16 %v4983, %v4976
    %v5411 = vpack.c.b16 %v4984, %v4977
    %v5412 = vpack.c.b16 %v4985, %v4978
    %v5413 = vpack.c.b16 %v4986, %v4979
    %v5414 = vpack.c.b16 %v4994, %v4987
    %v5415 = vpack.c.b16 %v4995, %v4988
    %v5416 = vpack.c.b16 %v4996, %v4989
    %v5417 = vpack.c.b16 %v4997, %v4990
    %v5418 = vpack.c.b16 %v4998, %v4991
    %v5419 = vpack.c.b16 %v4999, %v4992
    %v5420 = vpack.c.b16 %v5000, %v4993
    %v5421 = vpack.c.b16 %v5008, %v5001
    %v5422 = vpack.c.b16 %v5009, %v5002
    %v5423 = vpack.c.b16 %v5010, %v5003
    %v5424 = vpack.c.b16 %v5011, %v5004
    %v5425 = vpack.c.b16 %v5012, %v5005
    %v5426 = vpack.c.b16 %v5013, %v5006
    %v5427 = vpack.c.b16 %v5014, %v5007
    %v5428 = vpack.c.b16 %v5022, %v5015
    %v5429 = vpack.c.b16 %v5023, %v5016
    %v5430 = vpack.c.b16 %v5024, %v5017
    %v5431 = vpack.c.b16 %v5025, %v5018
    %v5432 = vpack.c.b16 %v5026, %v5019
    %v5433 = vpack.c.b16 %v5027, %v5020
    %v5434 = vpack.c.b16 %v5028, %v5021
    %v5435 = vpack.c.b16 %v5036, %v5029
    %v5436 = vpack.c.b16 %v5037, %v5030
    %v5437 = vpack.c.b16 %v5038, %v5031
    %v5438 = vpack.c.b16 %v5039, %v5032
    %v5439 = vpack.c.b16 %v5040, %v5033
    %v5440 = vpack.c.b16 %v5041, %v5034
    %v5441 = vpack.c.b16 %v5042, %v5035
    %v5442 = vpack.c.b16 %v5050, %v5043
    %v5443 = vpack.c.b16 %v5051, %v5044
    %v5444 = vpack.c.b16 %v5052, %v5045
    %v5445 = vpack.c.b16 %v5053, %v5046
    %v5446 = vpack.c.b16 %v5054, %v5047
    %v5447 = vpack.c.b16 %v5055, %v5048
    %v5448 = vpack.c.b16 %v5056, %v5049
    %5841 = vmatpush.bf16.msra.mxu0 %v5106
    %5842 = vmatpush.bf16.msra.mxu0 %v5099
    %5843 = vmatpush.bf16.msra.mxu0 %v5092
    %5844 = vmatpush.bf16.msra.mxu0 %v5085
    %5845 = vmatpush.bf16.msra.mxu0 %v5078
    %5846 = vmatpush.bf16.msra.mxu0 %v5071
    %5847 = vmatpush.bf16.msra.mxu0 %v5064
    %5848 = vmatpush.bf16.msra.mxu0 %v5057
    %5849 = vmatmul.bf16.gmra.mxu0 %v3354
    %v5850 = vpop.f32.mrf.mxu0
    %v5851 = vadd.f32 %v3811, %v5850
    %v5852 = vpop.f32.mrf.mxu0
    %v5853 = vadd.f32 %v3811, %v5852
    %5854 = vdwg.mxu0
    %5855 = vmatpush.bf16.msra.mxu0 %v5162
    %5856 = vmatpush.bf16.msra.mxu0 %v5155
    %5857 = vmatpush.bf16.msra.mxu0 %v5148
    %5858 = vmatpush.bf16.msra.mxu0 %v5141
    %5859 = vmatpush.bf16.msra.mxu0 %v5134
    %5860 = vmatpush.bf16.msra.mxu0 %v5127
    %5861 = vmatpush.bf16.msra.mxu0 %v5120
    %5862 = vmatpush.bf16.msra.mxu0 %v5113
    %5863 = vmatmul.bf16.gmra.mxu0 %v3355
    %v5864 = vpop.f32.mrf.mxu0
    %v5865 = vadd.f32 %v5851, %v5864
    %v5866 = vpop.f32.mrf.mxu0
    %v5867 = vadd.f32 %v5853, %v5866
    %5868 = vdwg.mxu0
    %5869 = vmatpush.bf16.msra.mxu0 %v5218
    %5870 = vmatpush.bf16.msra.mxu0 %v5211
    %5871 = vmatpush.bf16.msra.mxu0 %v5204
    %5872 = vmatpush.bf16.msra.mxu0 %v5197
    %5873 = vmatpush.bf16.msra.mxu0 %v5190
    %5874 = vmatpush.bf16.msra.mxu0 %v5183
    %5875 = vmatpush.bf16.msra.mxu0 %v5176
    %5876 = vmatpush.bf16.msra.mxu0 %v5169
    %5877 = vmatmul.bf16.gmra.mxu0 %v3356
    %v5878 = vpop.f32.mrf.mxu0
    %v5879 = vadd.f32 %v5865, %v5878
    %v5880 = vpop.f32.mrf.mxu0
    %v5881 = vadd.f32 %v5867, %v5880
    %5882 = vdwg.mxu0
    %5883 = vmatpush.bf16.msra.mxu0 %v5274
    %5884 = vmatpush.bf16.msra.mxu0 %v5267
    %5885 = vmatpush.bf16.msra.mxu0 %v5260
    %5886 = vmatpush.bf16.msra.mxu0 %v5253
    %5887 = vmatpush.bf16.msra.mxu0 %v5246
    %5888 = vmatpush.bf16.msra.mxu0 %v5239
    %5889 = vmatpush.bf16.msra.mxu0 %v5232
    %5890 = vmatpush.bf16.msra.mxu0 %v5225
    %5891 = vmatmul.bf16.gmra.mxu0 %v3357
    %v5892 = vpop.f32.mrf.mxu0
    %v5893 = vadd.f32 %v5879, %v5892
    %v5894 = vpop.f32.mrf.mxu0
    %v5895 = vadd.f32 %v5881, %v5894
    %5896 = vdwg.mxu0
    %5897 = vmatpush.bf16.msra.mxu0 %v5330
    %5898 = vmatpush.bf16.msra.mxu0 %v5323
    %5899 = vmatpush.bf16.msra.mxu0 %v5316
    %5900 = vmatpush.bf16.msra.mxu0 %v5309
    %5901 = vmatpush.bf16.msra.mxu0 %v5302
    %5902 = vmatpush.bf16.msra.mxu0 %v5295
    %5903 = vmatpush.bf16.msra.mxu0 %v5288
    %5904 = vmatpush.bf16.msra.mxu0 %v5281
    %5905 = vmatmul.bf16.gmra.mxu0 %v3358
    %v5906 = vpop.f32.mrf.mxu0
    %v5907 = vadd.f32 %v5893, %v5906
    %v5908 = vpop.f32.mrf.mxu0
    %v5909 = vadd.f32 %v5895, %v5908
    %5910 = vdwg.mxu0
    %5911 = vmatpush.bf16.msra.mxu0 %v5386
    %5912 = vmatpush.bf16.msra.mxu0 %v5379
    %5913 = vmatpush.bf16.msra.mxu0 %v5372
    %5914 = vmatpush.bf16.msra.mxu0 %v5365
    %5915 = vmatpush.bf16.msra.mxu0 %v5358
    %5916 = vmatpush.bf16.msra.mxu0 %v5351
    %5917 = vmatpush.bf16.msra.mxu0 %v5344
    %5918 = vmatpush.bf16.msra.mxu0 %v5337
    %5919 = vmatmul.bf16.gmra.mxu0 %v3359
    %v5920 = vpop.f32.mrf.mxu0
    %v5921 = vadd.f32 %v5907, %v5920
    %v5922 = vpop.f32.mrf.mxu0
    %v5923 = vadd.f32 %v5909, %v5922
    %5924 = vdwg.mxu0
    %5925 = vmatpush.bf16.msra.mxu0 %v5442
    %5926 = vmatpush.bf16.msra.mxu0 %v5435
    %5927 = vmatpush.bf16.msra.mxu0 %v5428
    %5928 = vmatpush.bf16.msra.mxu0 %v5421
    %5929 = vmatpush.bf16.msra.mxu0 %v5414
    %5930 = vmatpush.bf16.msra.mxu0 %v5407
    %5931 = vmatpush.bf16.msra.mxu0 %v5400
    %5932 = vmatpush.bf16.msra.mxu0 %v5393
    %5933 = vmatmul.bf16.gmra.mxu0 %v3360
    %v5934 = vpop.f32.mrf.mxu0
    %v5935 = vadd.f32 %v5921, %v5934
    %v5936 = vpop.f32.mrf.mxu0
    %v5937 = vadd.f32 %v5923, %v5936
    %5938 = vdwg.mxu0
    %5939 = vmatpush.bf16.msra.mxu0 %v5107
    %5940 = vmatpush.bf16.msra.mxu0 %v5100
    %5941 = vmatpush.bf16.msra.mxu0 %v5093
    %5942 = vmatpush.bf16.msra.mxu0 %v5086
    %5943 = vmatpush.bf16.msra.mxu0 %v5079
    %5944 = vmatpush.bf16.msra.mxu0 %v5072
    %5945 = vmatpush.bf16.msra.mxu0 %v5065
    %5946 = vmatpush.bf16.msra.mxu0 %v5058
    %5947 = vmatmul.bf16.gmra.mxu0 %v3354
    %v5948 = vpop.f32.mrf.mxu0
    %v5949 = vadd.f32 %v3812, %v5948
    %v5950 = vpop.f32.mrf.mxu0
    %v5951 = vadd.f32 %v3812, %v5950
    %5952 = vdwg.mxu0
    %5953 = vmatpush.bf16.msra.mxu0 %v5163
    %5954 = vmatpush.bf16.msra.mxu0 %v5156
    %5955 = vmatpush.bf16.msra.mxu0 %v5149
    %5956 = vmatpush.bf16.msra.mxu0 %v5142
    %5957 = vmatpush.bf16.msra.mxu0 %v5135
    %5958 = vmatpush.bf16.msra.mxu0 %v5128
    %5959 = vmatpush.bf16.msra.mxu0 %v5121
    %5960 = vmatpush.bf16.msra.mxu0 %v5114
    %5961 = vmatmul.bf16.gmra.mxu0 %v3355
    %v5962 = vpop.f32.mrf.mxu0
    %v5963 = vadd.f32 %v5949, %v5962
    %v5964 = vpop.f32.mrf.mxu0
    %v5965 = vadd.f32 %v5951, %v5964
    %5966 = vdwg.mxu0
    %5967 = vmatpush.bf16.msra.mxu0 %v5219
    %5968 = vmatpush.bf16.msra.mxu0 %v5212
    %5969 = vmatpush.bf16.msra.mxu0 %v5205
    %5970 = vmatpush.bf16.msra.mxu0 %v5198
    %5971 = vmatpush.bf16.msra.mxu0 %v5191
    %5972 = vmatpush.bf16.msra.mxu0 %v5184
    %5973 = vmatpush.bf16.msra.mxu0 %v5177
    %5974 = vmatpush.bf16.msra.mxu0 %v5170
    %5975 = vmatmul.bf16.gmra.mxu0 %v3356
    %v5976 = vpop.f32.mrf.mxu0
    %v5977 = vadd.f32 %v5963, %v5976
    %v5978 = vpop.f32.mrf.mxu0
    %v5979 = vadd.f32 %v5965, %v5978
    %5980 = vdwg.mxu0
    %5981 = vmatpush.bf16.msra.mxu0 %v5275
    %5982 = vmatpush.bf16.msra.mxu0 %v5268
    %5983 = vmatpush.bf16.msra.mxu0 %v5261
    %5984 = vmatpush.bf16.msra.mxu0 %v5254
    %5985 = vmatpush.bf16.msra.mxu0 %v5247
    %5986 = vmatpush.bf16.msra.mxu0 %v5240
    %5987 = vmatpush.bf16.msra.mxu0 %v5233
    %5988 = vmatpush.bf16.msra.mxu0 %v5226
    %5989 = vmatmul.bf16.gmra.mxu0 %v3357
    %v5990 = vpop.f32.mrf.mxu0
    %v5991 = vadd.f32 %v5977, %v5990
    %v5992 = vpop.f32.mrf.mxu0
    %v5993 = vadd.f32 %v5979, %v5992
    %5994 = vdwg.mxu0
    %5995 = vmatpush.bf16.msra.mxu0 %v5331
    %5996 = vmatpush.bf16.msra.mxu0 %v5324
    %5997 = vmatpush.bf16.msra.mxu0 %v5317
    %5998 = vmatpush.bf16.msra.mxu0 %v5310
    %5999 = vmatpush.bf16.msra.mxu0 %v5303
    %6000 = vmatpush.bf16.msra.mxu0 %v5296
    %6001 = vmatpush.bf16.msra.mxu0 %v5289
    %6002 = vmatpush.bf16.msra.mxu0 %v5282
    %6003 = vmatmul.bf16.gmra.mxu0 %v3358
    %v6004 = vpop.f32.mrf.mxu0
    %v6005 = vadd.f32 %v5991, %v6004
    %v6006 = vpop.f32.mrf.mxu0
    %v6007 = vadd.f32 %v5993, %v6006
    %6008 = vdwg.mxu0
    %6009 = vmatpush.bf16.msra.mxu0 %v5387
    %6010 = vmatpush.bf16.msra.mxu0 %v5380
    %6011 = vmatpush.bf16.msra.mxu0 %v5373
    %6012 = vmatpush.bf16.msra.mxu0 %v5366
    %6013 = vmatpush.bf16.msra.mxu0 %v5359
    %6014 = vmatpush.bf16.msra.mxu0 %v5352
    %6015 = vmatpush.bf16.msra.mxu0 %v5345
    %6016 = vmatpush.bf16.msra.mxu0 %v5338
    %6017 = vmatmul.bf16.gmra.mxu0 %v3359
    %v6018 = vpop.f32.mrf.mxu0
    %v6019 = vadd.f32 %v6005, %v6018
    %v6020 = vpop.f32.mrf.mxu0
    %v6021 = vadd.f32 %v6007, %v6020
    %6022 = vdwg.mxu0
    %6023 = vmatpush.bf16.msra.mxu0 %v5443
    %6024 = vmatpush.bf16.msra.mxu0 %v5436
    %6025 = vmatpush.bf16.msra.mxu0 %v5429
    %6026 = vmatpush.bf16.msra.mxu0 %v5422
    %6027 = vmatpush.bf16.msra.mxu0 %v5415
    %6028 = vmatpush.bf16.msra.mxu0 %v5408
    %6029 = vmatpush.bf16.msra.mxu0 %v5401
    %6030 = vmatpush.bf16.msra.mxu0 %v5394
    %6031 = vmatmul.bf16.gmra.mxu0 %v3360
    %v6032 = vpop.f32.mrf.mxu0
    %v6033 = vadd.f32 %v6019, %v6032
    %v6034 = vpop.f32.mrf.mxu0
    %v6035 = vadd.f32 %v6021, %v6034
    %6036 = vdwg.mxu0
    %6037 = vmatpush.bf16.msra.mxu0 %v5108
    %6038 = vmatpush.bf16.msra.mxu0 %v5101
    %6039 = vmatpush.bf16.msra.mxu0 %v5094
    %6040 = vmatpush.bf16.msra.mxu0 %v5087
    %6041 = vmatpush.bf16.msra.mxu0 %v5080
    %6042 = vmatpush.bf16.msra.mxu0 %v5073
    %6043 = vmatpush.bf16.msra.mxu0 %v5066
    %6044 = vmatpush.bf16.msra.mxu0 %v5059
    %6045 = vmatmul.bf16.gmra.mxu0 %v3354
    %v6046 = vpop.f32.mrf.mxu0
    %v6047 = vadd.f32 %v3813, %v6046
    %v6048 = vpop.f32.mrf.mxu0
    %v6049 = vadd.f32 %v3813, %v6048
    %6050 = vdwg.mxu0
    %6051 = vmatpush.bf16.msra.mxu0 %v5164
    %6052 = vmatpush.bf16.msra.mxu0 %v5157
    %6053 = vmatpush.bf16.msra.mxu0 %v5150
    %6054 = vmatpush.bf16.msra.mxu0 %v5143
    %6055 = vmatpush.bf16.msra.mxu0 %v5136
    %6056 = vmatpush.bf16.msra.mxu0 %v5129
    %6057 = vmatpush.bf16.msra.mxu0 %v5122
    %6058 = vmatpush.bf16.msra.mxu0 %v5115
    %6059 = vmatmul.bf16.gmra.mxu0 %v3355
    %v6060 = vpop.f32.mrf.mxu0
    %v6061 = vadd.f32 %v6047, %v6060
    %v6062 = vpop.f32.mrf.mxu0
    %v6063 = vadd.f32 %v6049, %v6062
    %6064 = vdwg.mxu0
    %6065 = vmatpush.bf16.msra.mxu0 %v5220
    %6066 = vmatpush.bf16.msra.mxu0 %v5213
    %6067 = vmatpush.bf16.msra.mxu0 %v5206
    %6068 = vmatpush.bf16.msra.mxu0 %v5199
    %6069 = vmatpush.bf16.msra.mxu0 %v5192
    %6070 = vmatpush.bf16.msra.mxu0 %v5185
    %6071 = vmatpush.bf16.msra.mxu0 %v5178
    %6072 = vmatpush.bf16.msra.mxu0 %v5171
    %6073 = vmatmul.bf16.gmra.mxu0 %v3356
    %v6074 = vpop.f32.mrf.mxu0
    %v6075 = vadd.f32 %v6061, %v6074
    %v6076 = vpop.f32.mrf.mxu0
    %v6077 = vadd.f32 %v6063, %v6076
    %6078 = vdwg.mxu0
    %6079 = vmatpush.bf16.msra.mxu0 %v5276
    %6080 = vmatpush.bf16.msra.mxu0 %v5269
    %6081 = vmatpush.bf16.msra.mxu0 %v5262
    %6082 = vmatpush.bf16.msra.mxu0 %v5255
    %6083 = vmatpush.bf16.msra.mxu0 %v5248
    %6084 = vmatpush.bf16.msra.mxu0 %v5241
    %6085 = vmatpush.bf16.msra.mxu0 %v5234
    %6086 = vmatpush.bf16.msra.mxu0 %v5227
    %6087 = vmatmul.bf16.gmra.mxu0 %v3357
    %v6088 = vpop.f32.mrf.mxu0
    %v6089 = vadd.f32 %v6075, %v6088
    %v6090 = vpop.f32.mrf.mxu0
    %v6091 = vadd.f32 %v6077, %v6090
    %6092 = vdwg.mxu0
    %6093 = vmatpush.bf16.msra.mxu0 %v5332
    %6094 = vmatpush.bf16.msra.mxu0 %v5325
    %6095 = vmatpush.bf16.msra.mxu0 %v5318
    %6096 = vmatpush.bf16.msra.mxu0 %v5311
    %6097 = vmatpush.bf16.msra.mxu0 %v5304
    %6098 = vmatpush.bf16.msra.mxu0 %v5297
    %6099 = vmatpush.bf16.msra.mxu0 %v5290
    %6100 = vmatpush.bf16.msra.mxu0 %v5283
    %6101 = vmatmul.bf16.gmra.mxu0 %v3358
    %v6102 = vpop.f32.mrf.mxu0
    %v6103 = vadd.f32 %v6089, %v6102
    %v6104 = vpop.f32.mrf.mxu0
    %v6105 = vadd.f32 %v6091, %v6104
    %6106 = vdwg.mxu0
    %6107 = vmatpush.bf16.msra.mxu0 %v5388
    %6108 = vmatpush.bf16.msra.mxu0 %v5381
    %6109 = vmatpush.bf16.msra.mxu0 %v5374
    %6110 = vmatpush.bf16.msra.mxu0 %v5367
    %6111 = vmatpush.bf16.msra.mxu0 %v5360
    %6112 = vmatpush.bf16.msra.mxu0 %v5353
    %6113 = vmatpush.bf16.msra.mxu0 %v5346
    %6114 = vmatpush.bf16.msra.mxu0 %v5339
    %6115 = vmatmul.bf16.gmra.mxu0 %v3359
    %v6116 = vpop.f32.mrf.mxu0
    %v6117 = vadd.f32 %v6103, %v6116
    %v6118 = vpop.f32.mrf.mxu0
    %v6119 = vadd.f32 %v6105, %v6118
    %6120 = vdwg.mxu0
    %6121 = vmatpush.bf16.msra.mxu0 %v5444
    %6122 = vmatpush.bf16.msra.mxu0 %v5437
    %6123 = vmatpush.bf16.msra.mxu0 %v5430
    %6124 = vmatpush.bf16.msra.mxu0 %v5423
    %6125 = vmatpush.bf16.msra.mxu0 %v5416
    %6126 = vmatpush.bf16.msra.mxu0 %v5409
    %6127 = vmatpush.bf16.msra.mxu0 %v5402
    %6128 = vmatpush.bf16.msra.mxu0 %v5395
    %6129 = vmatmul.bf16.gmra.mxu0 %v3360
    %v6130 = vpop.f32.mrf.mxu0
    %v6131 = vadd.f32 %v6117, %v6130
    %v6132 = vpop.f32.mrf.mxu0
    %v6133 = vadd.f32 %v6119, %v6132
    %6134 = vdwg.mxu0
    %6135 = vmatpush.bf16.msra.mxu0 %v5109
    %6136 = vmatpush.bf16.msra.mxu0 %v5102
    %6137 = vmatpush.bf16.msra.mxu0 %v5095
    %6138 = vmatpush.bf16.msra.mxu0 %v5088
    %6139 = vmatpush.bf16.msra.mxu0 %v5081
    %6140 = vmatpush.bf16.msra.mxu0 %v5074
    %6141 = vmatpush.bf16.msra.mxu0 %v5067
    %6142 = vmatpush.bf16.msra.mxu0 %v5060
    %6143 = vmatmul.bf16.gmra.mxu0 %v3354
    %v6144 = vpop.f32.mrf.mxu0
    %v6145 = vadd.f32 %v3814, %v6144
    %v6146 = vpop.f32.mrf.mxu0
    %v6147 = vadd.f32 %v3814, %v6146
    %6148 = vdwg.mxu0
    %6149 = vmatpush.bf16.msra.mxu0 %v5165
    %6150 = vmatpush.bf16.msra.mxu0 %v5158
    %6151 = vmatpush.bf16.msra.mxu0 %v5151
    %6152 = vmatpush.bf16.msra.mxu0 %v5144
    %6153 = vmatpush.bf16.msra.mxu0 %v5137
    %6154 = vmatpush.bf16.msra.mxu0 %v5130
    %6155 = vmatpush.bf16.msra.mxu0 %v5123
    %6156 = vmatpush.bf16.msra.mxu0 %v5116
    %6157 = vmatmul.bf16.gmra.mxu0 %v3355
    %v6158 = vpop.f32.mrf.mxu0
    %v6159 = vadd.f32 %v6145, %v6158
    %v6160 = vpop.f32.mrf.mxu0
    %v6161 = vadd.f32 %v6147, %v6160
    %6162 = vdwg.mxu0
    %6163 = vmatpush.bf16.msra.mxu0 %v5221
    %6164 = vmatpush.bf16.msra.mxu0 %v5214
    %6165 = vmatpush.bf16.msra.mxu0 %v5207
    %6166 = vmatpush.bf16.msra.mxu0 %v5200
    %6167 = vmatpush.bf16.msra.mxu0 %v5193
    %6168 = vmatpush.bf16.msra.mxu0 %v5186
    %6169 = vmatpush.bf16.msra.mxu0 %v5179
    %6170 = vmatpush.bf16.msra.mxu0 %v5172
    %6171 = vmatmul.bf16.gmra.mxu0 %v3356
    %v6172 = vpop.f32.mrf.mxu0
    %v6173 = vadd.f32 %v6159, %v6172
    %v6174 = vpop.f32.mrf.mxu0
    %v6175 = vadd.f32 %v6161, %v6174
    %6176 = vdwg.mxu0
    %6177 = vmatpush.bf16.msra.mxu0 %v5277
    %6178 = vmatpush.bf16.msra.mxu0 %v5270
    %6179 = vmatpush.bf16.msra.mxu0 %v5263
    %6180 = vmatpush.bf16.msra.mxu0 %v5256
    %6181 = vmatpush.bf16.msra.mxu0 %v5249
    %6182 = vmatpush.bf16.msra.mxu0 %v5242
    %6183 = vmatpush.bf16.msra.mxu0 %v5235
    %6184 = vmatpush.bf16.msra.mxu0 %v5228
    %6185 = vmatmul.bf16.gmra.mxu0 %v3357
    %v6186 = vpop.f32.mrf.mxu0
    %v6187 = vadd.f32 %v6173, %v6186
    %v6188 = vpop.f32.mrf.mxu0
    %v6189 = vadd.f32 %v6175, %v6188
    %6190 = vdwg.mxu0
    %6191 = vmatpush.bf16.msra.mxu0 %v5333
    %6192 = vmatpush.bf16.msra.mxu0 %v5326
    %6193 = vmatpush.bf16.msra.mxu0 %v5319
    %6194 = vmatpush.bf16.msra.mxu0 %v5312
    %6195 = vmatpush.bf16.msra.mxu0 %v5305
    %6196 = vmatpush.bf16.msra.mxu0 %v5298
    %6197 = vmatpush.bf16.msra.mxu0 %v5291
    %6198 = vmatpush.bf16.msra.mxu0 %v5284
    %6199 = vmatmul.bf16.gmra.mxu0 %v3358
    %v6200 = vpop.f32.mrf.mxu0
    %v6201 = vadd.f32 %v6187, %v6200
    %v6202 = vpop.f32.mrf.mxu0
    %v6203 = vadd.f32 %v6189, %v6202
    %6204 = vdwg.mxu0
    %6205 = vmatpush.bf16.msra.mxu0 %v5389
    %6206 = vmatpush.bf16.msra.mxu0 %v5382
    %6207 = vmatpush.bf16.msra.mxu0 %v5375
    %6208 = vmatpush.bf16.msra.mxu0 %v5368
    %6209 = vmatpush.bf16.msra.mxu0 %v5361
    %6210 = vmatpush.bf16.msra.mxu0 %v5354
    %6211 = vmatpush.bf16.msra.mxu0 %v5347
    %6212 = vmatpush.bf16.msra.mxu0 %v5340
    %6213 = vmatmul.bf16.gmra.mxu0 %v3359
    %v6214 = vpop.f32.mrf.mxu0
    %v6215 = vadd.f32 %v6201, %v6214
    %v6216 = vpop.f32.mrf.mxu0
    %v6217 = vadd.f32 %v6203, %v6216
    %6218 = vdwg.mxu0
    %6219 = vmatpush.bf16.msra.mxu0 %v5445
    %6220 = vmatpush.bf16.msra.mxu0 %v5438
    %6221 = vmatpush.bf16.msra.mxu0 %v5431
    %6222 = vmatpush.bf16.msra.mxu0 %v5424
    %6223 = vmatpush.bf16.msra.mxu0 %v5417
    %6224 = vmatpush.bf16.msra.mxu0 %v5410
    %6225 = vmatpush.bf16.msra.mxu0 %v5403
    %6226 = vmatpush.bf16.msra.mxu0 %v5396
    %6227 = vmatmul.bf16.gmra.mxu0 %v3360
    %v6228 = vpop.f32.mrf.mxu0
    %v6229 = vadd.f32 %v6215, %v6228
    %v6230 = vpop.f32.mrf.mxu0
    %v6231 = vadd.f32 %v6217, %v6230
    %6232 = vdwg.mxu0
    %6233 = vmatpush.bf16.msra.mxu0 %v5110
    %6234 = vmatpush.bf16.msra.mxu0 %v5103
    %6235 = vmatpush.bf16.msra.mxu0 %v5096
    %6236 = vmatpush.bf16.msra.mxu0 %v5089
    %6237 = vmatpush.bf16.msra.mxu0 %v5082
    %6238 = vmatpush.bf16.msra.mxu0 %v5075
    %6239 = vmatpush.bf16.msra.mxu0 %v5068
    %6240 = vmatpush.bf16.msra.mxu0 %v5061
    %6241 = vmatmul.bf16.gmra.mxu0 %v3354
    %v6242 = vpop.f32.mrf.mxu0
    %v6243 = vadd.f32 %v3815, %v6242
    %v6244 = vpop.f32.mrf.mxu0
    %v6245 = vadd.f32 %v3815, %v6244
    %6246 = vdwg.mxu0
    %6247 = vmatpush.bf16.msra.mxu0 %v5166
    %6248 = vmatpush.bf16.msra.mxu0 %v5159
    %6249 = vmatpush.bf16.msra.mxu0 %v5152
    %6250 = vmatpush.bf16.msra.mxu0 %v5145
    %6251 = vmatpush.bf16.msra.mxu0 %v5138
    %6252 = vmatpush.bf16.msra.mxu0 %v5131
    %6253 = vmatpush.bf16.msra.mxu0 %v5124
    %6254 = vmatpush.bf16.msra.mxu0 %v5117
    %6255 = vmatmul.bf16.gmra.mxu0 %v3355
    %v6256 = vpop.f32.mrf.mxu0
    %v6257 = vadd.f32 %v6243, %v6256
    %v6258 = vpop.f32.mrf.mxu0
    %v6259 = vadd.f32 %v6245, %v6258
    %6260 = vdwg.mxu0
    %6261 = vmatpush.bf16.msra.mxu0 %v5222
    %6262 = vmatpush.bf16.msra.mxu0 %v5215
    %6263 = vmatpush.bf16.msra.mxu0 %v5208
    %6264 = vmatpush.bf16.msra.mxu0 %v5201
    %6265 = vmatpush.bf16.msra.mxu0 %v5194
    %6266 = vmatpush.bf16.msra.mxu0 %v5187
    %6267 = vmatpush.bf16.msra.mxu0 %v5180
    %6268 = vmatpush.bf16.msra.mxu0 %v5173
    %6269 = vmatmul.bf16.gmra.mxu0 %v3356
    %v6270 = vpop.f32.mrf.mxu0
    %v6271 = vadd.f32 %v6257, %v6270
    %v6272 = vpop.f32.mrf.mxu0
    %v6273 = vadd.f32 %v6259, %v6272
    %6274 = vdwg.mxu0
    %6275 = vmatpush.bf16.msra.mxu0 %v5278
    %6276 = vmatpush.bf16.msra.mxu0 %v5271
    %6277 = vmatpush.bf16.msra.mxu0 %v5264
    %6278 = vmatpush.bf16.msra.mxu0 %v5257
    %6279 = vmatpush.bf16.msra.mxu0 %v5250
    %6280 = vmatpush.bf16.msra.mxu0 %v5243
    %6281 = vmatpush.bf16.msra.mxu0 %v5236
    %6282 = vmatpush.bf16.msra.mxu0 %v5229
    %6283 = vmatmul.bf16.gmra.mxu0 %v3357
    %v6284 = vpop.f32.mrf.mxu0
    %v6285 = vadd.f32 %v6271, %v6284
    %v6286 = vpop.f32.mrf.mxu0
    %v6287 = vadd.f32 %v6273, %v6286
    %6288 = vdwg.mxu0
    %6289 = vmatpush.bf16.msra.mxu0 %v5334
    %6290 = vmatpush.bf16.msra.mxu0 %v5327
    %6291 = vmatpush.bf16.msra.mxu0 %v5320
    %6292 = vmatpush.bf16.msra.mxu0 %v5313
    %6293 = vmatpush.bf16.msra.mxu0 %v5306
    %6294 = vmatpush.bf16.msra.mxu0 %v5299
    %6295 = vmatpush.bf16.msra.mxu0 %v5292
    %6296 = vmatpush.bf16.msra.mxu0 %v5285
    %6297 = vmatmul.bf16.gmra.mxu0 %v3358
    %v6298 = vpop.f32.mrf.mxu0
    %v6299 = vadd.f32 %v6285, %v6298
    %v6300 = vpop.f32.mrf.mxu0
    %v6301 = vadd.f32 %v6287, %v6300
    %6302 = vdwg.mxu0
    %6303 = vmatpush.bf16.msra.mxu0 %v5390
    %6304 = vmatpush.bf16.msra.mxu0 %v5383
    %6305 = vmatpush.bf16.msra.mxu0 %v5376
    %6306 = vmatpush.bf16.msra.mxu0 %v5369
    %6307 = vmatpush.bf16.msra.mxu0 %v5362
    %6308 = vmatpush.bf16.msra.mxu0 %v5355
    %6309 = vmatpush.bf16.msra.mxu0 %v5348
    %6310 = vmatpush.bf16.msra.mxu0 %v5341
    %6311 = vmatmul.bf16.gmra.mxu0 %v3359
    %v6312 = vpop.f32.mrf.mxu0
    %v6313 = vadd.f32 %v6299, %v6312
    %v6314 = vpop.f32.mrf.mxu0
    %v6315 = vadd.f32 %v6301, %v6314
    %6316 = vdwg.mxu0
    %6317 = vmatpush.bf16.msra.mxu0 %v5446
    %6318 = vmatpush.bf16.msra.mxu0 %v5439
    %6319 = vmatpush.bf16.msra.mxu0 %v5432
    %6320 = vmatpush.bf16.msra.mxu0 %v5425
    %6321 = vmatpush.bf16.msra.mxu0 %v5418
    %6322 = vmatpush.bf16.msra.mxu0 %v5411
    %6323 = vmatpush.bf16.msra.mxu0 %v5404
    %6324 = vmatpush.bf16.msra.mxu0 %v5397
    %6325 = vmatmul.bf16.gmra.mxu0 %v3360
    %v6326 = vpop.f32.mrf.mxu0
    %v6327 = vadd.f32 %v6313, %v6326
    %v6328 = vpop.f32.mrf.mxu0
    %v6329 = vadd.f32 %v6315, %v6328
    %6330 = vdwg.mxu0
    %6331 = vmatpush.bf16.msra.mxu0 %v5111
    %6332 = vmatpush.bf16.msra.mxu0 %v5104
    %6333 = vmatpush.bf16.msra.mxu0 %v5097
    %6334 = vmatpush.bf16.msra.mxu0 %v5090
    %6335 = vmatpush.bf16.msra.mxu0 %v5083
    %6336 = vmatpush.bf16.msra.mxu0 %v5076
    %6337 = vmatpush.bf16.msra.mxu0 %v5069
    %6338 = vmatpush.bf16.msra.mxu0 %v5062
    %6339 = vmatmul.bf16.gmra.mxu0 %v3354
    %v6340 = vpop.f32.mrf.mxu0
    %v6341 = vadd.f32 %v3816, %v6340
    %v6342 = vpop.f32.mrf.mxu0
    %v6343 = vadd.f32 %v3816, %v6342
    %6344 = vdwg.mxu0
    %6345 = vmatpush.bf16.msra.mxu0 %v5167
    %6346 = vmatpush.bf16.msra.mxu0 %v5160
    %6347 = vmatpush.bf16.msra.mxu0 %v5153
    %6348 = vmatpush.bf16.msra.mxu0 %v5146
    %6349 = vmatpush.bf16.msra.mxu0 %v5139
    %6350 = vmatpush.bf16.msra.mxu0 %v5132
    %6351 = vmatpush.bf16.msra.mxu0 %v5125
    %6352 = vmatpush.bf16.msra.mxu0 %v5118
    %6353 = vmatmul.bf16.gmra.mxu0 %v3355
    %v6354 = vpop.f32.mrf.mxu0
    %v6355 = vadd.f32 %v6341, %v6354
    %v6356 = vpop.f32.mrf.mxu0
    %v6357 = vadd.f32 %v6343, %v6356
    %6358 = vdwg.mxu0
    %6359 = vmatpush.bf16.msra.mxu0 %v5223
    %6360 = vmatpush.bf16.msra.mxu0 %v5216
    %6361 = vmatpush.bf16.msra.mxu0 %v5209
    %6362 = vmatpush.bf16.msra.mxu0 %v5202
    %6363 = vmatpush.bf16.msra.mxu0 %v5195
    %6364 = vmatpush.bf16.msra.mxu0 %v5188
    %6365 = vmatpush.bf16.msra.mxu0 %v5181
    %6366 = vmatpush.bf16.msra.mxu0 %v5174
    %6367 = vmatmul.bf16.gmra.mxu0 %v3356
    %v6368 = vpop.f32.mrf.mxu0
    %v6369 = vadd.f32 %v6355, %v6368
    %v6370 = vpop.f32.mrf.mxu0
    %v6371 = vadd.f32 %v6357, %v6370
    %6372 = vdwg.mxu0
    %6373 = vmatpush.bf16.msra.mxu0 %v5279
    %6374 = vmatpush.bf16.msra.mxu0 %v5272
    %6375 = vmatpush.bf16.msra.mxu0 %v5265
    %6376 = vmatpush.bf16.msra.mxu0 %v5258
    %6377 = vmatpush.bf16.msra.mxu0 %v5251
    %6378 = vmatpush.bf16.msra.mxu0 %v5244
    %6379 = vmatpush.bf16.msra.mxu0 %v5237
    %6380 = vmatpush.bf16.msra.mxu0 %v5230
    %6381 = vmatmul.bf16.gmra.mxu0 %v3357
    %v6382 = vpop.f32.mrf.mxu0
    %v6383 = vadd.f32 %v6369, %v6382
    %v6384 = vpop.f32.mrf.mxu0
    %v6385 = vadd.f32 %v6371, %v6384
    %6386 = vdwg.mxu0
    %6387 = vmatpush.bf16.msra.mxu0 %v5335
    %6388 = vmatpush.bf16.msra.mxu0 %v5328
    %6389 = vmatpush.bf16.msra.mxu0 %v5321
    %6390 = vmatpush.bf16.msra.mxu0 %v5314
    %6391 = vmatpush.bf16.msra.mxu0 %v5307
    %6392 = vmatpush.bf16.msra.mxu0 %v5300
    %6393 = vmatpush.bf16.msra.mxu0 %v5293
    %6394 = vmatpush.bf16.msra.mxu0 %v5286
    %6395 = vmatmul.bf16.gmra.mxu0 %v3358
    %v6396 = vpop.f32.mrf.mxu0
    %v6397 = vadd.f32 %v6383, %v6396
    %v6398 = vpop.f32.mrf.mxu0
    %v6399 = vadd.f32 %v6385, %v6398
    %6400 = vdwg.mxu0
    %6401 = vmatpush.bf16.msra.mxu0 %v5391
    %6402 = vmatpush.bf16.msra.mxu0 %v5384
    %6403 = vmatpush.bf16.msra.mxu0 %v5377
    %6404 = vmatpush.bf16.msra.mxu0 %v5370
    %6405 = vmatpush.bf16.msra.mxu0 %v5363
    %6406 = vmatpush.bf16.msra.mxu0 %v5356
    %6407 = vmatpush.bf16.msra.mxu0 %v5349
    %6408 = vmatpush.bf16.msra.mxu0 %v5342
    %6409 = vmatmul.bf16.gmra.mxu0 %v3359
    %v6410 = vpop.f32.mrf.mxu0
    %v6411 = vadd.f32 %v6397, %v6410
    %v6412 = vpop.f32.mrf.mxu0
    %v6413 = vadd.f32 %v6399, %v6412
    %6414 = vdwg.mxu0
    %6415 = vmatpush.bf16.msra.mxu0 %v5447
    %6416 = vmatpush.bf16.msra.mxu0 %v5440
    %6417 = vmatpush.bf16.msra.mxu0 %v5433
    %6418 = vmatpush.bf16.msra.mxu0 %v5426
    %6419 = vmatpush.bf16.msra.mxu0 %v5419
    %6420 = vmatpush.bf16.msra.mxu0 %v5412
    %6421 = vmatpush.bf16.msra.mxu0 %v5405
    %6422 = vmatpush.bf16.msra.mxu0 %v5398
    %6423 = vmatmul.bf16.gmra.mxu0 %v3360
    %v6424 = vpop.f32.mrf.mxu0
    %v6425 = vadd.f32 %v6411, %v6424
    %v6426 = vpop.f32.mrf.mxu0
    %v6427 = vadd.f32 %v6413, %v6426
    %6428 = vdwg.mxu0
    %6429 = vmatpush.bf16.msra.mxu0 %v5112
    %6430 = vmatpush.bf16.msra.mxu0 %v5105
    %6431 = vmatpush.bf16.msra.mxu0 %v5098
    %6432 = vmatpush.bf16.msra.mxu0 %v5091
    %6433 = vmatpush.bf16.msra.mxu0 %v5084
    %6434 = vmatpush.bf16.msra.mxu0 %v5077
    %6435 = vmatpush.bf16.msra.mxu0 %v5070
    %6436 = vmatpush.bf16.msra.mxu0 %v5063
    %6437 = vmatmul.bf16.gmra.mxu0 %v3354
    %v6438 = vpop.f32.mrf.mxu0
    %v6439 = vadd.f32 %v3817, %v6438
    %v6440 = vpop.f32.mrf.mxu0
    %v6441 = vadd.f32 %v3817, %v6440
    %6442 = vdwg.mxu0
    %6443 = vmatpush.bf16.msra.mxu0 %v5168
    %6444 = vmatpush.bf16.msra.mxu0 %v5161
    %6445 = vmatpush.bf16.msra.mxu0 %v5154
    %6446 = vmatpush.bf16.msra.mxu0 %v5147
    %6447 = vmatpush.bf16.msra.mxu0 %v5140
    %6448 = vmatpush.bf16.msra.mxu0 %v5133
    %6449 = vmatpush.bf16.msra.mxu0 %v5126
    %6450 = vmatpush.bf16.msra.mxu0 %v5119
    %6451 = vmatmul.bf16.gmra.mxu0 %v3355
    %v6452 = vpop.f32.mrf.mxu0
    %v6453 = vadd.f32 %v6439, %v6452
    %v6454 = vpop.f32.mrf.mxu0
    %v6455 = vadd.f32 %v6441, %v6454
    %6456 = vdwg.mxu0
    %6457 = vmatpush.bf16.msra.mxu0 %v5224
    %6458 = vmatpush.bf16.msra.mxu0 %v5217
    %6459 = vmatpush.bf16.msra.mxu0 %v5210
    %6460 = vmatpush.bf16.msra.mxu0 %v5203
    %6461 = vmatpush.bf16.msra.mxu0 %v5196
    %6462 = vmatpush.bf16.msra.mxu0 %v5189
    %6463 = vmatpush.bf16.msra.mxu0 %v5182
    %6464 = vmatpush.bf16.msra.mxu0 %v5175
    %6465 = vmatmul.bf16.gmra.mxu0 %v3356
    %v6466 = vpop.f32.mrf.mxu0
    %v6467 = vadd.f32 %v6453, %v6466
    %v6468 = vpop.f32.mrf.mxu0
    %v6469 = vadd.f32 %v6455, %v6468
    %6470 = vdwg.mxu0
    %6471 = vmatpush.bf16.msra.mxu0 %v5280
    %6472 = vmatpush.bf16.msra.mxu0 %v5273
    %6473 = vmatpush.bf16.msra.mxu0 %v5266
    %6474 = vmatpush.bf16.msra.mxu0 %v5259
    %6475 = vmatpush.bf16.msra.mxu0 %v5252
    %6476 = vmatpush.bf16.msra.mxu0 %v5245
    %6477 = vmatpush.bf16.msra.mxu0 %v5238
    %6478 = vmatpush.bf16.msra.mxu0 %v5231
    %6479 = vmatmul.bf16.gmra.mxu0 %v3357
    %v6480 = vpop.f32.mrf.mxu0
    %v6481 = vadd.f32 %v6467, %v6480
    %v6482 = vpop.f32.mrf.mxu0
    %v6483 = vadd.f32 %v6469, %v6482
    %6484 = vdwg.mxu0
    %6485 = vmatpush.bf16.msra.mxu0 %v5336
    %6486 = vmatpush.bf16.msra.mxu0 %v5329
    %6487 = vmatpush.bf16.msra.mxu0 %v5322
    %6488 = vmatpush.bf16.msra.mxu0 %v5315
    %6489 = vmatpush.bf16.msra.mxu0 %v5308
    %6490 = vmatpush.bf16.msra.mxu0 %v5301
    %6491 = vmatpush.bf16.msra.mxu0 %v5294
    %6492 = vmatpush.bf16.msra.mxu0 %v5287
    %6493 = vmatmul.bf16.gmra.mxu0 %v3358
    %v6494 = vpop.f32.mrf.mxu0
    %v6495 = vadd.f32 %v6481, %v6494
    %v6496 = vpop.f32.mrf.mxu0
    %v6497 = vadd.f32 %v6483, %v6496
    %6498 = vdwg.mxu0
    %6499 = vmatpush.bf16.msra.mxu0 %v5392
    %6500 = vmatpush.bf16.msra.mxu0 %v5385
    %6501 = vmatpush.bf16.msra.mxu0 %v5378
    %6502 = vmatpush.bf16.msra.mxu0 %v5371
    %6503 = vmatpush.bf16.msra.mxu0 %v5364
    %6504 = vmatpush.bf16.msra.mxu0 %v5357
    %6505 = vmatpush.bf16.msra.mxu0 %v5350
    %6506 = vmatpush.bf16.msra.mxu0 %v5343
    %6507 = vmatmul.bf16.gmra.mxu0 %v3359
    %v6508 = vpop.f32.mrf.mxu0
    %v6509 = vadd.f32 %v6495, %v6508
    %v6510 = vpop.f32.mrf.mxu0
    %v6511 = vadd.f32 %v6497, %v6510
    %6512 = vdwg.mxu0
    %6513 = vmatpush.bf16.msra.mxu0 %v5448
    %6514 = vmatpush.bf16.msra.mxu0 %v5441
    %6515 = vmatpush.bf16.msra.mxu0 %v5434
    %6516 = vmatpush.bf16.msra.mxu0 %v5427
    %6517 = vmatpush.bf16.msra.mxu0 %v5420
    %6518 = vmatpush.bf16.msra.mxu0 %v5413
    %6519 = vmatpush.bf16.msra.mxu0 %v5406
    %6520 = vmatpush.bf16.msra.mxu0 %v5399
    %6521 = vmatmul.bf16.gmra.mxu0 %v3360
    %v6522 = vpop.f32.mrf.mxu0
    %v6523 = vadd.f32 %v6509, %v6522
    %v6524 = vpop.f32.mrf.mxu0
    %v6525 = vadd.f32 %v6511, %v6524
    %6526 = vdwg.mxu0
    %v6527 = vmax.f32 %v5935, 0.0
    %v6528 = vmax.f32 %v6033, 0.0
    %v6529 = vmax.f32 %v6131, 0.0
    %v6530 = vmax.f32 %v6229, 0.0
    %v6531 = vmax.f32 %v6327, 0.0
    %v6532 = vmax.f32 %v6425, 0.0
    %v6533 = vmax.f32 %v6523, 0.0
    %v6534 = vmax.f32 %v5937, 0.0
    %v6535 = vmax.f32 %v6035, 0.0
    %v6536 = vmax.f32 %v6133, 0.0
    %v6537 = vmax.f32 %v6231, 0.0
    %v6538 = vmax.f32 %v6329, 0.0
    %v6539 = vmax.f32 %v6427, 0.0
    %v6540 = vmax.f32 %v6525, 0.0
    %v6541 = vpack.c.bf16 %v6534, %v6527
    %v6542 = vpack.c.bf16 %v6535, %v6528
    %v6543 = vpack.c.bf16 %v6536, %v6529
    %v6544 = vpack.c.bf16 %v6537, %v6530
    %v6545 = vpack.c.bf16 %v6538, %v6531
    %v6546 = vpack.c.bf16 %v6539, %v6532
    %v6547 = vpack.c.bf16 %v6540, %v6533
    %v6548 = vld [vmem:[#allocation11] sm:$0xf]
    %v6549 = vld [vmem:[#allocation11 + $0x4] sm:$0xf]
    %v6550 = vld [vmem:[#allocation11 + $0x8] sm:$0xf]
    %v6551 = vld [vmem:[#allocation11 + $0xc] sm:$0xf]
    %v6552 = vld [vmem:[#allocation11 + $0x10] sm:$0xf]
    %v6553 = vld [vmem:[#allocation11 + $0x14] sm:$0xf]
    %v6554 = vld [vmem:[#allocation11 + $0x18] sm:$0xf]
    %v6555 = vld [vmem:[#allocation11 + $0x1c] sm:$0xf]
    %v6556 = vld [vmem:[#allocation11 + $0x20] sm:$0xf]
    %v6557 = vld [vmem:[#allocation11 + $0x24] sm:$0xf]
    %v6558 = vld [vmem:[#allocation11 + $0x28] sm:$0xf]
    %v6559 = vld [vmem:[#allocation11 + $0x2c] sm:$0xf]
    %v6560 = vld [vmem:[#allocation11 + $0x30] sm:$0xf]
    %v6561 = vld [vmem:[#allocation11 + $0x34] sm:$0xf]
    %v6562 = vld [vmem:[#allocation11 + $0x38] sm:$0xf]
    %v6563 = vld [vmem:[#allocation11 + $0x3c] sm:$0xf]
    %v6564 = vld [vmem:[#allocation11 + $0x40] sm:$0xf]
    %v6565 = vld [vmem:[#allocation11 + $0x44] sm:$0xf]
    %v6566 = vld [vmem:[#allocation11 + $0x48] sm:$0xf]
    %v6567 = vld [vmem:[#allocation11 + $0x4c] sm:$0xf]
    %v6568 = vld [vmem:[#allocation11 + $0x50] sm:$0xf]
    %v6569 = vld [vmem:[#allocation11 + $0x54] sm:$0xf]
    %v6570 = vld [vmem:[#allocation11 + $0x58] sm:$0xf]
    %v6571 = vld [vmem:[#allocation11 + $0x5c] sm:$0xf]
    %v6572 = vld [vmem:[#allocation11 + $0x60] sm:$0xf]
    %v6573 = vld [vmem:[#allocation11 + $0x64] sm:$0xf]
    %v6574 = vld [vmem:[#allocation11 + $0x68] sm:$0xf]
    %v6575 = vld [vmem:[#allocation11 + $0x6c] sm:$0xf]
    %v6576 = vld [vmem:[#allocation11 + $0x70] sm:$0xf]
    %v6577 = vld [vmem:[#allocation11 + $0x74] sm:$0xf]
    %v6578 = vld [vmem:[#allocation11 + $0x78] sm:$0xf]
    %v6579 = vld [vmem:[#allocation11 + $0x7c] sm:$0xf]
    %v6580 = vld [vmem:[#allocation11 + $0x80] sm:$0xf]
    %v6581 = vld [vmem:[#allocation11 + $0x84] sm:$0xf]
    %v6582 = vld [vmem:[#allocation11 + $0x88] sm:$0xf]
    %v6583 = vld [vmem:[#allocation11 + $0x8c] sm:$0xf]
    %v6584 = vld [vmem:[#allocation11 + $0x90] sm:$0xf]
    %v6585 = vld [vmem:[#allocation11 + $0x94] sm:$0xf]
    %v6586 = vld [vmem:[#allocation11 + $0x98] sm:$0xf]
    %v6587 = vld [vmem:[#allocation11 + $0x9c] sm:$0xf]
    %v6588 = vld [vmem:[#allocation11 + $0xa0] sm:$0xf]
    %v6589 = vld [vmem:[#allocation11 + $0xa4] sm:$0xf]
    %v6590 = vld [vmem:[#allocation11 + $0xa8] sm:$0xf]
    %v6591 = vld [vmem:[#allocation11 + $0xac] sm:$0xf]
    %v6592 = vld [vmem:[#allocation11 + $0xb0] sm:$0xf]
    %v6593 = vld [vmem:[#allocation11 + $0xb4] sm:$0xf]
    %v6594 = vld [vmem:[#allocation11 + $0xb8] sm:$0xf]
    %v6595 = vld [vmem:[#allocation11 + $0xbc] sm:$0xf]
    %v6596 = vld [vmem:[#allocation11 + $0xc0] sm:$0xf]
    %v6597 = vld [vmem:[#allocation11 + $0xc4] sm:$0xf]
    %v6598 = vld [vmem:[#allocation11 + $0xc8] sm:$0xf]
    %v6599 = vld [vmem:[#allocation11 + $0xcc] sm:$0xf]
    %v6600 = vld [vmem:[#allocation11 + $0xd0] sm:$0xf]
    %v6601 = vld [vmem:[#allocation11 + $0xd4] sm:$0xf]
    %v6602 = vld [vmem:[#allocation11 + $0xd8] sm:$0xf]
    %v6603 = vld [vmem:[#allocation11 + $0xdc] sm:$0xf]
    %v6604 = vld [vmem:[#allocation11 + $0xe0] sm:$0xf]
    %v6605 = vld [vmem:[#allocation11 + $0xe4] sm:$0xf]
    %v6606 = vld [vmem:[#allocation11 + $0xe8] sm:$0xf]
    %v6607 = vld [vmem:[#allocation11 + $0xec] sm:$0xf]
    %v6608 = vld [vmem:[#allocation11 + $0xf0] sm:$0xf]
    %v6609 = vld [vmem:[#allocation11 + $0xf4] sm:$0xf]
    %v6610 = vld [vmem:[#allocation11 + $0xf8] sm:$0xf]
    %v6611 = vld [vmem:[#allocation11 + $0xfc] sm:$0xf]
    %v6612 = vld [vmem:[#allocation11 + $0x100] sm:$0xf]
    %v6613 = vld [vmem:[#allocation11 + $0x104] sm:$0xf]
    %v6614 = vld [vmem:[#allocation11 + $0x108] sm:$0xf]
    %v6615 = vld [vmem:[#allocation11 + $0x10c] sm:$0xf]
    %v6616 = vld [vmem:[#allocation11 + $0x110] sm:$0xf]
    %v6617 = vld [vmem:[#allocation11 + $0x114] sm:$0xf]
    %v6618 = vld [vmem:[#allocation11 + $0x118] sm:$0xf]
    %v6619 = vld [vmem:[#allocation11 + $0x11c] sm:$0xf]
    %v6620 = vld [vmem:[#allocation11 + $0x120] sm:$0xf]
    %v6621 = vld [vmem:[#allocation11 + $0x124] sm:$0xf]
    %v6622 = vld [vmem:[#allocation11 + $0x128] sm:$0xf]
    %v6623 = vld [vmem:[#allocation11 + $0x12c] sm:$0xf]
    %v6624 = vld [vmem:[#allocation11 + $0x130] sm:$0xf]
    %v6625 = vld [vmem:[#allocation11 + $0x134] sm:$0xf]
    %v6626 = vld [vmem:[#allocation11 + $0x138] sm:$0xf]
    %v6627 = vld [vmem:[#allocation11 + $0x13c] sm:$0xf]
    %v6628 = vld [vmem:[#allocation11 + $0x140] sm:$0xf]
    %v6629 = vld [vmem:[#allocation11 + $0x144] sm:$0xf]
    %v6630 = vld [vmem:[#allocation11 + $0x148] sm:$0xf]
    %v6631 = vld [vmem:[#allocation11 + $0x14c] sm:$0xf]
    %v6632 = vld [vmem:[#allocation11 + $0x150] sm:$0xf]
    %v6633 = vld [vmem:[#allocation11 + $0x154] sm:$0xf]
    %v6634 = vld [vmem:[#allocation11 + $0x158] sm:$0xf]
    %v6635 = vld [vmem:[#allocation11 + $0x15c] sm:$0xf]
    %v6636 = vld [vmem:[#allocation11 + $0x160] sm:$0xf]
    %v6637 = vld [vmem:[#allocation11 + $0x164] sm:$0xf]
    %v6638 = vld [vmem:[#allocation11 + $0x168] sm:$0xf]
    %v6639 = vld [vmem:[#allocation11 + $0x16c] sm:$0xf]
    %v6640 = vld [vmem:[#allocation11 + $0x170] sm:$0xf]
    %v6641 = vld [vmem:[#allocation11 + $0x174] sm:$0xf]
    %v6642 = vld [vmem:[#allocation11 + $0x178] sm:$0xf]
    %v6643 = vld [vmem:[#allocation11 + $0x17c] sm:$0xf]
    %v6644 = vld [vmem:[#allocation11 + $0x180] sm:$0xf]
    %v6645 = vld [vmem:[#allocation11 + $0x184] sm:$0xf]
    %v6646 = vld [vmem:[#allocation11 + $0x188] sm:$0xf]
    %v6647 = vld [vmem:[#allocation11 + $0x18c] sm:$0xf]
    %v6648 = vld [vmem:[#allocation11 + $0x190] sm:$0xf]
    %v6649 = vld [vmem:[#allocation11 + $0x194] sm:$0xf]
    %v6650 = vld [vmem:[#allocation11 + $0x198] sm:$0xf]
    %v6651 = vld [vmem:[#allocation11 + $0x19c] sm:$0xf]
    %v6652 = vld [vmem:[#allocation11 + $0x1a0] sm:$0xf]
    %v6653 = vld [vmem:[#allocation11 + $0x1a4] sm:$0xf]
    %v6654 = vld [vmem:[#allocation11 + $0x1a8] sm:$0xf]
    %v6655 = vld [vmem:[#allocation11 + $0x1ac] sm:$0xf]
    %v6656 = vld [vmem:[#allocation11 + $0x1b0] sm:$0xf]
    %v6657 = vld [vmem:[#allocation11 + $0x1b4] sm:$0xf]
    %v6658 = vld [vmem:[#allocation11 + $0x1b8] sm:$0xf]
    %v6659 = vld [vmem:[#allocation11 + $0x1bc] sm:$0xf]
    %v6660 = vld [vmem:[#allocation13] sm:$0x1]
    %v6662 = vperm.slane %v6660, 0
    %v6776 = vunpack.c.l.b16 %v6548
    %v6777 = vunpack.c.l.b16 %v6549
    %v6778 = vunpack.c.l.b16 %v6550
    %v6779 = vunpack.c.l.b16 %v6551
    %v6780 = vunpack.c.l.b16 %v6552
    %v6781 = vunpack.c.l.b16 %v6553
    %v6782 = vunpack.c.l.b16 %v6554
    %v6783 = vunpack.c.l.b16 %v6555
    %v6784 = vunpack.c.l.b16 %v6556
    %v6785 = vunpack.c.l.b16 %v6557
    %v6786 = vunpack.c.l.b16 %v6558
    %v6787 = vunpack.c.l.b16 %v6559
    %v6788 = vunpack.c.l.b16 %v6560
    %v6789 = vunpack.c.l.b16 %v6561
    %v6790 = vunpack.c.l.b16 %v6562
    %v6791 = vunpack.c.l.b16 %v6563
    %v6792 = vunpack.c.l.b16 %v6564
    %v6793 = vunpack.c.l.b16 %v6565
    %v6794 = vunpack.c.l.b16 %v6566
    %v6795 = vunpack.c.l.b16 %v6567
    %v6796 = vunpack.c.l.b16 %v6568
    %v6797 = vunpack.c.l.b16 %v6569
    %v6798 = vunpack.c.l.b16 %v6570
    %v6799 = vunpack.c.l.b16 %v6571
    %v6800 = vunpack.c.l.b16 %v6572
    %v6801 = vunpack.c.l.b16 %v6573
    %v6802 = vunpack.c.l.b16 %v6574
    %v6803 = vunpack.c.l.b16 %v6575
    %v6804 = vunpack.c.l.b16 %v6576
    %v6805 = vunpack.c.l.b16 %v6577
    %v6806 = vunpack.c.l.b16 %v6578
    %v6807 = vunpack.c.l.b16 %v6579
    %v6808 = vunpack.c.l.b16 %v6580
    %v6809 = vunpack.c.l.b16 %v6581
    %v6810 = vunpack.c.l.b16 %v6582
    %v6811 = vunpack.c.l.b16 %v6583
    %v6812 = vunpack.c.l.b16 %v6584
    %v6813 = vunpack.c.l.b16 %v6585
    %v6814 = vunpack.c.l.b16 %v6586
    %v6815 = vunpack.c.l.b16 %v6587
    %v6816 = vunpack.c.l.b16 %v6588
    %v6817 = vunpack.c.l.b16 %v6589
    %v6818 = vunpack.c.l.b16 %v6590
    %v6819 = vunpack.c.l.b16 %v6591
    %v6820 = vunpack.c.l.b16 %v6592
    %v6821 = vunpack.c.l.b16 %v6593
    %v6822 = vunpack.c.l.b16 %v6594
    %v6823 = vunpack.c.l.b16 %v6595
    %v6824 = vunpack.c.l.b16 %v6596
    %v6825 = vunpack.c.l.b16 %v6597
    %v6826 = vunpack.c.l.b16 %v6598
    %v6827 = vunpack.c.l.b16 %v6599
    %v6828 = vunpack.c.l.b16 %v6600
    %v6829 = vunpack.c.l.b16 %v6601
    %v6830 = vunpack.c.l.b16 %v6602
    %v6831 = vunpack.c.l.b16 %v6603
    %v6832 = vunpack.c.l.b16 %v6604
    %v6833 = vunpack.c.l.b16 %v6605
    %v6834 = vunpack.c.l.b16 %v6606
    %v6835 = vunpack.c.l.b16 %v6607
    %v6836 = vunpack.c.l.b16 %v6608
    %v6837 = vunpack.c.l.b16 %v6609
    %v6838 = vunpack.c.l.b16 %v6610
    %v6839 = vunpack.c.l.b16 %v6611
    %v6840 = vunpack.c.l.b16 %v6612
    %v6841 = vunpack.c.l.b16 %v6613
    %v6842 = vunpack.c.l.b16 %v6614
    %v6843 = vunpack.c.l.b16 %v6615
    %v6844 = vunpack.c.l.b16 %v6616
    %v6845 = vunpack.c.l.b16 %v6617
    %v6846 = vunpack.c.l.b16 %v6618
    %v6847 = vunpack.c.l.b16 %v6619
    %v6848 = vunpack.c.l.b16 %v6620
    %v6849 = vunpack.c.l.b16 %v6621
    %v6850 = vunpack.c.l.b16 %v6622
    %v6851 = vunpack.c.l.b16 %v6623
    %v6852 = vunpack.c.l.b16 %v6624
    %v6853 = vunpack.c.l.b16 %v6625
    %v6854 = vunpack.c.l.b16 %v6626
    %v6855 = vunpack.c.l.b16 %v6627
    %v6856 = vunpack.c.l.b16 %v6628
    %v6857 = vunpack.c.l.b16 %v6629
    %v6858 = vunpack.c.l.b16 %v6630
    %v6859 = vunpack.c.l.b16 %v6631
    %v6860 = vunpack.c.l.b16 %v6632
    %v6861 = vunpack.c.l.b16 %v6633
    %v6862 = vunpack.c.l.b16 %v6634
    %v6863 = vunpack.c.l.b16 %v6635
    %v6864 = vunpack.c.l.b16 %v6636
    %v6865 = vunpack.c.l.b16 %v6637
    %v6866 = vunpack.c.l.b16 %v6638
    %v6867 = vunpack.c.l.b16 %v6639
    %v6868 = vunpack.c.l.b16 %v6640
    %v6869 = vunpack.c.l.b16 %v6641
    %v6870 = vunpack.c.l.b16 %v6642
    %v6871 = vunpack.c.l.b16 %v6643
    %v6872 = vunpack.c.l.b16 %v6644
    %v6873 = vunpack.c.l.b16 %v6645
    %v6874 = vunpack.c.l.b16 %v6646
    %v6875 = vunpack.c.l.b16 %v6647
    %v6876 = vunpack.c.l.b16 %v6648
    %v6877 = vunpack.c.l.b16 %v6649
    %v6878 = vunpack.c.l.b16 %v6650
    %v6879 = vunpack.c.l.b16 %v6651
    %v6880 = vunpack.c.l.b16 %v6652
    %v6881 = vunpack.c.l.b16 %v6653
    %v6882 = vunpack.c.l.b16 %v6654
    %v6883 = vunpack.c.l.b16 %v6655
    %v6884 = vunpack.c.l.b16 %v6656
    %v6885 = vunpack.c.l.b16 %v6657
    %v6886 = vunpack.c.l.b16 %v6658
    %v6887 = vunpack.c.l.b16 %v6659
    %v6888 = vpack.c.b16 %v6777, %v6776
    %v6889 = vpack.c.b16 %v6779, %v6778
    %v6890 = vpack.c.b16 %v6781, %v6780
    %v6891 = vpack.c.b16 %v6783, %v6782
    %v6892 = vpack.c.b16 %v6785, %v6784
    %v6893 = vpack.c.b16 %v6787, %v6786
    %v6894 = vpack.c.b16 %v6789, %v6788
    %v6895 = vpack.c.b16 %v6791, %v6790
    %v6896 = vpack.c.b16 %v6793, %v6792
    %v6897 = vpack.c.b16 %v6795, %v6794
    %v6898 = vpack.c.b16 %v6797, %v6796
    %v6899 = vpack.c.b16 %v6799, %v6798
    %v6900 = vpack.c.b16 %v6801, %v6800
    %v6901 = vpack.c.b16 %v6803, %v6802
    %v6902 = vpack.c.b16 %v6805, %v6804
    %v6903 = vpack.c.b16 %v6807, %v6806
    %v6904 = vpack.c.b16 %v6809, %v6808
    %v6905 = vpack.c.b16 %v6811, %v6810
    %v6906 = vpack.c.b16 %v6813, %v6812
    %v6907 = vpack.c.b16 %v6815, %v6814
    %v6908 = vpack.c.b16 %v6817, %v6816
    %v6909 = vpack.c.b16 %v6819, %v6818
    %v6910 = vpack.c.b16 %v6821, %v6820
    %v6911 = vpack.c.b16 %v6823, %v6822
    %v6912 = vpack.c.b16 %v6825, %v6824
    %v6913 = vpack.c.b16 %v6827, %v6826
    %v6914 = vpack.c.b16 %v6829, %v6828
    %v6915 = vpack.c.b16 %v6831, %v6830
    %v6916 = vpack.c.b16 %v6833, %v6832
    %v6917 = vpack.c.b16 %v6835, %v6834
    %v6918 = vpack.c.b16 %v6837, %v6836
    %v6919 = vpack.c.b16 %v6839, %v6838
    %v6920 = vpack.c.b16 %v6841, %v6840
    %v6921 = vpack.c.b16 %v6843, %v6842
    %v6922 = vpack.c.b16 %v6845, %v6844
    %v6923 = vpack.c.b16 %v6847, %v6846
    %v6924 = vpack.c.b16 %v6849, %v6848
    %v6925 = vpack.c.b16 %v6851, %v6850
    %v6926 = vpack.c.b16 %v6853, %v6852
    %v6927 = vpack.c.b16 %v6855, %v6854
    %v6928 = vpack.c.b16 %v6857, %v6856
    %v6929 = vpack.c.b16 %v6859, %v6858
    %v6930 = vpack.c.b16 %v6861, %v6860
    %v6931 = vpack.c.b16 %v6863, %v6862
    %v6932 = vpack.c.b16 %v6865, %v6864
    %v6933 = vpack.c.b16 %v6867, %v6866
    %v6934 = vpack.c.b16 %v6869, %v6868
    %v6935 = vpack.c.b16 %v6871, %v6870
    %v6936 = vpack.c.b16 %v6873, %v6872
    %v6937 = vpack.c.b16 %v6875, %v6874
    %v6938 = vpack.c.b16 %v6877, %v6876
    %v6939 = vpack.c.b16 %v6879, %v6878
    %v6940 = vpack.c.b16 %v6881, %v6880
    %v6941 = vpack.c.b16 %v6883, %v6882
    %v6942 = vpack.c.b16 %v6885, %v6884
    %v6943 = vpack.c.b16 %v6887, %v6886
    %7000 = vmatpush.bf16.msra.mxu0 %v6895
    %7001 = vmatpush.bf16.msra.mxu0 %v6894
    %7002 = vmatpush.bf16.msra.mxu0 %v6893
    %7003 = vmatpush.bf16.msra.mxu0 %v6892
    %7004 = vmatpush.bf16.msra.mxu0 %v6891
    %7005 = vmatpush.bf16.msra.mxu0 %v6890
    %7006 = vmatpush.bf16.msra.mxu0 %v6889
    %7007 = vmatpush.bf16.msra.mxu0 %v6888
    %7008 = vmatmul.bf16.gmra.mxu0 %v6541
    %v7009 = vpop.f32.mrf.mxu0
    %v7010 = vadd.f32 %v6662, %v7009
    %v7011 = vpop.f32.mrf.mxu0
    %v7012 = vadd.f32 %v6662, %v7011
    %7013 = vdwg.mxu0
    %7014 = vmatpush.bf16.msra.mxu0 %v6903
    %7015 = vmatpush.bf16.msra.mxu0 %v6902
    %7016 = vmatpush.bf16.msra.mxu0 %v6901
    %7017 = vmatpush.bf16.msra.mxu0 %v6900
    %7018 = vmatpush.bf16.msra.mxu0 %v6899
    %7019 = vmatpush.bf16.msra.mxu0 %v6898
    %7020 = vmatpush.bf16.msra.mxu0 %v6897
    %7021 = vmatpush.bf16.msra.mxu0 %v6896
    %7022 = vmatmul.bf16.gmra.mxu0 %v6542
    %v7023 = vpop.f32.mrf.mxu0
    %v7024 = vadd.f32 %v7010, %v7023
    %v7025 = vpop.f32.mrf.mxu0
    %v7026 = vadd.f32 %v7012, %v7025
    %7027 = vdwg.mxu0
    %7028 = vmatpush.bf16.msra.mxu0 %v6911
    %7029 = vmatpush.bf16.msra.mxu0 %v6910
    %7030 = vmatpush.bf16.msra.mxu0 %v6909
    %7031 = vmatpush.bf16.msra.mxu0 %v6908
    %7032 = vmatpush.bf16.msra.mxu0 %v6907
    %7033 = vmatpush.bf16.msra.mxu0 %v6906
    %7034 = vmatpush.bf16.msra.mxu0 %v6905
    %7035 = vmatpush.bf16.msra.mxu0 %v6904
    %7036 = vmatmul.bf16.gmra.mxu0 %v6543
    %v7037 = vpop.f32.mrf.mxu0
    %v7038 = vadd.f32 %v7024, %v7037
    %v7039 = vpop.f32.mrf.mxu0
    %v7040 = vadd.f32 %v7026, %v7039
    %7041 = vdwg.mxu0
    %7042 = vmatpush.bf16.msra.mxu0 %v6919
    %7043 = vmatpush.bf16.msra.mxu0 %v6918
    %7044 = vmatpush.bf16.msra.mxu0 %v6917
    %7045 = vmatpush.bf16.msra.mxu0 %v6916
    %7046 = vmatpush.bf16.msra.mxu0 %v6915
    %7047 = vmatpush.bf16.msra.mxu0 %v6914
    %7048 = vmatpush.bf16.msra.mxu0 %v6913
    %7049 = vmatpush.bf16.msra.mxu0 %v6912
    %7050 = vmatmul.bf16.gmra.mxu0 %v6544
    %v7051 = vpop.f32.mrf.mxu0
    %v7052 = vadd.f32 %v7038, %v7051
    %v7053 = vpop.f32.mrf.mxu0
    %v7054 = vadd.f32 %v7040, %v7053
    %7055 = vdwg.mxu0
    %7056 = vmatpush.bf16.msra.mxu0 %v6927
    %7057 = vmatpush.bf16.msra.mxu0 %v6926
    %7058 = vmatpush.bf16.msra.mxu0 %v6925
    %7059 = vmatpush.bf16.msra.mxu0 %v6924
    %7060 = vmatpush.bf16.msra.mxu0 %v6923
    %7061 = vmatpush.bf16.msra.mxu0 %v6922
    %7062 = vmatpush.bf16.msra.mxu0 %v6921
    %7063 = vmatpush.bf16.msra.mxu0 %v6920
    %7064 = vmatmul.bf16.gmra.mxu0 %v6545
    %v7065 = vpop.f32.mrf.mxu0
    %v7066 = vadd.f32 %v7052, %v7065
    %v7067 = vpop.f32.mrf.mxu0
    %v7068 = vadd.f32 %v7054, %v7067
    %7069 = vdwg.mxu0
    %7070 = vmatpush.bf16.msra.mxu0 %v6935
    %7071 = vmatpush.bf16.msra.mxu0 %v6934
    %7072 = vmatpush.bf16.msra.mxu0 %v6933
    %7073 = vmatpush.bf16.msra.mxu0 %v6932
    %7074 = vmatpush.bf16.msra.mxu0 %v6931
    %7075 = vmatpush.bf16.msra.mxu0 %v6930
    %7076 = vmatpush.bf16.msra.mxu0 %v6929
    %7077 = vmatpush.bf16.msra.mxu0 %v6928
    %7078 = vmatmul.bf16.gmra.mxu0 %v6546
    %v7079 = vpop.f32.mrf.mxu0
    %v7080 = vadd.f32 %v7066, %v7079
    %v7081 = vpop.f32.mrf.mxu0
    %v7082 = vadd.f32 %v7068, %v7081
    %7083 = vdwg.mxu0
    %7084 = vmatpush.bf16.msra.mxu0 %v6943
    %7085 = vmatpush.bf16.msra.mxu0 %v6942
    %7086 = vmatpush.bf16.msra.mxu0 %v6941
    %7087 = vmatpush.bf16.msra.mxu0 %v6940
    %7088 = vmatpush.bf16.msra.mxu0 %v6939
    %7089 = vmatpush.bf16.msra.mxu0 %v6938
    %7090 = vmatpush.bf16.msra.mxu0 %v6937
    %7091 = vmatpush.bf16.msra.mxu0 %v6936
    %7092 = vmatmul.bf16.gmra.mxu0 %v6547
    %v7093 = vpop.f32.mrf.mxu0
    %v7094 = vadd.f32 %v7080, %v7093
    %v7095 = vpop.f32.mrf.mxu0
    %v7096 = vadd.f32 %v7082, %v7095
    %7097 = vdwg.mxu0
    %7098 = vst [vmem:[#allocation14] sm:$0xff] %v7094
    %7099 = vst [vmem:[#allocation14 + $0x8] sm:$0xff] %v7096
    // Predicated region
    $region58: #{tpu_custom_call.1} parent=1 // pred_check
      _
    $region59: #{tpu_custom_call.1} parent=1 // pred_check_branch
      %7101 = sbr.rel (0) target = $region61
    $region60: #{tpu_custom_call.1} parent=1 // pred_region
      %7103 = vsyncadd [#allocation4], 0
      %s7104 = sshll.u32 [#allocation14], 4
      %s7105 = int_to_ptr.vmem [resolvable:$true] %s7104
      %s7106 = sshll.u32 %s7, 4
      %s7107 = int_to_ptr.hbm [resolvable:$true] %s7106
      %7112 = dma.vmem_to_hbm [thread:$0]  %s7105, 256, %s7107, [#allocation4], 128, 128, 8
    $region61: #{tpu_custom_call.1} parent=1 // pred_fallthru
      _
    // Predicated region
    $region62: #{tpu_custom_call.1} parent=1 // pred_check
      _
    $region63: #{tpu_custom_call.1} parent=1 // pred_check_branch
      %7114 = sbr.rel (0) target = $region65
    $region64: #{tpu_custom_call.1} parent=1 // pred_region
      %7116 = dma.done [#allocation4], 256
    $region65: #{tpu_custom_call.1} parent=1 // pred_fallthru
      _
    %7117 = vsyncpa [#allocation3], 1
    %7118 = vsyncpa [#allocation6], 1
    %7119 = vsyncpa [#allocation9], 1
    %7120 = vsyncpa [#allocation12], 1
    %7121 = vsyncpa [#allocation4], 1

// kernel: tpu_custom_call.1
$region0: #{tpu_custom_call.1}
  #allocation0 [shape = 'u32[]', space=smem, size = 0x4, offset = 0x4, fixed_abs, tag = 'smem constant byte address 0x4 - core index']
  #allocation1 [shape = 'u32[72,128]{1,0:T(1,128)}', space=vmem, size = 0x9000, scoped, tag = 'internal scratch']
  %s0 = inlined_call_operand.hbm [shape: bf16[16,896], index: 0, kind: input, shape index: {}]
  %s1 = inlined_call_operand.hbm [shape: bf16[896,896], index: 1, kind: input, shape index: {}]
  %s2 = inlined_call_operand.hbm [shape: f32[1,896], index: 2, kind: input, shape index: {}]
  %s3 = inlined_call_operand.hbm [shape: bf16[896,896], index: 3, kind: input, shape index: {}]
  %s4 = inlined_call_operand.hbm [shape: f32[1,896], index: 4, kind: input, shape index: {}]
  %s5 = inlined_call_operand.hbm [shape: bf16[896,128], index: 5, kind: input, shape index: {}]
  %s6 = inlined_call_operand.hbm [shape: f32[1,128], index: 6, kind: input, shape index: {}]
  %s7 = inlined_call_operand.hbm [shape: f32[16,128], index: 7, kind: output, shape index: {}]
  %s8 = sld [smem:[#allocation0]]
  $region66: #{tpu_custom_call.1} parent=0
    _
  %s10 = ssub.s32 1, %s8
  %s11 = scalar_select 0, %s10, %s8
  $region1: #{tpu_custom_call.1} parent=0
    #allocation2 [shape = 'u8[28672]{0}', space=vmem, size = 0x7000, scoped, tag = 'input window, operand 0, single buffered']
    #allocation3 [shape = 's32[1]{0}', space=sflag, size = 0x4, scoped, tag = 'scoped memory for tpu_custom_call.1']
    #allocation4 [shape = 's32[1]{0}', space=sflag, size = 0x4, scoped, tag = 'scoped memory for tpu_custom_call.1']
    #allocation5 [shape = 'u8[1605632]{0}', space=vmem, size = 0x188000, scoped, tag = 'input window, operand 1, single buffered']
    #allocation6 [shape = 's32[1]{0}', space=sflag, size = 0x4, scoped, tag = 'scoped memory for tpu_custom_call.1']
    #allocation7 [shape = 'u8[3584]{0}', space=vmem, size = 0x1000, scoped, tag = 'input window, operand 2, single buffered']
    #allocation8 [shape = 'u8[1605632]{0}', space=vmem, size = 0x188000, scoped, tag = 'input window, operand 3, single buffered']
    #allocation9 [shape = 's32[1]{0}', space=sflag, size = 0x4, scoped, tag = 'scoped memory for tpu_custom_call.1']
    #allocation10 [shape = 'u8[3584]{0}', space=vmem, size = 0x1000, scoped, tag = 'input window, operand 4, single buffered']
    #allocation11 [shape = 'u8[229376]{0}', space=vmem, size = 0x38000, scoped, tag = 'input window, operand 5, single buffered']
    #allocation12 [shape = 's32[1]{0}', space=sflag, size = 0x4, scoped, tag = 'scoped memory for tpu_custom_call.1']
    #allocation13 [shape = 'u8[512]{0}', space=vmem, size = 0x400, scoped, tag = 'input window, operand 6, single buffered']
    #allocation14 [shape = 'u8[8192]{0}', space=vmem, size = 0x2000, scoped, tag = 'output window, operand 0, single buffered']
    %12 = vsyncpa [#allocation3], 0
    %13 = vsyncpa [#allocation6], 0
    %14 = vsyncpa [#allocation9], 0
    %15 = vsyncpa [#allocation12], 0
    %16 = vsyncpa [#allocation4], 0
    // Predicated region
    $region2: #{tpu_custom_call.1} parent=1 // pred_check
      _
    $region3: #{tpu_custom_call.1} parent=1 // pred_check_branch
      %18 = sbr.rel (0) target = $region5
    $region4: #{tpu_custom_call.1} parent=1 // pred_region
      %20 = vsyncadd [#allocation3], 0
      %s21 = sshll.u32 %s0, 4
      %s22 = int_to_ptr.hbm [resolvable:$true] %s21
      %s23 = sshll.u32 [#allocation2], 4
      %s24 = int_to_ptr.vmem [resolvable:$true] %s23
      %29 = dma.hbm_to_vmem [thread:$0]  %s22, 896, %s24, [#allocation3], 448, 448, 28
    $region5: #{tpu_custom_call.1} parent=1 // pred_fallthru
      _
    // Predicated region
    $region6: #{tpu_custom_call.1} parent=1 // pred_check
      _
    $region7: #{tpu_custom_call.1} parent=1 // pred_check_branch
      %31 = sbr.rel (0) target = $region9
    $region8: #{tpu_custom_call.1} parent=1 // pred_region
      %33 = vsyncadd [#allocation6], 0
      %s34 = sshll.u32 %s1, 4
      %s35 = int_to_ptr.hbm [resolvable:$true] %s34
      %s36 = sshll.u32 [#allocation5], 4
      %s37 = int_to_ptr.vmem [resolvable:$true] %s36
      %42 = dma.hbm_to_vmem [thread:$0]  %s35, 50176, %s37, [#allocation6], 448, 448, 28
    $region9: #{tpu_custom_call.1} parent=1 // pred_fallthru
      _
    // Predicated region
    $region10: #{tpu_custom_call.1} parent=1 // pred_check
      _
    $region11: #{tpu_custom_call.1} parent=1 // pred_check_branch
      %44 = sbr.rel (0) target = $region13
    $region12: #{tpu_custom_call.1} parent=1 // pred_region
      %46 = vsyncadd [#allocation6], 0
      %s48 = sshll.u32 %s2, 4
      %s49 = int_to_ptr.hbm [resolvable:$true] %s48
      %s50 = sshll.u32 [#allocation7], 4
      %s51 = int_to_ptr.vmem [resolvable:$true] %s50
      %53 = dma.hbm_to_vmem [thread:$0]  %s49, 112, %s51, [#allocation6]
    $region13: #{tpu_custom_call.1} parent=1 // pred_fallthru
      _
    // Predicated region
    $region14: #{tpu_custom_call.1} parent=1 // pred_check
      _
    $region15: #{tpu_custom_call.1} parent=1 // pred_check_branch
      %55 = sbr.rel (0) target = $region17
    $region16: #{tpu_custom_call.1} parent=1 // pred_region
      %57 = vsyncadd [#allocation9], 0
      %s58 = sshll.u32 %s3, 4
      %s59 = int_to_ptr.hbm [resolvable:$true] %s58
      %s60 = sshll.u32 [#allocation8], 4
      %s61 = int_to_ptr.vmem [resolvable:$true] %s60
      %66 = dma.hbm_to_vmem [thread:$0]  %s59, 50176, %s61, [#allocation9], 448, 448, 28
    $region17: #{tpu_custom_call.1} parent=1 // pred_fallthru
      _
    // Predicated region
    $region18: #{tpu_custom_call.1} parent=1 // pred_check
      _
    $region19: #{tpu_custom_call.1} parent=1 // pred_check_branch
      %68 = sbr.rel (0) target = $region21
    $region20: #{tpu_custom_call.1} parent=1 // pred_region
      %70 = vsyncadd [#allocation9], 0
      %s72 = sshll.u32 %s4, 4
      %s73 = int_to_ptr.hbm [resolvable:$true] %s72
      %s74 = sshll.u32 [#allocation10], 4
      %s75 = int_to_ptr.vmem [resolvable:$true] %s74
      %77 = dma.hbm_to_vmem [thread:$0]  %s73, 112, %s75, [#allocation9]
    $region21: #{tpu_custom_call.1} parent=1 // pred_fallthru
      _
    // Predicated region
    $region22: #{tpu_custom_call.1} parent=1 // pred_check
      _
    $region23: #{tpu_custom_call.1} parent=1 // pred_check_branch
      %79 = sbr.rel (0) target = $region25
    $region24: #{tpu_custom_call.1} parent=1 // pred_region
      %81 = vsyncadd [#allocation12], 0
      %s82 = sshll.u32 %s5, 4
      %s83 = int_to_ptr.hbm [resolvable:$true] %s82
      %s84 = sshll.u32 [#allocation11], 4
      %s85 = int_to_ptr.vmem [resolvable:$true] %s84
      %90 = dma.hbm_to_vmem [thread:$0]  %s83, 7168, %s85, [#allocation12], 64, 64, 4
    $region25: #{tpu_custom_call.1} parent=1 // pred_fallthru
      _
    // Predicated region
    $region26: #{tpu_custom_call.1} parent=1 // pred_check
      _
    $region27: #{tpu_custom_call.1} parent=1 // pred_check_branch
      %92 = sbr.rel (0) target = $region29
    $region28: #{tpu_custom_call.1} parent=1 // pred_region
      %94 = vsyncadd [#allocation12], 0
      %s96 = sshll.u32 %s6, 4
      %s97 = int_to_ptr.hbm [resolvable:$true] %s96
      %s98 = sshll.u32 [#allocation13], 4
      %s99 = int_to_ptr.vmem [resolvable:$true] %s98
      %101 = dma.hbm_to_vmem [thread:$0]  %s97, 16, %s99, [#allocation12]
    $region29: #{tpu_custom_call.1} parent=1 // pred_fallthru
      _
    // Predicated region
    $region30: #{tpu_custom_call.1} parent=1 // pred_check
      _
    $region31: #{tpu_custom_call.1} parent=1 // pred_check_branch
      %103 = sbr.rel (0) target = $region33
    $region32: #{tpu_custom_call.1} parent=1 // pred_region
      %105 = dma.done [#allocation3], 896
    $region33: #{tpu_custom_call.1} parent=1 // pred_fallthru
      _
    // Predicated region
    $region34: #{tpu_custom_call.1} parent=1 // pred_check
      _
    $region35: #{tpu_custom_call.1} parent=1 // pred_check_branch
      %107 = sbr.rel (0) target = $region37
    $region36: #{tpu_custom_call.1} parent=1 // pred_region
      %109 = dma.done [#allocation6], 50176
    $region37: #{tpu_custom_call.1} parent=1 // pred_fallthru
      _
    // Predicated region
    $region38: #{tpu_custom_call.1} parent=1 // pred_check
      _
    $region39: #{tpu_custom_call.1} parent=1 // pred_check_branch
      %111 = sbr.rel (0) target = $region41
    $region40: #{tpu_custom_call.1} parent=1 // pred_region
      %113 = dma.done [#allocation6], 112
    $region41: #{tpu_custom_call.1} parent=1 // pred_fallthru
      _
    // Predicated region
    $region42: #{tpu_custom_call.1} parent=1 // pred_check
      _
    $region43: #{tpu_custom_call.1} parent=1 // pred_check_branch
      %115 = sbr.rel (0) target = $region45
    $region44: #{tpu_custom_call.1} parent=1 // pred_region
      %117 = dma.done [#allocation9], 50176
    $region45: #{tpu_custom_call.1} parent=1 // pred_fallthru
      _
    // Predicated region
    $region46: #{tpu_custom_call.1} parent=1 // pred_check
      _
    $region47: #{tpu_custom_call.1} parent=1 // pred_check_branch
      %119 = sbr.rel (0) target = $region49
    $region48: #{tpu_custom_call.1} parent=1 // pred_region
      %121 = dma.done [#allocation9], 112
    $region49: #{tpu_custom_call.1} parent=1 // pred_fallthru
      _
    // Predicated region
    $region50: #{tpu_custom_call.1} parent=1 // pred_check
      _
    $region51: #{tpu_custom_call.1} parent=1 // pred_check_branch
      %123 = sbr.rel (0) target = $region53
    $region52: #{tpu_custom_call.1} parent=1 // pred_region
      %125 = dma.done [#allocation12], 7168
    $region53: #{tpu_custom_call.1} parent=1 // pred_fallthru
      _
    // Predicated region
    $region54: #{tpu_custom_call.1} parent=1 // pred_check
      _
    $region55: #{tpu_custom_call.1} parent=1 // pred_check_branch
      %127 = sbr.rel (0) target = $region57
    $region56: #{tpu_custom_call.1} parent=1 // pred_region
      %129 = dma.done [#allocation12], 16
    $region57: #{tpu_custom_call.1} parent=1 // pred_fallthru
      _
    %v130 = vld [vmem:[#allocation2] sm:$0xff]
    %v131 = vld [vmem:[#allocation2 + $0x8] sm:$0xff]
    %v132 = vld [vmem:[#allocation2 + $0x10] sm:$0xff]
    %v133 = vld [vmem:[#allocation2 + $0x18] sm:$0xf]
    %v134 = vld [vmem:[#allocation2 + $0x1c] sm:$0xff]
    %v135 = vld [vmem:[#allocation2 + $0x24] sm:$0xff]
    %v136 = vld [vmem:[#allocation2 + $0x2c] sm:$0xff]
    %v137 = vld [vmem:[#allocation2 + $0x34] sm:$0xf]
    %v138 = vld [vmem:[#allocation5] sm:$0xff]
    %v139 = vld [vmem:[#allocation5 + $0x8] sm:$0xff]
    %v140 = vld [vmem:[#allocation5 + $0x10] sm:$0xff]
    %v141 = vld [vmem:[#allocation5 + $0x18] sm:$0xf]
    %v142 = vld [vmem:[#allocation5 + $0x1c] sm:$0xff]
    %v143 = vld [vmem:[#allocation5 + $0x24] sm:$0xff]
    %v144 = vld [vmem:[#allocation5 + $0x2c] sm:$0xff]
    %v145 = vld [vmem:[#allocation5 + $0x34] sm:$0xf]
    %v146 = vld [vmem:[#allocation5 + $0x38] sm:$0xff]
    %v147 = vld [vmem:[#allocation5 + $0x40] sm:$0xff]
    %v148 = vld [vmem:[#allocation5 + $0x48] sm:$0xff]
    %v149 = vld [vmem:[#allocation5 + $0x50] sm:$0xf]
    %v150 = vld [vmem:[#allocation5 + $0x54] sm:$0xff]
    %v151 = vld [vmem:[#allocation5 + $0x5c] sm:$0xff]
    %v152 = vld [vmem:[#allocation5 + $0x64] sm:$0xff]
    %v153 = vld [vmem:[#allocation5 + $0x6c] sm:$0xf]
    %v154 = vld [vmem:[#allocation5 + $0x70] sm:$0xff]
    %v155 = vld [vmem:[#allocation5 + $0x78] sm:$0xff]
    %v156 = vld [vmem:[#allocation5 + $0x80] sm:$0xff]
    %v157 = vld [vmem:[#allocation5 + $0x88] sm:$0xf]
    %v158 = vld [vmem:[#allocation5 + $0x8c] sm:$0xff]
    %v159 = vld [vmem:[#allocation5 + $0x94] sm:$0xff]
    %v160 = vld [vmem:[#allocation5 + $0x9c] sm:$0xff]
    %v161 = vld [vmem:[#allocation5 + $0xa4] sm:$0xf]
    %v162 = vld [vmem:[#allocation5 + $0xa8] sm:$0xff]
    %v163 = vld [vmem:[#allocation5 + $0xb0] sm:$0xff]
    %v164 = vld [vmem:[#allocation5 + $0xb8] sm:$0xff]
    %v165 = vld [vmem:[#allocation5 + $0xc0] sm:$0xf]
    %v166 = vld [vmem:[#allocation5 + $0xc4] sm:$0xff]
    %v167 = vld [vmem:[#allocation5 + $0xcc] sm:$0xff]
    %v168 = vld [vmem:[#allocation5 + $0xd4] sm:$0xff]
    %v169 = vld [vmem:[#allocation5 + $0xdc] sm:$0xf]
    %v170 = vld [vmem:[#allocation5 + $0xe0] sm:$0xff]
    %v171 = vld [vmem:[#allocation5 + $0xe8] sm:$0xff]
    %v172 = vld [vmem:[#allocation5 + $0xf0] sm:$0xff]
    %v173 = vld [vmem:[#allocation5 + $0xf8] sm:$0xf]
    %v174 = vld [vmem:[#allocation5 + $0xfc] sm:$0xff]
    %v175 = vld [vmem:[#allocation5 + $0x104] sm:$0xff]
    %v176 = vld [vmem:[#allocation5 + $0x10c] sm:$0xff]
    %v177 = vld [vmem:[#allocation5 + $0x114] sm:$0xf]
    %v178 = vld [vmem:[#allocation5 + $0x118] sm:$0xff]
    %v179 = vld [vmem:[#allocation5 + $0x120] sm:$0xff]
    %v180 = vld [vmem:[#allocation5 + $0x128] sm:$0xff]
    %v181 = vld [vmem:[#allocation5 + $0x130] sm:$0xf]
    %v182 = vld [vmem:[#allocation5 + $0x134] sm:$0xff]
    %v183 = vld [vmem:[#allocation5 + $0x13c] sm:$0xff]
    %v184 = vld [vmem:[#allocation5 + $0x144] sm:$0xff]
    %v185 = vld [vmem:[#allocation5 + $0x14c] sm:$0xf]
    %v186 = vld [vmem:[#allocation5 + $0x150] sm:$0xff]
    %v187 = vld [vmem:[#allocation5 + $0x158] sm:$0xff]
    %v188 = vld [vmem:[#allocation5 + $0x160] sm:$0xff]
    %v189 = vld [vmem:[#allocation5 + $0x168] sm:$0xf]
    %v190 = vld [vmem:[#allocation5 + $0x16c] sm:$0xff]
    %v191 = vld [vmem:[#allocation5 + $0x174] sm:$0xff]
    %v192 = vld [vmem:[#allocation5 + $0x17c] sm:$0xff]
    %v193 = vld [vmem:[#allocation5 + $0x184] sm:$0xf]
    %v194 = vld [vmem:[#allocation5 + $0x188] sm:$0xff]
    %v195 = vld [vmem:[#allocation5 + $0x190] sm:$0xff]
    %v196 = vld [vmem:[#allocation5 + $0x198] sm:$0xff]
    %v197 = vld [vmem:[#allocation5 + $0x1a0] sm:$0xf]
    %v198 = vld [vmem:[#allocation5 + $0x1a4] sm:$0xff]
    %v199 = vld [vmem:[#allocation5 + $0x1ac] sm:$0xff]
    %v200 = vld [vmem:[#allocation5 + $0x1b4] sm:$0xff]
    %v201 = vld [vmem:[#allocation5 + $0x1bc] sm:$0xf]
    %v202 = vld [vmem:[#allocation5 + $0x1c0] sm:$0xff]
    %v203 = vld [vmem:[#allocation5 + $0x1c8] sm:$0xff]
    %v204 = vld [vmem:[#allocation5 + $0x1d0] sm:$0xff]
    %v205 = vld [vmem:[#allocation5 + $0x1d8] sm:$0xf]
    %v206 = vld [vmem:[#allocation5 + $0x1dc] sm:$0xff]
    %v207 = vld [vmem:[#allocation5 + $0x1e4] sm:$0xff]
    %v208 = vld [vmem:[#allocation5 + $0x1ec] sm:$0xff]
    %v209 = vld [vmem:[#allocation5 + $0x1f4] sm:$0xf]
    %v210 = vld [vmem:[#allocation5 + $0x1f8] sm:$0xff]
    %v211 = vld [vmem:[#allocation5 + $0x200] sm:$0xff]
    %v212 = vld [vmem:[#allocation5 + $0x208] sm:$0xff]
    %v213 = vld [vmem:[#allocation5 + $0x210] sm:$0xf]
    %v214 = vld [vmem:[#allocation5 + $0x214] sm:$0xff]
    %v215 = vld [vmem:[#allocation5 + $0x21c] sm:$0xff]
    %v216 = vld [vmem:[#allocation5 + $0x224] sm:$0xff]
    %v217 = vld [vmem:[#allocation5 + $0x22c] sm:$0xf]
    %v218 = vld [vmem:[#allocation5 + $0x230] sm:$0xff]
    %v219 = vld [vmem:[#allocation5 + $0x238] sm:$0xff]
    %v220 = vld [vmem:[#allocation5 + $0x240] sm:$0xff]
    %v221 = vld [vmem:[#allocation5 + $0x248] sm:$0xf]
    %v222 = vld [vmem:[#allocation5 + $0x24c] sm:$0xff]
    %v223 = vld [vmem:[#allocation5 + $0x254] sm:$0xff]
    %v224 = vld [vmem:[#allocation5 + $0x25c] sm:$0xff]
    %v225 = vld [vmem:[#allocation5 + $0x264] sm:$0xf]
    %v226 = vld [vmem:[#allocation5 + $0x268] sm:$0xff]
    %v227 = vld [vmem:[#allocation5 + $0x270] sm:$0xff]
    %v228 = vld [vmem:[#allocation5 + $0x278] sm:$0xff]
    %v229 = vld [vmem:[#allocation5 + $0x280] sm:$0xf]
    %v230 = vld [vmem:[#allocation5 + $0x284] sm:$0xff]
    %v231 = vld [vmem:[#allocation5 + $0x28c] sm:$0xff]
    %v232 = vld [vmem:[#allocation5 + $0x294] sm:$0xff]
    %v233 = vld [vmem:[#allocation5 + $0x29c] sm:$0xf]
    %v234 = vld [vmem:[#allocation5 + $0x2a0] sm:$0xff]
    %v235 = vld [vmem:[#allocation5 + $0x2a8] sm:$0xff]
    %v236 = vld [vmem:[#allocation5 + $0x2b0] sm:$0xff]
    %v237 = vld [vmem:[#allocation5 + $0x2b8] sm:$0xf]
    %v238 = vld [vmem:[#allocation5 + $0x2bc] sm:$0xff]
    %v239 = vld [vmem:[#allocation5 + $0x2c4] sm:$0xff]
    %v240 = vld [vmem:[#allocation5 + $0x2cc] sm:$0xff]
    %v241 = vld [vmem:[#allocation5 + $0x2d4] sm:$0xf]
    %v242 = vld [vmem:[#allocation5 + $0x2d8] sm:$0xff]
    %v243 = vld [vmem:[#allocation5 + $0x2e0] sm:$0xff]
    %v244 = vld [vmem:[#allocation5 + $0x2e8] sm:$0xff]
    %v245 = vld [vmem:[#allocation5 + $0x2f0] sm:$0xf]
    %v246 = vld [vmem:[#allocation5 + $0x2f4] sm:$0xff]
    %v247 = vld [vmem:[#allocation5 + $0x2fc] sm:$0xff]
    %v248 = vld [vmem:[#allocation5 + $0x304] sm:$0xff]
    %v249 = vld [vmem:[#allocation5 + $0x30c] sm:$0xf]
    %v250 = vld [vmem:[#allocation5 + $0x310] sm:$0xff]
    %v251 = vld [vmem:[#allocation5 + $0x318] sm:$0xff]
    %v252 = vld [vmem:[#allocation5 + $0x320] sm:$0xff]
    %v253 = vld [vmem:[#allocation5 + $0x328] sm:$0xf]
    %v254 = vld [vmem:[#allocation5 + $0x32c] sm:$0xff]
    %v255 = vld [vmem:[#allocation5 + $0x334] sm:$0xff]
    %v256 = vld [vmem:[#allocation5 + $0x33c] sm:$0xff]
    %v257 = vld [vmem:[#allocation5 + $0x344] sm:$0xf]
    %v258 = vld [vmem:[#allocation5 + $0x348] sm:$0xff]
    %v259 = vld [vmem:[#allocation5 + $0x350] sm:$0xff]
    %v260 = vld [vmem:[#allocation5 + $0x358] sm:$0xff]
    %v261 = vld [vmem:[#allocation5 + $0x360] sm:$0xf]
    %v262 = vld [vmem:[#allocation5 + $0x364] sm:$0xff]
    %v263 = vld [vmem:[#allocation5 + $0x36c] sm:$0xff]
    %v264 = vld [vmem:[#allocation5 + $0x374] sm:$0xff]
    %v265 = vld [vmem:[#allocation5 + $0x37c] sm:$0xf]
    %v266 = vld [vmem:[#allocation5 + $0x380] sm:$0xff]
    %v267 = vld [vmem:[#allocation5 + $0x388] sm:$0xff]
    %v268 = vld [vmem:[#allocation5 + $0x390] sm:$0xff]
    %v269 = vld [vmem:[#allocation5 + $0x398] sm:$0xf]
    %v270 = vld [vmem:[#allocation5 + $0x39c] sm:$0xff]
    %v271 = vld [vmem:[#allocation5 + $0x3a4] sm:$0xff]
    %v272 = vld [vmem:[#allocation5 + $0x3ac] sm:$0xff]
    %v273 = vld [vmem:[#allocation5 + $0x3b4] sm:$0xf]
    %v274 = vld [vmem:[#allocation5 + $0x3b8] sm:$0xff]
    %v275 = vld [vmem:[#allocation5 + $0x3c0] sm:$0xff]
    %v276 = vld [vmem:[#allocation5 + $0x3c8] sm:$0xff]
    %v277 = vld [vmem:[#allocation5 + $0x3d0] sm:$0xf]
    %v278 = vld [vmem:[#allocation5 + $0x3d4] sm:$0xff]
    %v279 = vld [vmem:[#allocation5 + $0x3dc] sm:$0xff]
    %v280 = vld [vmem:[#allocation5 + $0x3e4] sm:$0xff]
    %v281 = vld [vmem:[#allocation5 + $0x3ec] sm:$0xf]
    %v282 = vld [vmem:[#allocation5 + $0x3f0] sm:$0xff]
    %v283 = vld [vmem:[#allocation5 + $0x3f8] sm:$0xff]
    %v284 = vld [vmem:[#allocation5 + $0x400] sm:$0xff]
    %v285 = vld [vmem:[#allocation5 + $0x408] sm:$0xf]
    %v286 = vld [vmem:[#allocation5 + $0x40c] sm:$0xff]
    %v287 = vld [vmem:[#allocation5 + $0x414] sm:$0xff]
    %v288 = vld [vmem:[#allocation5 + $0x41c] sm:$0xff]
    %v289 = vld [vmem:[#allocation5 + $0x424] sm:$0xf]
    %v290 = vld [vmem:[#allocation5 + $0x428] sm:$0xff]
    %v291 = vld [vmem:[#allocation5 + $0x430] sm:$0xff]
    %v292 = vld [vmem:[#allocation5 + $0x438] sm:$0xff]
    %v293 = vld [vmem:[#allocation5 + $0x440] sm:$0xf]
    %v294 = vld [vmem:[#allocation5 + $0x444] sm:$0xff]
    %v295 = vld [vmem:[#allocation5 + $0x44c] sm:$0xff]
    %v296 = vld [vmem:[#allocation5 + $0x454] sm:$0xff]
    %v297 = vld [vmem:[#allocation5 + $0x45c] sm:$0xf]
    %v298 = vld [vmem:[#allocation5 + $0x460] sm:$0xff]
    %v299 = vld [vmem:[#allocation5 + $0x468] sm:$0xff]
    %v300 = vld [vmem:[#allocation5 + $0x470] sm:$0xff]
    %v301 = vld [vmem:[#allocation5 + $0x478] sm:$0xf]
    %v302 = vld [vmem:[#allocation5 + $0x47c] sm:$0xff]
    %v303 = vld [vmem:[#allocation5 + $0x484] sm:$0xff]
    %v304 = vld [vmem:[#allocation5 + $0x48c] sm:$0xff]
    %v305 = vld [vmem:[#allocation5 + $0x494] sm:$0xf]
    %v306 = vld [vmem:[#allocation5 + $0x498] sm:$0xff]
    %v307 = vld [vmem:[#allocation5 + $0x4a0] sm:$0xff]
    %v308 = vld [vmem:[#allocation5 + $0x4a8] sm:$0xff]
    %v309 = vld [vmem:[#allocation5 + $0x4b0] sm:$0xf]
    %v310 = vld [vmem:[#allocation5 + $0x4b4] sm:$0xff]
    %v311 = vld [vmem:[#allocation5 + $0x4bc] sm:$0xff]
    %v312 = vld [vmem:[#allocation5 + $0x4c4] sm:$0xff]
    %v313 = vld [vmem:[#allocation5 + $0x4cc] sm:$0xf]
    %v314 = vld [vmem:[#allocation5 + $0x4d0] sm:$0xff]
    %v315 = vld [vmem:[#allocation5 + $0x4d8] sm:$0xff]
    %v316 = vld [vmem:[#allocation5 + $0x4e0] sm:$0xff]
    %v317 = vld [vmem:[#allocation5 + $0x4e8] sm:$0xf]
    %v318 = vld [vmem:[#allocation5 + $0x4ec] sm:$0xff]
    %v319 = vld [vmem:[#allocation5 + $0x4f4] sm:$0xff]
    %v320 = vld [vmem:[#allocation5 + $0x4fc] sm:$0xff]
    %v321 = vld [vmem:[#allocation5 + $0x504] sm:$0xf]
    %v322 = vld [vmem:[#allocation5 + $0x508] sm:$0xff]
    %v323 = vld [vmem:[#allocation5 + $0x510] sm:$0xff]
    %v324 = vld [vmem:[#allocation5 + $0x518] sm:$0xff]
    %v325 = vld [vmem:[#allocation5 + $0x520] sm:$0xf]
    %v326 = vld [vmem:[#allocation5 + $0x524] sm:$0xff]
    %v327 = vld [vmem:[#allocation5 + $0x52c] sm:$0xff]
    %v328 = vld [vmem:[#allocation5 + $0x534] sm:$0xff]
    %v329 = vld [vmem:[#allocation5 + $0x53c] sm:$0xf]
    %v330 = vld [vmem:[#allocation5 + $0x540] sm:$0xff]
    %v331 = vld [vmem:[#allocation5 + $0x548] sm:$0xff]
    %v332 = vld [vmem:[#allocation5 + $0x550] sm:$0xff]
    %v333 = vld [vmem:[#allocation5 + $0x558] sm:$0xf]
    %v334 = vld [vmem:[#allocation5 + $0x55c] sm:$0xff]
    %v335 = vld [vmem:[#allocation5 + $0x564] sm:$0xff]
    %v336 = vld [vmem:[#allocation5 + $0x56c] sm:$0xff]
    %v337 = vld [vmem:[#allocation5 + $0x574] sm:$0xf]
    %v338 = vld [vmem:[#allocation5 + $0x578] sm:$0xff]
    %v339 = vld [vmem:[#allocation5 + $0x580] sm:$0xff]
    %v340 = vld [vmem:[#allocation5 + $0x588] sm:$0xff]
    %v341 = vld [vmem:[#allocation5 + $0x590] sm:$0xf]
    %v342 = vld [vmem:[#allocation5 + $0x594] sm:$0xff]
    %v343 = vld [vmem:[#allocation5 + $0x59c] sm:$0xff]
    %v344 = vld [vmem:[#allocation5 + $0x5a4] sm:$0xff]
    %v345 = vld [vmem:[#allocation5 + $0x5ac] sm:$0xf]
    %v346 = vld [vmem:[#allocation5 + $0x5b0] sm:$0xff]
    %v347 = vld [vmem:[#allocation5 + $0x5b8] sm:$0xff]
    %v348 = vld [vmem:[#allocation5 + $0x5c0] sm:$0xff]
    %v349 = vld [vmem:[#allocation5 + $0x5c8] sm:$0xf]
    %v350 = vld [vmem:[#allocation5 + $0x5cc] sm:$0xff]
    %v351 = vld [vmem:[#allocation5 + $0x5d4] sm:$0xff]
    %v352 = vld [vmem:[#allocation5 + $0x5dc] sm:$0xff]
    %v353 = vld [vmem:[#allocation5 + $0x5e4] sm:$0xf]
    %v354 = vld [vmem:[#allocation5 + $0x5e8] sm:$0xff]
    %v355 = vld [vmem:[#allocation5 + $0x5f0] sm:$0xff]
    %v356 = vld [vmem:[#allocation5 + $0x5f8] sm:$0xff]
    %v357 = vld [vmem:[#allocation5 + $0x600] sm:$0xf]
    %v358 = vld [vmem:[#allocation5 + $0x604] sm:$0xff]
    %v359 = vld [vmem:[#allocation5 + $0x60c] sm:$0xff]
    %v360 = vld [vmem:[#allocation5 + $0x614] sm:$0xff]
    %v361 = vld [vmem:[#allocation5 + $0x61c] sm:$0xf]
    %v362 = vld [vmem:[#allocation5 + $0x620] sm:$0xff]
    %v363 = vld [vmem:[#allocation5 + $0x628] sm:$0xff]
    %v364 = vld [vmem:[#allocation5 + $0x630] sm:$0xff]
    %v365 = vld [vmem:[#allocation5 + $0x638] sm:$0xf]
    %v366 = vld [vmem:[#allocation5 + $0x63c] sm:$0xff]
    %v367 = vld [vmem:[#allocation5 + $0x644] sm:$0xff]
    %v368 = vld [vmem:[#allocation5 + $0x64c] sm:$0xff]
    %v369 = vld [vmem:[#allocation5 + $0x654] sm:$0xf]
    %v370 = vld [vmem:[#allocation5 + $0x658] sm:$0xff]
    %v371 = vld [vmem:[#allocation5 + $0x660] sm:$0xff]
    %v372 = vld [vmem:[#allocation5 + $0x668] sm:$0xff]
    %v373 = vld [vmem:[#allocation5 + $0x670] sm:$0xf]
    %v374 = vld [vmem:[#allocation5 + $0x674] sm:$0xff]
    %v375 = vld [vmem:[#allocation5 + $0x67c] sm:$0xff]
    %v376 = vld [vmem:[#allocation5 + $0x684] sm:$0xff]
    %v377 = vld [vmem:[#allocation5 + $0x68c] sm:$0xf]
    %v378 = vld [vmem:[#allocation5 + $0x690] sm:$0xff]
    %v379 = vld [vmem:[#allocation5 + $0x698] sm:$0xff]
    %v380 = vld [vmem:[#allocation5 + $0x6a0] sm:$0xff]
    %v381 = vld [vmem:[#allocation5 + $0x6a8] sm:$0xf]
    %v382 = vld [vmem:[#allocation5 + $0x6ac] sm:$0xff]
    %v383 = vld [vmem:[#allocation5 + $0x6b4] sm:$0xff]
    %v384 = vld [vmem:[#allocation5 + $0x6bc] sm:$0xff]
    %v385 = vld [vmem:[#allocation5 + $0x6c4] sm:$0xf]
    %v386 = vld [vmem:[#allocation5 + $0x6c8] sm:$0xff]
    %v387 = vld [vmem:[#allocation5 + $0x6d0] sm:$0xff]
    %v388 = vld [vmem:[#allocation5 + $0x6d8] sm:$0xff]
    %v389 = vld [vmem:[#allocation5 + $0x6e0] sm:$0xf]
    %v390 = vld [vmem:[#allocation5 + $0x6e4] sm:$0xff]
    %v391 = vld [vmem:[#allocation5 + $0x6ec] sm:$0xff]
    %v392 = vld [vmem:[#allocation5 + $0x6f4] sm:$0xff]
    %v393 = vld [vmem:[#allocation5 + $0x6fc] sm:$0xf]
    %v394 = vld [vmem:[#allocation5 + $0x700] sm:$0xff]
    %v395 = vld [vmem:[#allocation5 + $0x708] sm:$0xff]
    %v396 = vld [vmem:[#allocation5 + $0x710] sm:$0xff]
    %v397 = vld [vmem:[#allocation5 + $0x718] sm:$0xf]
    %v398 = vld [vmem:[#allocation5 + $0x71c] sm:$0xff]
    %v399 = vld [vmem:[#allocation5 + $0x724] sm:$0xff]
    %v400 = vld [vmem:[#allocation5 + $0x72c] sm:$0xff]
    %v401 = vld [vmem:[#allocation5 + $0x734] sm:$0xf]
    %v402 = vld [vmem:[#allocation5 + $0x738] sm:$0xff]
    %v403 = vld [vmem:[#allocation5 + $0x740] sm:$0xff]
    %v404 = vld [vmem:[#allocation5 + $0x748] sm:$0xff]
    %v405 = vld [vmem:[#allocation5 + $0x750] sm:$0xf]
    %v406 = vld [vmem:[#allocation5 + $0x754] sm:$0xff]
    %v407 = vld [vmem:[#allocation5 + $0x75c] sm:$0xff]
    %v408 = vld [vmem:[#allocation5 + $0x764] sm:$0xff]
    %v409 = vld [vmem:[#allocation5 + $0x76c] sm:$0xf]
    %v410 = vld [vmem:[#allocation5 + $0x770] sm:$0xff]
    %v411 = vld [vmem:[#allocation5 + $0x778] sm:$0xff]
    %v412 = vld [vmem:[#allocation5 + $0x780] sm:$0xff]
    %v413 = vld [vmem:[#allocation5 + $0x788] sm:$0xf]
    %v414 = vld [vmem:[#allocation5 + $0x78c] sm:$0xff]
    %v415 = vld [vmem:[#allocation5 + $0x794] sm:$0xff]
    %v416 = vld [vmem:[#allocation5 + $0x79c] sm:$0xff]
    %v417 = vld [vmem:[#allocation5 + $0x7a4] sm:$0xf]
    %v418 = vld [vmem:[#allocation5 + $0x7a8] sm:$0xff]
    %v419 = vld [vmem:[#allocation5 + $0x7b0] sm:$0xff]
    %v420 = vld [vmem:[#allocation5 + $0x7b8] sm:$0xff]
    %v421 = vld [vmem:[#allocation5 + $0x7c0] sm:$0xf]
    %v422 = vld [vmem:[#allocation5 + $0x7c4] sm:$0xff]
    %v423 = vld [vmem:[#allocation5 + $0x7cc] sm:$0xff]
    %v424 = vld [vmem:[#allocation5 + $0x7d4] sm:$0xff]
    %v425 = vld [vmem:[#allocation5 + $0x7dc] sm:$0xf]
    %v426 = vld [vmem:[#allocation5 + $0x7e0] sm:$0xff]
    %v427 = vld [vmem:[#allocation5 + $0x7e8] sm:$0xff]
    %v428 = vld [vmem:[#allocation5 + $0x7f0] sm:$0xff]
    %v429 = vld [vmem:[#allocation5 + $0x7f8] sm:$0xf]
    %v430 = vld [vmem:[#allocation5 + $0x7fc] sm:$0xff]
    %v431 = vld [vmem:[#allocation5 + $0x804] sm:$0xff]
    %v432 = vld [vmem:[#allocation5 + $0x80c] sm:$0xff]
    %v433 = vld [vmem:[#allocation5 + $0x814] sm:$0xf]
    %v434 = vld [vmem:[#allocation5 + $0x818] sm:$0xff]
    %v435 = vld [vmem:[#allocation5 + $0x820] sm:$0xff]
    %v436 = vld [vmem:[#allocation5 + $0x828] sm:$0xff]
    %v437 = vld [vmem:[#allocation5 + $0x830] sm:$0xf]
    %v438 = vld [vmem:[#allocation5 + $0x834] sm:$0xff]
    %v439 = vld [vmem:[#allocation5 + $0x83c] sm:$0xff]
    %v440 = vld [vmem:[#allocation5 + $0x844] sm:$0xff]
    %v441 = vld [vmem:[#allocation5 + $0x84c] sm:$0xf]
    %v442 = vld [vmem:[#allocation5 + $0x850] sm:$0xff]
    %v443 = vld [vmem:[#allocation5 + $0x858] sm:$0xff]
    %v444 = vld [vmem:[#allocation5 + $0x860] sm:$0xff]
    %v445 = vld [vmem:[#allocation5 + $0x868] sm:$0xf]
    %v446 = vld [vmem:[#allocation5 + $0x86c] sm:$0xff]
    %v447 = vld [vmem:[#allocation5 + $0x874] sm:$0xff]
    %v448 = vld [vmem:[#allocation5 + $0x87c] sm:$0xff]
    %v449 = vld [vmem:[#allocation5 + $0x884] sm:$0xf]
    %v450 = vld [vmem:[#allocation5 + $0x888] sm:$0xff]
    %v451 = vld [vmem:[#allocation5 + $0x890] sm:$0xff]
    %v452 = vld [vmem:[#allocation5 + $0x898] sm:$0xff]
    %v453 = vld [vmem:[#allocation5 + $0x8a0] sm:$0xf]
    %v454 = vld [vmem:[#allocation5 + $0x8a4] sm:$0xff]
    %v455 = vld [vmem:[#allocation5 + $0x8ac] sm:$0xff]
    %v456 = vld [vmem:[#allocation5 + $0x8b4] sm:$0xff]
    %v457 = vld [vmem:[#allocation5 + $0x8bc] sm:$0xf]
    %v458 = vld [vmem:[#allocation5 + $0x8c0] sm:$0xff]
    %v459 = vld [vmem:[#allocation5 + $0x8c8] sm:$0xff]
    %v460 = vld [vmem:[#allocation5 + $0x8d0] sm:$0xff]
    %v461 = vld [vmem:[#allocation5 + $0x8d8] sm:$0xf]
    %v462 = vld [vmem:[#allocation5 + $0x8dc] sm:$0xff]
    %v463 = vld [vmem:[#allocation5 + $0x8e4] sm:$0xff]
    %v464 = vld [vmem:[#allocation5 + $0x8ec] sm:$0xff]
    %v465 = vld [vmem:[#allocation5 + $0x8f4] sm:$0xf]
    %v466 = vld [vmem:[#allocation5 + $0x8f8] sm:$0xff]
    %v467 = vld [vmem:[#allocation5 + $0x900] sm:$0xff]
    %v468 = vld [vmem:[#allocation5 + $0x908] sm:$0xff]
    %v469 = vld [vmem:[#allocation5 + $0x910] sm:$0xf]
    %v470 = vld [vmem:[#allocation5 + $0x914] sm:$0xff]
    %v471 = vld [vmem:[#allocation5 + $0x91c] sm:$0xff]
    %v472 = vld [vmem:[#allocation5 + $0x924] sm:$0xff]
    %v473 = vld [vmem:[#allocation5 + $0x92c] sm:$0xf]
    %v474 = vld [vmem:[#allocation5 + $0x930] sm:$0xff]
    %v475 = vld [vmem:[#allocation5 + $0x938] sm:$0xff]
    %v476 = vld [vmem:[#allocation5 + $0x940] sm:$0xff]
    %v477 = vld [vmem:[#allocation5 + $0x948] sm:$0xf]
    %v478 = vld [vmem:[#allocation5 + $0x94c] sm:$0xff]
    %v479 = vld [vmem:[#allocation5 + $0x954] sm:$0xff]
    %v480 = vld [vmem:[#allocation5 + $0x95c] sm:$0xff]
    %v481 = vld [vmem:[#allocation5 + $0x964] sm:$0xf]
    %v482 = vld [vmem:[#allocation5 + $0x968] sm:$0xff]
    %v483 = vld [vmem:[#allocation5 + $0x970] sm:$0xff]
    %v484 = vld [vmem:[#allocation5 + $0x978] sm:$0xff]
    %v485 = vld [vmem:[#allocation5 + $0x980] sm:$0xf]
    %v486 = vld [vmem:[#allocation5 + $0x984] sm:$0xff]
    %v487 = vld [vmem:[#allocation5 + $0x98c] sm:$0xff]
    %v488 = vld [vmem:[#allocation5 + $0x994] sm:$0xff]
    %v489 = vld [vmem:[#allocation5 + $0x99c] sm:$0xf]
    %v490 = vld [vmem:[#allocation5 + $0x9a0] sm:$0xff]
    %v491 = vld [vmem:[#allocation5 + $0x9a8] sm:$0xff]
    %v492 = vld [vmem:[#allocation5 + $0x9b0] sm:$0xff]
    %v493 = vld [vmem:[#allocation5 + $0x9b8] sm:$0xf]
    %v494 = vld [vmem:[#allocation5 + $0x9bc] sm:$0xff]
    %v495 = vld [vmem:[#allocation5 + $0x9c4] sm:$0xff]
    %v496 = vld [vmem:[#allocation5 + $0x9cc] sm:$0xff]
    %v497 = vld [vmem:[#allocation5 + $0x9d4] sm:$0xf]
    %v498 = vld [vmem:[#allocation5 + $0x9d8] sm:$0xff]
    %v499 = vld [vmem:[#allocation5 + $0x9e0] sm:$0xff]
    %v500 = vld [vmem:[#allocation5 + $0x9e8] sm:$0xff]
    %v501 = vld [vmem:[#allocation5 + $0x9f0] sm:$0xf]
    %v502 = vld [vmem:[#allocation5 + $0x9f4] sm:$0xff]
    %v503 = vld [vmem:[#allocation5 + $0x9fc] sm:$0xff]
    %v504 = vld [vmem:[#allocation5 + $0xa04] sm:$0xff]
    %v505 = vld [vmem:[#allocation5 + $0xa0c] sm:$0xf]
    %v506 = vld [vmem:[#allocation5 + $0xa10] sm:$0xff]
    %v507 = vld [vmem:[#allocation5 + $0xa18] sm:$0xff]
    %v508 = vld [vmem:[#allocation5 + $0xa20] sm:$0xff]
    %v509 = vld [vmem:[#allocation5 + $0xa28] sm:$0xf]
    %v510 = vld [vmem:[#allocation5 + $0xa2c] sm:$0xff]
    %v511 = vld [vmem:[#allocation5 + $0xa34] sm:$0xff]
    %v512 = vld [vmem:[#allocation5 + $0xa3c] sm:$0xff]
    %v513 = vld [vmem:[#allocation5 + $0xa44] sm:$0xf]
    %v514 = vld [vmem:[#allocation5 + $0xa48] sm:$0xff]
    %v515 = vld [vmem:[#allocation5 + $0xa50] sm:$0xff]
    %v516 = vld [vmem:[#allocation5 + $0xa58] sm:$0xff]
    %v517 = vld [vmem:[#allocation5 + $0xa60] sm:$0xf]
    %v518 = vld [vmem:[#allocation5 + $0xa64] sm:$0xff]
    %v519 = vld [vmem:[#allocation5 + $0xa6c] sm:$0xff]
    %v520 = vld [vmem:[#allocation5 + $0xa74] sm:$0xff]
    %v521 = vld [vmem:[#allocation5 + $0xa7c] sm:$0xf]
    %v522 = vld [vmem:[#allocation5 + $0xa80] sm:$0xff]
    %v523 = vld [vmem:[#allocation5 + $0xa88] sm:$0xff]
    %v524 = vld [vmem:[#allocation5 + $0xa90] sm:$0xff]
    %v525 = vld [vmem:[#allocation5 + $0xa98] sm:$0xf]
    %v526 = vld [vmem:[#allocation5 + $0xa9c] sm:$0xff]
    %v527 = vld [vmem:[#allocation5 + $0xaa4] sm:$0xff]
    %v528 = vld [vmem:[#allocation5 + $0xaac] sm:$0xff]
    %v529 = vld [vmem:[#allocation5 + $0xab4] sm:$0xf]
    %v530 = vld [vmem:[#allocation5 + $0xab8] sm:$0xff]
    %v531 = vld [vmem:[#allocation5 + $0xac0] sm:$0xff]
    %v532 = vld [vmem:[#allocation5 + $0xac8] sm:$0xff]
    %v533 = vld [vmem:[#allocation5 + $0xad0] sm:$0xf]
    %v534 = vld [vmem:[#allocation5 + $0xad4] sm:$0xff]
    %v535 = vld [vmem:[#allocation5 + $0xadc] sm:$0xff]
    %v536 = vld [vmem:[#allocation5 + $0xae4] sm:$0xff]
    %v537 = vld [vmem:[#allocation5 + $0xaec] sm:$0xf]
    %v538 = vld [vmem:[#allocation5 + $0xaf0] sm:$0xff]
    %v539 = vld [vmem:[#allocation5 + $0xaf8] sm:$0xff]
    %v540 = vld [vmem:[#allocation5 + $0xb00] sm:$0xff]
    %v541 = vld [vmem:[#allocation5 + $0xb08] sm:$0xf]
    %v542 = vld [vmem:[#allocation5 + $0xb0c] sm:$0xff]
    %v543 = vld [vmem:[#allocation5 + $0xb14] sm:$0xff]
    %v544 = vld [vmem:[#allocation5 + $0xb1c] sm:$0xff]
    %v545 = vld [vmem:[#allocation5 + $0xb24] sm:$0xf]
    %v546 = vld [vmem:[#allocation5 + $0xb28] sm:$0xff]
    %v547 = vld [vmem:[#allocation5 + $0xb30] sm:$0xff]
    %v548 = vld [vmem:[#allocation5 + $0xb38] sm:$0xff]
    %v549 = vld [vmem:[#allocation5 + $0xb40] sm:$0xf]
    %v550 = vld [vmem:[#allocation5 + $0xb44] sm:$0xff]
    %v551 = vld [vmem:[#allocation5 + $0xb4c] sm:$0xff]
    %v552 = vld [vmem:[#allocation5 + $0xb54] sm:$0xff]
    %v553 = vld [vmem:[#allocation5 + $0xb5c] sm:$0xf]
    %v554 = vld [vmem:[#allocation5 + $0xb60] sm:$0xff]
    %v555 = vld [vmem:[#allocation5 + $0xb68] sm:$0xff]
    %v556 = vld [vmem:[#allocation5 + $0xb70] sm:$0xff]
    %v557 = vld [vmem:[#allocation5 + $0xb78] sm:$0xf]
    %v558 = vld [vmem:[#allocation5 + $0xb7c] sm:$0xff]
    %v559 = vld [vmem:[#allocation5 + $0xb84] sm:$0xff]
    %v560 = vld [vmem:[#allocation5 + $0xb8c] sm:$0xff]
    %v561 = vld [vmem:[#allocation5 + $0xb94] sm:$0xf]
    %v562 = vld [vmem:[#allocation5 + $0xb98] sm:$0xff]
    %v563 = vld [vmem:[#allocation5 + $0xba0] sm:$0xff]
    %v564 = vld [vmem:[#allocation5 + $0xba8] sm:$0xff]
    %v565 = vld [vmem:[#allocation5 + $0xbb0] sm:$0xf]
    %v566 = vld [vmem:[#allocation5 + $0xbb4] sm:$0xff]
    %v567 = vld [vmem:[#allocation5 + $0xbbc] sm:$0xff]
    %v568 = vld [vmem:[#allocation5 + $0xbc4] sm:$0xff]
    %v569 = vld [vmem:[#allocation5 + $0xbcc] sm:$0xf]
    %v570 = vld [vmem:[#allocation5 + $0xbd0] sm:$0xff]
    %v571 = vld [vmem:[#allocation5 + $0xbd8] sm:$0xff]
    %v572 = vld [vmem:[#allocation5 + $0xbe0] sm:$0xff]
    %v573 = vld [vmem:[#allocation5 + $0xbe8] sm:$0xf]
    %v574 = vld [vmem:[#allocation5 + $0xbec] sm:$0xff]
    %v575 = vld [vmem:[#allocation5 + $0xbf4] sm:$0xff]
    %v576 = vld [vmem:[#allocation5 + $0xbfc] sm:$0xff]
    %v577 = vld [vmem:[#allocation5 + $0xc04] sm:$0xf]
    %v578 = vld [vmem:[#allocation5 + $0xc08] sm:$0xff]
    %v579 = vld [vmem:[#allocation5 + $0xc10] sm:$0xff]
    %v580 = vld [vmem:[#allocation5 + $0xc18] sm:$0xff]
    %v581 = vld [vmem:[#allocation5 + $0xc20] sm:$0xf]
    %v582 = vld [vmem:[#allocation5 + $0xc24] sm:$0xff]
    %v583 = vld [vmem:[#allocation5 + $0xc2c] sm:$0xff]
    %v584 = vld [vmem:[#allocation5 + $0xc34] sm:$0xff]
    %v585 = vld [vmem:[#allocation5 + $0xc3c] sm:$0xf]
    %v586 = vld [vmem:[#allocation7] sm:$0xff]
    %v588 = vperm.slane %v586, 0
    %v589 = vperm.slane %v586, 1
    %v590 = vperm.slane %v586, 2
    %v591 = vperm.slane %v586, 3
    %v592 = vperm.slane %v586, 4
    %v593 = vperm.slane %v586, 5
    %v594 = vperm.slane %v586, 6
    %v610 = vunpack.c.l.b16 %v130
    %v611 = vunpack.c.h.b16 %v130
    %v612 = vunpack.c.l.b16 %v131
    %v613 = vunpack.c.h.b16 %v131
    %v614 = vunpack.c.l.b16 %v132
    %v615 = vunpack.c.h.b16 %v132
    %v616 = vunpack.c.l.b16 %v133
    %v617 = vunpack.c.l.b16 %v134
    %v618 = vunpack.c.h.b16 %v134
    %v619 = vunpack.c.l.b16 %v135
    %v620 = vunpack.c.h.b16 %v135
    %v621 = vunpack.c.l.b16 %v136
    %v622 = vunpack.c.h.b16 %v136
    %v623 = vunpack.c.l.b16 %v137
    %v624 = vpack.c.b16 %v617, %v610
    %v625 = vpack.c.b16 %v618, %v611
    %v626 = vpack.c.b16 %v619, %v612
    %v627 = vpack.c.b16 %v620, %v613
    %v628 = vpack.c.b16 %v621, %v614
    %v629 = vpack.c.b16 %v622, %v615
    %v630 = vpack.c.b16 %v623, %v616
    %v1086 = vunpack.c.l.b16 %v138
    %v1087 = vunpack.c.h.b16 %v138
    %v1088 = vunpack.c.l.b16 %v139
    %v1089 = vunpack.c.h.b16 %v139
    %v1090 = vunpack.c.l.b16 %v140
    %v1091 = vunpack.c.h.b16 %v140
    %v1092 = vunpack.c.l.b16 %v141
    %v1093 = vunpack.c.l.b16 %v142
    %v1094 = vunpack.c.h.b16 %v142
    %v1095 = vunpack.c.l.b16 %v143
    %v1096 = vunpack.c.h.b16 %v143
    %v1097 = vunpack.c.l.b16 %v144
    %v1098 = vunpack.c.h.b16 %v144
    %v1099 = vunpack.c.l.b16 %v145
    %v1100 = vunpack.c.l.b16 %v146
    %v1101 = vunpack.c.h.b16 %v146
    %v1102 = vunpack.c.l.b16 %v147
    %v1103 = vunpack.c.h.b16 %v147
    %v1104 = vunpack.c.l.b16 %v148
    %v1105 = vunpack.c.h.b16 %v148
    %v1106 = vunpack.c.l.b16 %v149
    %v1107 = vunpack.c.l.b16 %v150
    %v1108 = vunpack.c.h.b16 %v150
    %v1109 = vunpack.c.l.b16 %v151
    %v1110 = vunpack.c.h.b16 %v151
    %v1111 = vunpack.c.l.b16 %v152
    %v1112 = vunpack.c.h.b16 %v152
    %v1113 = vunpack.c.l.b16 %v153
    %v1114 = vunpack.c.l.b16 %v154
    %v1115 = vunpack.c.h.b16 %v154
    %v1116 = vunpack.c.l.b16 %v155
    %v1117 = vunpack.c.h.b16 %v155
    %v1118 = vunpack.c.l.b16 %v156
    %v1119 = vunpack.c.h.b16 %v156
    %v1120 = vunpack.c.l.b16 %v157
    %v1121 = vunpack.c.l.b16 %v158
    %v1122 = vunpack.c.h.b16 %v158
    %v1123 = vunpack.c.l.b16 %v159
    %v1124 = vunpack.c.h.b16 %v159
    %v1125 = vunpack.c.l.b16 %v160
    %v1126 = vunpack.c.h.b16 %v160
    %v1127 = vunpack.c.l.b16 %v161
    %v1128 = vunpack.c.l.b16 %v162
    %v1129 = vunpack.c.h.b16 %v162
    %v1130 = vunpack.c.l.b16 %v163
    %v1131 = vunpack.c.h.b16 %v163
    %v1132 = vunpack.c.l.b16 %v164
    %v1133 = vunpack.c.h.b16 %v164
    %v1134 = vunpack.c.l.b16 %v165
    %v1135 = vunpack.c.l.b16 %v166
    %v1136 = vunpack.c.h.b16 %v166
    %v1137 = vunpack.c.l.b16 %v167
    %v1138 = vunpack.c.h.b16 %v167
    %v1139 = vunpack.c.l.b16 %v168
    %v1140 = vunpack.c.h.b16 %v168
    %v1141 = vunpack.c.l.b16 %v169
    %v1142 = vunpack.c.l.b16 %v170
    %v1143 = vunpack.c.h.b16 %v170
    %v1144 = vunpack.c.l.b16 %v171
    %v1145 = vunpack.c.h.b16 %v171
    %v1146 = vunpack.c.l.b16 %v172
    %v1147 = vunpack.c.h.b16 %v172
    %v1148 = vunpack.c.l.b16 %v173
    %v1149 = vunpack.c.l.b16 %v174
    %v1150 = vunpack.c.h.b16 %v174
    %v1151 = vunpack.c.l.b16 %v175
    %v1152 = vunpack.c.h.b16 %v175
    %v1153 = vunpack.c.l.b16 %v176
    %v1154 = vunpack.c.h.b16 %v176
    %v1155 = vunpack.c.l.b16 %v177
    %v1156 = vunpack.c.l.b16 %v178
    %v1157 = vunpack.c.h.b16 %v178
    %v1158 = vunpack.c.l.b16 %v179
    %v1159 = vunpack.c.h.b16 %v179
    %v1160 = vunpack.c.l.b16 %v180
    %v1161 = vunpack.c.h.b16 %v180
    %v1162 = vunpack.c.l.b16 %v181
    %v1163 = vunpack.c.l.b16 %v182
    %v1164 = vunpack.c.h.b16 %v182
    %v1165 = vunpack.c.l.b16 %v183
    %v1166 = vunpack.c.h.b16 %v183
    %v1167 = vunpack.c.l.b16 %v184
    %v1168 = vunpack.c.h.b16 %v184
    %v1169 = vunpack.c.l.b16 %v185
    %v1170 = vunpack.c.l.b16 %v186
    %v1171 = vunpack.c.h.b16 %v186
    %v1172 = vunpack.c.l.b16 %v187
    %v1173 = vunpack.c.h.b16 %v187
    %v1174 = vunpack.c.l.b16 %v188
    %v1175 = vunpack.c.h.b16 %v188
    %v1176 = vunpack.c.l.b16 %v189
    %v1177 = vunpack.c.l.b16 %v190
    %v1178 = vunpack.c.h.b16 %v190
    %v1179 = vunpack.c.l.b16 %v191
    %v1180 = vunpack.c.h.b16 %v191
    %v1181 = vunpack.c.l.b16 %v192
    %v1182 = vunpack.c.h.b16 %v192
    %v1183 = vunpack.c.l.b16 %v193
    %v1184 = vunpack.c.l.b16 %v194
    %v1185 = vunpack.c.h.b16 %v194
    %v1186 = vunpack.c.l.b16 %v195
    %v1187 = vunpack.c.h.b16 %v195
    %v1188 = vunpack.c.l.b16 %v196
    %v1189 = vunpack.c.h.b16 %v196
    %v1190 = vunpack.c.l.b16 %v197
    %v1191 = vunpack.c.l.b16 %v198
    %v1192 = vunpack.c.h.b16 %v198
    %v1193 = vunpack.c.l.b16 %v199
    %v1194 = vunpack.c.h.b16 %v199
    %v1195 = vunpack.c.l.b16 %v200
    %v1196 = vunpack.c.h.b16 %v200
    %v1197 = vunpack.c.l.b16 %v201
    %v1198 = vunpack.c.l.b16 %v202
    %v1199 = vunpack.c.h.b16 %v202
    %v1200 = vunpack.c.l.b16 %v203
    %v1201 = vunpack.c.h.b16 %v203
    %v1202 = vunpack.c.l.b16 %v204
    %v1203 = vunpack.c.h.b16 %v204
    %v1204 = vunpack.c.l.b16 %v205
    %v1205 = vunpack.c.l.b16 %v206
    %v1206 = vunpack.c.h.b16 %v206
    %v1207 = vunpack.c.l.b16 %v207
    %v1208 = vunpack.c.h.b16 %v207
    %v1209 = vunpack.c.l.b16 %v208
    %v1210 = vunpack.c.h.b16 %v208
    %v1211 = vunpack.c.l.b16 %v209
    %v1212 = vunpack.c.l.b16 %v210
    %v1213 = vunpack.c.h.b16 %v210
    %v1214 = vunpack.c.l.b16 %v211
    %v1215 = vunpack.c.h.b16 %v211
    %v1216 = vunpack.c.l.b16 %v212
    %v1217 = vunpack.c.h.b16 %v212
    %v1218 = vunpack.c.l.b16 %v213
    %v1219 = vunpack.c.l.b16 %v214
    %v1220 = vunpack.c.h.b16 %v214
    %v1221 = vunpack.c.l.b16 %v215
    %v1222 = vunpack.c.h.b16 %v215
    %v1223 = vunpack.c.l.b16 %v216
    %v1224 = vunpack.c.h.b16 %v216
    %v1225 = vunpack.c.l.b16 %v217
    %v1226 = vunpack.c.l.b16 %v218
    %v1227 = vunpack.c.h.b16 %v218
    %v1228 = vunpack.c.l.b16 %v219
    %v1229 = vunpack.c.h.b16 %v219
    %v1230 = vunpack.c.l.b16 %v220
    %v1231 = vunpack.c.h.b16 %v220
    %v1232 = vunpack.c.l.b16 %v221
    %v1233 = vunpack.c.l.b16 %v222
    %v1234 = vunpack.c.h.b16 %v222
    %v1235 = vunpack.c.l.b16 %v223
    %v1236 = vunpack.c.h.b16 %v223
    %v1237 = vunpack.c.l.b16 %v224
    %v1238 = vunpack.c.h.b16 %v224
    %v1239 = vunpack.c.l.b16 %v225
    %v1240 = vunpack.c.l.b16 %v226
    %v1241 = vunpack.c.h.b16 %v226
    %v1242 = vunpack.c.l.b16 %v227
    %v1243 = vunpack.c.h.b16 %v227
    %v1244 = vunpack.c.l.b16 %v228
    %v1245 = vunpack.c.h.b16 %v228
    %v1246 = vunpack.c.l.b16 %v229
    %v1247 = vunpack.c.l.b16 %v230
    %v1248 = vunpack.c.h.b16 %v230
    %v1249 = vunpack.c.l.b16 %v231
    %v1250 = vunpack.c.h.b16 %v231
    %v1251 = vunpack.c.l.b16 %v232
    %v1252 = vunpack.c.h.b16 %v232
    %v1253 = vunpack.c.l.b16 %v233
    %v1254 = vunpack.c.l.b16 %v234
    %v1255 = vunpack.c.h.b16 %v234
    %v1256 = vunpack.c.l.b16 %v235
    %v1257 = vunpack.c.h.b16 %v235
    %v1258 = vunpack.c.l.b16 %v236
    %v1259 = vunpack.c.h.b16 %v236
    %v1260 = vunpack.c.l.b16 %v237
    %v1261 = vunpack.c.l.b16 %v238
    %v1262 = vunpack.c.h.b16 %v238
    %v1263 = vunpack.c.l.b16 %v239
    %v1264 = vunpack.c.h.b16 %v239
    %v1265 = vunpack.c.l.b16 %v240
    %v1266 = vunpack.c.h.b16 %v240
    %v1267 = vunpack.c.l.b16 %v241
    %v1268 = vunpack.c.l.b16 %v242
    %v1269 = vunpack.c.h.b16 %v242
    %v1270 = vunpack.c.l.b16 %v243
    %v1271 = vunpack.c.h.b16 %v243
    %v1272 = vunpack.c.l.b16 %v244
    %v1273 = vunpack.c.h.b16 %v244
    %v1274 = vunpack.c.l.b16 %v245
    %v1275 = vunpack.c.l.b16 %v246
    %v1276 = vunpack.c.h.b16 %v246
    %v1277 = vunpack.c.l.b16 %v247
    %v1278 = vunpack.c.h.b16 %v247
    %v1279 = vunpack.c.l.b16 %v248
    %v1280 = vunpack.c.h.b16 %v248
    %v1281 = vunpack.c.l.b16 %v249
    %v1282 = vunpack.c.l.b16 %v250
    %v1283 = vunpack.c.h.b16 %v250
    %v1284 = vunpack.c.l.b16 %v251
    %v1285 = vunpack.c.h.b16 %v251
    %v1286 = vunpack.c.l.b16 %v252
    %v1287 = vunpack.c.h.b16 %v252
    %v1288 = vunpack.c.l.b16 %v253
    %v1289 = vunpack.c.l.b16 %v254
    %v1290 = vunpack.c.h.b16 %v254
    %v1291 = vunpack.c.l.b16 %v255
    %v1292 = vunpack.c.h.b16 %v255
    %v1293 = vunpack.c.l.b16 %v256
    %v1294 = vunpack.c.h.b16 %v256
    %v1295 = vunpack.c.l.b16 %v257
    %v1296 = vunpack.c.l.b16 %v258
    %v1297 = vunpack.c.h.b16 %v258
    %v1298 = vunpack.c.l.b16 %v259
    %v1299 = vunpack.c.h.b16 %v259
    %v1300 = vunpack.c.l.b16 %v260
    %v1301 = vunpack.c.h.b16 %v260
    %v1302 = vunpack.c.l.b16 %v261
    %v1303 = vunpack.c.l.b16 %v262
    %v1304 = vunpack.c.h.b16 %v262
    %v1305 = vunpack.c.l.b16 %v263
    %v1306 = vunpack.c.h.b16 %v263
    %v1307 = vunpack.c.l.b16 %v264
    %v1308 = vunpack.c.h.b16 %v264
    %v1309 = vunpack.c.l.b16 %v265
    %v1310 = vunpack.c.l.b16 %v266
    %v1311 = vunpack.c.h.b16 %v266
    %v1312 = vunpack.c.l.b16 %v267
    %v1313 = vunpack.c.h.b16 %v267
    %v1314 = vunpack.c.l.b16 %v268
    %v1315 = vunpack.c.h.b16 %v268
    %v1316 = vunpack.c.l.b16 %v269
    %v1317 = vunpack.c.l.b16 %v270
    %v1318 = vunpack.c.h.b16 %v270
    %v1319 = vunpack.c.l.b16 %v271
    %v1320 = vunpack.c.h.b16 %v271
    %v1321 = vunpack.c.l.b16 %v272
    %v1322 = vunpack.c.h.b16 %v272
    %v1323 = vunpack.c.l.b16 %v273
    %v1324 = vunpack.c.l.b16 %v274
    %v1325 = vunpack.c.h.b16 %v274
    %v1326 = vunpack.c.l.b16 %v275
    %v1327 = vunpack.c.h.b16 %v275
    %v1328 = vunpack.c.l.b16 %v276
    %v1329 = vunpack.c.h.b16 %v276
    %v1330 = vunpack.c.l.b16 %v277
    %v1331 = vunpack.c.l.b16 %v278
    %v1332 = vunpack.c.h.b16 %v278
    %v1333 = vunpack.c.l.b16 %v279
    %v1334 = vunpack.c.h.b16 %v279
    %v1335 = vunpack.c.l.b16 %v280
    %v1336 = vunpack.c.h.b16 %v280
    %v1337 = vunpack.c.l.b16 %v281
    %v1338 = vunpack.c.l.b16 %v282
    %v1339 = vunpack.c.h.b16 %v282
    %v1340 = vunpack.c.l.b16 %v283
    %v1341 = vunpack.c.h.b16 %v283
    %v1342 = vunpack.c.l.b16 %v284
    %v1343 = vunpack.c.h.b16 %v284
    %v1344 = vunpack.c.l.b16 %v285
    %v1345 = vunpack.c.l.b16 %v286
    %v1346 = vunpack.c.h.b16 %v286
    %v1347 = vunpack.c.l.b16 %v287
    %v1348 = vunpack.c.h.b16 %v287
    %v1349 = vunpack.c.l.b16 %v288
    %v1350 = vunpack.c.h.b16 %v288
    %v1351 = vunpack.c.l.b16 %v289
    %v1352 = vunpack.c.l.b16 %v290
    %v1353 = vunpack.c.h.b16 %v290
    %v1354 = vunpack.c.l.b16 %v291
    %v1355 = vunpack.c.h.b16 %v291
    %v1356 = vunpack.c.l.b16 %v292
    %v1357 = vunpack.c.h.b16 %v292
    %v1358 = vunpack.c.l.b16 %v293
    %v1359 = vunpack.c.l.b16 %v294
    %v1360 = vunpack.c.h.b16 %v294
    %v1361 = vunpack.c.l.b16 %v295
    %v1362 = vunpack.c.h.b16 %v295
    %v1363 = vunpack.c.l.b16 %v296
    %v1364 = vunpack.c.h.b16 %v296
    %v1365 = vunpack.c.l.b16 %v297
    %v1366 = vunpack.c.l.b16 %v298
    %v1367 = vunpack.c.h.b16 %v298
    %v1368 = vunpack.c.l.b16 %v299
    %v1369 = vunpack.c.h.b16 %v299
    %v1370 = vunpack.c.l.b16 %v300
    %v1371 = vunpack.c.h.b16 %v300
    %v1372 = vunpack.c.l.b16 %v301
    %v1373 = vunpack.c.l.b16 %v302
    %v1374 = vunpack.c.h.b16 %v302
    %v1375 = vunpack.c.l.b16 %v303
    %v1376 = vunpack.c.h.b16 %v303
    %v1377 = vunpack.c.l.b16 %v304
    %v1378 = vunpack.c.h.b16 %v304
    %v1379 = vunpack.c.l.b16 %v305
    %v1380 = vunpack.c.l.b16 %v306
    %v1381 = vunpack.c.h.b16 %v306
    %v1382 = vunpack.c.l.b16 %v307
    %v1383 = vunpack.c.h.b16 %v307
    %v1384 = vunpack.c.l.b16 %v308
    %v1385 = vunpack.c.h.b16 %v308
    %v1386 = vunpack.c.l.b16 %v309
    %v1387 = vunpack.c.l.b16 %v310
    %v1388 = vunpack.c.h.b16 %v310
    %v1389 = vunpack.c.l.b16 %v311
    %v1390 = vunpack.c.h.b16 %v311
    %v1391 = vunpack.c.l.b16 %v312
    %v1392 = vunpack.c.h.b16 %v312
    %v1393 = vunpack.c.l.b16 %v313
    %v1394 = vunpack.c.l.b16 %v314
    %v1395 = vunpack.c.h.b16 %v314
    %v1396 = vunpack.c.l.b16 %v315
    %v1397 = vunpack.c.h.b16 %v315
    %v1398 = vunpack.c.l.b16 %v316
    %v1399 = vunpack.c.h.b16 %v316
    %v1400 = vunpack.c.l.b16 %v317
    %v1401 = vunpack.c.l.b16 %v318
    %v1402 = vunpack.c.h.b16 %v318
    %v1403 = vunpack.c.l.b16 %v319
    %v1404 = vunpack.c.h.b16 %v319
    %v1405 = vunpack.c.l.b16 %v320
    %v1406 = vunpack.c.h.b16 %v320
    %v1407 = vunpack.c.l.b16 %v321
    %v1408 = vunpack.c.l.b16 %v322
    %v1409 = vunpack.c.h.b16 %v322
    %v1410 = vunpack.c.l.b16 %v323
    %v1411 = vunpack.c.h.b16 %v323
    %v1412 = vunpack.c.l.b16 %v324
    %v1413 = vunpack.c.h.b16 %v324
    %v1414 = vunpack.c.l.b16 %v325
    %v1415 = vunpack.c.l.b16 %v326
    %v1416 = vunpack.c.h.b16 %v326
    %v1417 = vunpack.c.l.b16 %v327
    %v1418 = vunpack.c.h.b16 %v327
    %v1419 = vunpack.c.l.b16 %v328
    %v1420 = vunpack.c.h.b16 %v328
    %v1421 = vunpack.c.l.b16 %v329
    %v1422 = vunpack.c.l.b16 %v330
    %v1423 = vunpack.c.h.b16 %v330
    %v1424 = vunpack.c.l.b16 %v331
    %v1425 = vunpack.c.h.b16 %v331
    %v1426 = vunpack.c.l.b16 %v332
    %v1427 = vunpack.c.h.b16 %v332
    %v1428 = vunpack.c.l.b16 %v333
    %v1429 = vunpack.c.l.b16 %v334
    %v1430 = vunpack.c.h.b16 %v334
    %v1431 = vunpack.c.l.b16 %v335
    %v1432 = vunpack.c.h.b16 %v335
    %v1433 = vunpack.c.l.b16 %v336
    %v1434 = vunpack.c.h.b16 %v336
    %v1435 = vunpack.c.l.b16 %v337
    %v1436 = vunpack.c.l.b16 %v338
    %v1437 = vunpack.c.h.b16 %v338
    %v1438 = vunpack.c.l.b16 %v339
    %v1439 = vunpack.c.h.b16 %v339
    %v1440 = vunpack.c.l.b16 %v340
    %v1441 = vunpack.c.h.b16 %v340
    %v1442 = vunpack.c.l.b16 %v341
    %v1443 = vunpack.c.l.b16 %v342
    %v1444 = vunpack.c.h.b16 %v342
    %v1445 = vunpack.c.l.b16 %v343
    %v1446 = vunpack.c.h.b16 %v343
    %v1447 = vunpack.c.l.b16 %v344
    %v1448 = vunpack.c.h.b16 %v344
    %v1449 = vunpack.c.l.b16 %v345
    %v1450 = vunpack.c.l.b16 %v346
    %v1451 = vunpack.c.h.b16 %v346
    %v1452 = vunpack.c.l.b16 %v347
    %v1453 = vunpack.c.h.b16 %v347
    %v1454 = vunpack.c.l.b16 %v348
    %v1455 = vunpack.c.h.b16 %v348
    %v1456 = vunpack.c.l.b16 %v349
    %v1457 = vunpack.c.l.b16 %v350
    %v1458 = vunpack.c.h.b16 %v350
    %v1459 = vunpack.c.l.b16 %v351
    %v1460 = vunpack.c.h.b16 %v351
    %v1461 = vunpack.c.l.b16 %v352
    %v1462 = vunpack.c.h.b16 %v352
    %v1463 = vunpack.c.l.b16 %v353
    %v1464 = vunpack.c.l.b16 %v354
    %v1465 = vunpack.c.h.b16 %v354
    %v1466 = vunpack.c.l.b16 %v355
    %v1467 = vunpack.c.h.b16 %v355
    %v1468 = vunpack.c.l.b16 %v356
    %v1469 = vunpack.c.h.b16 %v356
    %v1470 = vunpack.c.l.b16 %v357
    %v1471 = vunpack.c.l.b16 %v358
    %v1472 = vunpack.c.h.b16 %v358
    %v1473 = vunpack.c.l.b16 %v359
    %v1474 = vunpack.c.h.b16 %v359
    %v1475 = vunpack.c.l.b16 %v360
    %v1476 = vunpack.c.h.b16 %v360
    %v1477 = vunpack.c.l.b16 %v361
    %v1478 = vunpack.c.l.b16 %v362
    %v1479 = vunpack.c.h.b16 %v362
    %v1480 = vunpack.c.l.b16 %v363
    %v1481 = vunpack.c.h.b16 %v363
    %v1482 = vunpack.c.l.b16 %v364
    %v1483 = vunpack.c.h.b16 %v364
    %v1484 = vunpack.c.l.b16 %v365
    %v1485 = vunpack.c.l.b16 %v366
    %v1486 = vunpack.c.h.b16 %v366
    %v1487 = vunpack.c.l.b16 %v367
    %v1488 = vunpack.c.h.b16 %v367
    %v1489 = vunpack.c.l.b16 %v368
    %v1490 = vunpack.c.h.b16 %v368
    %v1491 = vunpack.c.l.b16 %v369
    %v1492 = vunpack.c.l.b16 %v370
    %v1493 = vunpack.c.h.b16 %v370
    %v1494 = vunpack.c.l.b16 %v371
    %v1495 = vunpack.c.h.b16 %v371
    %v1496 = vunpack.c.l.b16 %v372
    %v1497 = vunpack.c.h.b16 %v372
    %v1498 = vunpack.c.l.b16 %v373
    %v1499 = vunpack.c.l.b16 %v374
    %v1500 = vunpack.c.h.b16 %v374
    %v1501 = vunpack.c.l.b16 %v375
    %v1502 = vunpack.c.h.b16 %v375
    %v1503 = vunpack.c.l.b16 %v376
    %v1504 = vunpack.c.h.b16 %v376
    %v1505 = vunpack.c.l.b16 %v377
    %v1506 = vunpack.c.l.b16 %v378
    %v1507 = vunpack.c.h.b16 %v378
    %v1508 = vunpack.c.l.b16 %v379
    %v1509 = vunpack.c.h.b16 %v379
    %v1510 = vunpack.c.l.b16 %v380
    %v1511 = vunpack.c.h.b16 %v380
    %v1512 = vunpack.c.l.b16 %v381
    %v1513 = vunpack.c.l.b16 %v382
    %v1514 = vunpack.c.h.b16 %v382
    %v1515 = vunpack.c.l.b16 %v383
    %v1516 = vunpack.c.h.b16 %v383
    %v1517 = vunpack.c.l.b16 %v384
    %v1518 = vunpack.c.h.b16 %v384
    %v1519 = vunpack.c.l.b16 %v385
    %v1520 = vunpack.c.l.b16 %v386
    %v1521 = vunpack.c.h.b16 %v386
    %v1522 = vunpack.c.l.b16 %v387
    %v1523 = vunpack.c.h.b16 %v387
    %v1524 = vunpack.c.l.b16 %v388
    %v1525 = vunpack.c.h.b16 %v388
    %v1526 = vunpack.c.l.b16 %v389
    %v1527 = vunpack.c.l.b16 %v390
    %v1528 = vunpack.c.h.b16 %v390
    %v1529 = vunpack.c.l.b16 %v391
    %v1530 = vunpack.c.h.b16 %v391
    %v1531 = vunpack.c.l.b16 %v392
    %v1532 = vunpack.c.h.b16 %v392
    %v1533 = vunpack.c.l.b16 %v393
    %v1534 = vunpack.c.l.b16 %v394
    %v1535 = vunpack.c.h.b16 %v394
    %v1536 = vunpack.c.l.b16 %v395
    %v1537 = vunpack.c.h.b16 %v395
    %v1538 = vunpack.c.l.b16 %v396
    %v1539 = vunpack.c.h.b16 %v396
    %v1540 = vunpack.c.l.b16 %v397
    %v1541 = vunpack.c.l.b16 %v398
    %v1542 = vunpack.c.h.b16 %v398
    %v1543 = vunpack.c.l.b16 %v399
    %v1544 = vunpack.c.h.b16 %v399
    %v1545 = vunpack.c.l.b16 %v400
    %v1546 = vunpack.c.h.b16 %v400
    %v1547 = vunpack.c.l.b16 %v401
    %v1548 = vunpack.c.l.b16 %v402
    %v1549 = vunpack.c.h.b16 %v402
    %v1550 = vunpack.c.l.b16 %v403
    %v1551 = vunpack.c.h.b16 %v403
    %v1552 = vunpack.c.l.b16 %v404
    %v1553 = vunpack.c.h.b16 %v404
    %v1554 = vunpack.c.l.b16 %v405
    %v1555 = vunpack.c.l.b16 %v406
    %v1556 = vunpack.c.h.b16 %v406
    %v1557 = vunpack.c.l.b16 %v407
    %v1558 = vunpack.c.h.b16 %v407
    %v1559 = vunpack.c.l.b16 %v408
    %v1560 = vunpack.c.h.b16 %v408
    %v1561 = vunpack.c.l.b16 %v409
    %v1562 = vunpack.c.l.b16 %v410
    %v1563 = vunpack.c.h.b16 %v410
    %v1564 = vunpack.c.l.b16 %v411
    %v1565 = vunpack.c.h.b16 %v411
    %v1566 = vunpack.c.l.b16 %v412
    %v1567 = vunpack.c.h.b16 %v412
    %v1568 = vunpack.c.l.b16 %v413
    %v1569 = vunpack.c.l.b16 %v414
    %v1570 = vunpack.c.h.b16 %v414
    %v1571 = vunpack.c.l.b16 %v415
    %v1572 = vunpack.c.h.b16 %v415
    %v1573 = vunpack.c.l.b16 %v416
    %v1574 = vunpack.c.h.b16 %v416
    %v1575 = vunpack.c.l.b16 %v417
    %v1576 = vunpack.c.l.b16 %v418
    %v1577 = vunpack.c.h.b16 %v418
    %v1578 = vunpack.c.l.b16 %v419
    %v1579 = vunpack.c.h.b16 %v419
    %v1580 = vunpack.c.l.b16 %v420
    %v1581 = vunpack.c.h.b16 %v420
    %v1582 = vunpack.c.l.b16 %v421
    %v1583 = vunpack.c.l.b16 %v422
    %v1584 = vunpack.c.h.b16 %v422
    %v1585 = vunpack.c.l.b16 %v423
    %v1586 = vunpack.c.h.b16 %v423
    %v1587 = vunpack.c.l.b16 %v424
    %v1588 = vunpack.c.h.b16 %v424
    %v1589 = vunpack.c.l.b16 %v425
    %v1590 = vunpack.c.l.b16 %v426
    %v1591 = vunpack.c.h.b16 %v426
    %v1592 = vunpack.c.l.b16 %v427
    %v1593 = vunpack.c.h.b16 %v427
    %v1594 = vunpack.c.l.b16 %v428
    %v1595 = vunpack.c.h.b16 %v428
    %v1596 = vunpack.c.l.b16 %v429
    %v1597 = vunpack.c.l.b16 %v430
    %v1598 = vunpack.c.h.b16 %v430
    %v1599 = vunpack.c.l.b16 %v431
    %v1600 = vunpack.c.h.b16 %v431
    %v1601 = vunpack.c.l.b16 %v432
    %v1602 = vunpack.c.h.b16 %v432
    %v1603 = vunpack.c.l.b16 %v433
    %v1604 = vunpack.c.l.b16 %v434
    %v1605 = vunpack.c.h.b16 %v434
    %v1606 = vunpack.c.l.b16 %v435
    %v1607 = vunpack.c.h.b16 %v435
    %v1608 = vunpack.c.l.b16 %v436
    %v1609 = vunpack.c.h.b16 %v436
    %v1610 = vunpack.c.l.b16 %v437
    %v1611 = vunpack.c.l.b16 %v438
    %v1612 = vunpack.c.h.b16 %v438
    %v1613 = vunpack.c.l.b16 %v439
    %v1614 = vunpack.c.h.b16 %v439
    %v1615 = vunpack.c.l.b16 %v440
    %v1616 = vunpack.c.h.b16 %v440
    %v1617 = vunpack.c.l.b16 %v441
    %v1618 = vunpack.c.l.b16 %v442
    %v1619 = vunpack.c.h.b16 %v442
    %v1620 = vunpack.c.l.b16 %v443
    %v1621 = vunpack.c.h.b16 %v443
    %v1622 = vunpack.c.l.b16 %v444
    %v1623 = vunpack.c.h.b16 %v444
    %v1624 = vunpack.c.l.b16 %v445
    %v1625 = vunpack.c.l.b16 %v446
    %v1626 = vunpack.c.h.b16 %v446
    %v1627 = vunpack.c.l.b16 %v447
    %v1628 = vunpack.c.h.b16 %v447
    %v1629 = vunpack.c.l.b16 %v448
    %v1630 = vunpack.c.h.b16 %v448
    %v1631 = vunpack.c.l.b16 %v449
    %v1632 = vunpack.c.l.b16 %v450
    %v1633 = vunpack.c.h.b16 %v450
    %v1634 = vunpack.c.l.b16 %v451
    %v1635 = vunpack.c.h.b16 %v451
    %v1636 = vunpack.c.l.b16 %v452
    %v1637 = vunpack.c.h.b16 %v452
    %v1638 = vunpack.c.l.b16 %v453
    %v1639 = vunpack.c.l.b16 %v454
    %v1640 = vunpack.c.h.b16 %v454
    %v1641 = vunpack.c.l.b16 %v455
    %v1642 = vunpack.c.h.b16 %v455
    %v1643 = vunpack.c.l.b16 %v456
    %v1644 = vunpack.c.h.b16 %v456
    %v1645 = vunpack.c.l.b16 %v457
    %v1646 = vunpack.c.l.b16 %v458
    %v1647 = vunpack.c.h.b16 %v458
    %v1648 = vunpack.c.l.b16 %v459
    %v1649 = vunpack.c.h.b16 %v459
    %v1650 = vunpack.c.l.b16 %v460
    %v1651 = vunpack.c.h.b16 %v460
    %v1652 = vunpack.c.l.b16 %v461
    %v1653 = vunpack.c.l.b16 %v462
    %v1654 = vunpack.c.h.b16 %v462
    %v1655 = vunpack.c.l.b16 %v463
    %v1656 = vunpack.c.h.b16 %v463
    %v1657 = vunpack.c.l.b16 %v464
    %v1658 = vunpack.c.h.b16 %v464
    %v1659 = vunpack.c.l.b16 %v465
    %v1660 = vunpack.c.l.b16 %v466
    %v1661 = vunpack.c.h.b16 %v466
    %v1662 = vunpack.c.l.b16 %v467
    %v1663 = vunpack.c.h.b16 %v467
    %v1664 = vunpack.c.l.b16 %v468
    %v1665 = vunpack.c.h.b16 %v468
    %v1666 = vunpack.c.l.b16 %v469
    %v1667 = vunpack.c.l.b16 %v470
    %v1668 = vunpack.c.h.b16 %v470
    %v1669 = vunpack.c.l.b16 %v471
    %v1670 = vunpack.c.h.b16 %v471
    %v1671 = vunpack.c.l.b16 %v472
    %v1672 = vunpack.c.h.b16 %v472
    %v1673 = vunpack.c.l.b16 %v473
    %v1674 = vunpack.c.l.b16 %v474
    %v1675 = vunpack.c.h.b16 %v474
    %v1676 = vunpack.c.l.b16 %v475
    %v1677 = vunpack.c.h.b16 %v475
    %v1678 = vunpack.c.l.b16 %v476
    %v1679 = vunpack.c.h.b16 %v476
    %v1680 = vunpack.c.l.b16 %v477
    %v1681 = vunpack.c.l.b16 %v478
    %v1682 = vunpack.c.h.b16 %v478
    %v1683 = vunpack.c.l.b16 %v479
    %v1684 = vunpack.c.h.b16 %v479
    %v1685 = vunpack.c.l.b16 %v480
    %v1686 = vunpack.c.h.b16 %v480
    %v1687 = vunpack.c.l.b16 %v481
    %v1688 = vunpack.c.l.b16 %v482
    %v1689 = vunpack.c.h.b16 %v482
    %v1690 = vunpack.c.l.b16 %v483
    %v1691 = vunpack.c.h.b16 %v483
    %v1692 = vunpack.c.l.b16 %v484
    %v1693 = vunpack.c.h.b16 %v484
    %v1694 = vunpack.c.l.b16 %v485
    %v1695 = vunpack.c.l.b16 %v486
    %v1696 = vunpack.c.h.b16 %v486
    %v1697 = vunpack.c.l.b16 %v487
    %v1698 = vunpack.c.h.b16 %v487
    %v1699 = vunpack.c.l.b16 %v488
    %v1700 = vunpack.c.h.b16 %v488
    %v1701 = vunpack.c.l.b16 %v489
    %v1702 = vunpack.c.l.b16 %v490
    %v1703 = vunpack.c.h.b16 %v490
    %v1704 = vunpack.c.l.b16 %v491
    %v1705 = vunpack.c.h.b16 %v491
    %v1706 = vunpack.c.l.b16 %v492
    %v1707 = vunpack.c.h.b16 %v492
    %v1708 = vunpack.c.l.b16 %v493
    %v1709 = vunpack.c.l.b16 %v494
    %v1710 = vunpack.c.h.b16 %v494
    %v1711 = vunpack.c.l.b16 %v495
    %v1712 = vunpack.c.h.b16 %v495
    %v1713 = vunpack.c.l.b16 %v496
    %v1714 = vunpack.c.h.b16 %v496
    %v1715 = vunpack.c.l.b16 %v497
    %v1716 = vunpack.c.l.b16 %v498
    %v1717 = vunpack.c.h.b16 %v498
    %v1718 = vunpack.c.l.b16 %v499
    %v1719 = vunpack.c.h.b16 %v499
    %v1720 = vunpack.c.l.b16 %v500
    %v1721 = vunpack.c.h.b16 %v500
    %v1722 = vunpack.c.l.b16 %v501
    %v1723 = vunpack.c.l.b16 %v502
    %v1724 = vunpack.c.h.b16 %v502
    %v1725 = vunpack.c.l.b16 %v503
    %v1726 = vunpack.c.h.b16 %v503
    %v1727 = vunpack.c.l.b16 %v504
    %v1728 = vunpack.c.h.b16 %v504
    %v1729 = vunpack.c.l.b16 %v505
    %v1730 = vunpack.c.l.b16 %v506
    %v1731 = vunpack.c.h.b16 %v506
    %v1732 = vunpack.c.l.b16 %v507
    %v1733 = vunpack.c.h.b16 %v507
    %v1734 = vunpack.c.l.b16 %v508
    %v1735 = vunpack.c.h.b16 %v508
    %v1736 = vunpack.c.l.b16 %v509
    %v1737 = vunpack.c.l.b16 %v510
    %v1738 = vunpack.c.h.b16 %v510
    %v1739 = vunpack.c.l.b16 %v511
    %v1740 = vunpack.c.h.b16 %v511
    %v1741 = vunpack.c.l.b16 %v512
    %v1742 = vunpack.c.h.b16 %v512
    %v1743 = vunpack.c.l.b16 %v513
    %v1744 = vunpack.c.l.b16 %v514
    %v1745 = vunpack.c.h.b16 %v514
    %v1746 = vunpack.c.l.b16 %v515
    %v1747 = vunpack.c.h.b16 %v515
    %v1748 = vunpack.c.l.b16 %v516
    %v1749 = vunpack.c.h.b16 %v516
    %v1750 = vunpack.c.l.b16 %v517
    %v1751 = vunpack.c.l.b16 %v518
    %v1752 = vunpack.c.h.b16 %v518
    %v1753 = vunpack.c.l.b16 %v519
    %v1754 = vunpack.c.h.b16 %v519
    %v1755 = vunpack.c.l.b16 %v520
    %v1756 = vunpack.c.h.b16 %v520
    %v1757 = vunpack.c.l.b16 %v521
    %v1758 = vunpack.c.l.b16 %v522
    %v1759 = vunpack.c.h.b16 %v522
    %v1760 = vunpack.c.l.b16 %v523
    %v1761 = vunpack.c.h.b16 %v523
    %v1762 = vunpack.c.l.b16 %v524
    %v1763 = vunpack.c.h.b16 %v524
    %v1764 = vunpack.c.l.b16 %v525
    %v1765 = vunpack.c.l.b16 %v526
    %v1766 = vunpack.c.h.b16 %v526
    %v1767 = vunpack.c.l.b16 %v527
    %v1768 = vunpack.c.h.b16 %v527
    %v1769 = vunpack.c.l.b16 %v528
    %v1770 = vunpack.c.h.b16 %v528
    %v1771 = vunpack.c.l.b16 %v529
    %v1772 = vunpack.c.l.b16 %v530
    %v1773 = vunpack.c.h.b16 %v530
    %v1774 = vunpack.c.l.b16 %v531
    %v1775 = vunpack.c.h.b16 %v531
    %v1776 = vunpack.c.l.b16 %v532
    %v1777 = vunpack.c.h.b16 %v532
    %v1778 = vunpack.c.l.b16 %v533
    %v1779 = vunpack.c.l.b16 %v534
    %v1780 = vunpack.c.h.b16 %v534
    %v1781 = vunpack.c.l.b16 %v535
    %v1782 = vunpack.c.h.b16 %v535
    %v1783 = vunpack.c.l.b16 %v536
    %v1784 = vunpack.c.h.b16 %v536
    %v1785 = vunpack.c.l.b16 %v537
    %v1786 = vunpack.c.l.b16 %v538
    %v1787 = vunpack.c.h.b16 %v538
    %v1788 = vunpack.c.l.b16 %v539
    %v1789 = vunpack.c.h.b16 %v539
    %v1790 = vunpack.c.l.b16 %v540
    %v1791 = vunpack.c.h.b16 %v540
    %v1792 = vunpack.c.l.b16 %v541
    %v1793 = vunpack.c.l.b16 %v542
    %v1794 = vunpack.c.h.b16 %v542
    %v1795 = vunpack.c.l.b16 %v543
    %v1796 = vunpack.c.h.b16 %v543
    %v1797 = vunpack.c.l.b16 %v544
    %v1798 = vunpack.c.h.b16 %v544
    %v1799 = vunpack.c.l.b16 %v545
    %v1800 = vunpack.c.l.b16 %v546
    %v1801 = vunpack.c.h.b16 %v546
    %v1802 = vunpack.c.l.b16 %v547
    %v1803 = vunpack.c.h.b16 %v547
    %v1804 = vunpack.c.l.b16 %v548
    %v1805 = vunpack.c.h.b16 %v548
    %v1806 = vunpack.c.l.b16 %v549
    %v1807 = vunpack.c.l.b16 %v550
    %v1808 = vunpack.c.h.b16 %v550
    %v1809 = vunpack.c.l.b16 %v551
    %v1810 = vunpack.c.h.b16 %v551
    %v1811 = vunpack.c.l.b16 %v552
    %v1812 = vunpack.c.h.b16 %v552
    %v1813 = vunpack.c.l.b16 %v553
    %v1814 = vunpack.c.l.b16 %v554
    %v1815 = vunpack.c.h.b16 %v554
    %v1816 = vunpack.c.l.b16 %v555
    %v1817 = vunpack.c.h.b16 %v555
    %v1818 = vunpack.c.l.b16 %v556
    %v1819 = vunpack.c.h.b16 %v556
    %v1820 = vunpack.c.l.b16 %v557
    %v1821 = vunpack.c.l.b16 %v558
    %v1822 = vunpack.c.h.b16 %v558
    %v1823 = vunpack.c.l.b16 %v559
    %v1824 = vunpack.c.h.b16 %v559
    %v1825 = vunpack.c.l.b16 %v560
    %v1826 = vunpack.c.h.b16 %v560
    %v1827 = vunpack.c.l.b16 %v561
    %v1828 = vunpack.c.l.b16 %v562
    %v1829 = vunpack.c.h.b16 %v562
    %v1830 = vunpack.c.l.b16 %v563
    %v1831 = vunpack.c.h.b16 %v563
    %v1832 = vunpack.c.l.b16 %v564
    %v1833 = vunpack.c.h.b16 %v564
    %v1834 = vunpack.c.l.b16 %v565
    %v1835 = vunpack.c.l.b16 %v566
    %v1836 = vunpack.c.h.b16 %v566
    %v1837 = vunpack.c.l.b16 %v567
    %v1838 = vunpack.c.h.b16 %v567
    %v1839 = vunpack.c.l.b16 %v568
    %v1840 = vunpack.c.h.b16 %v568
    %v1841 = vunpack.c.l.b16 %v569
    %v1842 = vunpack.c.l.b16 %v570
    %v1843 = vunpack.c.h.b16 %v570
    %v1844 = vunpack.c.l.b16 %v571
    %v1845 = vunpack.c.h.b16 %v571
    %v1846 = vunpack.c.l.b16 %v572
    %v1847 = vunpack.c.h.b16 %v572
    %v1848 = vunpack.c.l.b16 %v573
    %v1849 = vunpack.c.l.b16 %v574
    %v1850 = vunpack.c.h.b16 %v574
    %v1851 = vunpack.c.l.b16 %v575
    %v1852 = vunpack.c.h.b16 %v575
    %v1853 = vunpack.c.l.b16 %v576
    %v1854 = vunpack.c.h.b16 %v576
    %v1855 = vunpack.c.l.b16 %v577
    %v1856 = vunpack.c.l.b16 %v578
    %v1857 = vunpack.c.h.b16 %v578
    %v1858 = vunpack.c.l.b16 %v579
    %v1859 = vunpack.c.h.b16 %v579
    %v1860 = vunpack.c.l.b16 %v580
    %v1861 = vunpack.c.h.b16 %v580
    %v1862 = vunpack.c.l.b16 %v581
    %v1863 = vunpack.c.l.b16 %v582
    %v1864 = vunpack.c.h.b16 %v582
    %v1865 = vunpack.c.l.b16 %v583
    %v1866 = vunpack.c.h.b16 %v583
    %v1867 = vunpack.c.l.b16 %v584
    %v1868 = vunpack.c.h.b16 %v584
    %v1869 = vunpack.c.l.b16 %v585
    %v1870 = vpack.c.b16 %v1093, %v1086
    %v1871 = vpack.c.b16 %v1094, %v1087
    %v1872 = vpack.c.b16 %v1095, %v1088
    %v1873 = vpack.c.b16 %v1096, %v1089
    %v1874 = vpack.c.b16 %v1097, %v1090
    %v1875 = vpack.c.b16 %v1098, %v1091
    %v1876 = vpack.c.b16 %v1099, %v1092
    %v1877 = vpack.c.b16 %v1107, %v1100
    %v1878 = vpack.c.b16 %v1108, %v1101
    %v1879 = vpack.c.b16 %v1109, %v1102
    %v1880 = vpack.c.b16 %v1110, %v1103
    %v1881 = vpack.c.b16 %v1111, %v1104
    %v1882 = vpack.c.b16 %v1112, %v1105
    %v1883 = vpack.c.b16 %v1113, %v1106
    %v1884 = vpack.c.b16 %v1121, %v1114
    %v1885 = vpack.c.b16 %v1122, %v1115
    %v1886 = vpack.c.b16 %v1123, %v1116
    %v1887 = vpack.c.b16 %v1124, %v1117
    %v1888 = vpack.c.b16 %v1125, %v1118
    %v1889 = vpack.c.b16 %v1126, %v1119
    %v1890 = vpack.c.b16 %v1127, %v1120
    %v1891 = vpack.c.b16 %v1135, %v1128
    %v1892 = vpack.c.b16 %v1136, %v1129
    %v1893 = vpack.c.b16 %v1137, %v1130
    %v1894 = vpack.c.b16 %v1138, %v1131
    %v1895 = vpack.c.b16 %v1139, %v1132
    %v1896 = vpack.c.b16 %v1140, %v1133
    %v1897 = vpack.c.b16 %v1141, %v1134
    %v1898 = vpack.c.b16 %v1149, %v1142
    %v1899 = vpack.c.b16 %v1150, %v1143
    %v1900 = vpack.c.b16 %v1151, %v1144
    %v1901 = vpack.c.b16 %v1152, %v1145
    %v1902 = vpack.c.b16 %v1153, %v1146
    %v1903 = vpack.c.b16 %v1154, %v1147
    %v1904 = vpack.c.b16 %v1155, %v1148
    %v1905 = vpack.c.b16 %v1163, %v1156
    %v1906 = vpack.c.b16 %v1164, %v1157
    %v1907 = vpack.c.b16 %v1165, %v1158
    %v1908 = vpack.c.b16 %v1166, %v1159
    %v1909 = vpack.c.b16 %v1167, %v1160
    %v1910 = vpack.c.b16 %v1168, %v1161
    %v1911 = vpack.c.b16 %v1169, %v1162
    %v1912 = vpack.c.b16 %v1177, %v1170
    %v1913 = vpack.c.b16 %v1178, %v1171
    %v1914 = vpack.c.b16 %v1179, %v1172
    %v1915 = vpack.c.b16 %v1180, %v1173
    %v1916 = vpack.c.b16 %v1181, %v1174
    %v1917 = vpack.c.b16 %v1182, %v1175
    %v1918 = vpack.c.b16 %v1183, %v1176
    %v1919 = vpack.c.b16 %v1191, %v1184
    %v1920 = vpack.c.b16 %v1192, %v1185
    %v1921 = vpack.c.b16 %v1193, %v1186
    %v1922 = vpack.c.b16 %v1194, %v1187
    %v1923 = vpack.c.b16 %v1195, %v1188
    %v1924 = vpack.c.b16 %v1196, %v1189
    %v1925 = vpack.c.b16 %v1197, %v1190
    %v1926 = vpack.c.b16 %v1205, %v1198
    %v1927 = vpack.c.b16 %v1206, %v1199
    %v1928 = vpack.c.b16 %v1207, %v1200
    %v1929 = vpack.c.b16 %v1208, %v1201
    %v1930 = vpack.c.b16 %v1209, %v1202
    %v1931 = vpack.c.b16 %v1210, %v1203
    %v1932 = vpack.c.b16 %v1211, %v1204
    %v1933 = vpack.c.b16 %v1219, %v1212
    %v1934 = vpack.c.b16 %v1220, %v1213
    %v1935 = vpack.c.b16 %v1221, %v1214
    %v1936 = vpack.c.b16 %v1222, %v1215
    %v1937 = vpack.c.b16 %v1223, %v1216
    %v1938 = vpack.c.b16 %v1224, %v1217
    %v1939 = vpack.c.b16 %v1225, %v1218
    %v1940 = vpack.c.b16 %v1233, %v1226
    %v1941 = vpack.c.b16 %v1234, %v1227
    %v1942 = vpack.c.b16 %v1235, %v1228
    %v1943 = vpack.c.b16 %v1236, %v1229
    %v1944 = vpack.c.b16 %v1237, %v1230
    %v1945 = vpack.c.b16 %v1238, %v1231
    %v1946 = vpack.c.b16 %v1239, %v1232
    %v1947 = vpack.c.b16 %v1247, %v1240
    %v1948 = vpack.c.b16 %v1248, %v1241
    %v1949 = vpack.c.b16 %v1249, %v1242
    %v1950 = vpack.c.b16 %v1250, %v1243
    %v1951 = vpack.c.b16 %v1251, %v1244
    %v1952 = vpack.c.b16 %v1252, %v1245
    %v1953 = vpack.c.b16 %v1253, %v1246
    %v1954 = vpack.c.b16 %v1261, %v1254
    %v1955 = vpack.c.b16 %v1262, %v1255
    %v1956 = vpack.c.b16 %v1263, %v1256
    %v1957 = vpack.c.b16 %v1264, %v1257
    %v1958 = vpack.c.b16 %v1265, %v1258
    %v1959 = vpack.c.b16 %v1266, %v1259
    %v1960 = vpack.c.b16 %v1267, %v1260
    %v1961 = vpack.c.b16 %v1275, %v1268
    %v1962 = vpack.c.b16 %v1276, %v1269
    %v1963 = vpack.c.b16 %v1277, %v1270
    %v1964 = vpack.c.b16 %v1278, %v1271
    %v1965 = vpack.c.b16 %v1279, %v1272
    %v1966 = vpack.c.b16 %v1280, %v1273
    %v1967 = vpack.c.b16 %v1281, %v1274
    %v1968 = vpack.c.b16 %v1289, %v1282
    %v1969 = vpack.c.b16 %v1290, %v1283
    %v1970 = vpack.c.b16 %v1291, %v1284
    %v1971 = vpack.c.b16 %v1292, %v1285
    %v1972 = vpack.c.b16 %v1293, %v1286
    %v1973 = vpack.c.b16 %v1294, %v1287
    %v1974 = vpack.c.b16 %v1295, %v1288
    %v1975 = vpack.c.b16 %v1303, %v1296
    %v1976 = vpack.c.b16 %v1304, %v1297
    %v1977 = vpack.c.b16 %v1305, %v1298
    %v1978 = vpack.c.b16 %v1306, %v1299
    %v1979 = vpack.c.b16 %v1307, %v1300
    %v1980 = vpack.c.b16 %v1308, %v1301
    %v1981 = vpack.c.b16 %v1309, %v1302
    %v1982 = vpack.c.b16 %v1317, %v1310
    %v1983 = vpack.c.b16 %v1318, %v1311
    %v1984 = vpack.c.b16 %v1319, %v1312
    %v1985 = vpack.c.b16 %v1320, %v1313
    %v1986 = vpack.c.b16 %v1321, %v1314
    %v1987 = vpack.c.b16 %v1322, %v1315
    %v1988 = vpack.c.b16 %v1323, %v1316
    %v1989 = vpack.c.b16 %v1331, %v1324
    %v1990 = vpack.c.b16 %v1332, %v1325
    %v1991 = vpack.c.b16 %v1333, %v1326
    %v1992 = vpack.c.b16 %v1334, %v1327
    %v1993 = vpack.c.b16 %v1335, %v1328
    %v1994 = vpack.c.b16 %v1336, %v1329
    %v1995 = vpack.c.b16 %v1337, %v1330
    %v1996 = vpack.c.b16 %v1345, %v1338
    %v1997 = vpack.c.b16 %v1346, %v1339
    %v1998 = vpack.c.b16 %v1347, %v1340
    %v1999 = vpack.c.b16 %v1348, %v1341
    %v2000 = vpack.c.b16 %v1349, %v1342
    %v2001 = vpack.c.b16 %v1350, %v1343
    %v2002 = vpack.c.b16 %v1351, %v1344
    %v2003 = vpack.c.b16 %v1359, %v1352
    %v2004 = vpack.c.b16 %v1360, %v1353
    %v2005 = vpack.c.b16 %v1361, %v1354
    %v2006 = vpack.c.b16 %v1362, %v1355
    %v2007 = vpack.c.b16 %v1363, %v1356
    %v2008 = vpack.c.b16 %v1364, %v1357
    %v2009 = vpack.c.b16 %v1365, %v1358
    %v2010 = vpack.c.b16 %v1373, %v1366
    %v2011 = vpack.c.b16 %v1374, %v1367
    %v2012 = vpack.c.b16 %v1375, %v1368
    %v2013 = vpack.c.b16 %v1376, %v1369
    %v2014 = vpack.c.b16 %v1377, %v1370
    %v2015 = vpack.c.b16 %v1378, %v1371
    %v2016 = vpack.c.b16 %v1379, %v1372
    %v2017 = vpack.c.b16 %v1387, %v1380
    %v2018 = vpack.c.b16 %v1388, %v1381
    %v2019 = vpack.c.b16 %v1389, %v1382
    %v2020 = vpack.c.b16 %v1390, %v1383
    %v2021 = vpack.c.b16 %v1391, %v1384
    %v2022 = vpack.c.b16 %v1392, %v1385
    %v2023 = vpack.c.b16 %v1393, %v1386
    %v2024 = vpack.c.b16 %v1401, %v1394
    %v2025 = vpack.c.b16 %v1402, %v1395
    %v2026 = vpack.c.b16 %v1403, %v1396
    %v2027 = vpack.c.b16 %v1404, %v1397
    %v2028 = vpack.c.b16 %v1405, %v1398
    %v2029 = vpack.c.b16 %v1406, %v1399
    %v2030 = vpack.c.b16 %v1407, %v1400
    %v2031 = vpack.c.b16 %v1415, %v1408
    %v2032 = vpack.c.b16 %v1416, %v1409
    %v2033 = vpack.c.b16 %v1417, %v1410
    %v2034 = vpack.c.b16 %v1418, %v1411
    %v2035 = vpack.c.b16 %v1419, %v1412
    %v2036 = vpack.c.b16 %v1420, %v1413
    %v2037 = vpack.c.b16 %v1421, %v1414
    %v2038 = vpack.c.b16 %v1429, %v1422
    %v2039 = vpack.c.b16 %v1430, %v1423
    %v2040 = vpack.c.b16 %v1431, %v1424
    %v2041 = vpack.c.b16 %v1432, %v1425
    %v2042 = vpack.c.b16 %v1433, %v1426
    %v2043 = vpack.c.b16 %v1434, %v1427
    %v2044 = vpack.c.b16 %v1435, %v1428
    %v2045 = vpack.c.b16 %v1443, %v1436
    %v2046 = vpack.c.b16 %v1444, %v1437
    %v2047 = vpack.c.b16 %v1445, %v1438
    %v2048 = vpack.c.b16 %v1446, %v1439
    %v2049 = vpack.c.b16 %v1447, %v1440
    %v2050 = vpack.c.b16 %v1448, %v1441
    %v2051 = vpack.c.b16 %v1449, %v1442
    %v2052 = vpack.c.b16 %v1457, %v1450
    %v2053 = vpack.c.b16 %v1458, %v1451
    %v2054 = vpack.c.b16 %v1459, %v1452
    %v2055 = vpack.c.b16 %v1460, %v1453
    %v2056 = vpack.c.b16 %v1461, %v1454
    %v2057 = vpack.c.b16 %v1462, %v1455
    %v2058 = vpack.c.b16 %v1463, %v1456
    %v2059 = vpack.c.b16 %v1471, %v1464
    %v2060 = vpack.c.b16 %v1472, %v1465
    %v2061 = vpack.c.b16 %v1473, %v1466
    %v2062 = vpack.c.b16 %v1474, %v1467
    %v2063 = vpack.c.b16 %v1475, %v1468
    %v2064 = vpack.c.b16 %v1476, %v1469
    %v2065 = vpack.c.b16 %v1477, %v1470
    %v2066 = vpack.c.b16 %v1485, %v1478
    %v2067 = vpack.c.b16 %v1486, %v1479
    %v2068 = vpack.c.b16 %v1487, %v1480
    %v2069 = vpack.c.b16 %v1488, %v1481
    %v2070 = vpack.c.b16 %v1489, %v1482
    %v2071 = vpack.c.b16 %v1490, %v1483
    %v2072 = vpack.c.b16 %v1491, %v1484
    %v2073 = vpack.c.b16 %v1499, %v1492
    %v2074 = vpack.c.b16 %v1500, %v1493
    %v2075 = vpack.c.b16 %v1501, %v1494
    %v2076 = vpack.c.b16 %v1502, %v1495
    %v2077 = vpack.c.b16 %v1503, %v1496
    %v2078 = vpack.c.b16 %v1504, %v1497
    %v2079 = vpack.c.b16 %v1505, %v1498
    %v2080 = vpack.c.b16 %v1513, %v1506
    %v2081 = vpack.c.b16 %v1514, %v1507
    %v2082 = vpack.c.b16 %v1515, %v1508
    %v2083 = vpack.c.b16 %v1516, %v1509
    %v2084 = vpack.c.b16 %v1517, %v1510
    %v2085 = vpack.c.b16 %v1518, %v1511
    %v2086 = vpack.c.b16 %v1519, %v1512
    %v2087 = vpack.c.b16 %v1527, %v1520
    %v2088 = vpack.c.b16 %v1528, %v1521
    %v2089 = vpack.c.b16 %v1529, %v1522
    %v2090 = vpack.c.b16 %v1530, %v1523
    %v2091 = vpack.c.b16 %v1531, %v1524
    %v2092 = vpack.c.b16 %v1532, %v1525
    %v2093 = vpack.c.b16 %v1533, %v1526
    %v2094 = vpack.c.b16 %v1541, %v1534
    %v2095 = vpack.c.b16 %v1542, %v1535
    %v2096 = vpack.c.b16 %v1543, %v1536
    %v2097 = vpack.c.b16 %v1544, %v1537
    %v2098 = vpack.c.b16 %v1545, %v1538
    %v2099 = vpack.c.b16 %v1546, %v1539
    %v2100 = vpack.c.b16 %v1547, %v1540
    %v2101 = vpack.c.b16 %v1555, %v1548
    %v2102 = vpack.c.b16 %v1556, %v1549
    %v2103 = vpack.c.b16 %v1557, %v1550
    %v2104 = vpack.c.b16 %v1558, %v1551
    %v2105 = vpack.c.b16 %v1559, %v1552
    %v2106 = vpack.c.b16 %v1560, %v1553
    %v2107 = vpack.c.b16 %v1561, %v1554
    %v2108 = vpack.c.b16 %v1569, %v1562
    %v2109 = vpack.c.b16 %v1570, %v1563
    %v2110 = vpack.c.b16 %v1571, %v1564
    %v2111 = vpack.c.b16 %v1572, %v1565
    %v2112 = vpack.c.b16 %v1573, %v1566
    %v2113 = vpack.c.b16 %v1574, %v1567
    %v2114 = vpack.c.b16 %v1575, %v1568
    %v2115 = vpack.c.b16 %v1583, %v1576
    %v2116 = vpack.c.b16 %v1584, %v1577
    %v2117 = vpack.c.b16 %v1585, %v1578
    %v2118 = vpack.c.b16 %v1586, %v1579
    %v2119 = vpack.c.b16 %v1587, %v1580
    %v2120 = vpack.c.b16 %v1588, %v1581
    %v2121 = vpack.c.b16 %v1589, %v1582
    %v2122 = vpack.c.b16 %v1597, %v1590
    %v2123 = vpack.c.b16 %v1598, %v1591
    %v2124 = vpack.c.b16 %v1599, %v1592
    %v2125 = vpack.c.b16 %v1600, %v1593
    %v2126 = vpack.c.b16 %v1601, %v1594
    %v2127 = vpack.c.b16 %v1602, %v1595
    %v2128 = vpack.c.b16 %v1603, %v1596
    %v2129 = vpack.c.b16 %v1611, %v1604
    %v2130 = vpack.c.b16 %v1612, %v1605
    %v2131 = vpack.c.b16 %v1613, %v1606
    %v2132 = vpack.c.b16 %v1614, %v1607
    %v2133 = vpack.c.b16 %v1615, %v1608
    %v2134 = vpack.c.b16 %v1616, %v1609
    %v2135 = vpack.c.b16 %v1617, %v1610
    %v2136 = vpack.c.b16 %v1625, %v1618
    %v2137 = vpack.c.b16 %v1626, %v1619
    %v2138 = vpack.c.b16 %v1627, %v1620
    %v2139 = vpack.c.b16 %v1628, %v1621
    %v2140 = vpack.c.b16 %v1629, %v1622
    %v2141 = vpack.c.b16 %v1630, %v1623
    %v2142 = vpack.c.b16 %v1631, %v1624
    %v2143 = vpack.c.b16 %v1639, %v1632
    %v2144 = vpack.c.b16 %v1640, %v1633
    %v2145 = vpack.c.b16 %v1641, %v1634
    %v2146 = vpack.c.b16 %v1642, %v1635
    %v2147 = vpack.c.b16 %v1643, %v1636
    %v2148 = vpack.c.b16 %v1644, %v1637
    %v2149 = vpack.c.b16 %v1645, %v1638
    %v2150 = vpack.c.b16 %v1653, %v1646
    %v2151 = vpack.c.b16 %v1654, %v1647
    %v2152 = vpack.c.b16 %v1655, %v1648
    %v2153 = vpack.c.b16 %v1656, %v1649
    %v2154 = vpack.c.b16 %v1657, %v1650
    %v2155 = vpack.c.b16 %v1658, %v1651
    %v2156 = vpack.c.b16 %v1659, %v1652
    %v2157 = vpack.c.b16 %v1667, %v1660
    %v2158 = vpack.c.b16 %v1668, %v1661
    %v2159 = vpack.c.b16 %v1669, %v1662
    %v2160 = vpack.c.b16 %v1670, %v1663
    %v2161 = vpack.c.b16 %v1671, %v1664
    %v2162 = vpack.c.b16 %v1672, %v1665
    %v2163 = vpack.c.b16 %v1673, %v1666
    %v2164 = vpack.c.b16 %v1681, %v1674
    %v2165 = vpack.c.b16 %v1682, %v1675
    %v2166 = vpack.c.b16 %v1683, %v1676
    %v2167 = vpack.c.b16 %v1684, %v1677
    %v2168 = vpack.c.b16 %v1685, %v1678
    %v2169 = vpack.c.b16 %v1686, %v1679
    %v2170 = vpack.c.b16 %v1687, %v1680
    %v2171 = vpack.c.b16 %v1695, %v1688
    %v2172 = vpack.c.b16 %v1696, %v1689
    %v2173 = vpack.c.b16 %v1697, %v1690
    %v2174 = vpack.c.b16 %v1698, %v1691
    %v2175 = vpack.c.b16 %v1699, %v1692
    %v2176 = vpack.c.b16 %v1700, %v1693
    %v2177 = vpack.c.b16 %v1701, %v1694
    %v2178 = vpack.c.b16 %v1709, %v1702
    %v2179 = vpack.c.b16 %v1710, %v1703
    %v2180 = vpack.c.b16 %v1711, %v1704
    %v2181 = vpack.c.b16 %v1712, %v1705
    %v2182 = vpack.c.b16 %v1713, %v1706
    %v2183 = vpack.c.b16 %v1714, %v1707
    %v2184 = vpack.c.b16 %v1715, %v1708
    %v2185 = vpack.c.b16 %v1723, %v1716
    %v2186 = vpack.c.b16 %v1724, %v1717
    %v2187 = vpack.c.b16 %v1725, %v1718
    %v2188 = vpack.c.b16 %v1726, %v1719
    %v2189 = vpack.c.b16 %v1727, %v1720
    %v2190 = vpack.c.b16 %v1728, %v1721
    %v2191 = vpack.c.b16 %v1729, %v1722
    %v2192 = vpack.c.b16 %v1737, %v1730
    %v2193 = vpack.c.b16 %v1738, %v1731
    %v2194 = vpack.c.b16 %v1739, %v1732
    %v2195 = vpack.c.b16 %v1740, %v1733
    %v2196 = vpack.c.b16 %v1741, %v1734
    %v2197 = vpack.c.b16 %v1742, %v1735
    %v2198 = vpack.c.b16 %v1743, %v1736
    %v2199 = vpack.c.b16 %v1751, %v1744
    %v2200 = vpack.c.b16 %v1752, %v1745
    %v2201 = vpack.c.b16 %v1753, %v1746
    %v2202 = vpack.c.b16 %v1754, %v1747
    %v2203 = vpack.c.b16 %v1755, %v1748
    %v2204 = vpack.c.b16 %v1756, %v1749
    %v2205 = vpack.c.b16 %v1757, %v1750
    %v2206 = vpack.c.b16 %v1765, %v1758
    %v2207 = vpack.c.b16 %v1766, %v1759
    %v2208 = vpack.c.b16 %v1767, %v1760
    %v2209 = vpack.c.b16 %v1768, %v1761
    %v2210 = vpack.c.b16 %v1769, %v1762
    %v2211 = vpack.c.b16 %v1770, %v1763
    %v2212 = vpack.c.b16 %v1771, %v1764
    %v2213 = vpack.c.b16 %v1779, %v1772
    %v2214 = vpack.c.b16 %v1780, %v1773
    %v2215 = vpack.c.b16 %v1781, %v1774
    %v2216 = vpack.c.b16 %v1782, %v1775
    %v2217 = vpack.c.b16 %v1783, %v1776
    %v2218 = vpack.c.b16 %v1784, %v1777
    %v2219 = vpack.c.b16 %v1785, %v1778
    %v2220 = vpack.c.b16 %v1793, %v1786
    %v2221 = vpack.c.b16 %v1794, %v1787
    %v2222 = vpack.c.b16 %v1795, %v1788
    %v2223 = vpack.c.b16 %v1796, %v1789
    %v2224 = vpack.c.b16 %v1797, %v1790
    %v2225 = vpack.c.b16 %v1798, %v1791
    %v2226 = vpack.c.b16 %v1799, %v1792
    %v2227 = vpack.c.b16 %v1807, %v1800
    %v2228 = vpack.c.b16 %v1808, %v1801
    %v2229 = vpack.c.b16 %v1809, %v1802
    %v2230 = vpack.c.b16 %v1810, %v1803
    %v2231 = vpack.c.b16 %v1811, %v1804
    %v2232 = vpack.c.b16 %v1812, %v1805
    %v2233 = vpack.c.b16 %v1813, %v1806
    %v2234 = vpack.c.b16 %v1821, %v1814
    %v2235 = vpack.c.b16 %v1822, %v1815
    %v2236 = vpack.c.b16 %v1823, %v1816
    %v2237 = vpack.c.b16 %v1824, %v1817
    %v2238 = vpack.c.b16 %v1825, %v1818
    %v2239 = vpack.c.b16 %v1826, %v1819
    %v2240 = vpack.c.b16 %v1827, %v1820
    %v2241 = vpack.c.b16 %v1835, %v1828
    %v2242 = vpack.c.b16 %v1836, %v1829
    %v2243 = vpack.c.b16 %v1837, %v1830
    %v2244 = vpack.c.b16 %v1838, %v1831
    %v2245 = vpack.c.b16 %v1839, %v1832
    %v2246 = vpack.c.b16 %v1840, %v1833
    %v2247 = vpack.c.b16 %v1841, %v1834
    %v2248 = vpack.c.b16 %v1849, %v1842
    %v2249 = vpack.c.b16 %v1850, %v1843
    %v2250 = vpack.c.b16 %v1851, %v1844
    %v2251 = vpack.c.b16 %v1852, %v1845
    %v2252 = vpack.c.b16 %v1853, %v1846
    %v2253 = vpack.c.b16 %v1854, %v1847
    %v2254 = vpack.c.b16 %v1855, %v1848
    %v2255 = vpack.c.b16 %v1863, %v1856
    %v2256 = vpack.c.b16 %v1864, %v1857
    %v2257 = vpack.c.b16 %v1865, %v1858
    %v2258 = vpack.c.b16 %v1866, %v1859
    %v2259 = vpack.c.b16 %v1867, %v1860
    %v2260 = vpack.c.b16 %v1868, %v1861
    %v2261 = vpack.c.b16 %v1869, %v1862
    %2654 = vmatpush.bf16.msra.mxu0 %v1919
    %2655 = vmatpush.bf16.msra.mxu0 %v1912
    %2656 = vmatpush.bf16.msra.mxu0 %v1905
    %2657 = vmatpush.bf16.msra.mxu0 %v1898
    %2658 = vmatpush.bf16.msra.mxu0 %v1891
    %2659 = vmatpush.bf16.msra.mxu0 %v1884
    %2660 = vmatpush.bf16.msra.mxu0 %v1877
    %2661 = vmatpush.bf16.msra.mxu0 %v1870
    %2662 = vmatmul.bf16.gmra.mxu0 %v624
    %v2663 = vpop.f32.mrf.mxu0
    %v2664 = vadd.f32 %v588, %v2663
    %v2665 = vpop.f32.mrf.mxu0
    %v2666 = vadd.f32 %v588, %v2665
    %2667 = vdwg.mxu0
    %2668 = vmatpush.bf16.msra.mxu0 %v1975
    %2669 = vmatpush.bf16.msra.mxu0 %v1968
    %2670 = vmatpush.bf16.msra.mxu0 %v1961
    %2671 = vmatpush.bf16.msra.mxu0 %v1954
    %2672 = vmatpush.bf16.msra.mxu0 %v1947
    %2673 = vmatpush.bf16.msra.mxu0 %v1940
    %2674 = vmatpush.bf16.msra.mxu0 %v1933
    %2675 = vmatpush.bf16.msra.mxu0 %v1926
    %2676 = vmatmul.bf16.gmra.mxu0 %v625
    %v2677 = vpop.f32.mrf.mxu0
    %v2678 = vadd.f32 %v2664, %v2677
    %v2679 = vpop.f32.mrf.mxu0
    %v2680 = vadd.f32 %v2666, %v2679
    %2681 = vdwg.mxu0
    %2682 = vmatpush.bf16.msra.mxu0 %v2031
    %2683 = vmatpush.bf16.msra.mxu0 %v2024
    %2684 = vmatpush.bf16.msra.mxu0 %v2017
    %2685 = vmatpush.bf16.msra.mxu0 %v2010
    %2686 = vmatpush.bf16.msra.mxu0 %v2003
    %2687 = vmatpush.bf16.msra.mxu0 %v1996
    %2688 = vmatpush.bf16.msra.mxu0 %v1989
    %2689 = vmatpush.bf16.msra.mxu0 %v1982
    %2690 = vmatmul.bf16.gmra.mxu0 %v626
    %v2691 = vpop.f32.mrf.mxu0
    %v2692 = vadd.f32 %v2678, %v2691
    %v2693 = vpop.f32.mrf.mxu0
    %v2694 = vadd.f32 %v2680, %v2693
    %2695 = vdwg.mxu0
    %2696 = vmatpush.bf16.msra.mxu0 %v2087
    %2697 = vmatpush.bf16.msra.mxu0 %v2080
    %2698 = vmatpush.bf16.msra.mxu0 %v2073
    %2699 = vmatpush.bf16.msra.mxu0 %v2066
    %2700 = vmatpush.bf16.msra.mxu0 %v2059
    %2701 = vmatpush.bf16.msra.mxu0 %v2052
    %2702 = vmatpush.bf16.msra.mxu0 %v2045
    %2703 = vmatpush.bf16.msra.mxu0 %v2038
    %2704 = vmatmul.bf16.gmra.mxu0 %v627
    %v2705 = vpop.f32.mrf.mxu0
    %v2706 = vadd.f32 %v2692, %v2705
    %v2707 = vpop.f32.mrf.mxu0
    %v2708 = vadd.f32 %v2694, %v2707
    %2709 = vdwg.mxu0
    %2710 = vmatpush.bf16.msra.mxu0 %v2143
    %2711 = vmatpush.bf16.msra.mxu0 %v2136
    %2712 = vmatpush.bf16.msra.mxu0 %v2129
    %2713 = vmatpush.bf16.msra.mxu0 %v2122
    %2714 = vmatpush.bf16.msra.mxu0 %v2115
    %2715 = vmatpush.bf16.msra.mxu0 %v2108
    %2716 = vmatpush.bf16.msra.mxu0 %v2101
    %2717 = vmatpush.bf16.msra.mxu0 %v2094
    %2718 = vmatmul.bf16.gmra.mxu0 %v628
    %v2719 = vpop.f32.mrf.mxu0
    %v2720 = vadd.f32 %v2706, %v2719
    %v2721 = vpop.f32.mrf.mxu0
    %v2722 = vadd.f32 %v2708, %v2721
    %2723 = vdwg.mxu0
    %2724 = vmatpush.bf16.msra.mxu0 %v2199
    %2725 = vmatpush.bf16.msra.mxu0 %v2192
    %2726 = vmatpush.bf16.msra.mxu0 %v2185
    %2727 = vmatpush.bf16.msra.mxu0 %v2178
    %2728 = vmatpush.bf16.msra.mxu0 %v2171
    %2729 = vmatpush.bf16.msra.mxu0 %v2164
    %2730 = vmatpush.bf16.msra.mxu0 %v2157
    %2731 = vmatpush.bf16.msra.mxu0 %v2150
    %2732 = vmatmul.bf16.gmra.mxu0 %v629
    %v2733 = vpop.f32.mrf.mxu0
    %v2734 = vadd.f32 %v2720, %v2733
    %v2735 = vpop.f32.mrf.mxu0
    %v2736 = vadd.f32 %v2722, %v2735
    %2737 = vdwg.mxu0
    %2738 = vmatpush.bf16.msra.mxu0 %v2255
    %2739 = vmatpush.bf16.msra.mxu0 %v2248
    %2740 = vmatpush.bf16.msra.mxu0 %v2241
    %2741 = vmatpush.bf16.msra.mxu0 %v2234
    %2742 = vmatpush.bf16.msra.mxu0 %v2227
    %2743 = vmatpush.bf16.msra.mxu0 %v2220
    %2744 = vmatpush.bf16.msra.mxu0 %v2213
    %2745 = vmatpush.bf16.msra.mxu0 %v2206
    %2746 = vmatmul.bf16.gmra.mxu0 %v630
    %v2747 = vpop.f32.mrf.mxu0
    %v2748 = vadd.f32 %v2734, %v2747
    %v2749 = vpop.f32.mrf.mxu0
    %v2750 = vadd.f32 %v2736, %v2749
    %2751 = vdwg.mxu0
    %2752 = vmatpush.bf16.msra.mxu0 %v1920
    %2753 = vmatpush.bf16.msra.mxu0 %v1913
    %2754 = vmatpush.bf16.msra.mxu0 %v1906
    %2755 = vmatpush.bf16.msra.mxu0 %v1899
    %2756 = vmatpush.bf16.msra.mxu0 %v1892
    %2757 = vmatpush.bf16.msra.mxu0 %v1885
    %2758 = vmatpush.bf16.msra.mxu0 %v1878
    %2759 = vmatpush.bf16.msra.mxu0 %v1871
    %2760 = vmatmul.bf16.gmra.mxu0 %v624
    %v2761 = vpop.f32.mrf.mxu0
    %v2762 = vadd.f32 %v589, %v2761
    %v2763 = vpop.f32.mrf.mxu0
    %v2764 = vadd.f32 %v589, %v2763
    %2765 = vdwg.mxu0
    %2766 = vmatpush.bf16.msra.mxu0 %v1976
    %2767 = vmatpush.bf16.msra.mxu0 %v1969
    %2768 = vmatpush.bf16.msra.mxu0 %v1962
    %2769 = vmatpush.bf16.msra.mxu0 %v1955
    %2770 = vmatpush.bf16.msra.mxu0 %v1948
    %2771 = vmatpush.bf16.msra.mxu0 %v1941
    %2772 = vmatpush.bf16.msra.mxu0 %v1934
    %2773 = vmatpush.bf16.msra.mxu0 %v1927
    %2774 = vmatmul.bf16.gmra.mxu0 %v625
    %v2775 = vpop.f32.mrf.mxu0
    %v2776 = vadd.f32 %v2762, %v2775
    %v2777 = vpop.f32.mrf.mxu0
    %v2778 = vadd.f32 %v2764, %v2777
    %2779 = vdwg.mxu0
    %2780 = vmatpush.bf16.msra.mxu0 %v2032
    %2781 = vmatpush.bf16.msra.mxu0 %v2025
    %2782 = vmatpush.bf16.msra.mxu0 %v2018
    %2783 = vmatpush.bf16.msra.mxu0 %v2011
    %2784 = vmatpush.bf16.msra.mxu0 %v2004
    %2785 = vmatpush.bf16.msra.mxu0 %v1997
    %2786 = vmatpush.bf16.msra.mxu0 %v1990
    %2787 = vmatpush.bf16.msra.mxu0 %v1983
    %2788 = vmatmul.bf16.gmra.mxu0 %v626
    %v2789 = vpop.f32.mrf.mxu0
    %v2790 = vadd.f32 %v2776, %v2789
    %v2791 = vpop.f32.mrf.mxu0
    %v2792 = vadd.f32 %v2778, %v2791
    %2793 = vdwg.mxu0
    %2794 = vmatpush.bf16.msra.mxu0 %v2088
    %2795 = vmatpush.bf16.msra.mxu0 %v2081
    %2796 = vmatpush.bf16.msra.mxu0 %v2074
    %2797 = vmatpush.bf16.msra.mxu0 %v2067
    %2798 = vmatpush.bf16.msra.mxu0 %v2060
    %2799 = vmatpush.bf16.msra.mxu0 %v2053
    %2800 = vmatpush.bf16.msra.mxu0 %v2046
    %2801 = vmatpush.bf16.msra.mxu0 %v2039
    %2802 = vmatmul.bf16.gmra.mxu0 %v627
    %v2803 = vpop.f32.mrf.mxu0
    %v2804 = vadd.f32 %v2790, %v2803
    %v2805 = vpop.f32.mrf.mxu0
    %v2806 = vadd.f32 %v2792, %v2805
    %2807 = vdwg.mxu0
    %2808 = vmatpush.bf16.msra.mxu0 %v2144
    %2809 = vmatpush.bf16.msra.mxu0 %v2137
    %2810 = vmatpush.bf16.msra.mxu0 %v2130
    %2811 = vmatpush.bf16.msra.mxu0 %v2123
    %2812 = vmatpush.bf16.msra.mxu0 %v2116
    %2813 = vmatpush.bf16.msra.mxu0 %v2109
    %2814 = vmatpush.bf16.msra.mxu0 %v2102
    %2815 = vmatpush.bf16.msra.mxu0 %v2095
    %2816 = vmatmul.bf16.gmra.mxu0 %v628
    %v2817 = vpop.f32.mrf.mxu0
    %v2818 = vadd.f32 %v2804, %v2817
    %v2819 = vpop.f32.mrf.mxu0
    %v2820 = vadd.f32 %v2806, %v2819
    %2821 = vdwg.mxu0
    %2822 = vmatpush.bf16.msra.mxu0 %v2200
    %2823 = vmatpush.bf16.msra.mxu0 %v2193
    %2824 = vmatpush.bf16.msra.mxu0 %v2186
    %2825 = vmatpush.bf16.msra.mxu0 %v2179
    %2826 = vmatpush.bf16.msra.mxu0 %v2172
    %2827 = vmatpush.bf16.msra.mxu0 %v2165
    %2828 = vmatpush.bf16.msra.mxu0 %v2158
    %2829 = vmatpush.bf16.msra.mxu0 %v2151
    %2830 = vmatmul.bf16.gmra.mxu0 %v629
    %v2831 = vpop.f32.mrf.mxu0
    %v2832 = vadd.f32 %v2818, %v2831
    %v2833 = vpop.f32.mrf.mxu0
    %v2834 = vadd.f32 %v2820, %v2833
    %2835 = vdwg.mxu0
    %2836 = vmatpush.bf16.msra.mxu0 %v2256
    %2837 = vmatpush.bf16.msra.mxu0 %v2249
    %2838 = vmatpush.bf16.msra.mxu0 %v2242
    %2839 = vmatpush.bf16.msra.mxu0 %v2235
    %2840 = vmatpush.bf16.msra.mxu0 %v2228
    %2841 = vmatpush.bf16.msra.mxu0 %v2221
    %2842 = vmatpush.bf16.msra.mxu0 %v2214
    %2843 = vmatpush.bf16.msra.mxu0 %v2207
    %2844 = vmatmul.bf16.gmra.mxu0 %v630
    %v2845 = vpop.f32.mrf.mxu0
    %v2846 = vadd.f32 %v2832, %v2845
    %v2847 = vpop.f32.mrf.mxu0
    %v2848 = vadd.f32 %v2834, %v2847
    %2849 = vdwg.mxu0
    %2850 = vmatpush.bf16.msra.mxu0 %v1921
    %2851 = vmatpush.bf16.msra.mxu0 %v1914
    %2852 = vmatpush.bf16.msra.mxu0 %v1907
    %2853 = vmatpush.bf16.msra.mxu0 %v1900
    %2854 = vmatpush.bf16.msra.mxu0 %v1893
    %2855 = vmatpush.bf16.msra.mxu0 %v1886
    %2856 = vmatpush.bf16.msra.mxu0 %v1879
    %2857 = vmatpush.bf16.msra.mxu0 %v1872
    %2858 = vmatmul.bf16.gmra.mxu0 %v624
    %v2859 = vpop.f32.mrf.mxu0
    %v2860 = vadd.f32 %v590, %v2859
    %v2861 = vpop.f32.mrf.mxu0
    %v2862 = vadd.f32 %v590, %v2861
    %2863 = vdwg.mxu0
    %2864 = vmatpush.bf16.msra.mxu0 %v1977
    %2865 = vmatpush.bf16.msra.mxu0 %v1970
    %2866 = vmatpush.bf16.msra.mxu0 %v1963
    %2867 = vmatpush.bf16.msra.mxu0 %v1956
    %2868 = vmatpush.bf16.msra.mxu0 %v1949
    %2869 = vmatpush.bf16.msra.mxu0 %v1942
    %2870 = vmatpush.bf16.msra.mxu0 %v1935
    %2871 = vmatpush.bf16.msra.mxu0 %v1928
    %2872 = vmatmul.bf16.gmra.mxu0 %v625
    %v2873 = vpop.f32.mrf.mxu0
    %v2874 = vadd.f32 %v2860, %v2873
    %v2875 = vpop.f32.mrf.mxu0
    %v2876 = vadd.f32 %v2862, %v2875
    %2877 = vdwg.mxu0
    %2878 = vmatpush.bf16.msra.mxu0 %v2033
    %2879 = vmatpush.bf16.msra.mxu0 %v2026
    %2880 = vmatpush.bf16.msra.mxu0 %v2019
    %2881 = vmatpush.bf16.msra.mxu0 %v2012
    %2882 = vmatpush.bf16.msra.mxu0 %v2005
    %2883 = vmatpush.bf16.msra.mxu0 %v1998
    %2884 = vmatpush.bf16.msra.mxu0 %v1991
    %2885 = vmatpush.bf16.msra.mxu0 %v1984
    %2886 = vmatmul.bf16.gmra.mxu0 %v626
    %v2887 = vpop.f32.mrf.mxu0
    %v2888 = vadd.f32 %v2874, %v2887
    %v2889 = vpop.f32.mrf.mxu0
    %v2890 = vadd.f32 %v2876, %v2889
    %2891 = vdwg.mxu0
    %2892 = vmatpush.bf16.msra.mxu0 %v2089
    %2893 = vmatpush.bf16.msra.mxu0 %v2082
    %2894 = vmatpush.bf16.msra.mxu0 %v2075
    %2895 = vmatpush.bf16.msra.mxu0 %v2068
    %2896 = vmatpush.bf16.msra.mxu0 %v2061
    %2897 = vmatpush.bf16.msra.mxu0 %v2054
    %2898 = vmatpush.bf16.msra.mxu0 %v2047
    %2899 = vmatpush.bf16.msra.mxu0 %v2040
    %2900 = vmatmul.bf16.gmra.mxu0 %v627
    %v2901 = vpop.f32.mrf.mxu0
    %v2902 = vadd.f32 %v2888, %v2901
    %v2903 = vpop.f32.mrf.mxu0
    %v2904 = vadd.f32 %v2890, %v2903
    %2905 = vdwg.mxu0
    %2906 = vmatpush.bf16.msra.mxu0 %v2145
    %2907 = vmatpush.bf16.msra.mxu0 %v2138
    %2908 = vmatpush.bf16.msra.mxu0 %v2131
    %2909 = vmatpush.bf16.msra.mxu0 %v2124
    %2910 = vmatpush.bf16.msra.mxu0 %v2117
    %2911 = vmatpush.bf16.msra.mxu0 %v2110
    %2912 = vmatpush.bf16.msra.mxu0 %v2103
    %2913 = vmatpush.bf16.msra.mxu0 %v2096
    %2914 = vmatmul.bf16.gmra.mxu0 %v628
    %v2915 = vpop.f32.mrf.mxu0
    %v2916 = vadd.f32 %v2902, %v2915
    %v2917 = vpop.f32.mrf.mxu0
    %v2918 = vadd.f32 %v2904, %v2917
    %2919 = vdwg.mxu0
    %2920 = vmatpush.bf16.msra.mxu0 %v2201
    %2921 = vmatpush.bf16.msra.mxu0 %v2194
    %2922 = vmatpush.bf16.msra.mxu0 %v2187
    %2923 = vmatpush.bf16.msra.mxu0 %v2180
    %2924 = vmatpush.bf16.msra.mxu0 %v2173
    %2925 = vmatpush.bf16.msra.mxu0 %v2166
    %2926 = vmatpush.bf16.msra.mxu0 %v2159
    %2927 = vmatpush.bf16.msra.mxu0 %v2152
    %2928 = vmatmul.bf16.gmra.mxu0 %v629
    %v2929 = vpop.f32.mrf.mxu0
    %v2930 = vadd.f32 %v2916, %v2929
    %v2931 = vpop.f32.mrf.mxu0
    %v2932 = vadd.f32 %v2918, %v2931
    %2933 = vdwg.mxu0
    %2934 = vmatpush.bf16.msra.mxu0 %v2257
    %2935 = vmatpush.bf16.msra.mxu0 %v2250
    %2936 = vmatpush.bf16.msra.mxu0 %v2243
    %2937 = vmatpush.bf16.msra.mxu0 %v2236
    %2938 = vmatpush.bf16.msra.mxu0 %v2229
    %2939 = vmatpush.bf16.msra.mxu0 %v2222
    %2940 = vmatpush.bf16.msra.mxu0 %v2215
    %2941 = vmatpush.bf16.msra.mxu0 %v2208
    %2942 = vmatmul.bf16.gmra.mxu0 %v630
    %v2943 = vpop.f32.mrf.mxu0
    %v2944 = vadd.f32 %v2930, %v2943
    %v2945 = vpop.f32.mrf.mxu0
    %v2946 = vadd.f32 %v2932, %v2945
    %2947 = vdwg.mxu0
    %2948 = vmatpush.bf16.msra.mxu0 %v1922
    %2949 = vmatpush.bf16.msra.mxu0 %v1915
    %2950 = vmatpush.bf16.msra.mxu0 %v1908
    %2951 = vmatpush.bf16.msra.mxu0 %v1901
    %2952 = vmatpush.bf16.msra.mxu0 %v1894
    %2953 = vmatpush.bf16.msra.mxu0 %v1887
    %2954 = vmatpush.bf16.msra.mxu0 %v1880
    %2955 = vmatpush.bf16.msra.mxu0 %v1873
    %2956 = vmatmul.bf16.gmra.mxu0 %v624
    %v2957 = vpop.f32.mrf.mxu0
    %v2958 = vadd.f32 %v591, %v2957
    %v2959 = vpop.f32.mrf.mxu0
    %v2960 = vadd.f32 %v591, %v2959
    %2961 = vdwg.mxu0
    %2962 = vmatpush.bf16.msra.mxu0 %v1978
    %2963 = vmatpush.bf16.msra.mxu0 %v1971
    %2964 = vmatpush.bf16.msra.mxu0 %v1964
    %2965 = vmatpush.bf16.msra.mxu0 %v1957
    %2966 = vmatpush.bf16.msra.mxu0 %v1950
    %2967 = vmatpush.bf16.msra.mxu0 %v1943
    %2968 = vmatpush.bf16.msra.mxu0 %v1936
    %2969 = vmatpush.bf16.msra.mxu0 %v1929
    %2970 = vmatmul.bf16.gmra.mxu0 %v625
    %v2971 = vpop.f32.mrf.mxu0
    %v2972 = vadd.f32 %v2958, %v2971
    %v2973 = vpop.f32.mrf.mxu0
    %v2974 = vadd.f32 %v2960, %v2973
    %2975 = vdwg.mxu0
    %2976 = vmatpush.bf16.msra.mxu0 %v2034
    %2977 = vmatpush.bf16.msra.mxu0 %v2027
    %2978 = vmatpush.bf16.msra.mxu0 %v2020
    %2979 = vmatpush.bf16.msra.mxu0 %v2013
    %2980 = vmatpush.bf16.msra.mxu0 %v2006
    %2981 = vmatpush.bf16.msra.mxu0 %v1999
    %2982 = vmatpush.bf16.msra.mxu0 %v1992
    %2983 = vmatpush.bf16.msra.mxu0 %v1985
    %2984 = vmatmul.bf16.gmra.mxu0 %v626
    %v2985 = vpop.f32.mrf.mxu0
    %v2986 = vadd.f32 %v2972, %v2985
    %v2987 = vpop.f32.mrf.mxu0
    %v2988 = vadd.f32 %v2974, %v2987
    %2989 = vdwg.mxu0
    %2990 = vmatpush.bf16.msra.mxu0 %v2090
    %2991 = vmatpush.bf16.msra.mxu0 %v2083
    %2992 = vmatpush.bf16.msra.mxu0 %v2076
    %2993 = vmatpush.bf16.msra.mxu0 %v2069
    %2994 = vmatpush.bf16.msra.mxu0 %v2062
    %2995 = vmatpush.bf16.msra.mxu0 %v2055
    %2996 = vmatpush.bf16.msra.mxu0 %v2048
    %2997 = vmatpush.bf16.msra.mxu0 %v2041
    %2998 = vmatmul.bf16.gmra.mxu0 %v627
    %v2999 = vpop.f32.mrf.mxu0
    %v3000 = vadd.f32 %v2986, %v2999
    %v3001 = vpop.f32.mrf.mxu0
    %v3002 = vadd.f32 %v2988, %v3001
    %3003 = vdwg.mxu0
    %3004 = vmatpush.bf16.msra.mxu0 %v2146
    %3005 = vmatpush.bf16.msra.mxu0 %v2139
    %3006 = vmatpush.bf16.msra.mxu0 %v2132
    %3007 = vmatpush.bf16.msra.mxu0 %v2125
    %3008 = vmatpush.bf16.msra.mxu0 %v2118
    %3009 = vmatpush.bf16.msra.mxu0 %v2111
    %3010 = vmatpush.bf16.msra.mxu0 %v2104
    %3011 = vmatpush.bf16.msra.mxu0 %v2097
    %3012 = vmatmul.bf16.gmra.mxu0 %v628
    %v3013 = vpop.f32.mrf.mxu0
    %v3014 = vadd.f32 %v3000, %v3013
    %v3015 = vpop.f32.mrf.mxu0
    %v3016 = vadd.f32 %v3002, %v3015
    %3017 = vdwg.mxu0
    %3018 = vmatpush.bf16.msra.mxu0 %v2202
    %3019 = vmatpush.bf16.msra.mxu0 %v2195
    %3020 = vmatpush.bf16.msra.mxu0 %v2188
    %3021 = vmatpush.bf16.msra.mxu0 %v2181
    %3022 = vmatpush.bf16.msra.mxu0 %v2174
    %3023 = vmatpush.bf16.msra.mxu0 %v2167
    %3024 = vmatpush.bf16.msra.mxu0 %v2160
    %3025 = vmatpush.bf16.msra.mxu0 %v2153
    %3026 = vmatmul.bf16.gmra.mxu0 %v629
    %v3027 = vpop.f32.mrf.mxu0
    %v3028 = vadd.f32 %v3014, %v3027
    %v3029 = vpop.f32.mrf.mxu0
    %v3030 = vadd.f32 %v3016, %v3029
    %3031 = vdwg.mxu0
    %3032 = vmatpush.bf16.msra.mxu0 %v2258
    %3033 = vmatpush.bf16.msra.mxu0 %v2251
    %3034 = vmatpush.bf16.msra.mxu0 %v2244
    %3035 = vmatpush.bf16.msra.mxu0 %v2237
    %3036 = vmatpush.bf16.msra.mxu0 %v2230
    %3037 = vmatpush.bf16.msra.mxu0 %v2223
    %3038 = vmatpush.bf16.msra.mxu0 %v2216
    %3039 = vmatpush.bf16.msra.mxu0 %v2209
    %3040 = vmatmul.bf16.gmra.mxu0 %v630
    %v3041 = vpop.f32.mrf.mxu0
    %v3042 = vadd.f32 %v3028, %v3041
    %v3043 = vpop.f32.mrf.mxu0
    %v3044 = vadd.f32 %v3030, %v3043
    %3045 = vdwg.mxu0
    %3046 = vmatpush.bf16.msra.mxu0 %v1923
    %3047 = vmatpush.bf16.msra.mxu0 %v1916
    %3048 = vmatpush.bf16.msra.mxu0 %v1909
    %3049 = vmatpush.bf16.msra.mxu0 %v1902
    %3050 = vmatpush.bf16.msra.mxu0 %v1895
    %3051 = vmatpush.bf16.msra.mxu0 %v1888
    %3052 = vmatpush.bf16.msra.mxu0 %v1881
    %3053 = vmatpush.bf16.msra.mxu0 %v1874
    %3054 = vmatmul.bf16.gmra.mxu0 %v624
    %v3055 = vpop.f32.mrf.mxu0
    %v3056 = vadd.f32 %v592, %v3055
    %v3057 = vpop.f32.mrf.mxu0
    %v3058 = vadd.f32 %v592, %v3057
    %3059 = vdwg.mxu0
    %3060 = vmatpush.bf16.msra.mxu0 %v1979
    %3061 = vmatpush.bf16.msra.mxu0 %v1972
    %3062 = vmatpush.bf16.msra.mxu0 %v1965
    %3063 = vmatpush.bf16.msra.mxu0 %v1958
    %3064 = vmatpush.bf16.msra.mxu0 %v1951
    %3065 = vmatpush.bf16.msra.mxu0 %v1944
    %3066 = vmatpush.bf16.msra.mxu0 %v1937
    %3067 = vmatpush.bf16.msra.mxu0 %v1930
    %3068 = vmatmul.bf16.gmra.mxu0 %v625
    %v3069 = vpop.f32.mrf.mxu0
    %v3070 = vadd.f32 %v3056, %v3069
    %v3071 = vpop.f32.mrf.mxu0
    %v3072 = vadd.f32 %v3058, %v3071
    %3073 = vdwg.mxu0
    %3074 = vmatpush.bf16.msra.mxu0 %v2035
    %3075 = vmatpush.bf16.msra.mxu0 %v2028
    %3076 = vmatpush.bf16.msra.mxu0 %v2021
    %3077 = vmatpush.bf16.msra.mxu0 %v2014
    %3078 = vmatpush.bf16.msra.mxu0 %v2007
    %3079 = vmatpush.bf16.msra.mxu0 %v2000
    %3080 = vmatpush.bf16.msra.mxu0 %v1993
    %3081 = vmatpush.bf16.msra.mxu0 %v1986
    %3082 = vmatmul.bf16.gmra.mxu0 %v626
    %v3083 = vpop.f32.mrf.mxu0
    %v3084 = vadd.f32 %v3070, %v3083
    %v3085 = vpop.f32.mrf.mxu0
    %v3086 = vadd.f32 %v3072, %v3085
    %3087 = vdwg.mxu0
    %3088 = vmatpush.bf16.msra.mxu0 %v2091
    %3089 = vmatpush.bf16.msra.mxu0 %v2084
    %3090 = vmatpush.bf16.msra.mxu0 %v2077
    %3091 = vmatpush.bf16.msra.mxu0 %v2070
    %3092 = vmatpush.bf16.msra.mxu0 %v2063
    %3093 = vmatpush.bf16.msra.mxu0 %v2056
    %3094 = vmatpush.bf16.msra.mxu0 %v2049
    %3095 = vmatpush.bf16.msra.mxu0 %v2042
    %3096 = vmatmul.bf16.gmra.mxu0 %v627
    %v3097 = vpop.f32.mrf.mxu0
    %v3098 = vadd.f32 %v3084, %v3097
    %v3099 = vpop.f32.mrf.mxu0
    %v3100 = vadd.f32 %v3086, %v3099
    %3101 = vdwg.mxu0
    %3102 = vmatpush.bf16.msra.mxu0 %v2147
    %3103 = vmatpush.bf16.msra.mxu0 %v2140
    %3104 = vmatpush.bf16.msra.mxu0 %v2133
    %3105 = vmatpush.bf16.msra.mxu0 %v2126
    %3106 = vmatpush.bf16.msra.mxu0 %v2119
    %3107 = vmatpush.bf16.msra.mxu0 %v2112
    %3108 = vmatpush.bf16.msra.mxu0 %v2105
    %3109 = vmatpush.bf16.msra.mxu0 %v2098
    %3110 = vmatmul.bf16.gmra.mxu0 %v628
    %v3111 = vpop.f32.mrf.mxu0
    %v3112 = vadd.f32 %v3098, %v3111
    %v3113 = vpop.f32.mrf.mxu0
    %v3114 = vadd.f32 %v3100, %v3113
    %3115 = vdwg.mxu0
    %3116 = vmatpush.bf16.msra.mxu0 %v2203
    %3117 = vmatpush.bf16.msra.mxu0 %v2196
    %3118 = vmatpush.bf16.msra.mxu0 %v2189
    %3119 = vmatpush.bf16.msra.mxu0 %v2182
    %3120 = vmatpush.bf16.msra.mxu0 %v2175
    %3121 = vmatpush.bf16.msra.mxu0 %v2168
    %3122 = vmatpush.bf16.msra.mxu0 %v2161
    %3123 = vmatpush.bf16.msra.mxu0 %v2154
    %3124 = vmatmul.bf16.gmra.mxu0 %v629
    %v3125 = vpop.f32.mrf.mxu0
    %v3126 = vadd.f32 %v3112, %v3125
    %v3127 = vpop.f32.mrf.mxu0
    %v3128 = vadd.f32 %v3114, %v3127
    %3129 = vdwg.mxu0
    %3130 = vmatpush.bf16.msra.mxu0 %v2259
    %3131 = vmatpush.bf16.msra.mxu0 %v2252
    %3132 = vmatpush.bf16.msra.mxu0 %v2245
    %3133 = vmatpush.bf16.msra.mxu0 %v2238
    %3134 = vmatpush.bf16.msra.mxu0 %v2231
    %3135 = vmatpush.bf16.msra.mxu0 %v2224
    %3136 = vmatpush.bf16.msra.mxu0 %v2217
    %3137 = vmatpush.bf16.msra.mxu0 %v2210
    %3138 = vmatmul.bf16.gmra.mxu0 %v630
    %v3139 = vpop.f32.mrf.mxu0
    %v3140 = vadd.f32 %v3126, %v3139
    %v3141 = vpop.f32.mrf.mxu0
    %v3142 = vadd.f32 %v3128, %v3141
    %3143 = vdwg.mxu0
    %3144 = vmatpush.bf16.msra.mxu0 %v1924
    %3145 = vmatpush.bf16.msra.mxu0 %v1917
    %3146 = vmatpush.bf16.msra.mxu0 %v1910
    %3147 = vmatpush.bf16.msra.mxu0 %v1903
    %3148 = vmatpush.bf16.msra.mxu0 %v1896
    %3149 = vmatpush.bf16.msra.mxu0 %v1889
    %3150 = vmatpush.bf16.msra.mxu0 %v1882
    %3151 = vmatpush.bf16.msra.mxu0 %v1875
    %3152 = vmatmul.bf16.gmra.mxu0 %v624
    %v3153 = vpop.f32.mrf.mxu0
    %v3154 = vadd.f32 %v593, %v3153
    %v3155 = vpop.f32.mrf.mxu0
    %v3156 = vadd.f32 %v593, %v3155
    %3157 = vdwg.mxu0
    %3158 = vmatpush.bf16.msra.mxu0 %v1980
    %3159 = vmatpush.bf16.msra.mxu0 %v1973
    %3160 = vmatpush.bf16.msra.mxu0 %v1966
    %3161 = vmatpush.bf16.msra.mxu0 %v1959
    %3162 = vmatpush.bf16.msra.mxu0 %v1952
    %3163 = vmatpush.bf16.msra.mxu0 %v1945
    %3164 = vmatpush.bf16.msra.mxu0 %v1938
    %3165 = vmatpush.bf16.msra.mxu0 %v1931
    %3166 = vmatmul.bf16.gmra.mxu0 %v625
    %v3167 = vpop.f32.mrf.mxu0
    %v3168 = vadd.f32 %v3154, %v3167
    %v3169 = vpop.f32.mrf.mxu0
    %v3170 = vadd.f32 %v3156, %v3169
    %3171 = vdwg.mxu0
    %3172 = vmatpush.bf16.msra.mxu0 %v2036
    %3173 = vmatpush.bf16.msra.mxu0 %v2029
    %3174 = vmatpush.bf16.msra.mxu0 %v2022
    %3175 = vmatpush.bf16.msra.mxu0 %v2015
    %3176 = vmatpush.bf16.msra.mxu0 %v2008
    %3177 = vmatpush.bf16.msra.mxu0 %v2001
    %3178 = vmatpush.bf16.msra.mxu0 %v1994
    %3179 = vmatpush.bf16.msra.mxu0 %v1987
    %3180 = vmatmul.bf16.gmra.mxu0 %v626
    %v3181 = vpop.f32.mrf.mxu0
    %v3182 = vadd.f32 %v3168, %v3181
    %v3183 = vpop.f32.mrf.mxu0
    %v3184 = vadd.f32 %v3170, %v3183
    %3185 = vdwg.mxu0
    %3186 = vmatpush.bf16.msra.mxu0 %v2092
    %3187 = vmatpush.bf16.msra.mxu0 %v2085
    %3188 = vmatpush.bf16.msra.mxu0 %v2078
    %3189 = vmatpush.bf16.msra.mxu0 %v2071
    %3190 = vmatpush.bf16.msra.mxu0 %v2064
    %3191 = vmatpush.bf16.msra.mxu0 %v2057
    %3192 = vmatpush.bf16.msra.mxu0 %v2050
    %3193 = vmatpush.bf16.msra.mxu0 %v2043
    %3194 = vmatmul.bf16.gmra.mxu0 %v627
    %v3195 = vpop.f32.mrf.mxu0
    %v3196 = vadd.f32 %v3182, %v3195
    %v3197 = vpop.f32.mrf.mxu0
    %v3198 = vadd.f32 %v3184, %v3197
    %3199 = vdwg.mxu0
    %3200 = vmatpush.bf16.msra.mxu0 %v2148
    %3201 = vmatpush.bf16.msra.mxu0 %v2141
    %3202 = vmatpush.bf16.msra.mxu0 %v2134
    %3203 = vmatpush.bf16.msra.mxu0 %v2127
    %3204 = vmatpush.bf16.msra.mxu0 %v2120
    %3205 = vmatpush.bf16.msra.mxu0 %v2113
    %3206 = vmatpush.bf16.msra.mxu0 %v2106
    %3207 = vmatpush.bf16.msra.mxu0 %v2099
    %3208 = vmatmul.bf16.gmra.mxu0 %v628
    %v3209 = vpop.f32.mrf.mxu0
    %v3210 = vadd.f32 %v3196, %v3209
    %v3211 = vpop.f32.mrf.mxu0
    %v3212 = vadd.f32 %v3198, %v3211
    %3213 = vdwg.mxu0
    %3214 = vmatpush.bf16.msra.mxu0 %v2204
    %3215 = vmatpush.bf16.msra.mxu0 %v2197
    %3216 = vmatpush.bf16.msra.mxu0 %v2190
    %3217 = vmatpush.bf16.msra.mxu0 %v2183
    %3218 = vmatpush.bf16.msra.mxu0 %v2176
    %3219 = vmatpush.bf16.msra.mxu0 %v2169
    %3220 = vmatpush.bf16.msra.mxu0 %v2162
    %3221 = vmatpush.bf16.msra.mxu0 %v2155
    %3222 = vmatmul.bf16.gmra.mxu0 %v629
    %v3223 = vpop.f32.mrf.mxu0
    %v3224 = vadd.f32 %v3210, %v3223
    %v3225 = vpop.f32.mrf.mxu0
    %v3226 = vadd.f32 %v3212, %v3225
    %3227 = vdwg.mxu0
    %3228 = vmatpush.bf16.msra.mxu0 %v2260
    %3229 = vmatpush.bf16.msra.mxu0 %v2253
    %3230 = vmatpush.bf16.msra.mxu0 %v2246
    %3231 = vmatpush.bf16.msra.mxu0 %v2239
    %3232 = vmatpush.bf16.msra.mxu0 %v2232
    %3233 = vmatpush.bf16.msra.mxu0 %v2225
    %3234 = vmatpush.bf16.msra.mxu0 %v2218
    %3235 = vmatpush.bf16.msra.mxu0 %v2211
    %3236 = vmatmul.bf16.gmra.mxu0 %v630
    %v3237 = vpop.f32.mrf.mxu0
    %v3238 = vadd.f32 %v3224, %v3237
    %v3239 = vpop.f32.mrf.mxu0
    %v3240 = vadd.f32 %v3226, %v3239
    %3241 = vdwg.mxu0
    %3242 = vmatpush.bf16.msra.mxu0 %v1925
    %3243 = vmatpush.bf16.msra.mxu0 %v1918
    %3244 = vmatpush.bf16.msra.mxu0 %v1911
    %3245 = vmatpush.bf16.msra.mxu0 %v1904
    %3246 = vmatpush.bf16.msra.mxu0 %v1897
    %3247 = vmatpush.bf16.msra.mxu0 %v1890
    %3248 = vmatpush.bf16.msra.mxu0 %v1883
    %3249 = vmatpush.bf16.msra.mxu0 %v1876
    %3250 = vmatmul.bf16.gmra.mxu0 %v624
    %v3251 = vpop.f32.mrf.mxu0
    %v3252 = vadd.f32 %v594, %v3251
    %v3253 = vpop.f32.mrf.mxu0
    %v3254 = vadd.f32 %v594, %v3253
    %3255 = vdwg.mxu0
    %3256 = vmatpush.bf16.msra.mxu0 %v1981
    %3257 = vmatpush.bf16.msra.mxu0 %v1974
    %3258 = vmatpush.bf16.msra.mxu0 %v1967
    %3259 = vmatpush.bf16.msra.mxu0 %v1960
    %3260 = vmatpush.bf16.msra.mxu0 %v1953
    %3261 = vmatpush.bf16.msra.mxu0 %v1946
    %3262 = vmatpush.bf16.msra.mxu0 %v1939
    %3263 = vmatpush.bf16.msra.mxu0 %v1932
    %3264 = vmatmul.bf16.gmra.mxu0 %v625
    %v3265 = vpop.f32.mrf.mxu0
    %v3266 = vadd.f32 %v3252, %v3265
    %v3267 = vpop.f32.mrf.mxu0
    %v3268 = vadd.f32 %v3254, %v3267
    %3269 = vdwg.mxu0
    %3270 = vmatpush.bf16.msra.mxu0 %v2037
    %3271 = vmatpush.bf16.msra.mxu0 %v2030
    %3272 = vmatpush.bf16.msra.mxu0 %v2023
    %3273 = vmatpush.bf16.msra.mxu0 %v2016
    %3274 = vmatpush.bf16.msra.mxu0 %v2009
    %3275 = vmatpush.bf16.msra.mxu0 %v2002
    %3276 = vmatpush.bf16.msra.mxu0 %v1995
    %3277 = vmatpush.bf16.msra.mxu0 %v1988
    %3278 = vmatmul.bf16.gmra.mxu0 %v626
    %v3279 = vpop.f32.mrf.mxu0
    %v3280 = vadd.f32 %v3266, %v3279
    %v3281 = vpop.f32.mrf.mxu0
    %v3282 = vadd.f32 %v3268, %v3281
    %3283 = vdwg.mxu0
    %3284 = vmatpush.bf16.msra.mxu0 %v2093
    %3285 = vmatpush.bf16.msra.mxu0 %v2086
    %3286 = vmatpush.bf16.msra.mxu0 %v2079
    %3287 = vmatpush.bf16.msra.mxu0 %v2072
    %3288 = vmatpush.bf16.msra.mxu0 %v2065
    %3289 = vmatpush.bf16.msra.mxu0 %v2058
    %3290 = vmatpush.bf16.msra.mxu0 %v2051
    %3291 = vmatpush.bf16.msra.mxu0 %v2044
    %3292 = vmatmul.bf16.gmra.mxu0 %v627
    %v3293 = vpop.f32.mrf.mxu0
    %v3294 = vadd.f32 %v3280, %v3293
    %v3295 = vpop.f32.mrf.mxu0
    %v3296 = vadd.f32 %v3282, %v3295
    %3297 = vdwg.mxu0
    %3298 = vmatpush.bf16.msra.mxu0 %v2149
    %3299 = vmatpush.bf16.msra.mxu0 %v2142
    %3300 = vmatpush.bf16.msra.mxu0 %v2135
    %3301 = vmatpush.bf16.msra.mxu0 %v2128
    %3302 = vmatpush.bf16.msra.mxu0 %v2121
    %3303 = vmatpush.bf16.msra.mxu0 %v2114
    %3304 = vmatpush.bf16.msra.mxu0 %v2107
    %3305 = vmatpush.bf16.msra.mxu0 %v2100
    %3306 = vmatmul.bf16.gmra.mxu0 %v628
    %v3307 = vpop.f32.mrf.mxu0
    %v3308 = vadd.f32 %v3294, %v3307
    %v3309 = vpop.f32.mrf.mxu0
    %v3310 = vadd.f32 %v3296, %v3309
    %3311 = vdwg.mxu0
    %3312 = vmatpush.bf16.msra.mxu0 %v2205
    %3313 = vmatpush.bf16.msra.mxu0 %v2198
    %3314 = vmatpush.bf16.msra.mxu0 %v2191
    %3315 = vmatpush.bf16.msra.mxu0 %v2184
    %3316 = vmatpush.bf16.msra.mxu0 %v2177
    %3317 = vmatpush.bf16.msra.mxu0 %v2170
    %3318 = vmatpush.bf16.msra.mxu0 %v2163
    %3319 = vmatpush.bf16.msra.mxu0 %v2156
    %3320 = vmatmul.bf16.gmra.mxu0 %v629
    %v3321 = vpop.f32.mrf.mxu0
    %v3322 = vadd.f32 %v3308, %v3321
    %v3323 = vpop.f32.mrf.mxu0
    %v3324 = vadd.f32 %v3310, %v3323
    %3325 = vdwg.mxu0
    %3326 = vmatpush.bf16.msra.mxu0 %v2261
    %3327 = vmatpush.bf16.msra.mxu0 %v2254
    %3328 = vmatpush.bf16.msra.mxu0 %v2247
    %3329 = vmatpush.bf16.msra.mxu0 %v2240
    %3330 = vmatpush.bf16.msra.mxu0 %v2233
    %3331 = vmatpush.bf16.msra.mxu0 %v2226
    %3332 = vmatpush.bf16.msra.mxu0 %v2219
    %3333 = vmatpush.bf16.msra.mxu0 %v2212
    %3334 = vmatmul.bf16.gmra.mxu0 %v630
    %v3335 = vpop.f32.mrf.mxu0
    %v3336 = vadd.f32 %v3322, %v3335
    %v3337 = vpop.f32.mrf.mxu0
    %v3338 = vadd.f32 %v3324, %v3337
    %3339 = vdwg.mxu0
    %v3340 = vmax.f32 %v2748, 0.0
    %v3341 = vmax.f32 %v2846, 0.0
    %v3342 = vmax.f32 %v2944, 0.0
    %v3343 = vmax.f32 %v3042, 0.0
    %v3344 = vmax.f32 %v3140, 0.0
    %v3345 = vmax.f32 %v3238, 0.0
    %v3346 = vmax.f32 %v3336, 0.0
    %v3347 = vmax.f32 %v2750, 0.0
    %v3348 = vmax.f32 %v2848, 0.0
    %v3349 = vmax.f32 %v2946, 0.0
    %v3350 = vmax.f32 %v3044, 0.0
    %v3351 = vmax.f32 %v3142, 0.0
    %v3352 = vmax.f32 %v3240, 0.0
    %v3353 = vmax.f32 %v3338, 0.0
    %v3354 = vpack.c.bf16 %v3347, %v3340
    %v3355 = vpack.c.bf16 %v3348, %v3341
    %v3356 = vpack.c.bf16 %v3349, %v3342
    %v3357 = vpack.c.bf16 %v3350, %v3343
    %v3358 = vpack.c.bf16 %v3351, %v3344
    %v3359 = vpack.c.bf16 %v3352, %v3345
    %v3360 = vpack.c.bf16 %v3353, %v3346
    %v3361 = vld [vmem:[#allocation8] sm:$0xff]
    %v3362 = vld [vmem:[#allocation8 + $0x8] sm:$0xff]
    %v3363 = vld [vmem:[#allocation8 + $0x10] sm:$0xff]
    %v3364 = vld [vmem:[#allocation8 + $0x18] sm:$0xf]
    %v3365 = vld [vmem:[#allocation8 + $0x1c] sm:$0xff]
    %v3366 = vld [vmem:[#allocation8 + $0x24] sm:$0xff]
    %v3367 = vld [vmem:[#allocation8 + $0x2c] sm:$0xff]
    %v3368 = vld [vmem:[#allocation8 + $0x34] sm:$0xf]
    %v3369 = vld [vmem:[#allocation8 + $0x38] sm:$0xff]
    %v3370 = vld [vmem:[#allocation8 + $0x40] sm:$0xff]
    %v3371 = vld [vmem:[#allocation8 + $0x48] sm:$0xff]
    %v3372 = vld [vmem:[#allocation8 + $0x50] sm:$0xf]
    %v3373 = vld [vmem:[#allocation8 + $0x54] sm:$0xff]
    %v3374 = vld [vmem:[#allocation8 + $0x5c] sm:$0xff]
    %v3375 = vld [vmem:[#allocation8 + $0x64] sm:$0xff]
    %v3376 = vld [vmem:[#allocation8 + $0x6c] sm:$0xf]
    %v3377 = vld [vmem:[#allocation8 + $0x70] sm:$0xff]
    %v3378 = vld [vmem:[#allocation8 + $0x78] sm:$0xff]
    %v3379 = vld [vmem:[#allocation8 + $0x80] sm:$0xff]
    %v3380 = vld [vmem:[#allocation8 + $0x88] sm:$0xf]
    %v3381 = vld [vmem:[#allocation8 + $0x8c] sm:$0xff]
    %v3382 = vld [vmem:[#allocation8 + $0x94] sm:$0xff]
    %v3383 = vld [vmem:[#allocation8 + $0x9c] sm:$0xff]
    %v3384 = vld [vmem:[#allocation8 + $0xa4] sm:$0xf]
    %v3385 = vld [vmem:[#allocation8 + $0xa8] sm:$0xff]
    %v3386 = vld [vmem:[#allocation8 + $0xb0] sm:$0xff]
    %v3387 = vld [vmem:[#allocation8 + $0xb8] sm:$0xff]
    %v3388 = vld [vmem:[#allocation8 + $0xc0] sm:$0xf]
    %v3389 = vld [vmem:[#allocation8 + $0xc4] sm:$0xff]
    %v3390 = vld [vmem:[#allocation8 + $0xcc] sm:$0xff]
    %v3391 = vld [vmem:[#allocation8 + $0xd4] sm:$0xff]
    %v3392 = vld [vmem:[#allocation8 + $0xdc] sm:$0xf]
    %v3393 = vld [vmem:[#allocation8 + $0xe0] sm:$0xff]
    %v3394 = vld [vmem:[#allocation8 + $0xe8] sm:$0xff]
    %v3395 = vld [vmem:[#allocation8 + $0xf0] sm:$0xff]
    %v3396 = vld [vmem:[#allocation8 + $0xf8] sm:$0xf]
    %v3397 = vld [vmem:[#allocation8 + $0xfc] sm:$0xff]
    %v3398 = vld [vmem:[#allocation8 + $0x104] sm:$0xff]
    %v3399 = vld [vmem:[#allocation8 + $0x10c] sm:$0xff]
    %v3400 = vld [vmem:[#allocation8 + $0x114] sm:$0xf]
    %v3401 = vld [vmem:[#allocation8 + $0x118] sm:$0xff]
    %v3402 = vld [vmem:[#allocation8 + $0x120] sm:$0xff]
    %v3403 = vld [vmem:[#allocation8 + $0x128] sm:$0xff]
    %v3404 = vld [vmem:[#allocation8 + $0x130] sm:$0xf]
    %v3405 = vld [vmem:[#allocation8 + $0x134] sm:$0xff]
    %v3406 = vld [vmem:[#allocation8 + $0x13c] sm:$0xff]
    %v3407 = vld [vmem:[#allocation8 + $0x144] sm:$0xff]
    %v3408 = vld [vmem:[#allocation8 + $0x14c] sm:$0xf]
    %v3409 = vld [vmem:[#allocation8 + $0x150] sm:$0xff]
    %v3410 = vld [vmem:[#allocation8 + $0x158] sm:$0xff]
    %v3411 = vld [vmem:[#allocation8 + $0x160] sm:$0xff]
    %v3412 = vld [vmem:[#allocation8 + $0x168] sm:$0xf]
    %v3413 = vld [vmem:[#allocation8 + $0x16c] sm:$0xff]
    %v3414 = vld [vmem:[#allocation8 + $0x174] sm:$0xff]
    %v3415 = vld [vmem:[#allocation8 + $0x17c] sm:$0xff]
    %v3416 = vld [vmem:[#allocation8 + $0x184] sm:$0xf]
    %v3417 = vld [vmem:[#allocation8 + $0x188] sm:$0xff]
    %v3418 = vld [vmem:[#allocation8 + $0x190] sm:$0xff]
    %v3419 = vld [vmem:[#allocation8 + $0x198] sm:$0xff]
    %v3420 = vld [vmem:[#allocation8 + $0x1a0] sm:$0xf]
    %v3421 = vld [vmem:[#allocation8 + $0x1a4] sm:$0xff]
    %v3422 = vld [vmem:[#allocation8 + $0x1ac] sm:$0xff]
    %v3423 = vld [vmem:[#allocation8 + $0x1b4] sm:$0xff]
    %v3424 = vld [vmem:[#allocation8 + $0x1bc] sm:$0xf]
    %v3425 = vld [vmem:[#allocation8 + $0x1c0] sm:$0xff]
    %v3426 = vld [vmem:[#allocation8 + $0x1c8] sm:$0xff]
    %v3427 = vld [vmem:[#allocation8 + $0x1d0] sm:$0xff]
    %v3428 = vld [vmem:[#allocation8 + $0x1d8] sm:$0xf]
    %v3429 = vld [vmem:[#allocation8 + $0x1dc] sm:$0xff]
    %v3430 = vld [vmem:[#allocation8 + $0x1e4] sm:$0xff]
    %v3431 = vld [vmem:[#allocation8 + $0x1ec] sm:$0xff]
    %v3432 = vld [vmem:[#allocation8 + $0x1f4] sm:$0xf]
    %v3433 = vld [vmem:[#allocation8 + $0x1f8] sm:$0xff]
    %v3434 = vld [vmem:[#allocation8 + $0x200] sm:$0xff]
    %v3435 = vld [vmem:[#allocation8 + $0x208] sm:$0xff]
    %v3436 = vld [vmem:[#allocation8 + $0x210] sm:$0xf]
    %v3437 = vld [vmem:[#allocation8 + $0x214] sm:$0xff]
    %v3438 = vld [vmem:[#allocation8 + $0x21c] sm:$0xff]
    %v3439 = vld [vmem:[#allocation8 + $0x224] sm:$0xff]
    %v3440 = vld [vmem:[#allocation8 + $0x22c] sm:$0xf]
    %v3441 = vld [vmem:[#allocation8 + $0x230] sm:$0xff]
    %v3442 = vld [vmem:[#allocation8 + $0x238] sm:$0xff]
    %v3443 = vld [vmem:[#allocation8 + $0x240] sm:$0xff]
    %v3444 = vld [vmem:[#allocation8 + $0x248] sm:$0xf]
    %v3445 = vld [vmem:[#allocation8 + $0x24c] sm:$0xff]
    %v3446 = vld [vmem:[#allocation8 + $0x254] sm:$0xff]
    %v3447 = vld [vmem:[#allocation8 + $0x25c] sm:$0xff]
    %v3448 = vld [vmem:[#allocation8 + $0x264] sm:$0xf]
    %v3449 = vld [vmem:[#allocation8 + $0x268] sm:$0xff]
    %v3450 = vld [vmem:[#allocation8 + $0x270] sm:$0xff]
    %v3451 = vld [vmem:[#allocation8 + $0x278] sm:$0xff]
    %v3452 = vld [vmem:[#allocation8 + $0x280] sm:$0xf]
    %v3453 = vld [vmem:[#allocation8 + $0x284] sm:$0xff]
    %v3454 = vld [vmem:[#allocation8 + $0x28c] sm:$0xff]
    %v3455 = vld [vmem:[#allocation8 + $0x294] sm:$0xff]
    %v3456 = vld [vmem:[#allocation8 + $0x29c] sm:$0xf]
    %v3457 = vld [vmem:[#allocation8 + $0x2a0] sm:$0xff]
    %v3458 = vld [vmem:[#allocation8 + $0x2a8] sm:$0xff]
    %v3459 = vld [vmem:[#allocation8 + $0x2b0] sm:$0xff]
    %v3460 = vld [vmem:[#allocation8 + $0x2b8] sm:$0xf]
    %v3461 = vld [vmem:[#allocation8 + $0x2bc] sm:$0xff]
    %v3462 = vld [vmem:[#allocation8 + $0x2c4] sm:$0xff]
    %v3463 = vld [vmem:[#allocation8 + $0x2cc] sm:$0xff]
    %v3464 = vld [vmem:[#allocation8 + $0x2d4] sm:$0xf]
    %v3465 = vld [vmem:[#allocation8 + $0x2d8] sm:$0xff]
    %v3466 = vld [vmem:[#allocation8 + $0x2e0] sm:$0xff]
    %v3467 = vld [vmem:[#allocation8 + $0x2e8] sm:$0xff]
    %v3468 = vld [vmem:[#allocation8 + $0x2f0] sm:$0xf]
    %v3469 = vld [vmem:[#allocation8 + $0x2f4] sm:$0xff]
    %v3470 = vld [vmem:[#allocation8 + $0x2fc] sm:$0xff]
    %v3471 = vld [vmem:[#allocation8 + $0x304] sm:$0xff]
    %v3472 = vld [vmem:[#allocation8 + $0x30c] sm:$0xf]
    %v3473 = vld [vmem:[#allocation8 + $0x310] sm:$0xff]
    %v3474 = vld [vmem:[#allocation8 + $0x318] sm:$0xff]
    %v3475 = vld [vmem:[#allocation8 + $0x320] sm:$0xff]
    %v3476 = vld [vmem:[#allocation8 + $0x328] sm:$0xf]
    %v3477 = vld [vmem:[#allocation8 + $0x32c] sm:$0xff]
    %v3478 = vld [vmem:[#allocation8 + $0x334] sm:$0xff]
    %v3479 = vld [vmem:[#allocation8 + $0x33c] sm:$0xff]
    %v3480 = vld [vmem:[#allocation8 + $0x344] sm:$0xf]
    %v3481 = vld [vmem:[#allocation8 + $0x348] sm:$0xff]
    %v3482 = vld [vmem:[#allocation8 + $0x350] sm:$0xff]
    %v3483 = vld [vmem:[#allocation8 + $0x358] sm:$0xff]
    %v3484 = vld [vmem:[#allocation8 + $0x360] sm:$0xf]
    %v3485 = vld [vmem:[#allocation8 + $0x364] sm:$0xff]
    %v3486 = vld [vmem:[#allocation8 + $0x36c] sm:$0xff]
    %v3487 = vld [vmem:[#allocation8 + $0x374] sm:$0xff]
    %v3488 = vld [vmem:[#allocation8 + $0x37c] sm:$0xf]
    %v3489 = vld [vmem:[#allocation8 + $0x380] sm:$0xff]
    %v3490 = vld [vmem:[#allocation8 + $0x388] sm:$0xff]
    %v3491 = vld [vmem:[#allocation8 + $0x390] sm:$0xff]
    %v3492 = vld [vmem:[#allocation8 + $0x398] sm:$0xf]
    %v3493 = vld [vmem:[#allocation8 + $0x39c] sm:$0xff]
    %v3494 = vld [vmem:[#allocation8 + $0x3a4] sm:$0xff]
    %v3495 = vld [vmem:[#allocation8 + $0x3ac] sm:$0xff]
    %v3496 = vld [vmem:[#allocation8 + $0x3b4] sm:$0xf]
    %v3497 = vld [vmem:[#allocation8 + $0x3b8] sm:$0xff]
    %v3498 = vld [vmem:[#allocation8 + $0x3c0] sm:$0xff]
    %v3499 = vld [vmem:[#allocation8 + $0x3c8] sm:$0xff]
    %v3500 = vld [vmem:[#allocation8 + $0x3d0] sm:$0xf]
    %v3501 = vld [vmem:[#allocation8 + $0x3d4] sm:$0xff]
    %v3502 = vld [vmem:[#allocation8 + $0x3dc] sm:$0xff]
    %v3503 = vld [vmem:[#allocation8 + $0x3e4] sm:$0xff]
    %v3504 = vld [vmem:[#allocation8 + $0x3ec] sm:$0xf]
    %v3505 = vld [vmem:[#allocation8 + $0x3f0] sm:$0xff]
    %v3506 = vld [vmem:[#allocation8 + $0x3f8] sm:$0xff]
    %v3507 = vld [vmem:[#allocation8 + $0x400] sm:$0xff]
    %v3508 = vld [vmem:[#allocation8 + $0x408] sm:$0xf]
    %v3509 = vld [vmem:[#allocation8 + $0x40c] sm:$0xff]
    %v3510 = vld [vmem:[#allocation8 + $0x414] sm:$0xff]
    %v3511 = vld [vmem:[#allocation8 + $0x41c] sm:$0xff]
    %v3512 = vld [vmem:[#allocation8 + $0x424] sm:$0xf]
    %v3513 = vld [vmem:[#allocation8 + $0x428] sm:$0xff]
    %v3514 = vld [vmem:[#allocation8 + $0x430] sm:$0xff]
    %v3515 = vld [vmem:[#allocation8 + $0x438] sm:$0xff]
    %v3516 = vld [vmem:[#allocation8 + $0x440] sm:$0xf]
    %v3517 = vld [vmem:[#allocation8 + $0x444] sm:$0xff]
    %v3518 = vld [vmem:[#allocation8 + $0x44c] sm:$0xff]
    %v3519 = vld [vmem:[#allocation8 + $0x454] sm:$0xff]
    %v3520 = vld [vmem:[#allocation8 + $0x45c] sm:$0xf]
    %v3521 = vld [vmem:[#allocation8 + $0x460] sm:$0xff]
    %v3522 = vld [vmem:[#allocation8 + $0x468] sm:$0xff]
    %v3523 = vld [vmem:[#allocation8 + $0x470] sm:$0xff]
    %v3524 = vld [vmem:[#allocation8 + $0x478] sm:$0xf]
    %v3525 = vld [vmem:[#allocation8 + $0x47c] sm:$0xff]
    %v3526 = vld [vmem:[#allocation8 + $0x484] sm:$0xff]
    %v3527 = vld [vmem:[#allocation8 + $0x48c] sm:$0xff]
    %v3528 = vld [vmem:[#allocation8 + $0x494] sm:$0xf]
    %v3529 = vld [vmem:[#allocation8 + $0x498] sm:$0xff]
    %v3530 = vld [vmem:[#allocation8 + $0x4a0] sm:$0xff]
    %v3531 = vld [vmem:[#allocation8 + $0x4a8] sm:$0xff]
    %v3532 = vld [vmem:[#allocation8 + $0x4b0] sm:$0xf]
    %v3533 = vld [vmem:[#allocation8 + $0x4b4] sm:$0xff]
    %v3534 = vld [vmem:[#allocation8 + $0x4bc] sm:$0xff]
    %v3535 = vld [vmem:[#allocation8 + $0x4c4] sm:$0xff]
    %v3536 = vld [vmem:[#allocation8 + $0x4cc] sm:$0xf]
    %v3537 = vld [vmem:[#allocation8 + $0x4d0] sm:$0xff]
    %v3538 = vld [vmem:[#allocation8 + $0x4d8] sm:$0xff]
    %v3539 = vld [vmem:[#allocation8 + $0x4e0] sm:$0xff]
    %v3540 = vld [vmem:[#allocation8 + $0x4e8] sm:$0xf]
    %v3541 = vld [vmem:[#allocation8 + $0x4ec] sm:$0xff]
    %v3542 = vld [vmem:[#allocation8 + $0x4f4] sm:$0xff]
    %v3543 = vld [vmem:[#allocation8 + $0x4fc] sm:$0xff]
    %v3544 = vld [vmem:[#allocation8 + $0x504] sm:$0xf]
    %v3545 = vld [vmem:[#allocation8 + $0x508] sm:$0xff]
    %v3546 = vld [vmem:[#allocation8 + $0x510] sm:$0xff]
    %v3547 = vld [vmem:[#allocation8 + $0x518] sm:$0xff]
    %v3548 = vld [vmem:[#allocation8 + $0x520] sm:$0xf]
    %v3549 = vld [vmem:[#allocation8 + $0x524] sm:$0xff]
    %v3550 = vld [vmem:[#allocation8 + $0x52c] sm:$0xff]
    %v3551 = vld [vmem:[#allocation8 + $0x534] sm:$0xff]
    %v3552 = vld [vmem:[#allocation8 + $0x53c] sm:$0xf]
    %v3553 = vld [vmem:[#allocation8 + $0x540] sm:$0xff]
    %v3554 = vld [vmem:[#allocation8 + $0x548] sm:$0xff]
    %v3555 = vld [vmem:[#allocation8 + $0x550] sm:$0xff]
    %v3556 = vld [vmem:[#allocation8 + $0x558] sm:$0xf]
    %v3557 = vld [vmem:[#allocation8 + $0x55c] sm:$0xff]
    %v3558 = vld [vmem:[#allocation8 + $0x564] sm:$0xff]
    %v3559 = vld [vmem:[#allocation8 + $0x56c] sm:$0xff]
    %v3560 = vld [vmem:[#allocation8 + $0x574] sm:$0xf]
    %v3561 = vld [vmem:[#allocation8 + $0x578] sm:$0xff]
    %v3562 = vld [vmem:[#allocation8 + $0x580] sm:$0xff]
    %v3563 = vld [vmem:[#allocation8 + $0x588] sm:$0xff]
    %v3564 = vld [vmem:[#allocation8 + $0x590] sm:$0xf]
    %v3565 = vld [vmem:[#allocation8 + $0x594] sm:$0xff]
    %v3566 = vld [vmem:[#allocation8 + $0x59c] sm:$0xff]
    %v3567 = vld [vmem:[#allocation8 + $0x5a4] sm:$0xff]
    %v3568 = vld [vmem:[#allocation8 + $0x5ac] sm:$0xf]
    %v3569 = vld [vmem:[#allocation8 + $0x5b0] sm:$0xff]
    %v3570 = vld [vmem:[#allocation8 + $0x5b8] sm:$0xff]
    %v3571 = vld [vmem:[#allocation8 + $0x5c0] sm:$0xff]
    %v3572 = vld [vmem:[#allocation8 + $0x5c8] sm:$0xf]
    %v3573 = vld [vmem:[#allocation8 + $0x5cc] sm:$0xff]
    %v3574 = vld [vmem:[#allocation8 + $0x5d4] sm:$0xff]
    %v3575 = vld [vmem:[#allocation8 + $0x5dc] sm:$0xff]
    %v3576 = vld [vmem:[#allocation8 + $0x5e4] sm:$0xf]
    %v3577 = vld [vmem:[#allocation8 + $0x5e8] sm:$0xff]
    %v3578 = vld [vmem:[#allocation8 + $0x5f0] sm:$0xff]
    %v3579 = vld [vmem:[#allocation8 + $0x5f8] sm:$0xff]
    %v3580 = vld [vmem:[#allocation8 + $0x600] sm:$0xf]
    %v3581 = vld [vmem:[#allocation8 + $0x604] sm:$0xff]
    %v3582 = vld [vmem:[#allocation8 + $0x60c] sm:$0xff]
    %v3583 = vld [vmem:[#allocation8 + $0x614] sm:$0xff]
    %v3584 = vld [vmem:[#allocation8 + $0x61c] sm:$0xf]
    %v3585 = vld [vmem:[#allocation8 + $0x620] sm:$0xff]
    %v3586 = vld [vmem:[#allocation8 + $0x628] sm:$0xff]
    %v3587 = vld [vmem:[#allocation8 + $0x630] sm:$0xff]
    %v3588 = vld [vmem:[#allocation8 + $0x638] sm:$0xf]
    %v3589 = vld [vmem:[#allocation8 + $0x63c] sm:$0xff]
    %v3590 = vld [vmem:[#allocation8 + $0x644] sm:$0xff]
    %v3591 = vld [vmem:[#allocation8 + $0x64c] sm:$0xff]
    %v3592 = vld [vmem:[#allocation8 + $0x654] sm:$0xf]
    %v3593 = vld [vmem:[#allocation8 + $0x658] sm:$0xff]
    %v3594 = vld [vmem:[#allocation8 + $0x660] sm:$0xff]
    %v3595 = vld [vmem:[#allocation8 + $0x668] sm:$0xff]
    %v3596 = vld [vmem:[#allocation8 + $0x670] sm:$0xf]
    %v3597 = vld [vmem:[#allocation8 + $0x674] sm:$0xff]
    %v3598 = vld [vmem:[#allocation8 + $0x67c] sm:$0xff]
    %v3599 = vld [vmem:[#allocation8 + $0x684] sm:$0xff]
    %v3600 = vld [vmem:[#allocation8 + $0x68c] sm:$0xf]
    %v3601 = vld [vmem:[#allocation8 + $0x690] sm:$0xff]
    %v3602 = vld [vmem:[#allocation8 + $0x698] sm:$0xff]
    %v3603 = vld [vmem:[#allocation8 + $0x6a0] sm:$0xff]
    %v3604 = vld [vmem:[#allocation8 + $0x6a8] sm:$0xf]
    %v3605 = vld [vmem:[#allocation8 + $0x6ac] sm:$0xff]
    %v3606 = vld [vmem:[#allocation8 + $0x6b4] sm:$0xff]
    %v3607 = vld [vmem:[#allocation8 + $0x6bc] sm:$0xff]
    %v3608 = vld [vmem:[#allocation8 + $0x6c4] sm:$0xf]
    %v3609 = vld [vmem:[#allocation8 + $0x6c8] sm:$0xff]
    %v3610 = vld [vmem:[#allocation8 + $0x6d0] sm:$0xff]
    %v3611 = vld [vmem:[#allocation8 + $0x6d8] sm:$0xff]
    %v3612 = vld [vmem:[#allocation8 + $0x6e0] sm:$0xf]
    %v3613 = vld [vmem:[#allocation8 + $0x6e4] sm:$0xff]
    %v3614 = vld [vmem:[#allocation8 + $0x6ec] sm:$0xff]
    %v3615 = vld [vmem:[#allocation8 + $0x6f4] sm:$0xff]
    %v3616 = vld [vmem:[#allocation8 + $0x6fc] sm:$0xf]
    %v3617 = vld [vmem:[#allocation8 + $0x700] sm:$0xff]
    %v3618 = vld [vmem:[#allocation8 + $0x708] sm:$0xff]
    %v3619 = vld [vmem:[#allocation8 + $0x710] sm:$0xff]
    %v3620 = vld [vmem:[#allocation8 + $0x718] sm:$0xf]
    %v3621 = vld [vmem:[#allocation8 + $0x71c] sm:$0xff]
    %v3622 = vld [vmem:[#allocation8 + $0x724] sm:$0xff]
    %v3623 = vld [vmem:[#allocation8 + $0x72c] sm:$0xff]
    %v3624 = vld [vmem:[#allocation8 + $0x734] sm:$0xf]
    %v3625 = vld [vmem:[#allocation8 + $0x738] sm:$0xff]
    %v3626 = vld [vmem:[#allocation8 + $0x740] sm:$0xff]
    %v3627 = vld [vmem:[#allocation8 + $0x748] sm:$0xff]
    %v3628 = vld [vmem:[#allocation8 + $0x750] sm:$0xf]
    %v3629 = vld [vmem:[#allocation8 + $0x754] sm:$0xff]
    %v3630 = vld [vmem:[#allocation8 + $0x75c] sm:$0xff]
    %v3631 = vld [vmem:[#allocation8 + $0x764] sm:$0xff]
    %v3632 = vld [vmem:[#allocation8 + $0x76c] sm:$0xf]
    %v3633 = vld [vmem:[#allocation8 + $0x770] sm:$0xff]
    %v3634 = vld [vmem:[#allocation8 + $0x778] sm:$0xff]
    %v3635 = vld [vmem:[#allocation8 + $0x780] sm:$0xff]
    %v3636 = vld [vmem:[#allocation8 + $0x788] sm:$0xf]
    %v3637 = vld [vmem:[#allocation8 + $0x78c] sm:$0xff]
    %v3638 = vld [vmem:[#allocation8 + $0x794] sm:$0xff]
    %v3639 = vld [vmem:[#allocation8 + $0x79c] sm:$0xff]
    %v3640 = vld [vmem:[#allocation8 + $0x7a4] sm:$0xf]
    %v3641 = vld [vmem:[#allocation8 + $0x7a8] sm:$0xff]
    %v3642 = vld [vmem:[#allocation8 + $0x7b0] sm:$0xff]
    %v3643 = vld [vmem:[#allocation8 + $0x7b8] sm:$0xff]
    %v3644 = vld [vmem:[#allocation8 + $0x7c0] sm:$0xf]
    %v3645 = vld [vmem:[#allocation8 + $0x7c4] sm:$0xff]
    %v3646 = vld [vmem:[#allocation8 + $0x7cc] sm:$0xff]
    %v3647 = vld [vmem:[#allocation8 + $0x7d4] sm:$0xff]
    %v3648 = vld [vmem:[#allocation8 + $0x7dc] sm:$0xf]
    %v3649 = vld [vmem:[#allocation8 + $0x7e0] sm:$0xff]
    %v3650 = vld [vmem:[#allocation8 + $0x7e8] sm:$0xff]
    %v3651 = vld [vmem:[#allocation8 + $0x7f0] sm:$0xff]
    %v3652 = vld [vmem:[#allocation8 + $0x7f8] sm:$0xf]
    %v3653 = vld [vmem:[#allocation8 + $0x7fc] sm:$0xff]
    %v3654 = vld [vmem:[#allocation8 + $0x804] sm:$0xff]
    %v3655 = vld [vmem:[#allocation8 + $0x80c] sm:$0xff]
    %v3656 = vld [vmem:[#allocation8 + $0x814] sm:$0xf]
    %v3657 = vld [vmem:[#allocation8 + $0x818] sm:$0xff]
    %v3658 = vld [vmem:[#allocation8 + $0x820] sm:$0xff]
    %v3659 = vld [vmem:[#allocation8 + $0x828] sm:$0xff]
    %v3660 = vld [vmem:[#allocation8 + $0x830] sm:$0xf]
    %v3661 = vld [vmem:[#allocation8 + $0x834] sm:$0xff]
    %v3662 = vld [vmem:[#allocation8 + $0x83c] sm:$0xff]
    %v3663 = vld [vmem:[#allocation8 + $0x844] sm:$0xff]
    %v3664 = vld [vmem:[#allocation8 + $0x84c] sm:$0xf]
    %v3665 = vld [vmem:[#allocation8 + $0x850] sm:$0xff]
    %v3666 = vld [vmem:[#allocation8 + $0x858] sm:$0xff]
    %v3667 = vld [vmem:[#allocation8 + $0x860] sm:$0xff]
    %v3668 = vld [vmem:[#allocation8 + $0x868] sm:$0xf]
    %v3669 = vld [vmem:[#allocation8 + $0x86c] sm:$0xff]
    %v3670 = vld [vmem:[#allocation8 + $0x874] sm:$0xff]
    %v3671 = vld [vmem:[#allocation8 + $0x87c] sm:$0xff]
    %v3672 = vld [vmem:[#allocation8 + $0x884] sm:$0xf]
    %v3673 = vld [vmem:[#allocation8 + $0x888] sm:$0xff]
    %v3674 = vld [vmem:[#allocation8 + $0x890] sm:$0xff]
    %v3675 = vld [vmem:[#allocation8 + $0x898] sm:$0xff]
    %v3676 = vld [vmem:[#allocation8 + $0x8a0] sm:$0xf]
    %v3677 = vld [vmem:[#allocation8 + $0x8a4] sm:$0xff]
    %v3678 = vld [vmem:[#allocation8 + $0x8ac] sm:$0xff]
    %v3679 = vld [vmem:[#allocation8 + $0x8b4] sm:$0xff]
    %v3680 = vld [vmem:[#allocation8 + $0x8bc] sm:$0xf]
    %v3681 = vld [vmem:[#allocation8 + $0x8c0] sm:$0xff]
    %v3682 = vld [vmem:[#allocation8 + $0x8c8] sm:$0xff]
    %v3683 = vld [vmem:[#allocation8 + $0x8d0] sm:$0xff]
    %v3684 = vld [vmem:[#allocation8 + $0x8d8] sm:$0xf]
    %v3685 = vld [vmem:[#allocation8 + $0x8dc] sm:$0xff]
    %v3686 = vld [vmem:[#allocation8 + $0x8e4] sm:$0xff]
    %v3687 = vld [vmem:[#allocation8 + $0x8ec] sm:$0xff]
    %v3688 = vld [vmem:[#allocation8 + $0x8f4] sm:$0xf]
    %v3689 = vld [vmem:[#allocation8 + $0x8f8] sm:$0xff]
    %v3690 = vld [vmem:[#allocation8 + $0x900] sm:$0xff]
    %v3691 = vld [vmem:[#allocation8 + $0x908] sm:$0xff]
    %v3692 = vld [vmem:[#allocation8 + $0x910] sm:$0xf]
    %v3693 = vld [vmem:[#allocation8 + $0x914] sm:$0xff]
    %v3694 = vld [vmem:[#allocation8 + $0x91c] sm:$0xff]
    %v3695 = vld [vmem:[#allocation8 + $0x924] sm:$0xff]
    %v3696 = vld [vmem:[#allocation8 + $0x92c] sm:$0xf]
    %v3697 = vld [vmem:[#allocation8 + $0x930] sm:$0xff]
    %v3698 = vld [vmem:[#allocation8 + $0x938] sm:$0xff]
    %v3699 = vld [vmem:[#allocation8 + $0x940] sm:$0xff]
    %v3700 = vld [vmem:[#allocation8 + $0x948] sm:$0xf]
    %v3701 = vld [vmem:[#allocation8 + $0x94c] sm:$0xff]
    %v3702 = vld [vmem:[#allocation8 + $0x954] sm:$0xff]
    %v3703 = vld [vmem:[#allocation8 + $0x95c] sm:$0xff]
    %v3704 = vld [vmem:[#allocation8 + $0x964] sm:$0xf]
    %v3705 = vld [vmem:[#allocation8 + $0x968] sm:$0xff]
    %v3706 = vld [vmem:[#allocation8 + $0x970] sm:$0xff]
    %v3707 = vld [vmem:[#allocation8 + $0x978] sm:$0xff]
    %v3708 = vld [vmem:[#allocation8 + $0x980] sm:$0xf]
    %v3709 = vld [vmem:[#allocation8 + $0x984] sm:$0xff]
    %v3710 = vld [vmem:[#allocation8 + $0x98c] sm:$0xff]
    %v3711 = vld [vmem:[#allocation8 + $0x994] sm:$0xff]
    %v3712 = vld [vmem:[#allocation8 + $0x99c] sm:$0xf]
    %v3713 = vld [vmem:[#allocation8 + $0x9a0] sm:$0xff]
    %v3714 = vld [vmem:[#allocation8 + $0x9a8] sm:$0xff]
    %v3715 = vld [vmem:[#allocation8 + $0x9b0] sm:$0xff]
    %v3716 = vld [vmem:[#allocation8 + $0x9b8] sm:$0xf]
    %v3717 = vld [vmem:[#allocation8 + $0x9bc] sm:$0xff]
    %v3718 = vld [vmem:[#allocation8 + $0x9c4] sm:$0xff]
    %v3719 = vld [vmem:[#allocation8 + $0x9cc] sm:$0xff]
    %v3720 = vld [vmem:[#allocation8 + $0x9d4] sm:$0xf]
    %v3721 = vld [vmem:[#allocation8 + $0x9d8] sm:$0xff]
    %v3722 = vld [vmem:[#allocation8 + $0x9e0] sm:$0xff]
    %v3723 = vld [vmem:[#allocation8 + $0x9e8] sm:$0xff]
    %v3724 = vld [vmem:[#allocation8 + $0x9f0] sm:$0xf]
    %v3725 = vld [vmem:[#allocation8 + $0x9f4] sm:$0xff]
    %v3726 = vld [vmem:[#allocation8 + $0x9fc] sm:$0xff]
    %v3727 = vld [vmem:[#allocation8 + $0xa04] sm:$0xff]
    %v3728 = vld [vmem:[#allocation8 + $0xa0c] sm:$0xf]
    %v3729 = vld [vmem:[#allocation8 + $0xa10] sm:$0xff]
    %v3730 = vld [vmem:[#allocation8 + $0xa18] sm:$0xff]
    %v3731 = vld [vmem:[#allocation8 + $0xa20] sm:$0xff]
    %v3732 = vld [vmem:[#allocation8 + $0xa28] sm:$0xf]
    %v3733 = vld [vmem:[#allocation8 + $0xa2c] sm:$0xff]
    %v3734 = vld [vmem:[#allocation8 + $0xa34] sm:$0xff]
    %v3735 = vld [vmem:[#allocation8 + $0xa3c] sm:$0xff]
    %v3736 = vld [vmem:[#allocation8 + $0xa44] sm:$0xf]
    %v3737 = vld [vmem:[#allocation8 + $0xa48] sm:$0xff]
    %v3738 = vld [vmem:[#allocation8 + $0xa50] sm:$0xff]
    %v3739 = vld [vmem:[#allocation8 + $0xa58] sm:$0xff]
    %v3740 = vld [vmem:[#allocation8 + $0xa60] sm:$0xf]
    %v3741 = vld [vmem:[#allocation8 + $0xa64] sm:$0xff]
    %v3742 = vld [vmem:[#allocation8 + $0xa6c] sm:$0xff]
    %v3743 = vld [vmem:[#allocation8 + $0xa74] sm:$0xff]
    %v3744 = vld [vmem:[#allocation8 + $0xa7c] sm:$0xf]
    %v3745 = vld [vmem:[#allocation8 + $0xa80] sm:$0xff]
    %v3746 = vld [vmem:[#allocation8 + $0xa88] sm:$0xff]
    %v3747 = vld [vmem:[#allocation8 + $0xa90] sm:$0xff]
    %v3748 = vld [vmem:[#allocation8 + $0xa98] sm:$0xf]
    %v3749 = vld [vmem:[#allocation8 + $0xa9c] sm:$0xff]
    %v3750 = vld [vmem:[#allocation8 + $0xaa4] sm:$0xff]
    %v3751 = vld [vmem:[#allocation8 + $0xaac] sm:$0xff]
    %v3752 = vld [vmem:[#allocation8 + $0xab4] sm:$0xf]
    %v3753 = vld [vmem:[#allocation8 + $0xab8] sm:$0xff]
    %v3754 = vld [vmem:[#allocation8 + $0xac0] sm:$0xff]
    %v3755 = vld [vmem:[#allocation8 + $0xac8] sm:$0xff]
    %v3756 = vld [vmem:[#allocation8 + $0xad0] sm:$0xf]
    %v3757 = vld [vmem:[#allocation8 + $0xad4] sm:$0xff]
    %v3758 = vld [vmem:[#allocation8 + $0xadc] sm:$0xff]
    %v3759 = vld [vmem:[#allocation8 + $0xae4] sm:$0xff]
    %v3760 = vld [vmem:[#allocation8 + $0xaec] sm:$0xf]
    %v3761 = vld [vmem:[#allocation8 + $0xaf0] sm:$0xff]
    %v3762 = vld [vmem:[#allocation8 + $0xaf8] sm:$0xff]
    %v3763 = vld [vmem:[#allocation8 + $0xb00] sm:$0xff]
    %v3764 = vld [vmem:[#allocation8 + $0xb08] sm:$0xf]
    %v3765 = vld [vmem:[#allocation8 + $0xb0c] sm:$0xff]
    %v3766 = vld [vmem:[#allocation8 + $0xb14] sm:$0xff]
    %v3767 = vld [vmem:[#allocation8 + $0xb1c] sm:$0xff]
    %v3768 = vld [vmem:[#allocation8 + $0xb24] sm:$0xf]
    %v3769 = vld [vmem:[#allocation8 + $0xb28] sm:$0xff]
    %v3770 = vld [vmem:[#allocation8 + $0xb30] sm:$0xff]
    %v3771 = vld [vmem:[#allocation8 + $0xb38] sm:$0xff]
    %v3772 = vld [vmem:[#allocation8 + $0xb40] sm:$0xf]
    %v3773 = vld [vmem:[#allocation8 + $0xb44] sm:$0xff]
    %v3774 = vld [vmem:[#allocation8 + $0xb4c] sm:$0xff]
    %v3775 = vld [vmem:[#allocation8 + $0xb54] sm:$0xff]
    %v3776 = vld [vmem:[#allocation8 + $0xb5c] sm:$0xf]
    %v3777 = vld [vmem:[#allocation8 + $0xb60] sm:$0xff]
    %v3778 = vld [vmem:[#allocation8 + $0xb68] sm:$0xff]
    %v3779 = vld [vmem:[#allocation8 + $0xb70] sm:$0xff]
    %v3780 = vld [vmem:[#allocation8 + $0xb78] sm:$0xf]
    %v3781 = vld [vmem:[#allocation8 + $0xb7c] sm:$0xff]
    %v3782 = vld [vmem:[#allocation8 + $0xb84] sm:$0xff]
    %v3783 = vld [vmem:[#allocation8 + $0xb8c] sm:$0xff]
    %v3784 = vld [vmem:[#allocation8 + $0xb94] sm:$0xf]
    %v3785 = vld [vmem:[#allocation8 + $0xb98] sm:$0xff]
    %v3786 = vld [vmem:[#allocation8 + $0xba0] sm:$0xff]
    %v3787 = vld [vmem:[#allocation8 + $0xba8] sm:$0xff]
    %v3788 = vld [vmem:[#allocation8 + $0xbb0] sm:$0xf]
    %v3789 = vld [vmem:[#allocation8 + $0xbb4] sm:$0xff]
    %v3790 = vld [vmem:[#allocation8 + $0xbbc] sm:$0xff]
    %v3791 = vld [vmem:[#allocation8 + $0xbc4] sm:$0xff]
    %v3792 = vld [vmem:[#allocation8 + $0xbcc] sm:$0xf]
    %v3793 = vld [vmem:[#allocation8 + $0xbd0] sm:$0xff]
    %v3794 = vld [vmem:[#allocation8 + $0xbd8] sm:$0xff]
    %v3795 = vld [vmem:[#allocation8 + $0xbe0] sm:$0xff]
    %v3796 = vld [vmem:[#allocation8 + $0xbe8] sm:$0xf]
    %v3797 = vld [vmem:[#allocation8 + $0xbec] sm:$0xff]
    %v3798 = vld [vmem:[#allocation8 + $0xbf4] sm:$0xff]
    %v3799 = vld [vmem:[#allocation8 + $0xbfc] sm:$0xff]
    %v3800 = vld [vmem:[#allocation8 + $0xc04] sm:$0xf]
    %v3801 = vld [vmem:[#allocation8 + $0xc08] sm:$0xff]
    %v3802 = vld [vmem:[#allocation8 + $0xc10] sm:$0xff]
    %v3803 = vld [vmem:[#allocation8 + $0xc18] sm:$0xff]
    %v3804 = vld [vmem:[#allocation8 + $0xc20] sm:$0xf]
    %v3805 = vld [vmem:[#allocation8 + $0xc24] sm:$0xff]
    %v3806 = vld [vmem:[#allocation8 + $0xc2c] sm:$0xff]
    %v3807 = vld [vmem:[#allocation8 + $0xc34] sm:$0xff]
    %v3808 = vld [vmem:[#allocation8 + $0xc3c] sm:$0xf]
    %v3809 = vld [vmem:[#allocation10] sm:$0xff]
    %v3811 = vperm.slane %v3809, 0
    %v3812 = vperm.slane %v3809, 1
    %v3813 = vperm.slane %v3809, 2
    %v3814 = vperm.slane %v3809, 3
    %v3815 = vperm.slane %v3809, 4
    %v3816 = vperm.slane %v3809, 5
    %v3817 = vperm.slane %v3809, 6
    %v4273 = vunpack.c.l.b16 %v3361
    %v4274 = vunpack.c.h.b16 %v3361
    %v4275 = vunpack.c.l.b16 %v3362
    %v4276 = vunpack.c.h.b16 %v3362
    %v4277 = vunpack.c.l.b16 %v3363
    %v4278 = vunpack.c.h.b16 %v3363
    %v4279 = vunpack.c.l.b16 %v3364
    %v4280 = vunpack.c.l.b16 %v3365
    %v4281 = vunpack.c.h.b16 %v3365
    %v4282 = vunpack.c.l.b16 %v3366
    %v4283 = vunpack.c.h.b16 %v3366
    %v4284 = vunpack.c.l.b16 %v3367
    %v4285 = vunpack.c.h.b16 %v3367
    %v4286 = vunpack.c.l.b16 %v3368
    %v4287 = vunpack.c.l.b16 %v3369
    %v4288 = vunpack.c.h.b16 %v3369
    %v4289 = vunpack.c.l.b16 %v3370
    %v4290 = vunpack.c.h.b16 %v3370
    %v4291 = vunpack.c.l.b16 %v3371
    %v4292 = vunpack.c.h.b16 %v3371
    %v4293 = vunpack.c.l.b16 %v3372
    %v4294 = vunpack.c.l.b16 %v3373
    %v4295 = vunpack.c.h.b16 %v3373
    %v4296 = vunpack.c.l.b16 %v3374
    %v4297 = vunpack.c.h.b16 %v3374
    %v4298 = vunpack.c.l.b16 %v3375
    %v4299 = vunpack.c.h.b16 %v3375
    %v4300 = vunpack.c.l.b16 %v3376
    %v4301 = vunpack.c.l.b16 %v3377
    %v4302 = vunpack.c.h.b16 %v3377
    %v4303 = vunpack.c.l.b16 %v3378
    %v4304 = vunpack.c.h.b16 %v3378
    %v4305 = vunpack.c.l.b16 %v3379
    %v4306 = vunpack.c.h.b16 %v3379
    %v4307 = vunpack.c.l.b16 %v3380
    %v4308 = vunpack.c.l.b16 %v3381
    %v4309 = vunpack.c.h.b16 %v3381
    %v4310 = vunpack.c.l.b16 %v3382
    %v4311 = vunpack.c.h.b16 %v3382
    %v4312 = vunpack.c.l.b16 %v3383
    %v4313 = vunpack.c.h.b16 %v3383
    %v4314 = vunpack.c.l.b16 %v3384
    %v4315 = vunpack.c.l.b16 %v3385
    %v4316 = vunpack.c.h.b16 %v3385
    %v4317 = vunpack.c.l.b16 %v3386
    %v4318 = vunpack.c.h.b16 %v3386
    %v4319 = vunpack.c.l.b16 %v3387
    %v4320 = vunpack.c.h.b16 %v3387
    %v4321 = vunpack.c.l.b16 %v3388
    %v4322 = vunpack.c.l.b16 %v3389
    %v4323 = vunpack.c.h.b16 %v3389
    %v4324 = vunpack.c.l.b16 %v3390
    %v4325 = vunpack.c.h.b16 %v3390
    %v4326 = vunpack.c.l.b16 %v3391
    %v4327 = vunpack.c.h.b16 %v3391
    %v4328 = vunpack.c.l.b16 %v3392
    %v4329 = vunpack.c.l.b16 %v3393
    %v4330 = vunpack.c.h.b16 %v3393
    %v4331 = vunpack.c.l.b16 %v3394
    %v4332 = vunpack.c.h.b16 %v3394
    %v4333 = vunpack.c.l.b16 %v3395
    %v4334 = vunpack.c.h.b16 %v3395
    %v4335 = vunpack.c.l.b16 %v3396
    %v4336 = vunpack.c.l.b16 %v3397
    %v4337 = vunpack.c.h.b16 %v3397
    %v4338 = vunpack.c.l.b16 %v3398
    %v4339 = vunpack.c.h.b16 %v3398
    %v4340 = vunpack.c.l.b16 %v3399
    %v4341 = vunpack.c.h.b16 %v3399
    %v4342 = vunpack.c.l.b16 %v3400
    %v4343 = vunpack.c.l.b16 %v3401
    %v4344 = vunpack.c.h.b16 %v3401
    %v4345 = vunpack.c.l.b16 %v3402
    %v4346 = vunpack.c.h.b16 %v3402
    %v4347 = vunpack.c.l.b16 %v3403
    %v4348 = vunpack.c.h.b16 %v3403
    %v4349 = vunpack.c.l.b16 %v3404
    %v4350 = vunpack.c.l.b16 %v3405
    %v4351 = vunpack.c.h.b16 %v3405
    %v4352 = vunpack.c.l.b16 %v3406
    %v4353 = vunpack.c.h.b16 %v3406
    %v4354 = vunpack.c.l.b16 %v3407
    %v4355 = vunpack.c.h.b16 %v3407
    %v4356 = vunpack.c.l.b16 %v3408
    %v4357 = vunpack.c.l.b16 %v3409
    %v4358 = vunpack.c.h.b16 %v3409
    %v4359 = vunpack.c.l.b16 %v3410
    %v4360 = vunpack.c.h.b16 %v3410
    %v4361 = vunpack.c.l.b16 %v3411
    %v4362 = vunpack.c.h.b16 %v3411
    %v4363 = vunpack.c.l.b16 %v3412
    %v4364 = vunpack.c.l.b16 %v3413
    %v4365 = vunpack.c.h.b16 %v3413
    %v4366 = vunpack.c.l.b16 %v3414
    %v4367 = vunpack.c.h.b16 %v3414
    %v4368 = vunpack.c.l.b16 %v3415
    %v4369 = vunpack.c.h.b16 %v3415
    %v4370 = vunpack.c.l.b16 %v3416
    %v4371 = vunpack.c.l.b16 %v3417
    %v4372 = vunpack.c.h.b16 %v3417
    %v4373 = vunpack.c.l.b16 %v3418
    %v4374 = vunpack.c.h.b16 %v3418
    %v4375 = vunpack.c.l.b16 %v3419
    %v4376 = vunpack.c.h.b16 %v3419
    %v4377 = vunpack.c.l.b16 %v3420
    %v4378 = vunpack.c.l.b16 %v3421
    %v4379 = vunpack.c.h.b16 %v3421
    %v4380 = vunpack.c.l.b16 %v3422
    %v4381 = vunpack.c.h.b16 %v3422
    %v4382 = vunpack.c.l.b16 %v3423
    %v4383 = vunpack.c.h.b16 %v3423
    %v4384 = vunpack.c.l.b16 %v3424
    %v4385 = vunpack.c.l.b16 %v3425
    %v4386 = vunpack.c.h.b16 %v3425
    %v4387 = vunpack.c.l.b16 %v3426
    %v4388 = vunpack.c.h.b16 %v3426
    %v4389 = vunpack.c.l.b16 %v3427
    %v4390 = vunpack.c.h.b16 %v3427
    %v4391 = vunpack.c.l.b16 %v3428
    %v4392 = vunpack.c.l.b16 %v3429
    %v4393 = vunpack.c.h.b16 %v3429
    %v4394 = vunpack.c.l.b16 %v3430
    %v4395 = vunpack.c.h.b16 %v3430
    %v4396 = vunpack.c.l.b16 %v3431
    %v4397 = vunpack.c.h.b16 %v3431
    %v4398 = vunpack.c.l.b16 %v3432
    %v4399 = vunpack.c.l.b16 %v3433
    %v4400 = vunpack.c.h.b16 %v3433
    %v4401 = vunpack.c.l.b16 %v3434
    %v4402 = vunpack.c.h.b16 %v3434
    %v4403 = vunpack.c.l.b16 %v3435
    %v4404 = vunpack.c.h.b16 %v3435
    %v4405 = vunpack.c.l.b16 %v3436
    %v4406 = vunpack.c.l.b16 %v3437
    %v4407 = vunpack.c.h.b16 %v3437
    %v4408 = vunpack.c.l.b16 %v3438
    %v4409 = vunpack.c.h.b16 %v3438
    %v4410 = vunpack.c.l.b16 %v3439
    %v4411 = vunpack.c.h.b16 %v3439
    %v4412 = vunpack.c.l.b16 %v3440
    %v4413 = vunpack.c.l.b16 %v3441
    %v4414 = vunpack.c.h.b16 %v3441
    %v4415 = vunpack.c.l.b16 %v3442
    %v4416 = vunpack.c.h.b16 %v3442
    %v4417 = vunpack.c.l.b16 %v3443
    %v4418 = vunpack.c.h.b16 %v3443
    %v4419 = vunpack.c.l.b16 %v3444
    %v4420 = vunpack.c.l.b16 %v3445
    %v4421 = vunpack.c.h.b16 %v3445
    %v4422 = vunpack.c.l.b16 %v3446
    %v4423 = vunpack.c.h.b16 %v3446
    %v4424 = vunpack.c.l.b16 %v3447
    %v4425 = vunpack.c.h.b16 %v3447
    %v4426 = vunpack.c.l.b16 %v3448
    %v4427 = vunpack.c.l.b16 %v3449
    %v4428 = vunpack.c.h.b16 %v3449
    %v4429 = vunpack.c.l.b16 %v3450
    %v4430 = vunpack.c.h.b16 %v3450
    %v4431 = vunpack.c.l.b16 %v3451
    %v4432 = vunpack.c.h.b16 %v3451
    %v4433 = vunpack.c.l.b16 %v3452
    %v4434 = vunpack.c.l.b16 %v3453
    %v4435 = vunpack.c.h.b16 %v3453
    %v4436 = vunpack.c.l.b16 %v3454
    %v4437 = vunpack.c.h.b16 %v3454
    %v4438 = vunpack.c.l.b16 %v3455
    %v4439 = vunpack.c.h.b16 %v3455
    %v4440 = vunpack.c.l.b16 %v3456
    %v4441 = vunpack.c.l.b16 %v3457
    %v4442 = vunpack.c.h.b16 %v3457
    %v4443 = vunpack.c.l.b16 %v3458
    %v4444 = vunpack.c.h.b16 %v3458
    %v4445 = vunpack.c.l.b16 %v3459
    %v4446 = vunpack.c.h.b16 %v3459
    %v4447 = vunpack.c.l.b16 %v3460
    %v4448 = vunpack.c.l.b16 %v3461
    %v4449 = vunpack.c.h.b16 %v3461
    %v4450 = vunpack.c.l.b16 %v3462
    %v4451 = vunpack.c.h.b16 %v3462
    %v4452 = vunpack.c.l.b16 %v3463
    %v4453 = vunpack.c.h.b16 %v3463
    %v4454 = vunpack.c.l.b16 %v3464
    %v4455 = vunpack.c.l.b16 %v3465
    %v4456 = vunpack.c.h.b16 %v3465
    %v4457 = vunpack.c.l.b16 %v3466
    %v4458 = vunpack.c.h.b16 %v3466
    %v4459 = vunpack.c.l.b16 %v3467
    %v4460 = vunpack.c.h.b16 %v3467
    %v4461 = vunpack.c.l.b16 %v3468
    %v4462 = vunpack.c.l.b16 %v3469
    %v4463 = vunpack.c.h.b16 %v3469
    %v4464 = vunpack.c.l.b16 %v3470
    %v4465 = vunpack.c.h.b16 %v3470
    %v4466 = vunpack.c.l.b16 %v3471
    %v4467 = vunpack.c.h.b16 %v3471
    %v4468 = vunpack.c.l.b16 %v3472
    %v4469 = vunpack.c.l.b16 %v3473
    %v4470 = vunpack.c.h.b16 %v3473
    %v4471 = vunpack.c.l.b16 %v3474
    %v4472 = vunpack.c.h.b16 %v3474
    %v4473 = vunpack.c.l.b16 %v3475
    %v4474 = vunpack.c.h.b16 %v3475
    %v4475 = vunpack.c.l.b16 %v3476
    %v4476 = vunpack.c.l.b16 %v3477
    %v4477 = vunpack.c.h.b16 %v3477
    %v4478 = vunpack.c.l.b16 %v3478
    %v4479 = vunpack.c.h.b16 %v3478
    %v4480 = vunpack.c.l.b16 %v3479
    %v4481 = vunpack.c.h.b16 %v3479
    %v4482 = vunpack.c.l.b16 %v3480
    %v4483 = vunpack.c.l.b16 %v3481
    %v4484 = vunpack.c.h.b16 %v3481
    %v4485 = vunpack.c.l.b16 %v3482
    %v4486 = vunpack.c.h.b16 %v3482
    %v4487 = vunpack.c.l.b16 %v3483
    %v4488 = vunpack.c.h.b16 %v3483
    %v4489 = vunpack.c.l.b16 %v3484
    %v4490 = vunpack.c.l.b16 %v3485
    %v4491 = vunpack.c.h.b16 %v3485
    %v4492 = vunpack.c.l.b16 %v3486
    %v4493 = vunpack.c.h.b16 %v3486
    %v4494 = vunpack.c.l.b16 %v3487
    %v4495 = vunpack.c.h.b16 %v3487
    %v4496 = vunpack.c.l.b16 %v3488
    %v4497 = vunpack.c.l.b16 %v3489
    %v4498 = vunpack.c.h.b16 %v3489
    %v4499 = vunpack.c.l.b16 %v3490
    %v4500 = vunpack.c.h.b16 %v3490
    %v4501 = vunpack.c.l.b16 %v3491
    %v4502 = vunpack.c.h.b16 %v3491
    %v4503 = vunpack.c.l.b16 %v3492
    %v4504 = vunpack.c.l.b16 %v3493
    %v4505 = vunpack.c.h.b16 %v3493
    %v4506 = vunpack.c.l.b16 %v3494
    %v4507 = vunpack.c.h.b16 %v3494
    %v4508 = vunpack.c.l.b16 %v3495
    %v4509 = vunpack.c.h.b16 %v3495
    %v4510 = vunpack.c.l.b16 %v3496
    %v4511 = vunpack.c.l.b16 %v3497
    %v4512 = vunpack.c.h.b16 %v3497
    %v4513 = vunpack.c.l.b16 %v3498
    %v4514 = vunpack.c.h.b16 %v3498
    %v4515 = vunpack.c.l.b16 %v3499
    %v4516 = vunpack.c.h.b16 %v3499
    %v4517 = vunpack.c.l.b16 %v3500
    %v4518 = vunpack.c.l.b16 %v3501
    %v4519 = vunpack.c.h.b16 %v3501
    %v4520 = vunpack.c.l.b16 %v3502
    %v4521 = vunpack.c.h.b16 %v3502
    %v4522 = vunpack.c.l.b16 %v3503
    %v4523 = vunpack.c.h.b16 %v3503
    %v4524 = vunpack.c.l.b16 %v3504
    %v4525 = vunpack.c.l.b16 %v3505
    %v4526 = vunpack.c.h.b16 %v3505
    %v4527 = vunpack.c.l.b16 %v3506
    %v4528 = vunpack.c.h.b16 %v3506
    %v4529 = vunpack.c.l.b16 %v3507
    %v4530 = vunpack.c.h.b16 %v3507
    %v4531 = vunpack.c.l.b16 %v3508
    %v4532 = vunpack.c.l.b16 %v3509
    %v4533 = vunpack.c.h.b16 %v3509
    %v4534 = vunpack.c.l.b16 %v3510
    %v4535 = vunpack.c.h.b16 %v3510
    %v4536 = vunpack.c.l.b16 %v3511
    %v4537 = vunpack.c.h.b16 %v3511
    %v4538 = vunpack.c.l.b16 %v3512
    %v4539 = vunpack.c.l.b16 %v3513
    %v4540 = vunpack.c.h.b16 %v3513
    %v4541 = vunpack.c.l.b16 %v3514
    %v4542 = vunpack.c.h.b16 %v3514
    %v4543 = vunpack.c.l.b16 %v3515
    %v4544 = vunpack.c.h.b16 %v3515
    %v4545 = vunpack.c.l.b16 %v3516
    %v4546 = vunpack.c.l.b16 %v3517
    %v4547 = vunpack.c.h.b16 %v3517
    %v4548 = vunpack.c.l.b16 %v3518
    %v4549 = vunpack.c.h.b16 %v3518
    %v4550 = vunpack.c.l.b16 %v3519
    %v4551 = vunpack.c.h.b16 %v3519
    %v4552 = vunpack.c.l.b16 %v3520
    %v4553 = vunpack.c.l.b16 %v3521
    %v4554 = vunpack.c.h.b16 %v3521
    %v4555 = vunpack.c.l.b16 %v3522
    %v4556 = vunpack.c.h.b16 %v3522
    %v4557 = vunpack.c.l.b16 %v3523
    %v4558 = vunpack.c.h.b16 %v3523
    %v4559 = vunpack.c.l.b16 %v3524
    %v4560 = vunpack.c.l.b16 %v3525
    %v4561 = vunpack.c.h.b16 %v3525
    %v4562 = vunpack.c.l.b16 %v3526
    %v4563 = vunpack.c.h.b16 %v3526
    %v4564 = vunpack.c.l.b16 %v3527
    %v4565 = vunpack.c.h.b16 %v3527
    %v4566 = vunpack.c.l.b16 %v3528
    %v4567 = vunpack.c.l.b16 %v3529
    %v4568 = vunpack.c.h.b16 %v3529
    %v4569 = vunpack.c.l.b16 %v3530
    %v4570 = vunpack.c.h.b16 %v3530
    %v4571 = vunpack.c.l.b16 %v3531
    %v4572 = vunpack.c.h.b16 %v3531
    %v4573 = vunpack.c.l.b16 %v3532
    %v4574 = vunpack.c.l.b16 %v3533
    %v4575 = vunpack.c.h.b16 %v3533
    %v4576 = vunpack.c.l.b16 %v3534
    %v4577 = vunpack.c.h.b16 %v3534
    %v4578 = vunpack.c.l.b16 %v3535
    %v4579 = vunpack.c.h.b16 %v3535
    %v4580 = vunpack.c.l.b16 %v3536
    %v4581 = vunpack.c.l.b16 %v3537
    %v4582 = vunpack.c.h.b16 %v3537
    %v4583 = vunpack.c.l.b16 %v3538
    %v4584 = vunpack.c.h.b16 %v3538
    %v4585 = vunpack.c.l.b16 %v3539
    %v4586 = vunpack.c.h.b16 %v3539
    %v4587 = vunpack.c.l.b16 %v3540
    %v4588 = vunpack.c.l.b16 %v3541
    %v4589 = vunpack.c.h.b16 %v3541
    %v4590 = vunpack.c.l.b16 %v3542
    %v4591 = vunpack.c.h.b16 %v3542
    %v4592 = vunpack.c.l.b16 %v3543
    %v4593 = vunpack.c.h.b16 %v3543
    %v4594 = vunpack.c.l.b16 %v3544
    %v4595 = vunpack.c.l.b16 %v3545
    %v4596 = vunpack.c.h.b16 %v3545
    %v4597 = vunpack.c.l.b16 %v3546
    %v4598 = vunpack.c.h.b16 %v3546
    %v4599 = vunpack.c.l.b16 %v3547
    %v4600 = vunpack.c.h.b16 %v3547
    %v4601 = vunpack.c.l.b16 %v3548
    %v4602 = vunpack.c.l.b16 %v3549
    %v4603 = vunpack.c.h.b16 %v3549
    %v4604 = vunpack.c.l.b16 %v3550
    %v4605 = vunpack.c.h.b16 %v3550
    %v4606 = vunpack.c.l.b16 %v3551
    %v4607 = vunpack.c.h.b16 %v3551
    %v4608 = vunpack.c.l.b16 %v3552
    %v4609 = vunpack.c.l.b16 %v3553
    %v4610 = vunpack.c.h.b16 %v3553
    %v4611 = vunpack.c.l.b16 %v3554
    %v4612 = vunpack.c.h.b16 %v3554
    %v4613 = vunpack.c.l.b16 %v3555
    %v4614 = vunpack.c.h.b16 %v3555
    %v4615 = vunpack.c.l.b16 %v3556
    %v4616 = vunpack.c.l.b16 %v3557
    %v4617 = vunpack.c.h.b16 %v3557
    %v4618 = vunpack.c.l.b16 %v3558
    %v4619 = vunpack.c.h.b16 %v3558
    %v4620 = vunpack.c.l.b16 %v3559
    %v4621 = vunpack.c.h.b16 %v3559
    %v4622 = vunpack.c.l.b16 %v3560
    %v4623 = vunpack.c.l.b16 %v3561
    %v4624 = vunpack.c.h.b16 %v3561
    %v4625 = vunpack.c.l.b16 %v3562
    %v4626 = vunpack.c.h.b16 %v3562
    %v4627 = vunpack.c.l.b16 %v3563
    %v4628 = vunpack.c.h.b16 %v3563
    %v4629 = vunpack.c.l.b16 %v3564
    %v4630 = vunpack.c.l.b16 %v3565
    %v4631 = vunpack.c.h.b16 %v3565
    %v4632 = vunpack.c.l.b16 %v3566
    %v4633 = vunpack.c.h.b16 %v3566
    %v4634 = vunpack.c.l.b16 %v3567
    %v4635 = vunpack.c.h.b16 %v3567
    %v4636 = vunpack.c.l.b16 %v3568
    %v4637 = vunpack.c.l.b16 %v3569
    %v4638 = vunpack.c.h.b16 %v3569
    %v4639 = vunpack.c.l.b16 %v3570
    %v4640 = vunpack.c.h.b16 %v3570
    %v4641 = vunpack.c.l.b16 %v3571
    %v4642 = vunpack.c.h.b16 %v3571
    %v4643 = vunpack.c.l.b16 %v3572
    %v4644 = vunpack.c.l.b16 %v3573
    %v4645 = vunpack.c.h.b16 %v3573
    %v4646 = vunpack.c.l.b16 %v3574
    %v4647 = vunpack.c.h.b16 %v3574
    %v4648 = vunpack.c.l.b16 %v3575
    %v4649 = vunpack.c.h.b16 %v3575
    %v4650 = vunpack.c.l.b16 %v3576
    %v4651 = vunpack.c.l.b16 %v3577
    %v4652 = vunpack.c.h.b16 %v3577
    %v4653 = vunpack.c.l.b16 %v3578
    %v4654 = vunpack.c.h.b16 %v3578
    %v4655 = vunpack.c.l.b16 %v3579
    %v4656 = vunpack.c.h.b16 %v3579
    %v4657 = vunpack.c.l.b16 %v3580
    %v4658 = vunpack.c.l.b16 %v3581
    %v4659 = vunpack.c.h.b16 %v3581
    %v4660 = vunpack.c.l.b16 %v3582
    %v4661 = vunpack.c.h.b16 %v3582
    %v4662 = vunpack.c.l.b16 %v3583
    %v4663 = vunpack.c.h.b16 %v3583
    %v4664 = vunpack.c.l.b16 %v3584
    %v4665 = vunpack.c.l.b16 %v3585
    %v4666 = vunpack.c.h.b16 %v3585
    %v4667 = vunpack.c.l.b16 %v3586
    %v4668 = vunpack.c.h.b16 %v3586
    %v4669 = vunpack.c.l.b16 %v3587
    %v4670 = vunpack.c.h.b16 %v3587
    %v4671 = vunpack.c.l.b16 %v3588
    %v4672 = vunpack.c.l.b16 %v3589
    %v4673 = vunpack.c.h.b16 %v3589
    %v4674 = vunpack.c.l.b16 %v3590
    %v4675 = vunpack.c.h.b16 %v3590
    %v4676 = vunpack.c.l.b16 %v3591
    %v4677 = vunpack.c.h.b16 %v3591
    %v4678 = vunpack.c.l.b16 %v3592
    %v4679 = vunpack.c.l.b16 %v3593
    %v4680 = vunpack.c.h.b16 %v3593
    %v4681 = vunpack.c.l.b16 %v3594
    %v4682 = vunpack.c.h.b16 %v3594
    %v4683 = vunpack.c.l.b16 %v3595
    %v4684 = vunpack.c.h.b16 %v3595
    %v4685 = vunpack.c.l.b16 %v3596
    %v4686 = vunpack.c.l.b16 %v3597
    %v4687 = vunpack.c.h.b16 %v3597
    %v4688 = vunpack.c.l.b16 %v3598
    %v4689 = vunpack.c.h.b16 %v3598
    %v4690 = vunpack.c.l.b16 %v3599
    %v4691 = vunpack.c.h.b16 %v3599
    %v4692 = vunpack.c.l.b16 %v3600
    %v4693 = vunpack.c.l.b16 %v3601
    %v4694 = vunpack.c.h.b16 %v3601
    %v4695 = vunpack.c.l.b16 %v3602
    %v4696 = vunpack.c.h.b16 %v3602
    %v4697 = vunpack.c.l.b16 %v3603
    %v4698 = vunpack.c.h.b16 %v3603
    %v4699 = vunpack.c.l.b16 %v3604
    %v4700 = vunpack.c.l.b16 %v3605
    %v4701 = vunpack.c.h.b16 %v3605
    %v4702 = vunpack.c.l.b16 %v3606
    %v4703 = vunpack.c.h.b16 %v3606
    %v4704 = vunpack.c.l.b16 %v3607
    %v4705 = vunpack.c.h.b16 %v3607
    %v4706 = vunpack.c.l.b16 %v3608
    %v4707 = vunpack.c.l.b16 %v3609
    %v4708 = vunpack.c.h.b16 %v3609
    %v4709 = vunpack.c.l.b16 %v3610
    %v4710 = vunpack.c.h.b16 %v3610
    %v4711 = vunpack.c.l.b16 %v3611
    %v4712 = vunpack.c.h.b16 %v3611
    %v4713 = vunpack.c.l.b16 %v3612
    %v4714 = vunpack.c.l.b16 %v3613
    %v4715 = vunpack.c.h.b16 %v3613
    %v4716 = vunpack.c.l.b16 %v3614
    %v4717 = vunpack.c.h.b16 %v3614
    %v4718 = vunpack.c.l.b16 %v3615
    %v4719 = vunpack.c.h.b16 %v3615
    %v4720 = vunpack.c.l.b16 %v3616
    %v4721 = vunpack.c.l.b16 %v3617
    %v4722 = vunpack.c.h.b16 %v3617
    %v4723 = vunpack.c.l.b16 %v3618
    %v4724 = vunpack.c.h.b16 %v3618
    %v4725 = vunpack.c.l.b16 %v3619
    %v4726 = vunpack.c.h.b16 %v3619
    %v4727 = vunpack.c.l.b16 %v3620
    %v4728 = vunpack.c.l.b16 %v3621
    %v4729 = vunpack.c.h.b16 %v3621
    %v4730 = vunpack.c.l.b16 %v3622
    %v4731 = vunpack.c.h.b16 %v3622
    %v4732 = vunpack.c.l.b16 %v3623
    %v4733 = vunpack.c.h.b16 %v3623
    %v4734 = vunpack.c.l.b16 %v3624
    %v4735 = vunpack.c.l.b16 %v3625
    %v4736 = vunpack.c.h.b16 %v3625
    %v4737 = vunpack.c.l.b16 %v3626
    %v4738 = vunpack.c.h.b16 %v3626
    %v4739 = vunpack.c.l.b16 %v3627
    %v4740 = vunpack.c.h.b16 %v3627
    %v4741 = vunpack.c.l.b16 %v3628
    %v4742 = vunpack.c.l.b16 %v3629
    %v4743 = vunpack.c.h.b16 %v3629
    %v4744 = vunpack.c.l.b16 %v3630
    %v4745 = vunpack.c.h.b16 %v3630
    %v4746 = vunpack.c.l.b16 %v3631
    %v4747 = vunpack.c.h.b16 %v3631
    %v4748 = vunpack.c.l.b16 %v3632
    %v4749 = vunpack.c.l.b16 %v3633
    %v4750 = vunpack.c.h.b16 %v3633
    %v4751 = vunpack.c.l.b16 %v3634
    %v4752 = vunpack.c.h.b16 %v3634
    %v4753 = vunpack.c.l.b16 %v3635
    %v4754 = vunpack.c.h.b16 %v3635
    %v4755 = vunpack.c.l.b16 %v3636
    %v4756 = vunpack.c.l.b16 %v3637
    %v4757 = vunpack.c.h.b16 %v3637
    %v4758 = vunpack.c.l.b16 %v3638
    %v4759 = vunpack.c.h.b16 %v3638
    %v4760 = vunpack.c.l.b16 %v3639
    %v4761 = vunpack.c.h.b16 %v3639
    %v4762 = vunpack.c.l.b16 %v3640
    %v4763 = vunpack.c.l.b16 %v3641
    %v4764 = vunpack.c.h.b16 %v3641
    %v4765 = vunpack.c.l.b16 %v3642
    %v4766 = vunpack.c.h.b16 %v3642
    %v4767 = vunpack.c.l.b16 %v3643
    %v4768 = vunpack.c.h.b16 %v3643
    %v4769 = vunpack.c.l.b16 %v3644
    %v4770 = vunpack.c.l.b16 %v3645
    %v4771 = vunpack.c.h.b16 %v3645
    %v4772 = vunpack.c.l.b16 %v3646
    %v4773 = vunpack.c.h.b16 %v3646
    %v4774 = vunpack.c.l.b16 %v3647
    %v4775 = vunpack.c.h.b16 %v3647
    %v4776 = vunpack.c.l.b16 %v3648
    %v4777 = vunpack.c.l.b16 %v3649
    %v4778 = vunpack.c.h.b16 %v3649
    %v4779 = vunpack.c.l.b16 %v3650
    %v4780 = vunpack.c.h.b16 %v3650
    %v4781 = vunpack.c.l.b16 %v3651
    %v4782 = vunpack.c.h.b16 %v3651
    %v4783 = vunpack.c.l.b16 %v3652
    %v4784 = vunpack.c.l.b16 %v3653
    %v4785 = vunpack.c.h.b16 %v3653
    %v4786 = vunpack.c.l.b16 %v3654
    %v4787 = vunpack.c.h.b16 %v3654
    %v4788 = vunpack.c.l.b16 %v3655
    %v4789 = vunpack.c.h.b16 %v3655
    %v4790 = vunpack.c.l.b16 %v3656
    %v4791 = vunpack.c.l.b16 %v3657
    %v4792 = vunpack.c.h.b16 %v3657
    %v4793 = vunpack.c.l.b16 %v3658
    %v4794 = vunpack.c.h.b16 %v3658
    %v4795 = vunpack.c.l.b16 %v3659
    %v4796 = vunpack.c.h.b16 %v3659
    %v4797 = vunpack.c.l.b16 %v3660
    %v4798 = vunpack.c.l.b16 %v3661
    %v4799 = vunpack.c.h.b16 %v3661
    %v4800 = vunpack.c.l.b16 %v3662
    %v4801 = vunpack.c.h.b16 %v3662
    %v4802 = vunpack.c.l.b16 %v3663
    %v4803 = vunpack.c.h.b16 %v3663
    %v4804 = vunpack.c.l.b16 %v3664
    %v4805 = vunpack.c.l.b16 %v3665
    %v4806 = vunpack.c.h.b16 %v3665
    %v4807 = vunpack.c.l.b16 %v3666
    %v4808 = vunpack.c.h.b16 %v3666
    %v4809 = vunpack.c.l.b16 %v3667
    %v4810 = vunpack.c.h.b16 %v3667
    %v4811 = vunpack.c.l.b16 %v3668
    %v4812 = vunpack.c.l.b16 %v3669
    %v4813 = vunpack.c.h.b16 %v3669
    %v4814 = vunpack.c.l.b16 %v3670
    %v4815 = vunpack.c.h.b16 %v3670
    %v4816 = vunpack.c.l.b16 %v3671
    %v4817 = vunpack.c.h.b16 %v3671
    %v4818 = vunpack.c.l.b16 %v3672
    %v4819 = vunpack.c.l.b16 %v3673
    %v4820 = vunpack.c.h.b16 %v3673
    %v4821 = vunpack.c.l.b16 %v3674
    %v4822 = vunpack.c.h.b16 %v3674
    %v4823 = vunpack.c.l.b16 %v3675
    %v4824 = vunpack.c.h.b16 %v3675
    %v4825 = vunpack.c.l.b16 %v3676
    %v4826 = vunpack.c.l.b16 %v3677
    %v4827 = vunpack.c.h.b16 %v3677
    %v4828 = vunpack.c.l.b16 %v3678
    %v4829 = vunpack.c.h.b16 %v3678
    %v4830 = vunpack.c.l.b16 %v3679
    %v4831 = vunpack.c.h.b16 %v3679
    %v4832 = vunpack.c.l.b16 %v3680
    %v4833 = vunpack.c.l.b16 %v3681
    %v4834 = vunpack.c.h.b16 %v3681
    %v4835 = vunpack.c.l.b16 %v3682
    %v4836 = vunpack.c.h.b16 %v3682
    %v4837 = vunpack.c.l.b16 %v3683
    %v4838 = vunpack.c.h.b16 %v3683
    %v4839 = vunpack.c.l.b16 %v3684
    %v4840 = vunpack.c.l.b16 %v3685
    %v4841 = vunpack.c.h.b16 %v3685
    %v4842 = vunpack.c.l.b16 %v3686
    %v4843 = vunpack.c.h.b16 %v3686
    %v4844 = vunpack.c.l.b16 %v3687
    %v4845 = vunpack.c.h.b16 %v3687
    %v4846 = vunpack.c.l.b16 %v3688
    %v4847 = vunpack.c.l.b16 %v3689
    %v4848 = vunpack.c.h.b16 %v3689
    %v4849 = vunpack.c.l.b16 %v3690
    %v4850 = vunpack.c.h.b16 %v3690
    %v4851 = vunpack.c.l.b16 %v3691
    %v4852 = vunpack.c.h.b16 %v3691
    %v4853 = vunpack.c.l.b16 %v3692
    %v4854 = vunpack.c.l.b16 %v3693
    %v4855 = vunpack.c.h.b16 %v3693
    %v4856 = vunpack.c.l.b16 %v3694
    %v4857 = vunpack.c.h.b16 %v3694
    %v4858 = vunpack.c.l.b16 %v3695
    %v4859 = vunpack.c.h.b16 %v3695
    %v4860 = vunpack.c.l.b16 %v3696
    %v4861 = vunpack.c.l.b16 %v3697
    %v4862 = vunpack.c.h.b16 %v3697
    %v4863 = vunpack.c.l.b16 %v3698
    %v4864 = vunpack.c.h.b16 %v3698
    %v4865 = vunpack.c.l.b16 %v3699
    %v4866 = vunpack.c.h.b16 %v3699
    %v4867 = vunpack.c.l.b16 %v3700
    %v4868 = vunpack.c.l.b16 %v3701
    %v4869 = vunpack.c.h.b16 %v3701
    %v4870 = vunpack.c.l.b16 %v3702
    %v4871 = vunpack.c.h.b16 %v3702
    %v4872 = vunpack.c.l.b16 %v3703
    %v4873 = vunpack.c.h.b16 %v3703
    %v4874 = vunpack.c.l.b16 %v3704
    %v4875 = vunpack.c.l.b16 %v3705
    %v4876 = vunpack.c.h.b16 %v3705
    %v4877 = vunpack.c.l.b16 %v3706
    %v4878 = vunpack.c.h.b16 %v3706
    %v4879 = vunpack.c.l.b16 %v3707
    %v4880 = vunpack.c.h.b16 %v3707
    %v4881 = vunpack.c.l.b16 %v3708
    %v4882 = vunpack.c.l.b16 %v3709
    %v4883 = vunpack.c.h.b16 %v3709
    %v4884 = vunpack.c.l.b16 %v3710
    %v4885 = vunpack.c.h.b16 %v3710
    %v4886 = vunpack.c.l.b16 %v3711
    %v4887 = vunpack.c.h.b16 %v3711
    %v4888 = vunpack.c.l.b16 %v3712
    %v4889 = vunpack.c.l.b16 %v3713
    %v4890 = vunpack.c.h.b16 %v3713
    %v4891 = vunpack.c.l.b16 %v3714
    %v4892 = vunpack.c.h.b16 %v3714
    %v4893 = vunpack.c.l.b16 %v3715
    %v4894 = vunpack.c.h.b16 %v3715
    %v4895 = vunpack.c.l.b16 %v3716
    %v4896 = vunpack.c.l.b16 %v3717
    %v4897 = vunpack.c.h.b16 %v3717
    %v4898 = vunpack.c.l.b16 %v3718
    %v4899 = vunpack.c.h.b16 %v3718
    %v4900 = vunpack.c.l.b16 %v3719
    %v4901 = vunpack.c.h.b16 %v3719
    %v4902 = vunpack.c.l.b16 %v3720
    %v4903 = vunpack.c.l.b16 %v3721
    %v4904 = vunpack.c.h.b16 %v3721
    %v4905 = vunpack.c.l.b16 %v3722
    %v4906 = vunpack.c.h.b16 %v3722
    %v4907 = vunpack.c.l.b16 %v3723
    %v4908 = vunpack.c.h.b16 %v3723
    %v4909 = vunpack.c.l.b16 %v3724
    %v4910 = vunpack.c.l.b16 %v3725
    %v4911 = vunpack.c.h.b16 %v3725
    %v4912 = vunpack.c.l.b16 %v3726
    %v4913 = vunpack.c.h.b16 %v3726
    %v4914 = vunpack.c.l.b16 %v3727
    %v4915 = vunpack.c.h.b16 %v3727
    %v4916 = vunpack.c.l.b16 %v3728
    %v4917 = vunpack.c.l.b16 %v3729
    %v4918 = vunpack.c.h.b16 %v3729
    %v4919 = vunpack.c.l.b16 %v3730
    %v4920 = vunpack.c.h.b16 %v3730
    %v4921 = vunpack.c.l.b16 %v3731
    %v4922 = vunpack.c.h.b16 %v3731
    %v4923 = vunpack.c.l.b16 %v3732
    %v4924 = vunpack.c.l.b16 %v3733
    %v4925 = vunpack.c.h.b16 %v3733
    %v4926 = vunpack.c.l.b16 %v3734
    %v4927 = vunpack.c.h.b16 %v3734
    %v4928 = vunpack.c.l.b16 %v3735
    %v4929 = vunpack.c.h.b16 %v3735
    %v4930 = vunpack.c.l.b16 %v3736
    %v4931 = vunpack.c.l.b16 %v3737
    %v4932 = vunpack.c.h.b16 %v3737
    %v4933 = vunpack.c.l.b16 %v3738
    %v4934 = vunpack.c.h.b16 %v3738
    %v4935 = vunpack.c.l.b16 %v3739
    %v4936 = vunpack.c.h.b16 %v3739
    %v4937 = vunpack.c.l.b16 %v3740
    %v4938 = vunpack.c.l.b16 %v3741
    %v4939 = vunpack.c.h.b16 %v3741
    %v4940 = vunpack.c.l.b16 %v3742
    %v4941 = vunpack.c.h.b16 %v3742
    %v4942 = vunpack.c.l.b16 %v3743
    %v4943 = vunpack.c.h.b16 %v3743
    %v4944 = vunpack.c.l.b16 %v3744
    %v4945 = vunpack.c.l.b16 %v3745
    %v4946 = vunpack.c.h.b16 %v3745
    %v4947 = vunpack.c.l.b16 %v3746
    %v4948 = vunpack.c.h.b16 %v3746
    %v4949 = vunpack.c.l.b16 %v3747
    %v4950 = vunpack.c.h.b16 %v3747
    %v4951 = vunpack.c.l.b16 %v3748
    %v4952 = vunpack.c.l.b16 %v3749
    %v4953 = vunpack.c.h.b16 %v3749
    %v4954 = vunpack.c.l.b16 %v3750
    %v4955 = vunpack.c.h.b16 %v3750
    %v4956 = vunpack.c.l.b16 %v3751
    %v4957 = vunpack.c.h.b16 %v3751
    %v4958 = vunpack.c.l.b16 %v3752
    %v4959 = vunpack.c.l.b16 %v3753
    %v4960 = vunpack.c.h.b16 %v3753
    %v4961 = vunpack.c.l.b16 %v3754
    %v4962 = vunpack.c.h.b16 %v3754
    %v4963 = vunpack.c.l.b16 %v3755
    %v4964 = vunpack.c.h.b16 %v3755
    %v4965 = vunpack.c.l.b16 %v3756
    %v4966 = vunpack.c.l.b16 %v3757
    %v4967 = vunpack.c.h.b16 %v3757
    %v4968 = vunpack.c.l.b16 %v3758
    %v4969 = vunpack.c.h.b16 %v3758
    %v4970 = vunpack.c.l.b16 %v3759
    %v4971 = vunpack.c.h.b16 %v3759
    %v4972 = vunpack.c.l.b16 %v3760
    %v4973 = vunpack.c.l.b16 %v3761
    %v4974 = vunpack.c.h.b16 %v3761
    %v4975 = vunpack.c.l.b16 %v3762
    %v4976 = vunpack.c.h.b16 %v3762
    %v4977 = vunpack.c.l.b16 %v3763
    %v4978 = vunpack.c.h.b16 %v3763
    %v4979 = vunpack.c.l.b16 %v3764
    %v4980 = vunpack.c.l.b16 %v3765
    %v4981 = vunpack.c.h.b16 %v3765
    %v4982 = vunpack.c.l.b16 %v3766
    %v4983 = vunpack.c.h.b16 %v3766
    %v4984 = vunpack.c.l.b16 %v3767
    %v4985 = vunpack.c.h.b16 %v3767
    %v4986 = vunpack.c.l.b16 %v3768
    %v4987 = vunpack.c.l.b16 %v3769
    %v4988 = vunpack.c.h.b16 %v3769
    %v4989 = vunpack.c.l.b16 %v3770
    %v4990 = vunpack.c.h.b16 %v3770
    %v4991 = vunpack.c.l.b16 %v3771
    %v4992 = vunpack.c.h.b16 %v3771
    %v4993 = vunpack.c.l.b16 %v3772
    %v4994 = vunpack.c.l.b16 %v3773
    %v4995 = vunpack.c.h.b16 %v3773
    %v4996 = vunpack.c.l.b16 %v3774
    %v4997 = vunpack.c.h.b16 %v3774
    %v4998 = vunpack.c.l.b16 %v3775
    %v4999 = vunpack.c.h.b16 %v3775
    %v5000 = vunpack.c.l.b16 %v3776
    %v5001 = vunpack.c.l.b16 %v3777
    %v5002 = vunpack.c.h.b16 %v3777
    %v5003 = vunpack.c.l.b16 %v3778
    %v5004 = vunpack.c.h.b16 %v3778
    %v5005 = vunpack.c.l.b16 %v3779
    %v5006 = vunpack.c.h.b16 %v3779
    %v5007 = vunpack.c.l.b16 %v3780
    %v5008 = vunpack.c.l.b16 %v3781
    %v5009 = vunpack.c.h.b16 %v3781
    %v5010 = vunpack.c.l.b16 %v3782
    %v5011 = vunpack.c.h.b16 %v3782
    %v5012 = vunpack.c.l.b16 %v3783
    %v5013 = vunpack.c.h.b16 %v3783
    %v5014 = vunpack.c.l.b16 %v3784
    %v5015 = vunpack.c.l.b16 %v3785
    %v5016 = vunpack.c.h.b16 %v3785
    %v5017 = vunpack.c.l.b16 %v3786
    %v5018 = vunpack.c.h.b16 %v3786
    %v5019 = vunpack.c.l.b16 %v3787
    %v5020 = vunpack.c.h.b16 %v3787
    %v5021 = vunpack.c.l.b16 %v3788
    %v5022 = vunpack.c.l.b16 %v3789
    %v5023 = vunpack.c.h.b16 %v3789
    %v5024 = vunpack.c.l.b16 %v3790
    %v5025 = vunpack.c.h.b16 %v3790
    %v5026 = vunpack.c.l.b16 %v3791
    %v5027 = vunpack.c.h.b16 %v3791
    %v5028 = vunpack.c.l.b16 %v3792
    %v5029 = vunpack.c.l.b16 %v3793
    %v5030 = vunpack.c.h.b16 %v3793
    %v5031 = vunpack.c.l.b16 %v3794
    %v5032 = vunpack.c.h.b16 %v3794
    %v5033 = vunpack.c.l.b16 %v3795
    %v5034 = vunpack.c.h.b16 %v3795
    %v5035 = vunpack.c.l.b16 %v3796
    %v5036 = vunpack.c.l.b16 %v3797
    %v5037 = vunpack.c.h.b16 %v3797
    %v5038 = vunpack.c.l.b16 %v3798
    %v5039 = vunpack.c.h.b16 %v3798
    %v5040 = vunpack.c.l.b16 %v3799
    %v5041 = vunpack.c.h.b16 %v3799
    %v5042 = vunpack.c.l.b16 %v3800
    %v5043 = vunpack.c.l.b16 %v3801
    %v5044 = vunpack.c.h.b16 %v3801
    %v5045 = vunpack.c.l.b16 %v3802
    %v5046 = vunpack.c.h.b16 %v3802
    %v5047 = vunpack.c.l.b16 %v3803
    %v5048 = vunpack.c.h.b16 %v3803
    %v5049 = vunpack.c.l.b16 %v3804
    %v5050 = vunpack.c.l.b16 %v3805
    %v5051 = vunpack.c.h.b16 %v3805
    %v5052 = vunpack.c.l.b16 %v3806
    %v5053 = vunpack.c.h.b16 %v3806
    %v5054 = vunpack.c.l.b16 %v3807
    %v5055 = vunpack.c.h.b16 %v3807
    %v5056 = vunpack.c.l.b16 %v3808
    %v5057 = vpack.c.b16 %v4280, %v4273
    %v5058 = vpack.c.b16 %v4281, %v4274
    %v5059 = vpack.c.b16 %v4282, %v4275
    %v5060 = vpack.c.b16 %v4283, %v4276
    %v5061 = vpack.c.b16 %v4284, %v4277
    %v5062 = vpack.c.b16 %v4285, %v4278
    %v5063 = vpack.c.b16 %v4286, %v4279
    %v5064 = vpack.c.b16 %v4294, %v4287
    %v5065 = vpack.c.b16 %v4295, %v4288
    %v5066 = vpack.c.b16 %v4296, %v4289
    %v5067 = vpack.c.b16 %v4297, %v4290
    %v5068 = vpack.c.b16 %v4298, %v4291
    %v5069 = vpack.c.b16 %v4299, %v4292
    %v5070 = vpack.c.b16 %v4300, %v4293
    %v5071 = vpack.c.b16 %v4308, %v4301
    %v5072 = vpack.c.b16 %v4309, %v4302
    %v5073 = vpack.c.b16 %v4310, %v4303
    %v5074 = vpack.c.b16 %v4311, %v4304
    %v5075 = vpack.c.b16 %v4312, %v4305
    %v5076 = vpack.c.b16 %v4313, %v4306
    %v5077 = vpack.c.b16 %v4314, %v4307
    %v5078 = vpack.c.b16 %v4322, %v4315
    %v5079 = vpack.c.b16 %v4323, %v4316
    %v5080 = vpack.c.b16 %v4324, %v4317
    %v5081 = vpack.c.b16 %v4325, %v4318
    %v5082 = vpack.c.b16 %v4326, %v4319
    %v5083 = vpack.c.b16 %v4327, %v4320
    %v5084 = vpack.c.b16 %v4328, %v4321
    %v5085 = vpack.c.b16 %v4336, %v4329
    %v5086 = vpack.c.b16 %v4337, %v4330
    %v5087 = vpack.c.b16 %v4338, %v4331
    %v5088 = vpack.c.b16 %v4339, %v4332
    %v5089 = vpack.c.b16 %v4340, %v4333
    %v5090 = vpack.c.b16 %v4341, %v4334
    %v5091 = vpack.c.b16 %v4342, %v4335
    %v5092 = vpack.c.b16 %v4350, %v4343
    %v5093 = vpack.c.b16 %v4351, %v4344
    %v5094 = vpack.c.b16 %v4352, %v4345
    %v5095 = vpack.c.b16 %v4353, %v4346
    %v5096 = vpack.c.b16 %v4354, %v4347
    %v5097 = vpack.c.b16 %v4355, %v4348
    %v5098 = vpack.c.b16 %v4356, %v4349
    %v5099 = vpack.c.b16 %v4364, %v4357
    %v5100 = vpack.c.b16 %v4365, %v4358
    %v5101 = vpack.c.b16 %v4366, %v4359
    %v5102 = vpack.c.b16 %v4367, %v4360
    %v5103 = vpack.c.b16 %v4368, %v4361
    %v5104 = vpack.c.b16 %v4369, %v4362
    %v5105 = vpack.c.b16 %v4370, %v4363
    %v5106 = vpack.c.b16 %v4378, %v4371
    %v5107 = vpack.c.b16 %v4379, %v4372
    %v5108 = vpack.c.b16 %v4380, %v4373
    %v5109 = vpack.c.b16 %v4381, %v4374
    %v5110 = vpack.c.b16 %v4382, %v4375
    %v5111 = vpack.c.b16 %v4383, %v4376
    %v5112 = vpack.c.b16 %v4384, %v4377
    %v5113 = vpack.c.b16 %v4392, %v4385
    %v5114 = vpack.c.b16 %v4393, %v4386
    %v5115 = vpack.c.b16 %v4394, %v4387
    %v5116 = vpack.c.b16 %v4395, %v4388
    %v5117 = vpack.c.b16 %v4396, %v4389
    %v5118 = vpack.c.b16 %v4397, %v4390
    %v5119 = vpack.c.b16 %v4398, %v4391
    %v5120 = vpack.c.b16 %v4406, %v4399
    %v5121 = vpack.c.b16 %v4407, %v4400
    %v5122 = vpack.c.b16 %v4408, %v4401
    %v5123 = vpack.c.b16 %v4409, %v4402
    %v5124 = vpack.c.b16 %v4410, %v4403
    %v5125 = vpack.c.b16 %v4411, %v4404
    %v5126 = vpack.c.b16 %v4412, %v4405
    %v5127 = vpack.c.b16 %v4420, %v4413
    %v5128 = vpack.c.b16 %v4421, %v4414
    %v5129 = vpack.c.b16 %v4422, %v4415
    %v5130 = vpack.c.b16 %v4423, %v4416
    %v5131 = vpack.c.b16 %v4424, %v4417
    %v5132 = vpack.c.b16 %v4425, %v4418
    %v5133 = vpack.c.b16 %v4426, %v4419
    %v5134 = vpack.c.b16 %v4434, %v4427
    %v5135 = vpack.c.b16 %v4435, %v4428
    %v5136 = vpack.c.b16 %v4436, %v4429
    %v5137 = vpack.c.b16 %v4437, %v4430
    %v5138 = vpack.c.b16 %v4438, %v4431
    %v5139 = vpack.c.b16 %v4439, %v4432
    %v5140 = vpack.c.b16 %v4440, %v4433
    %v5141 = vpack.c.b16 %v4448, %v4441
    %v5142 = vpack.c.b16 %v4449, %v4442
    %v5143 = vpack.c.b16 %v4450, %v4443
    %v5144 = vpack.c.b16 %v4451, %v4444
    %v5145 = vpack.c.b16 %v4452, %v4445
    %v5146 = vpack.c.b16 %v4453, %v4446
    %v5147 = vpack.c.b16 %v4454, %v4447
    %v5148 = vpack.c.b16 %v4462, %v4455
    %v5149 = vpack.c.b16 %v4463, %v4456
    %v5150 = vpack.c.b16 %v4464, %v4457
    %v5151 = vpack.c.b16 %v4465, %v4458
    %v5152 = vpack.c.b16 %v4466, %v4459
    %v5153 = vpack.c.b16 %v4467, %v4460
    %v5154 = vpack.c.b16 %v4468, %v4461
    %v5155 = vpack.c.b16 %v4476, %v4469
    %v5156 = vpack.c.b16 %v4477, %v4470
    %v5157 = vpack.c.b16 %v4478, %v4471
    %v5158 = vpack.c.b16 %v4479, %v4472
    %v5159 = vpack.c.b16 %v4480, %v4473
    %v5160 = vpack.c.b16 %v4481, %v4474
    %v5161 = vpack.c.b16 %v4482, %v4475
    %v5162 = vpack.c.b16 %v4490, %v4483
    %v5163 = vpack.c.b16 %v4491, %v4484
    %v5164 = vpack.c.b16 %v4492, %v4485
    %v5165 = vpack.c.b16 %v4493, %v4486
    %v5166 = vpack.c.b16 %v4494, %v4487
    %v5167 = vpack.c.b16 %v4495, %v4488
    %v5168 = vpack.c.b16 %v4496, %v4489
    %v5169 = vpack.c.b16 %v4504, %v4497
    %v5170 = vpack.c.b16 %v4505, %v4498
    %v5171 = vpack.c.b16 %v4506, %v4499
    %v5172 = vpack.c.b16 %v4507, %v4500
    %v5173 = vpack.c.b16 %v4508, %v4501
    %v5174 = vpack.c.b16 %v4509, %v4502
    %v5175 = vpack.c.b16 %v4510, %v4503
    %v5176 = vpack.c.b16 %v4518, %v4511
    %v5177 = vpack.c.b16 %v4519, %v4512
    %v5178 = vpack.c.b16 %v4520, %v4513
    %v5179 = vpack.c.b16 %v4521, %v4514
    %v5180 = vpack.c.b16 %v4522, %v4515
    %v5181 = vpack.c.b16 %v4523, %v4516
    %v5182 = vpack.c.b16 %v4524, %v4517
    %v5183 = vpack.c.b16 %v4532, %v4525
    %v5184 = vpack.c.b16 %v4533, %v4526
    %v5185 = vpack.c.b16 %v4534, %v4527
    %v5186 = vpack.c.b16 %v4535, %v4528
    %v5187 = vpack.c.b16 %v4536, %v4529
    %v5188 = vpack.c.b16 %v4537, %v4530
    %v5189 = vpack.c.b16 %v4538, %v4531
    %v5190 = vpack.c.b16 %v4546, %v4539
    %v5191 = vpack.c.b16 %v4547, %v4540
    %v5192 = vpack.c.b16 %v4548, %v4541
    %v5193 = vpack.c.b16 %v4549, %v4542
    %v5194 = vpack.c.b16 %v4550, %v4543
    %v5195 = vpack.c.b16 %v4551, %v4544
    %v5196 = vpack.c.b16 %v4552, %v4545
    %v5197 = vpack.c.b16 %v4560, %v4553
    %v5198 = vpack.c.b16 %v4561, %v4554
    %v5199 = vpack.c.b16 %v4562, %v4555
    %v5200 = vpack.c.b16 %v4563, %v4556
    %v5201 = vpack.c.b16 %v4564, %v4557
    %v5202 = vpack.c.b16 %v4565, %v4558
    %v5203 = vpack.c.b16 %v4566, %v4559
    %v5204 = vpack.c.b16 %v4574, %v4567
    %v5205 = vpack.c.b16 %v4575, %v4568
    %v5206 = vpack.c.b16 %v4576, %v4569
    %v5207 = vpack.c.b16 %v4577, %v4570
    %v5208 = vpack.c.b16 %v4578, %v4571
    %v5209 = vpack.c.b16 %v4579, %v4572
    %v5210 = vpack.c.b16 %v4580, %v4573
    %v5211 = vpack.c.b16 %v4588, %v4581
    %v5212 = vpack.c.b16 %v4589, %v4582
    %v5213 = vpack.c.b16 %v4590, %v4583
    %v5214 = vpack.c.b16 %v4591, %v4584
    %v5215 = vpack.c.b16 %v4592, %v4585
    %v5216 = vpack.c.b16 %v4593, %v4586
    %v5217 = vpack.c.b16 %v4594, %v4587
    %v5218 = vpack.c.b16 %v4602, %v4595
    %v5219 = vpack.c.b16 %v4603, %v4596
    %v5220 = vpack.c.b16 %v4604, %v4597
    %v5221 = vpack.c.b16 %v4605, %v4598
    %v5222 = vpack.c.b16 %v4606, %v4599
    %v5223 = vpack.c.b16 %v4607, %v4600
    %v5224 = vpack.c.b16 %v4608, %v4601
    %v5225 = vpack.c.b16 %v4616, %v4609
    %v5226 = vpack.c.b16 %v4617, %v4610
    %v5227 = vpack.c.b16 %v4618, %v4611
    %v5228 = vpack.c.b16 %v4619, %v4612
    %v5229 = vpack.c.b16 %v4620, %v4613
    %v5230 = vpack.c.b16 %v4621, %v4614
    %v5231 = vpack.c.b16 %v4622, %v4615
    %v5232 = vpack.c.b16 %v4630, %v4623
    %v5233 = vpack.c.b16 %v4631, %v4624
    %v5234 = vpack.c.b16 %v4632, %v4625
    %v5235 = vpack.c.b16 %v4633, %v4626
    %v5236 = vpack.c.b16 %v4634, %v4627
    %v5237 = vpack.c.b16 %v4635, %v4628
    %v5238 = vpack.c.b16 %v4636, %v4629
    %v5239 = vpack.c.b16 %v4644, %v4637
    %v5240 = vpack.c.b16 %v4645, %v4638
    %v5241 = vpack.c.b16 %v4646, %v4639
    %v5242 = vpack.c.b16 %v4647, %v4640
    %v5243 = vpack.c.b16 %v4648, %v4641
    %v5244 = vpack.c.b16 %v4649, %v4642
    %v5245 = vpack.c.b16 %v4650, %v4643
    %v5246 = vpack.c.b16 %v4658, %v4651
    %v5247 = vpack.c.b16 %v4659, %v4652
    %v5248 = vpack.c.b16 %v4660, %v4653
    %v5249 = vpack.c.b16 %v4661, %v4654
    %v5250 = vpack.c.b16 %v4662, %v4655
    %v5251 = vpack.c.b16 %v4663, %v4656
    %v5252 = vpack.c.b16 %v4664, %v4657
    %v5253 = vpack.c.b16 %v4672, %v4665
    %v5254 = vpack.c.b16 %v4673, %v4666
    %v5255 = vpack.c.b16 %v4674, %v4667
    %v5256 = vpack.c.b16 %v4675, %v4668
    %v5257 = vpack.c.b16 %v4676, %v4669
    %v5258 = vpack.c.b16 %v4677, %v4670
    %v5259 = vpack.c.b16 %v4678, %v4671
    %v5260 = vpack.c.b16 %v4686, %v4679
    %v5261 = vpack.c.b16 %v4687, %v4680
    %v5262 = vpack.c.b16 %v4688, %v4681
    %v5263 = vpack.c.b16 %v4689, %v4682
    %v5264 = vpack.c.b16 %v4690, %v4683
    %v5265 = vpack.c.b16 %v4691, %v4684
    %v5266 = vpack.c.b16 %v4692, %v4685
    %v5267 = vpack.c.b16 %v4700, %v4693
    %v5268 = vpack.c.b16 %v4701, %v4694
    %v5269 = vpack.c.b16 %v4702, %v4695
    %v5270 = vpack.c.b16 %v4703, %v4696
    %v5271 = vpack.c.b16 %v4704, %v4697
    %v5272 = vpack.c.b16 %v4705, %v4698
    %v5273 = vpack.c.b16 %v4706, %v4699
    %v5274 = vpack.c.b16 %v4714, %v4707
    %v5275 = vpack.c.b16 %v4715, %v4708
    %v5276 = vpack.c.b16 %v4716, %v4709
    %v5277 = vpack.c.b16 %v4717, %v4710
    %v5278 = vpack.c.b16 %v4718, %v4711
    %v5279 = vpack.c.b16 %v4719, %v4712
    %v5280 = vpack.c.b16 %v4720, %v4713
    %v5281 = vpack.c.b16 %v4728, %v4721
    %v5282 = vpack.c.b16 %v4729, %v4722
    %v5283 = vpack.c.b16 %v4730, %v4723
    %v5284 = vpack.c.b16 %v4731, %v4724
    %v5285 = vpack.c.b16 %v4732, %v4725
    %v5286 = vpack.c.b16 %v4733, %v4726
    %v5287 = vpack.c.b16 %v4734, %v4727
    %v5288 = vpack.c.b16 %v4742, %v4735
    %v5289 = vpack.c.b16 %v4743, %v4736
    %v5290 = vpack.c.b16 %v4744, %v4737
    %v5291 = vpack.c.b16 %v4745, %v4738
    %v5292 = vpack.c.b16 %v4746, %v4739
    %v5293 = vpack.c.b16 %v4747, %v4740
    %v5294 = vpack.c.b16 %v4748, %v4741
    %v5295 = vpack.c.b16 %v4756, %v4749
    %v5296 = vpack.c.b16 %v4757, %v4750
    %v5297 = vpack.c.b16 %v4758, %v4751
    %v5298 = vpack.c.b16 %v4759, %v4752
    %v5299 = vpack.c.b16 %v4760, %v4753
    %v5300 = vpack.c.b16 %v4761, %v4754
    %v5301 = vpack.c.b16 %v4762, %v4755
    %v5302 = vpack.c.b16 %v4770, %v4763
    %v5303 = vpack.c.b16 %v4771, %v4764
    %v5304 = vpack.c.b16 %v4772, %v4765
    %v5305 = vpack.c.b16 %v4773, %v4766
    %v5306 = vpack.c.b16 %v4774, %v4767
    %v5307 = vpack.c.b16 %v4775, %v4768
    %v5308 = vpack.c.b16 %v4776, %v4769
    %v5309 = vpack.c.b16 %v4784, %v4777
    %v5310 = vpack.c.b16 %v4785, %v4778
    %v5311 = vpack.c.b16 %v4786, %v4779
    %v5312 = vpack.c.b16 %v4787, %v4780
    %v5313 = vpack.c.b16 %v4788, %v4781
    %v5314 = vpack.c.b16 %v4789, %v4782
    %v5315 = vpack.c.b16 %v4790, %v4783
    %v5316 = vpack.c.b16 %v4798, %v4791
    %v5317 = vpack.c.b16 %v4799, %v4792
    %v5318 = vpack.c.b16 %v4800, %v4793
    %v5319 = vpack.c.b16 %v4801, %v4794
    %v5320 = vpack.c.b16 %v4802, %v4795
    %v5321 = vpack.c.b16 %v4803, %v4796
    %v5322 = vpack.c.b16 %v4804, %v4797
    %v5323 = vpack.c.b16 %v4812, %v4805
    %v5324 = vpack.c.b16 %v4813, %v4806
    %v5325 = vpack.c.b16 %v4814, %v4807
    %v5326 = vpack.c.b16 %v4815, %v4808
    %v5327 = vpack.c.b16 %v4816, %v4809
    %v5328 = vpack.c.b16 %v4817, %v4810
    %v5329 = vpack.c.b16 %v4818, %v4811
    %v5330 = vpack.c.b16 %v4826, %v4819
    %v5331 = vpack.c.b16 %v4827, %v4820
    %v5332 = vpack.c.b16 %v4828, %v4821
    %v5333 = vpack.c.b16 %v4829, %v4822
    %v5334 = vpack.c.b16 %v4830, %v4823
    %v5335 = vpack.c.b16 %v4831, %v4824
    %v5336 = vpack.c.b16 %v4832, %v4825
    %v5337 = vpack.c.b16 %v4840, %v4833
    %v5338 = vpack.c.b16 %v4841, %v4834
    %v5339 = vpack.c.b16 %v4842, %v4835
    %v5340 = vpack.c.b16 %v4843, %v4836
    %v5341 = vpack.c.b16 %v4844, %v4837
    %v5342 = vpack.c.b16 %v4845, %v4838
    %v5343 = vpack.c.b16 %v4846, %v4839
    %v5344 = vpack.c.b16 %v4854, %v4847
    %v5345 = vpack.c.b16 %v4855, %v4848
    %v5346 = vpack.c.b16 %v4856, %v4849
    %v5347 = vpack.c.b16 %v4857, %v4850
    %v5348 = vpack.c.b16 %v4858, %v4851
    %v5349 = vpack.c.b16 %v4859, %v4852
    %v5350 = vpack.c.b16 %v4860, %v4853
    %v5351 = vpack.c.b16 %v4868, %v4861
    %v5352 = vpack.c.b16 %v4869, %v4862
    %v5353 = vpack.c.b16 %v4870, %v4863
    %v5354 = vpack.c.b16 %v4871, %v4864
    %v5355 = vpack.c.b16 %v4872, %v4865
    %v5356 = vpack.c.b16 %v4873, %v4866
    %v5357 = vpack.c.b16 %v4874, %v4867
    %v5358 = vpack.c.b16 %v4882, %v4875
    %v5359 = vpack.c.b16 %v4883, %v4876
    %v5360 = vpack.c.b16 %v4884, %v4877
    %v5361 = vpack.c.b16 %v4885, %v4878
    %v5362 = vpack.c.b16 %v4886, %v4879
    %v5363 = vpack.c.b16 %v4887, %v4880
    %v5364 = vpack.c.b16 %v4888, %v4881
    %v5365 = vpack.c.b16 %v4896, %v4889
    %v5366 = vpack.c.b16 %v4897, %v4890
    %v5367 = vpack.c.b16 %v4898, %v4891
    %v5368 = vpack.c.b16 %v4899, %v4892
    %v5369 = vpack.c.b16 %v4900, %v4893
    %v5370 = vpack.c.b16 %v4901, %v4894
    %v5371 = vpack.c.b16 %v4902, %v4895
    %v5372 = vpack.c.b16 %v4910, %v4903
    %v5373 = vpack.c.b16 %v4911, %v4904
    %v5374 = vpack.c.b16 %v4912, %v4905
    %v5375 = vpack.c.b16 %v4913, %v4906
    %v5376 = vpack.c.b16 %v4914, %v4907
    %v5377 = vpack.c.b16 %v4915, %v4908
    %v5378 = vpack.c.b16 %v4916, %v4909
    %v5379 = vpack.c.b16 %v4924, %v4917
    %v5380 = vpack.c.b16 %v4925, %v4918
    %v5381 = vpack.c.b16 %v4926, %v4919
    %v5382 = vpack.c.b16 %v4927, %v4920
    %v5383 = vpack.c.b16 %v4928, %v4921
    %v5384 = vpack.c.b16 %v4929, %v4922
    %v5385 = vpack.c.b16 %v4930, %v4923
    %v5386 = vpack.c.b16 %v4938, %v4931
    %v5387 = vpack.c.b16 %v4939, %v4932
    %v5388 = vpack.c.b16 %v4940, %v4933
    %v5389 = vpack.c.b16 %v4941, %v4934
    %v5390 = vpack.c.b16 %v4942, %v4935
    %v5391 = vpack.c.b16 %v4943, %v4936
    %v5392 = vpack.c.b16 %v4944, %v4937
    %v5393 = vpack.c.b16 %v4952, %v4945
    %v5394 = vpack.c.b16 %v4953, %v4946
    %v5395 = vpack.c.b16 %v4954, %v4947
    %v5396 = vpack.c.b16 %v4955, %v4948
    %v5397 = vpack.c.b16 %v4956, %v4949
    %v5398 = vpack.c.b16 %v4957, %v4950
    %v5399 = vpack.c.b16 %v4958, %v4951
    %v5400 = vpack.c.b16 %v4966, %v4959
    %v5401 = vpack.c.b16 %v4967, %v4960
    %v5402 = vpack.c.b16 %v4968, %v4961
    %v5403 = vpack.c.b16 %v4969, %v4962
    %v5404 = vpack.c.b16 %v4970, %v4963
    %v5405 = vpack.c.b16 %v4971, %v4964
    %v5406 = vpack.c.b16 %v4972, %v4965
    %v5407 = vpack.c.b16 %v4980, %v4973
    %v5408 = vpack.c.b16 %v4981, %v4974
    %v5409 = vpack.c.b16 %v4982, %v4975
    %v5410 = vpack.c.b16 %v4983, %v4976
    %v5411 = vpack.c.b16 %v4984, %v4977
    %v5412 = vpack.c.b16 %v4985, %v4978
    %v5413 = vpack.c.b16 %v4986, %v4979
    %v5414 = vpack.c.b16 %v4994, %v4987
    %v5415 = vpack.c.b16 %v4995, %v4988
    %v5416 = vpack.c.b16 %v4996, %v4989
    %v5417 = vpack.c.b16 %v4997, %v4990
    %v5418 = vpack.c.b16 %v4998, %v4991
    %v5419 = vpack.c.b16 %v4999, %v4992
    %v5420 = vpack.c.b16 %v5000, %v4993
    %v5421 = vpack.c.b16 %v5008, %v5001
    %v5422 = vpack.c.b16 %v5009, %v5002
    %v5423 = vpack.c.b16 %v5010, %v5003
    %v5424 = vpack.c.b16 %v5011, %v5004
    %v5425 = vpack.c.b16 %v5012, %v5005
    %v5426 = vpack.c.b16 %v5013, %v5006
    %v5427 = vpack.c.b16 %v5014, %v5007
    %v5428 = vpack.c.b16 %v5022, %v5015
    %v5429 = vpack.c.b16 %v5023, %v5016
    %v5430 = vpack.c.b16 %v5024, %v5017
    %v5431 = vpack.c.b16 %v5025, %v5018
    %v5432 = vpack.c.b16 %v5026, %v5019
    %v5433 = vpack.c.b16 %v5027, %v5020
    %v5434 = vpack.c.b16 %v5028, %v5021
    %v5435 = vpack.c.b16 %v5036, %v5029
    %v5436 = vpack.c.b16 %v5037, %v5030
    %v5437 = vpack.c.b16 %v5038, %v5031
    %v5438 = vpack.c.b16 %v5039, %v5032
    %v5439 = vpack.c.b16 %v5040, %v5033
    %v5440 = vpack.c.b16 %v5041, %v5034
    %v5441 = vpack.c.b16 %v5042, %v5035
    %v5442 = vpack.c.b16 %v5050, %v5043
    %v5443 = vpack.c.b16 %v5051, %v5044
    %v5444 = vpack.c.b16 %v5052, %v5045
    %v5445 = vpack.c.b16 %v5053, %v5046
    %v5446 = vpack.c.b16 %v5054, %v5047
    %v5447 = vpack.c.b16 %v5055, %v5048
    %v5448 = vpack.c.b16 %v5056, %v5049
    %5841 = vmatpush.bf16.msra.mxu0 %v5106
    %5842 = vmatpush.bf16.msra.mxu0 %v5099
    %5843 = vmatpush.bf16.msra.mxu0 %v5092
    %5844 = vmatpush.bf16.msra.mxu0 %v5085
    %5845 = vmatpush.bf16.msra.mxu0 %v5078
    %5846 = vmatpush.bf16.msra.mxu0 %v5071
    %5847 = vmatpush.bf16.msra.mxu0 %v5064
    %5848 = vmatpush.bf16.msra.mxu0 %v5057
    %5849 = vmatmul.bf16.gmra.mxu0 %v3354
    %v5850 = vpop.f32.mrf.mxu0
    %v5851 = vadd.f32 %v3811, %v5850
    %v5852 = vpop.f32.mrf.mxu0
    %v5853 = vadd.f32 %v3811, %v5852
    %5854 = vdwg.mxu0
    %5855 = vmatpush.bf16.msra.mxu0 %v5162
    %5856 = vmatpush.bf16.msra.mxu0 %v5155
    %5857 = vmatpush.bf16.msra.mxu0 %v5148
    %5858 = vmatpush.bf16.msra.mxu0 %v5141
    %5859 = vmatpush.bf16.msra.mxu0 %v5134
    %5860 = vmatpush.bf16.msra.mxu0 %v5127
    %5861 = vmatpush.bf16.msra.mxu0 %v5120
    %5862 = vmatpush.bf16.msra.mxu0 %v5113
    %5863 = vmatmul.bf16.gmra.mxu0 %v3355
    %v5864 = vpop.f32.mrf.mxu0
    %v5865 = vadd.f32 %v5851, %v5864
    %v5866 = vpop.f32.mrf.mxu0
    %v5867 = vadd.f32 %v5853, %v5866
    %5868 = vdwg.mxu0
    %5869 = vmatpush.bf16.msra.mxu0 %v5218
    %5870 = vmatpush.bf16.msra.mxu0 %v5211
    %5871 = vmatpush.bf16.msra.mxu0 %v5204
    %5872 = vmatpush.bf16.msra.mxu0 %v5197
    %5873 = vmatpush.bf16.msra.mxu0 %v5190
    %5874 = vmatpush.bf16.msra.mxu0 %v5183
    %5875 = vmatpush.bf16.msra.mxu0 %v5176
    %5876 = vmatpush.bf16.msra.mxu0 %v5169
    %5877 = vmatmul.bf16.gmra.mxu0 %v3356
    %v5878 = vpop.f32.mrf.mxu0
    %v5879 = vadd.f32 %v5865, %v5878
    %v5880 = vpop.f32.mrf.mxu0
    %v5881 = vadd.f32 %v5867, %v5880
    %5882 = vdwg.mxu0
    %5883 = vmatpush.bf16.msra.mxu0 %v5274
    %5884 = vmatpush.bf16.msra.mxu0 %v5267
    %5885 = vmatpush.bf16.msra.mxu0 %v5260
    %5886 = vmatpush.bf16.msra.mxu0 %v5253
    %5887 = vmatpush.bf16.msra.mxu0 %v5246
    %5888 = vmatpush.bf16.msra.mxu0 %v5239
    %5889 = vmatpush.bf16.msra.mxu0 %v5232
    %5890 = vmatpush.bf16.msra.mxu0 %v5225
    %5891 = vmatmul.bf16.gmra.mxu0 %v3357
    %v5892 = vpop.f32.mrf.mxu0
    %v5893 = vadd.f32 %v5879, %v5892
    %v5894 = vpop.f32.mrf.mxu0
    %v5895 = vadd.f32 %v5881, %v5894
    %5896 = vdwg.mxu0
    %5897 = vmatpush.bf16.msra.mxu0 %v5330
    %5898 = vmatpush.bf16.msra.mxu0 %v5323
    %5899 = vmatpush.bf16.msra.mxu0 %v5316
    %5900 = vmatpush.bf16.msra.mxu0 %v5309
    %5901 = vmatpush.bf16.msra.mxu0 %v5302
    %5902 = vmatpush.bf16.msra.mxu0 %v5295
    %5903 = vmatpush.bf16.msra.mxu0 %v5288
    %5904 = vmatpush.bf16.msra.mxu0 %v5281
    %5905 = vmatmul.bf16.gmra.mxu0 %v3358
    %v5906 = vpop.f32.mrf.mxu0
    %v5907 = vadd.f32 %v5893, %v5906
    %v5908 = vpop.f32.mrf.mxu0
    %v5909 = vadd.f32 %v5895, %v5908
    %5910 = vdwg.mxu0
    %5911 = vmatpush.bf16.msra.mxu0 %v5386
    %5912 = vmatpush.bf16.msra.mxu0 %v5379
    %5913 = vmatpush.bf16.msra.mxu0 %v5372
    %5914 = vmatpush.bf16.msra.mxu0 %v5365
    %5915 = vmatpush.bf16.msra.mxu0 %v5358
    %5916 = vmatpush.bf16.msra.mxu0 %v5351
    %5917 = vmatpush.bf16.msra.mxu0 %v5344
    %5918 = vmatpush.bf16.msra.mxu0 %v5337
    %5919 = vmatmul.bf16.gmra.mxu0 %v3359
    %v5920 = vpop.f32.mrf.mxu0
    %v5921 = vadd.f32 %v5907, %v5920
    %v5922 = vpop.f32.mrf.mxu0
    %v5923 = vadd.f32 %v5909, %v5922
    %5924 = vdwg.mxu0
    %5925 = vmatpush.bf16.msra.mxu0 %v5442
    %5926 = vmatpush.bf16.msra.mxu0 %v5435
    %5927 = vmatpush.bf16.msra.mxu0 %v5428
    %5928 = vmatpush.bf16.msra.mxu0 %v5421
    %5929 = vmatpush.bf16.msra.mxu0 %v5414
    %5930 = vmatpush.bf16.msra.mxu0 %v5407
    %5931 = vmatpush.bf16.msra.mxu0 %v5400
    %5932 = vmatpush.bf16.msra.mxu0 %v5393
    %5933 = vmatmul.bf16.gmra.mxu0 %v3360
    %v5934 = vpop.f32.mrf.mxu0
    %v5935 = vadd.f32 %v5921, %v5934
    %v5936 = vpop.f32.mrf.mxu0
    %v5937 = vadd.f32 %v5923, %v5936
    %5938 = vdwg.mxu0
    %5939 = vmatpush.bf16.msra.mxu0 %v5107
    %5940 = vmatpush.bf16.msra.mxu0 %v5100
    %5941 = vmatpush.bf16.msra.mxu0 %v5093
    %5942 = vmatpush.bf16.msra.mxu0 %v5086
    %5943 = vmatpush.bf16.msra.mxu0 %v5079
    %5944 = vmatpush.bf16.msra.mxu0 %v5072
    %5945 = vmatpush.bf16.msra.mxu0 %v5065
    %5946 = vmatpush.bf16.msra.mxu0 %v5058
    %5947 = vmatmul.bf16.gmra.mxu0 %v3354
    %v5948 = vpop.f32.mrf.mxu0
    %v5949 = vadd.f32 %v3812, %v5948
    %v5950 = vpop.f32.mrf.mxu0
    %v5951 = vadd.f32 %v3812, %v5950
    %5952 = vdwg.mxu0
    %5953 = vmatpush.bf16.msra.mxu0 %v5163
    %5954 = vmatpush.bf16.msra.mxu0 %v5156
    %5955 = vmatpush.bf16.msra.mxu0 %v5149
    %5956 = vmatpush.bf16.msra.mxu0 %v5142
    %5957 = vmatpush.bf16.msra.mxu0 %v5135
    %5958 = vmatpush.bf16.msra.mxu0 %v5128
    %5959 = vmatpush.bf16.msra.mxu0 %v5121
    %5960 = vmatpush.bf16.msra.mxu0 %v5114
    %5961 = vmatmul.bf16.gmra.mxu0 %v3355
    %v5962 = vpop.f32.mrf.mxu0
    %v5963 = vadd.f32 %v5949, %v5962
    %v5964 = vpop.f32.mrf.mxu0
    %v5965 = vadd.f32 %v5951, %v5964
    %5966 = vdwg.mxu0
    %5967 = vmatpush.bf16.msra.mxu0 %v5219
    %5968 = vmatpush.bf16.msra.mxu0 %v5212
    %5969 = vmatpush.bf16.msra.mxu0 %v5205
    %5970 = vmatpush.bf16.msra.mxu0 %v5198
    %5971 = vmatpush.bf16.msra.mxu0 %v5191
    %5972 = vmatpush.bf16.msra.mxu0 %v5184
    %5973 = vmatpush.bf16.msra.mxu0 %v5177
    %5974 = vmatpush.bf16.msra.mxu0 %v5170
    %5975 = vmatmul.bf16.gmra.mxu0 %v3356
    %v5976 = vpop.f32.mrf.mxu0
    %v5977 = vadd.f32 %v5963, %v5976
    %v5978 = vpop.f32.mrf.mxu0
    %v5979 = vadd.f32 %v5965, %v5978
    %5980 = vdwg.mxu0
    %5981 = vmatpush.bf16.msra.mxu0 %v5275
    %5982 = vmatpush.bf16.msra.mxu0 %v5268
    %5983 = vmatpush.bf16.msra.mxu0 %v5261
    %5984 = vmatpush.bf16.msra.mxu0 %v5254
    %5985 = vmatpush.bf16.msra.mxu0 %v5247
    %5986 = vmatpush.bf16.msra.mxu0 %v5240
    %5987 = vmatpush.bf16.msra.mxu0 %v5233
    %5988 = vmatpush.bf16.msra.mxu0 %v5226
    %5989 = vmatmul.bf16.gmra.mxu0 %v3357
    %v5990 = vpop.f32.mrf.mxu0
    %v5991 = vadd.f32 %v5977, %v5990
    %v5992 = vpop.f32.mrf.mxu0
    %v5993 = vadd.f32 %v5979, %v5992
    %5994 = vdwg.mxu0
    %5995 = vmatpush.bf16.msra.mxu0 %v5331
    %5996 = vmatpush.bf16.msra.mxu0 %v5324
    %5997 = vmatpush.bf16.msra.mxu0 %v5317
    %5998 = vmatpush.bf16.msra.mxu0 %v5310
    %5999 = vmatpush.bf16.msra.mxu0 %v5303
    %6000 = vmatpush.bf16.msra.mxu0 %v5296
    %6001 = vmatpush.bf16.msra.mxu0 %v5289
    %6002 = vmatpush.bf16.msra.mxu0 %v5282
    %6003 = vmatmul.bf16.gmra.mxu0 %v3358
    %v6004 = vpop.f32.mrf.mxu0
    %v6005 = vadd.f32 %v5991, %v6004
    %v6006 = vpop.f32.mrf.mxu0
    %v6007 = vadd.f32 %v5993, %v6006
    %6008 = vdwg.mxu0
    %6009 = vmatpush.bf16.msra.mxu0 %v5387
    %6010 = vmatpush.bf16.msra.mxu0 %v5380
    %6011 = vmatpush.bf16.msra.mxu0 %v5373
    %6012 = vmatpush.bf16.msra.mxu0 %v5366
    %6013 = vmatpush.bf16.msra.mxu0 %v5359
    %6014 = vmatpush.bf16.msra.mxu0 %v5352
    %6015 = vmatpush.bf16.msra.mxu0 %v5345
    %6016 = vmatpush.bf16.msra.mxu0 %v5338
    %6017 = vmatmul.bf16.gmra.mxu0 %v3359
    %v6018 = vpop.f32.mrf.mxu0
    %v6019 = vadd.f32 %v6005, %v6018
    %v6020 = vpop.f32.mrf.mxu0
    %v6021 = vadd.f32 %v6007, %v6020
    %6022 = vdwg.mxu0
    %6023 = vmatpush.bf16.msra.mxu0 %v5443
    %6024 = vmatpush.bf16.msra.mxu0 %v5436
    %6025 = vmatpush.bf16.msra.mxu0 %v5429
    %6026 = vmatpush.bf16.msra.mxu0 %v5422
    %6027 = vmatpush.bf16.msra.mxu0 %v5415
    %6028 = vmatpush.bf16.msra.mxu0 %v5408
    %6029 = vmatpush.bf16.msra.mxu0 %v5401
    %6030 = vmatpush.bf16.msra.mxu0 %v5394
    %6031 = vmatmul.bf16.gmra.mxu0 %v3360
    %v6032 = vpop.f32.mrf.mxu0
    %v6033 = vadd.f32 %v6019, %v6032
    %v6034 = vpop.f32.mrf.mxu0
    %v6035 = vadd.f32 %v6021, %v6034
    %6036 = vdwg.mxu0
    %6037 = vmatpush.bf16.msra.mxu0 %v5108
    %6038 = vmatpush.bf16.msra.mxu0 %v5101
    %6039 = vmatpush.bf16.msra.mxu0 %v5094
    %6040 = vmatpush.bf16.msra.mxu0 %v5087
    %6041 = vmatpush.bf16.msra.mxu0 %v5080
    %6042 = vmatpush.bf16.msra.mxu0 %v5073
    %6043 = vmatpush.bf16.msra.mxu0 %v5066
    %6044 = vmatpush.bf16.msra.mxu0 %v5059
    %6045 = vmatmul.bf16.gmra.mxu0 %v3354
    %v6046 = vpop.f32.mrf.mxu0
    %v6047 = vadd.f32 %v3813, %v6046
    %v6048 = vpop.f32.mrf.mxu0
    %v6049 = vadd.f32 %v3813, %v6048
    %6050 = vdwg.mxu0
    %6051 = vmatpush.bf16.msra.mxu0 %v5164
    %6052 = vmatpush.bf16.msra.mxu0 %v5157
    %6053 = vmatpush.bf16.msra.mxu0 %v5150
    %6054 = vmatpush.bf16.msra.mxu0 %v5143
    %6055 = vmatpush.bf16.msra.mxu0 %v5136
    %6056 = vmatpush.bf16.msra.mxu0 %v5129
    %6057 = vmatpush.bf16.msra.mxu0 %v5122
    %6058 = vmatpush.bf16.msra.mxu0 %v5115
    %6059 = vmatmul.bf16.gmra.mxu0 %v3355
    %v6060 = vpop.f32.mrf.mxu0
    %v6061 = vadd.f32 %v6047, %v6060
    %v6062 = vpop.f32.mrf.mxu0
    %v6063 = vadd.f32 %v6049, %v6062
    %6064 = vdwg.mxu0
    %6065 = vmatpush.bf16.msra.mxu0 %v5220
    %6066 = vmatpush.bf16.msra.mxu0 %v5213
    %6067 = vmatpush.bf16.msra.mxu0 %v5206
    %6068 = vmatpush.bf16.msra.mxu0 %v5199
    %6069 = vmatpush.bf16.msra.mxu0 %v5192
    %6070 = vmatpush.bf16.msra.mxu0 %v5185
    %6071 = vmatpush.bf16.msra.mxu0 %v5178
    %6072 = vmatpush.bf16.msra.mxu0 %v5171
    %6073 = vmatmul.bf16.gmra.mxu0 %v3356
    %v6074 = vpop.f32.mrf.mxu0
    %v6075 = vadd.f32 %v6061, %v6074
    %v6076 = vpop.f32.mrf.mxu0
    %v6077 = vadd.f32 %v6063, %v6076
    %6078 = vdwg.mxu0
    %6079 = vmatpush.bf16.msra.mxu0 %v5276
    %6080 = vmatpush.bf16.msra.mxu0 %v5269
    %6081 = vmatpush.bf16.msra.mxu0 %v5262
    %6082 = vmatpush.bf16.msra.mxu0 %v5255
    %6083 = vmatpush.bf16.msra.mxu0 %v5248
    %6084 = vmatpush.bf16.msra.mxu0 %v5241
    %6085 = vmatpush.bf16.msra.mxu0 %v5234
    %6086 = vmatpush.bf16.msra.mxu0 %v5227
    %6087 = vmatmul.bf16.gmra.mxu0 %v3357
    %v6088 = vpop.f32.mrf.mxu0
    %v6089 = vadd.f32 %v6075, %v6088
    %v6090 = vpop.f32.mrf.mxu0
    %v6091 = vadd.f32 %v6077, %v6090
    %6092 = vdwg.mxu0
    %6093 = vmatpush.bf16.msra.mxu0 %v5332
    %6094 = vmatpush.bf16.msra.mxu0 %v5325
    %6095 = vmatpush.bf16.msra.mxu0 %v5318
    %6096 = vmatpush.bf16.msra.mxu0 %v5311
    %6097 = vmatpush.bf16.msra.mxu0 %v5304
    %6098 = vmatpush.bf16.msra.mxu0 %v5297
    %6099 = vmatpush.bf16.msra.mxu0 %v5290
    %6100 = vmatpush.bf16.msra.mxu0 %v5283
    %6101 = vmatmul.bf16.gmra.mxu0 %v3358
    %v6102 = vpop.f32.mrf.mxu0
    %v6103 = vadd.f32 %v6089, %v6102
    %v6104 = vpop.f32.mrf.mxu0
    %v6105 = vadd.f32 %v6091, %v6104
    %6106 = vdwg.mxu0
    %6107 = vmatpush.bf16.msra.mxu0 %v5388
    %6108 = vmatpush.bf16.msra.mxu0 %v5381
    %6109 = vmatpush.bf16.msra.mxu0 %v5374
    %6110 = vmatpush.bf16.msra.mxu0 %v5367
    %6111 = vmatpush.bf16.msra.mxu0 %v5360
    %6112 = vmatpush.bf16.msra.mxu0 %v5353
    %6113 = vmatpush.bf16.msra.mxu0 %v5346
    %6114 = vmatpush.bf16.msra.mxu0 %v5339
    %6115 = vmatmul.bf16.gmra.mxu0 %v3359
    %v6116 = vpop.f32.mrf.mxu0
    %v6117 = vadd.f32 %v6103, %v6116
    %v6118 = vpop.f32.mrf.mxu0
    %v6119 = vadd.f32 %v6105, %v6118
    %6120 = vdwg.mxu0
    %6121 = vmatpush.bf16.msra.mxu0 %v5444
    %6122 = vmatpush.bf16.msra.mxu0 %v5437
    %6123 = vmatpush.bf16.msra.mxu0 %v5430
    %6124 = vmatpush.bf16.msra.mxu0 %v5423
    %6125 = vmatpush.bf16.msra.mxu0 %v5416
    %6126 = vmatpush.bf16.msra.mxu0 %v5409
    %6127 = vmatpush.bf16.msra.mxu0 %v5402
    %6128 = vmatpush.bf16.msra.mxu0 %v5395
    %6129 = vmatmul.bf16.gmra.mxu0 %v3360
    %v6130 = vpop.f32.mrf.mxu0
    %v6131 = vadd.f32 %v6117, %v6130
    %v6132 = vpop.f32.mrf.mxu0
    %v6133 = vadd.f32 %v6119, %v6132
    %6134 = vdwg.mxu0
    %6135 = vmatpush.bf16.msra.mxu0 %v5109
    %6136 = vmatpush.bf16.msra.mxu0 %v5102
    %6137 = vmatpush.bf16.msra.mxu0 %v5095
    %6138 = vmatpush.bf16.msra.mxu0 %v5088
    %6139 = vmatpush.bf16.msra.mxu0 %v5081
    %6140 = vmatpush.bf16.msra.mxu0 %v5074
    %6141 = vmatpush.bf16.msra.mxu0 %v5067
    %6142 = vmatpush.bf16.msra.mxu0 %v5060
    %6143 = vmatmul.bf16.gmra.mxu0 %v3354
    %v6144 = vpop.f32.mrf.mxu0
    %v6145 = vadd.f32 %v3814, %v6144
    %v6146 = vpop.f32.mrf.mxu0
    %v6147 = vadd.f32 %v3814, %v6146
    %6148 = vdwg.mxu0
    %6149 = vmatpush.bf16.msra.mxu0 %v5165
    %6150 = vmatpush.bf16.msra.mxu0 %v5158
    %6151 = vmatpush.bf16.msra.mxu0 %v5151
    %6152 = vmatpush.bf16.msra.mxu0 %v5144
    %6153 = vmatpush.bf16.msra.mxu0 %v5137
    %6154 = vmatpush.bf16.msra.mxu0 %v5130
    %6155 = vmatpush.bf16.msra.mxu0 %v5123
    %6156 = vmatpush.bf16.msra.mxu0 %v5116
    %6157 = vmatmul.bf16.gmra.mxu0 %v3355
    %v6158 = vpop.f32.mrf.mxu0
    %v6159 = vadd.f32 %v6145, %v6158
    %v6160 = vpop.f32.mrf.mxu0
    %v6161 = vadd.f32 %v6147, %v6160
    %6162 = vdwg.mxu0
    %6163 = vmatpush.bf16.msra.mxu0 %v5221
    %6164 = vmatpush.bf16.msra.mxu0 %v5214
    %6165 = vmatpush.bf16.msra.mxu0 %v5207
    %6166 = vmatpush.bf16.msra.mxu0 %v5200
    %6167 = vmatpush.bf16.msra.mxu0 %v5193
    %6168 = vmatpush.bf16.msra.mxu0 %v5186
    %6169 = vmatpush.bf16.msra.mxu0 %v5179
    %6170 = vmatpush.bf16.msra.mxu0 %v5172
    %6171 = vmatmul.bf16.gmra.mxu0 %v3356
    %v6172 = vpop.f32.mrf.mxu0
    %v6173 = vadd.f32 %v6159, %v6172
    %v6174 = vpop.f32.mrf.mxu0
    %v6175 = vadd.f32 %v6161, %v6174
    %6176 = vdwg.mxu0
    %6177 = vmatpush.bf16.msra.mxu0 %v5277
    %6178 = vmatpush.bf16.msra.mxu0 %v5270
    %6179 = vmatpush.bf16.msra.mxu0 %v5263
    %6180 = vmatpush.bf16.msra.mxu0 %v5256
    %6181 = vmatpush.bf16.msra.mxu0 %v5249
    %6182 = vmatpush.bf16.msra.mxu0 %v5242
    %6183 = vmatpush.bf16.msra.mxu0 %v5235
    %6184 = vmatpush.bf16.msra.mxu0 %v5228
    %6185 = vmatmul.bf16.gmra.mxu0 %v3357
    %v6186 = vpop.f32.mrf.mxu0
    %v6187 = vadd.f32 %v6173, %v6186
    %v6188 = vpop.f32.mrf.mxu0
    %v6189 = vadd.f32 %v6175, %v6188
    %6190 = vdwg.mxu0
    %6191 = vmatpush.bf16.msra.mxu0 %v5333
    %6192 = vmatpush.bf16.msra.mxu0 %v5326
    %6193 = vmatpush.bf16.msra.mxu0 %v5319
    %6194 = vmatpush.bf16.msra.mxu0 %v5312
    %6195 = vmatpush.bf16.msra.mxu0 %v5305
    %6196 = vmatpush.bf16.msra.mxu0 %v5298
    %6197 = vmatpush.bf16.msra.mxu0 %v5291
    %6198 = vmatpush.bf16.msra.mxu0 %v5284
    %6199 = vmatmul.bf16.gmra.mxu0 %v3358
    %v6200 = vpop.f32.mrf.mxu0
    %v6201 = vadd.f32 %v6187, %v6200
    %v6202 = vpop.f32.mrf.mxu0
    %v6203 = vadd.f32 %v6189, %v6202
    %6204 = vdwg.mxu0
    %6205 = vmatpush.bf16.msra.mxu0 %v5389
    %6206 = vmatpush.bf16.msra.mxu0 %v5382
    %6207 = vmatpush.bf16.msra.mxu0 %v5375
    %6208 = vmatpush.bf16.msra.mxu0 %v5368
    %6209 = vmatpush.bf16.msra.mxu0 %v5361
    %6210 = vmatpush.bf16.msra.mxu0 %v5354
    %6211 = vmatpush.bf16.msra.mxu0 %v5347
    %6212 = vmatpush.bf16.msra.mxu0 %v5340
    %6213 = vmatmul.bf16.gmra.mxu0 %v3359
    %v6214 = vpop.f32.mrf.mxu0
    %v6215 = vadd.f32 %v6201, %v6214
    %v6216 = vpop.f32.mrf.mxu0
    %v6217 = vadd.f32 %v6203, %v6216
    %6218 = vdwg.mxu0
    %6219 = vmatpush.bf16.msra.mxu0 %v5445
    %6220 = vmatpush.bf16.msra.mxu0 %v5438
    %6221 = vmatpush.bf16.msra.mxu0 %v5431
    %6222 = vmatpush.bf16.msra.mxu0 %v5424
    %6223 = vmatpush.bf16.msra.mxu0 %v5417
    %6224 = vmatpush.bf16.msra.mxu0 %v5410
    %6225 = vmatpush.bf16.msra.mxu0 %v5403
    %6226 = vmatpush.bf16.msra.mxu0 %v5396
    %6227 = vmatmul.bf16.gmra.mxu0 %v3360
    %v6228 = vpop.f32.mrf.mxu0
    %v6229 = vadd.f32 %v6215, %v6228
    %v6230 = vpop.f32.mrf.mxu0
    %v6231 = vadd.f32 %v6217, %v6230
    %6232 = vdwg.mxu0
    %6233 = vmatpush.bf16.msra.mxu0 %v5110
    %6234 = vmatpush.bf16.msra.mxu0 %v5103
    %6235 = vmatpush.bf16.msra.mxu0 %v5096
    %6236 = vmatpush.bf16.msra.mxu0 %v5089
    %6237 = vmatpush.bf16.msra.mxu0 %v5082
    %6238 = vmatpush.bf16.msra.mxu0 %v5075
    %6239 = vmatpush.bf16.msra.mxu0 %v5068
    %6240 = vmatpush.bf16.msra.mxu0 %v5061
    %6241 = vmatmul.bf16.gmra.mxu0 %v3354
    %v6242 = vpop.f32.mrf.mxu0
    %v6243 = vadd.f32 %v3815, %v6242
    %v6244 = vpop.f32.mrf.mxu0
    %v6245 = vadd.f32 %v3815, %v6244
    %6246 = vdwg.mxu0
    %6247 = vmatpush.bf16.msra.mxu0 %v5166
    %6248 = vmatpush.bf16.msra.mxu0 %v5159
    %6249 = vmatpush.bf16.msra.mxu0 %v5152
    %6250 = vmatpush.bf16.msra.mxu0 %v5145
    %6251 = vmatpush.bf16.msra.mxu0 %v5138
    %6252 = vmatpush.bf16.msra.mxu0 %v5131
    %6253 = vmatpush.bf16.msra.mxu0 %v5124
    %6254 = vmatpush.bf16.msra.mxu0 %v5117
    %6255 = vmatmul.bf16.gmra.mxu0 %v3355
    %v6256 = vpop.f32.mrf.mxu0
    %v6257 = vadd.f32 %v6243, %v6256
    %v6258 = vpop.f32.mrf.mxu0
    %v6259 = vadd.f32 %v6245, %v6258
    %6260 = vdwg.mxu0
    %6261 = vmatpush.bf16.msra.mxu0 %v5222
    %6262 = vmatpush.bf16.msra.mxu0 %v5215
    %6263 = vmatpush.bf16.msra.mxu0 %v5208
    %6264 = vmatpush.bf16.msra.mxu0 %v5201
    %6265 = vmatpush.bf16.msra.mxu0 %v5194
    %6266 = vmatpush.bf16.msra.mxu0 %v5187
    %6267 = vmatpush.bf16.msra.mxu0 %v5180
    %6268 = vmatpush.bf16.msra.mxu0 %v5173
    %6269 = vmatmul.bf16.gmra.mxu0 %v3356
    %v6270 = vpop.f32.mrf.mxu0
    %v6271 = vadd.f32 %v6257, %v6270
    %v6272 = vpop.f32.mrf.mxu0
    %v6273 = vadd.f32 %v6259, %v6272
    %6274 = vdwg.mxu0
    %6275 = vmatpush.bf16.msra.mxu0 %v5278
    %6276 = vmatpush.bf16.msra.mxu0 %v5271
    %6277 = vmatpush.bf16.msra.mxu0 %v5264
    %6278 = vmatpush.bf16.msra.mxu0 %v5257
    %6279 = vmatpush.bf16.msra.mxu0 %v5250
    %6280 = vmatpush.bf16.msra.mxu0 %v5243
    %6281 = vmatpush.bf16.msra.mxu0 %v5236
    %6282 = vmatpush.bf16.msra.mxu0 %v5229
    %6283 = vmatmul.bf16.gmra.mxu0 %v3357
    %v6284 = vpop.f32.mrf.mxu0
    %v6285 = vadd.f32 %v6271, %v6284
    %v6286 = vpop.f32.mrf.mxu0
    %v6287 = vadd.f32 %v6273, %v6286
    %6288 = vdwg.mxu0
    %6289 = vmatpush.bf16.msra.mxu0 %v5334
    %6290 = vmatpush.bf16.msra.mxu0 %v5327
    %6291 = vmatpush.bf16.msra.mxu0 %v5320
    %6292 = vmatpush.bf16.msra.mxu0 %v5313
    %6293 = vmatpush.bf16.msra.mxu0 %v5306
    %6294 = vmatpush.bf16.msra.mxu0 %v5299
    %6295 = vmatpush.bf16.msra.mxu0 %v5292
    %6296 = vmatpush.bf16.msra.mxu0 %v5285
    %6297 = vmatmul.bf16.gmra.mxu0 %v3358
    %v6298 = vpop.f32.mrf.mxu0
    %v6299 = vadd.f32 %v6285, %v6298
    %v6300 = vpop.f32.mrf.mxu0
    %v6301 = vadd.f32 %v6287, %v6300
    %6302 = vdwg.mxu0
    %6303 = vmatpush.bf16.msra.mxu0 %v5390
    %6304 = vmatpush.bf16.msra.mxu0 %v5383
    %6305 = vmatpush.bf16.msra.mxu0 %v5376
    %6306 = vmatpush.bf16.msra.mxu0 %v5369
    %6307 = vmatpush.bf16.msra.mxu0 %v5362
    %6308 = vmatpush.bf16.msra.mxu0 %v5355
    %6309 = vmatpush.bf16.msra.mxu0 %v5348
    %6310 = vmatpush.bf16.msra.mxu0 %v5341
    %6311 = vmatmul.bf16.gmra.mxu0 %v3359
    %v6312 = vpop.f32.mrf.mxu0
    %v6313 = vadd.f32 %v6299, %v6312
    %v6314 = vpop.f32.mrf.mxu0
    %v6315 = vadd.f32 %v6301, %v6314
    %6316 = vdwg.mxu0
    %6317 = vmatpush.bf16.msra.mxu0 %v5446
    %6318 = vmatpush.bf16.msra.mxu0 %v5439
    %6319 = vmatpush.bf16.msra.mxu0 %v5432
    %6320 = vmatpush.bf16.msra.mxu0 %v5425
    %6321 = vmatpush.bf16.msra.mxu0 %v5418
    %6322 = vmatpush.bf16.msra.mxu0 %v5411
    %6323 = vmatpush.bf16.msra.mxu0 %v5404
    %6324 = vmatpush.bf16.msra.mxu0 %v5397
    %6325 = vmatmul.bf16.gmra.mxu0 %v3360
    %v6326 = vpop.f32.mrf.mxu0
    %v6327 = vadd.f32 %v6313, %v6326
    %v6328 = vpop.f32.mrf.mxu0
    %v6329 = vadd.f32 %v6315, %v6328
    %6330 = vdwg.mxu0
    %6331 = vmatpush.bf16.msra.mxu0 %v5111
    %6332 = vmatpush.bf16.msra.mxu0 %v5104
    %6333 = vmatpush.bf16.msra.mxu0 %v5097
    %6334 = vmatpush.bf16.msra.mxu0 %v5090
    %6335 = vmatpush.bf16.msra.mxu0 %v5083
    %6336 = vmatpush.bf16.msra.mxu0 %v5076
    %6337 = vmatpush.bf16.msra.mxu0 %v5069
    %6338 = vmatpush.bf16.msra.mxu0 %v5062
    %6339 = vmatmul.bf16.gmra.mxu0 %v3354
    %v6340 = vpop.f32.mrf.mxu0
    %v6341 = vadd.f32 %v3816, %v6340
    %v6342 = vpop.f32.mrf.mxu0
    %v6343 = vadd.f32 %v3816, %v6342
    %6344 = vdwg.mxu0
    %6345 = vmatpush.bf16.msra.mxu0 %v5167
    %6346 = vmatpush.bf16.msra.mxu0 %v5160
    %6347 = vmatpush.bf16.msra.mxu0 %v5153
    %6348 = vmatpush.bf16.msra.mxu0 %v5146
    %6349 = vmatpush.bf16.msra.mxu0 %v5139
    %6350 = vmatpush.bf16.msra.mxu0 %v5132
    %6351 = vmatpush.bf16.msra.mxu0 %v5125
    %6352 = vmatpush.bf16.msra.mxu0 %v5118
    %6353 = vmatmul.bf16.gmra.mxu0 %v3355
    %v6354 = vpop.f32.mrf.mxu0
    %v6355 = vadd.f32 %v6341, %v6354
    %v6356 = vpop.f32.mrf.mxu0
    %v6357 = vadd.f32 %v6343, %v6356
    %6358 = vdwg.mxu0
    %6359 = vmatpush.bf16.msra.mxu0 %v5223
    %6360 = vmatpush.bf16.msra.mxu0 %v5216
    %6361 = vmatpush.bf16.msra.mxu0 %v5209
    %6362 = vmatpush.bf16.msra.mxu0 %v5202
    %6363 = vmatpush.bf16.msra.mxu0 %v5195
    %6364 = vmatpush.bf16.msra.mxu0 %v5188
    %6365 = vmatpush.bf16.msra.mxu0 %v5181
    %6366 = vmatpush.bf16.msra.mxu0 %v5174
    %6367 = vmatmul.bf16.gmra.mxu0 %v3356
    %v6368 = vpop.f32.mrf.mxu0
    %v6369 = vadd.f32 %v6355, %v6368
    %v6370 = vpop.f32.mrf.mxu0
    %v6371 = vadd.f32 %v6357, %v6370
    %6372 = vdwg.mxu0
    %6373 = vmatpush.bf16.msra.mxu0 %v5279
    %6374 = vmatpush.bf16.msra.mxu0 %v5272
    %6375 = vmatpush.bf16.msra.mxu0 %v5265
    %6376 = vmatpush.bf16.msra.mxu0 %v5258
    %6377 = vmatpush.bf16.msra.mxu0 %v5251
    %6378 = vmatpush.bf16.msra.mxu0 %v5244
    %6379 = vmatpush.bf16.msra.mxu0 %v5237
    %6380 = vmatpush.bf16.msra.mxu0 %v5230
    %6381 = vmatmul.bf16.gmra.mxu0 %v3357
    %v6382 = vpop.f32.mrf.mxu0
    %v6383 = vadd.f32 %v6369, %v6382
    %v6384 = vpop.f32.mrf.mxu0
    %v6385 = vadd.f32 %v6371, %v6384
    %6386 = vdwg.mxu0
    %6387 = vmatpush.bf16.msra.mxu0 %v5335
    %6388 = vmatpush.bf16.msra.mxu0 %v5328
    %6389 = vmatpush.bf16.msra.mxu0 %v5321
    %6390 = vmatpush.bf16.msra.mxu0 %v5314
    %6391 = vmatpush.bf16.msra.mxu0 %v5307
    %6392 = vmatpush.bf16.msra.mxu0 %v5300
    %6393 = vmatpush.bf16.msra.mxu0 %v5293
    %6394 = vmatpush.bf16.msra.mxu0 %v5286
    %6395 = vmatmul.bf16.gmra.mxu0 %v3358
    %v6396 = vpop.f32.mrf.mxu0
    %v6397 = vadd.f32 %v6383, %v6396
    %v6398 = vpop.f32.mrf.mxu0
    %v6399 = vadd.f32 %v6385, %v6398
    %6400 = vdwg.mxu0
    %6401 = vmatpush.bf16.msra.mxu0 %v5391
    %6402 = vmatpush.bf16.msra.mxu0 %v5384
    %6403 = vmatpush.bf16.msra.mxu0 %v5377
    %6404 = vmatpush.bf16.msra.mxu0 %v5370
    %6405 = vmatpush.bf16.msra.mxu0 %v5363
    %6406 = vmatpush.bf16.msra.mxu0 %v5356
    %6407 = vmatpush.bf16.msra.mxu0 %v5349
    %6408 = vmatpush.bf16.msra.mxu0 %v5342
    %6409 = vmatmul.bf16.gmra.mxu0 %v3359
    %v6410 = vpop.f32.mrf.mxu0
    %v6411 = vadd.f32 %v6397, %v6410
    %v6412 = vpop.f32.mrf.mxu0
    %v6413 = vadd.f32 %v6399, %v6412
    %6414 = vdwg.mxu0
    %6415 = vmatpush.bf16.msra.mxu0 %v5447
    %6416 = vmatpush.bf16.msra.mxu0 %v5440
    %6417 = vmatpush.bf16.msra.mxu0 %v5433
    %6418 = vmatpush.bf16.msra.mxu0 %v5426
    %6419 = vmatpush.bf16.msra.mxu0 %v5419
    %6420 = vmatpush.bf16.msra.mxu0 %v5412
    %6421 = vmatpush.bf16.msra.mxu0 %v5405
    %6422 = vmatpush.bf16.msra.mxu0 %v5398
    %6423 = vmatmul.bf16.gmra.mxu0 %v3360
    %v6424 = vpop.f32.mrf.mxu0
    %v6425 = vadd.f32 %v6411, %v6424
    %v6426 = vpop.f32.mrf.mxu0
    %v6427 = vadd.f32 %v6413, %v6426
    %6428 = vdwg.mxu0
    %6429 = vmatpush.bf16.msra.mxu0 %v5112
    %6430 = vmatpush.bf16.msra.mxu0 %v5105
    %6431 = vmatpush.bf16.msra.mxu0 %v5098
    %6432 = vmatpush.bf16.msra.mxu0 %v5091
    %6433 = vmatpush.bf16.msra.mxu0 %v5084
    %6434 = vmatpush.bf16.msra.mxu0 %v5077
    %6435 = vmatpush.bf16.msra.mxu0 %v5070
    %6436 = vmatpush.bf16.msra.mxu0 %v5063
    %6437 = vmatmul.bf16.gmra.mxu0 %v3354
    %v6438 = vpop.f32.mrf.mxu0
    %v6439 = vadd.f32 %v3817, %v6438
    %v6440 = vpop.f32.mrf.mxu0
    %v6441 = vadd.f32 %v3817, %v6440
    %6442 = vdwg.mxu0
    %6443 = vmatpush.bf16.msra.mxu0 %v5168
    %6444 = vmatpush.bf16.msra.mxu0 %v5161
    %6445 = vmatpush.bf16.msra.mxu0 %v5154
    %6446 = vmatpush.bf16.msra.mxu0 %v5147
    %6447 = vmatpush.bf16.msra.mxu0 %v5140
    %6448 = vmatpush.bf16.msra.mxu0 %v5133
    %6449 = vmatpush.bf16.msra.mxu0 %v5126
    %6450 = vmatpush.bf16.msra.mxu0 %v5119
    %6451 = vmatmul.bf16.gmra.mxu0 %v3355
    %v6452 = vpop.f32.mrf.mxu0
    %v6453 = vadd.f32 %v6439, %v6452
    %v6454 = vpop.f32.mrf.mxu0
    %v6455 = vadd.f32 %v6441, %v6454
    %6456 = vdwg.mxu0
    %6457 = vmatpush.bf16.msra.mxu0 %v5224
    %6458 = vmatpush.bf16.msra.mxu0 %v5217
    %6459 = vmatpush.bf16.msra.mxu0 %v5210
    %6460 = vmatpush.bf16.msra.mxu0 %v5203
    %6461 = vmatpush.bf16.msra.mxu0 %v5196
    %6462 = vmatpush.bf16.msra.mxu0 %v5189
    %6463 = vmatpush.bf16.msra.mxu0 %v5182
    %6464 = vmatpush.bf16.msra.mxu0 %v5175
    %6465 = vmatmul.bf16.gmra.mxu0 %v3356
    %v6466 = vpop.f32.mrf.mxu0
    %v6467 = vadd.f32 %v6453, %v6466
    %v6468 = vpop.f32.mrf.mxu0
    %v6469 = vadd.f32 %v6455, %v6468
    %6470 = vdwg.mxu0
    %6471 = vmatpush.bf16.msra.mxu0 %v5280
    %6472 = vmatpush.bf16.msra.mxu0 %v5273
    %6473 = vmatpush.bf16.msra.mxu0 %v5266
    %6474 = vmatpush.bf16.msra.mxu0 %v5259
    %6475 = vmatpush.bf16.msra.mxu0 %v5252
    %6476 = vmatpush.bf16.msra.mxu0 %v5245
    %6477 = vmatpush.bf16.msra.mxu0 %v5238
    %6478 = vmatpush.bf16.msra.mxu0 %v5231
    %6479 = vmatmul.bf16.gmra.mxu0 %v3357
    %v6480 = vpop.f32.mrf.mxu0
    %v6481 = vadd.f32 %v6467, %v6480
    %v6482 = vpop.f32.mrf.mxu0
    %v6483 = vadd.f32 %v6469, %v6482
    %6484 = vdwg.mxu0
    %6485 = vmatpush.bf16.msra.mxu0 %v5336
    %6486 = vmatpush.bf16.msra.mxu0 %v5329
    %6487 = vmatpush.bf16.msra.mxu0 %v5322
    %6488 = vmatpush.bf16.msra.mxu0 %v5315
    %6489 = vmatpush.bf16.msra.mxu0 %v5308
    %6490 = vmatpush.bf16.msra.mxu0 %v5301
    %6491 = vmatpush.bf16.msra.mxu0 %v5294
    %6492 = vmatpush.bf16.msra.mxu0 %v5287
    %6493 = vmatmul.bf16.gmra.mxu0 %v3358
    %v6494 = vpop.f32.mrf.mxu0
    %v6495 = vadd.f32 %v6481, %v6494
    %v6496 = vpop.f32.mrf.mxu0
    %v6497 = vadd.f32 %v6483, %v6496
    %6498 = vdwg.mxu0
    %6499 = vmatpush.bf16.msra.mxu0 %v5392
    %6500 = vmatpush.bf16.msra.mxu0 %v5385
    %6501 = vmatpush.bf16.msra.mxu0 %v5378
    %6502 = vmatpush.bf16.msra.mxu0 %v5371
    %6503 = vmatpush.bf16.msra.mxu0 %v5364
    %6504 = vmatpush.bf16.msra.mxu0 %v5357
    %6505 = vmatpush.bf16.msra.mxu0 %v5350
    %6506 = vmatpush.bf16.msra.mxu0 %v5343
    %6507 = vmatmul.bf16.gmra.mxu0 %v3359
    %v6508 = vpop.f32.mrf.mxu0
    %v6509 = vadd.f32 %v6495, %v6508
    %v6510 = vpop.f32.mrf.mxu0
    %v6511 = vadd.f32 %v6497, %v6510
    %6512 = vdwg.mxu0
    %6513 = vmatpush.bf16.msra.mxu0 %v5448
    %6514 = vmatpush.bf16.msra.mxu0 %v5441
    %6515 = vmatpush.bf16.msra.mxu0 %v5434
    %6516 = vmatpush.bf16.msra.mxu0 %v5427
    %6517 = vmatpush.bf16.msra.mxu0 %v5420
    %6518 = vmatpush.bf16.msra.mxu0 %v5413
    %6519 = vmatpush.bf16.msra.mxu0 %v5406
    %6520 = vmatpush.bf16.msra.mxu0 %v5399
    %6521 = vmatmul.bf16.gmra.mxu0 %v3360
    %v6522 = vpop.f32.mrf.mxu0
    %v6523 = vadd.f32 %v6509, %v6522
    %v6524 = vpop.f32.mrf.mxu0
    %v6525 = vadd.f32 %v6511, %v6524
    %6526 = vdwg.mxu0
    %v6527 = vmax.f32 %v5935, 0.0
    %v6528 = vmax.f32 %v6033, 0.0
    %v6529 = vmax.f32 %v6131, 0.0
    %v6530 = vmax.f32 %v6229, 0.0
    %v6531 = vmax.f32 %v6327, 0.0
    %v6532 = vmax.f32 %v6425, 0.0
    %v6533 = vmax.f32 %v6523, 0.0
    %v6534 = vmax.f32 %v5937, 0.0
    %v6535 = vmax.f32 %v6035, 0.0
    %v6536 = vmax.f32 %v6133, 0.0
    %v6537 = vmax.f32 %v6231, 0.0
    %v6538 = vmax.f32 %v6329, 0.0
    %v6539 = vmax.f32 %v6427, 0.0
    %v6540 = vmax.f32 %v6525, 0.0
    %v6541 = vpack.c.bf16 %v6534, %v6527
    %v6542 = vpack.c.bf16 %v6535, %v6528
    %v6543 = vpack.c.bf16 %v6536, %v6529
    %v6544 = vpack.c.bf16 %v6537, %v6530
    %v6545 = vpack.c.bf16 %v6538, %v6531
    %v6546 = vpack.c.bf16 %v6539, %v6532
    %v6547 = vpack.c.bf16 %v6540, %v6533
    %v6548 = vld [vmem:[#allocation11] sm:$0xf]
    %v6549 = vld [vmem:[#allocation11 + $0x4] sm:$0xf]
    %v6550 = vld [vmem:[#allocation11 + $0x8] sm:$0xf]
    %v6551 = vld [vmem:[#allocation11 + $0xc] sm:$0xf]
    %v6552 = vld [vmem:[#allocation11 + $0x10] sm:$0xf]
    %v6553 = vld [vmem:[#allocation11 + $0x14] sm:$0xf]
    %v6554 = vld [vmem:[#allocation11 + $0x18] sm:$0xf]
    %v6555 = vld [vmem:[#allocation11 + $0x1c] sm:$0xf]
    %v6556 = vld [vmem:[#allocation11 + $0x20] sm:$0xf]
    %v6557 = vld [vmem:[#allocation11 + $0x24] sm:$0xf]
    %v6558 = vld [vmem:[#allocation11 + $0x28] sm:$0xf]
    %v6559 = vld [vmem:[#allocation11 + $0x2c] sm:$0xf]
    %v6560 = vld [vmem:[#allocation11 + $0x30] sm:$0xf]
    %v6561 = vld [vmem:[#allocation11 + $0x34] sm:$0xf]
    %v6562 = vld [vmem:[#allocation11 + $0x38] sm:$0xf]
    %v6563 = vld [vmem:[#allocation11 + $0x3c] sm:$0xf]
    %v6564 = vld [vmem:[#allocation11 + $0x40] sm:$0xf]
    %v6565 = vld [vmem:[#allocation11 + $0x44] sm:$0xf]
    %v6566 = vld [vmem:[#allocation11 + $0x48] sm:$0xf]
    %v6567 = vld [vmem:[#allocation11 + $0x4c] sm:$0xf]
    %v6568 = vld [vmem:[#allocation11 + $0x50] sm:$0xf]
    %v6569 = vld [vmem:[#allocation11 + $0x54] sm:$0xf]
    %v6570 = vld [vmem:[#allocation11 + $0x58] sm:$0xf]
    %v6571 = vld [vmem:[#allocation11 + $0x5c] sm:$0xf]
    %v6572 = vld [vmem:[#allocation11 + $0x60] sm:$0xf]
    %v6573 = vld [vmem:[#allocation11 + $0x64] sm:$0xf]
    %v6574 = vld [vmem:[#allocation11 + $0x68] sm:$0xf]
    %v6575 = vld [vmem:[#allocation11 + $0x6c] sm:$0xf]
    %v6576 = vld [vmem:[#allocation11 + $0x70] sm:$0xf]
    %v6577 = vld [vmem:[#allocation11 + $0x74] sm:$0xf]
    %v6578 = vld [vmem:[#allocation11 + $0x78] sm:$0xf]
    %v6579 = vld [vmem:[#allocation11 + $0x7c] sm:$0xf]
    %v6580 = vld [vmem:[#allocation11 + $0x80] sm:$0xf]
    %v6581 = vld [vmem:[#allocation11 + $0x84] sm:$0xf]
    %v6582 = vld [vmem:[#allocation11 + $0x88] sm:$0xf]
    %v6583 = vld [vmem:[#allocation11 + $0x8c] sm:$0xf]
    %v6584 = vld [vmem:[#allocation11 + $0x90] sm:$0xf]
    %v6585 = vld [vmem:[#allocation11 + $0x94] sm:$0xf]
    %v6586 = vld [vmem:[#allocation11 + $0x98] sm:$0xf]
    %v6587 = vld [vmem:[#allocation11 + $0x9c] sm:$0xf]
    %v6588 = vld [vmem:[#allocation11 + $0xa0] sm:$0xf]
    %v6589 = vld [vmem:[#allocation11 + $0xa4] sm:$0xf]
    %v6590 = vld [vmem:[#allocation11 + $0xa8] sm:$0xf]
    %v6591 = vld [vmem:[#allocation11 + $0xac] sm:$0xf]
    %v6592 = vld [vmem:[#allocation11 + $0xb0] sm:$0xf]
    %v6593 = vld [vmem:[#allocation11 + $0xb4] sm:$0xf]
    %v6594 = vld [vmem:[#allocation11 + $0xb8] sm:$0xf]
    %v6595 = vld [vmem:[#allocation11 + $0xbc] sm:$0xf]
    %v6596 = vld [vmem:[#allocation11 + $0xc0] sm:$0xf]
    %v6597 = vld [vmem:[#allocation11 + $0xc4] sm:$0xf]
    %v6598 = vld [vmem:[#allocation11 + $0xc8] sm:$0xf]
    %v6599 = vld [vmem:[#allocation11 + $0xcc] sm:$0xf]
    %v6600 = vld [vmem:[#allocation11 + $0xd0] sm:$0xf]
    %v6601 = vld [vmem:[#allocation11 + $0xd4] sm:$0xf]
    %v6602 = vld [vmem:[#allocation11 + $0xd8] sm:$0xf]
    %v6603 = vld [vmem:[#allocation11 + $0xdc] sm:$0xf]
    %v6604 = vld [vmem:[#allocation11 + $0xe0] sm:$0xf]
    %v6605 = vld [vmem:[#allocation11 + $0xe4] sm:$0xf]
    %v6606 = vld [vmem:[#allocation11 + $0xe8] sm:$0xf]
    %v6607 = vld [vmem:[#allocation11 + $0xec] sm:$0xf]
    %v6608 = vld [vmem:[#allocation11 + $0xf0] sm:$0xf]
    %v6609 = vld [vmem:[#allocation11 + $0xf4] sm:$0xf]
    %v6610 = vld [vmem:[#allocation11 + $0xf8] sm:$0xf]
    %v6611 = vld [vmem:[#allocation11 + $0xfc] sm:$0xf]
    %v6612 = vld [vmem:[#allocation11 + $0x100] sm:$0xf]
    %v6613 = vld [vmem:[#allocation11 + $0x104] sm:$0xf]
    %v6614 = vld [vmem:[#allocation11 + $0x108] sm:$0xf]
    %v6615 = vld [vmem:[#allocation11 + $0x10c] sm:$0xf]
    %v6616 = vld [vmem:[#allocation11 + $0x110] sm:$0xf]
    %v6617 = vld [vmem:[#allocation11 + $0x114] sm:$0xf]
    %v6618 = vld [vmem:[#allocation11 + $0x118] sm:$0xf]
    %v6619 = vld [vmem:[#allocation11 + $0x11c] sm:$0xf]
    %v6620 = vld [vmem:[#allocation11 + $0x120] sm:$0xf]
    %v6621 = vld [vmem:[#allocation11 + $0x124] sm:$0xf]
    %v6622 = vld [vmem:[#allocation11 + $0x128] sm:$0xf]
    %v6623 = vld [vmem:[#allocation11 + $0x12c] sm:$0xf]
    %v6624 = vld [vmem:[#allocation11 + $0x130] sm:$0xf]
    %v6625 = vld [vmem:[#allocation11 + $0x134] sm:$0xf]
    %v6626 = vld [vmem:[#allocation11 + $0x138] sm:$0xf]
    %v6627 = vld [vmem:[#allocation11 + $0x13c] sm:$0xf]
    %v6628 = vld [vmem:[#allocation11 + $0x140] sm:$0xf]
    %v6629 = vld [vmem:[#allocation11 + $0x144] sm:$0xf]
    %v6630 = vld [vmem:[#allocation11 + $0x148] sm:$0xf]
    %v6631 = vld [vmem:[#allocation11 + $0x14c] sm:$0xf]
    %v6632 = vld [vmem:[#allocation11 + $0x150] sm:$0xf]
    %v6633 = vld [vmem:[#allocation11 + $0x154] sm:$0xf]
    %v6634 = vld [vmem:[#allocation11 + $0x158] sm:$0xf]
    %v6635 = vld [vmem:[#allocation11 + $0x15c] sm:$0xf]
    %v6636 = vld [vmem:[#allocation11 + $0x160] sm:$0xf]
    %v6637 = vld [vmem:[#allocation11 + $0x164] sm:$0xf]
    %v6638 = vld [vmem:[#allocation11 + $0x168] sm:$0xf]
    %v6639 = vld [vmem:[#allocation11 + $0x16c] sm:$0xf]
    %v6640 = vld [vmem:[#allocation11 + $0x170] sm:$0xf]
    %v6641 = vld [vmem:[#allocation11 + $0x174] sm:$0xf]
    %v6642 = vld [vmem:[#allocation11 + $0x178] sm:$0xf]
    %v6643 = vld [vmem:[#allocation11 + $0x17c] sm:$0xf]
    %v6644 = vld [vmem:[#allocation11 + $0x180] sm:$0xf]
    %v6645 = vld [vmem:[#allocation11 + $0x184] sm:$0xf]
    %v6646 = vld [vmem:[#allocation11 + $0x188] sm:$0xf]
    %v6647 = vld [vmem:[#allocation11 + $0x18c] sm:$0xf]
    %v6648 = vld [vmem:[#allocation11 + $0x190] sm:$0xf]
    %v6649 = vld [vmem:[#allocation11 + $0x194] sm:$0xf]
    %v6650 = vld [vmem:[#allocation11 + $0x198] sm:$0xf]
    %v6651 = vld [vmem:[#allocation11 + $0x19c] sm:$0xf]
    %v6652 = vld [vmem:[#allocation11 + $0x1a0] sm:$0xf]
    %v6653 = vld [vmem:[#allocation11 + $0x1a4] sm:$0xf]
    %v6654 = vld [vmem:[#allocation11 + $0x1a8] sm:$0xf]
    %v6655 = vld [vmem:[#allocation11 + $0x1ac] sm:$0xf]
    %v6656 = vld [vmem:[#allocation11 + $0x1b0] sm:$0xf]
    %v6657 = vld [vmem:[#allocation11 + $0x1b4] sm:$0xf]
    %v6658 = vld [vmem:[#allocation11 + $0x1b8] sm:$0xf]
    %v6659 = vld [vmem:[#allocation11 + $0x1bc] sm:$0xf]
    %v6660 = vld [vmem:[#allocation13] sm:$0x1]
    %v6662 = vperm.slane %v6660, 0
    %v6776 = vunpack.c.l.b16 %v6548
    %v6777 = vunpack.c.l.b16 %v6549
    %v6778 = vunpack.c.l.b16 %v6550
    %v6779 = vunpack.c.l.b16 %v6551
    %v6780 = vunpack.c.l.b16 %v6552
    %v6781 = vunpack.c.l.b16 %v6553
    %v6782 = vunpack.c.l.b16 %v6554
    %v6783 = vunpack.c.l.b16 %v6555
    %v6784 = vunpack.c.l.b16 %v6556
    %v6785 = vunpack.c.l.b16 %v6557
    %v6786 = vunpack.c.l.b16 %v6558
    %v6787 = vunpack.c.l.b16 %v6559
    %v6788 = vunpack.c.l.b16 %v6560
    %v6789 = vunpack.c.l.b16 %v6561
    %v6790 = vunpack.c.l.b16 %v6562
    %v6791 = vunpack.c.l.b16 %v6563
    %v6792 = vunpack.c.l.b16 %v6564
    %v6793 = vunpack.c.l.b16 %v6565
    %v6794 = vunpack.c.l.b16 %v6566
    %v6795 = vunpack.c.l.b16 %v6567
    %v6796 = vunpack.c.l.b16 %v6568
    %v6797 = vunpack.c.l.b16 %v6569
    %v6798 = vunpack.c.l.b16 %v6570
    %v6799 = vunpack.c.l.b16 %v6571
    %v6800 = vunpack.c.l.b16 %v6572
    %v6801 = vunpack.c.l.b16 %v6573
    %v6802 = vunpack.c.l.b16 %v6574
    %v6803 = vunpack.c.l.b16 %v6575
    %v6804 = vunpack.c.l.b16 %v6576
    %v6805 = vunpack.c.l.b16 %v6577
    %v6806 = vunpack.c.l.b16 %v6578
    %v6807 = vunpack.c.l.b16 %v6579
    %v6808 = vunpack.c.l.b16 %v6580
    %v6809 = vunpack.c.l.b16 %v6581
    %v6810 = vunpack.c.l.b16 %v6582
    %v6811 = vunpack.c.l.b16 %v6583
    %v6812 = vunpack.c.l.b16 %v6584
    %v6813 = vunpack.c.l.b16 %v6585
    %v6814 = vunpack.c.l.b16 %v6586
    %v6815 = vunpack.c.l.b16 %v6587
    %v6816 = vunpack.c.l.b16 %v6588
    %v6817 = vunpack.c.l.b16 %v6589
    %v6818 = vunpack.c.l.b16 %v6590
    %v6819 = vunpack.c.l.b16 %v6591
    %v6820 = vunpack.c.l.b16 %v6592
    %v6821 = vunpack.c.l.b16 %v6593
    %v6822 = vunpack.c.l.b16 %v6594
    %v6823 = vunpack.c.l.b16 %v6595
    %v6824 = vunpack.c.l.b16 %v6596
    %v6825 = vunpack.c.l.b16 %v6597
    %v6826 = vunpack.c.l.b16 %v6598
    %v6827 = vunpack.c.l.b16 %v6599
    %v6828 = vunpack.c.l.b16 %v6600
    %v6829 = vunpack.c.l.b16 %v6601
    %v6830 = vunpack.c.l.b16 %v6602
    %v6831 = vunpack.c.l.b16 %v6603
    %v6832 = vunpack.c.l.b16 %v6604
    %v6833 = vunpack.c.l.b16 %v6605
    %v6834 = vunpack.c.l.b16 %v6606
    %v6835 = vunpack.c.l.b16 %v6607
    %v6836 = vunpack.c.l.b16 %v6608
    %v6837 = vunpack.c.l.b16 %v6609
    %v6838 = vunpack.c.l.b16 %v6610
    %v6839 = vunpack.c.l.b16 %v6611
    %v6840 = vunpack.c.l.b16 %v6612
    %v6841 = vunpack.c.l.b16 %v6613
    %v6842 = vunpack.c.l.b16 %v6614
    %v6843 = vunpack.c.l.b16 %v6615
    %v6844 = vunpack.c.l.b16 %v6616
    %v6845 = vunpack.c.l.b16 %v6617
    %v6846 = vunpack.c.l.b16 %v6618
    %v6847 = vunpack.c.l.b16 %v6619
    %v6848 = vunpack.c.l.b16 %v6620
    %v6849 = vunpack.c.l.b16 %v6621
    %v6850 = vunpack.c.l.b16 %v6622
    %v6851 = vunpack.c.l.b16 %v6623
    %v6852 = vunpack.c.l.b16 %v6624
    %v6853 = vunpack.c.l.b16 %v6625
    %v6854 = vunpack.c.l.b16 %v6626
    %v6855 = vunpack.c.l.b16 %v6627
    %v6856 = vunpack.c.l.b16 %v6628
    %v6857 = vunpack.c.l.b16 %v6629
    %v6858 = vunpack.c.l.b16 %v6630
    %v6859 = vunpack.c.l.b16 %v6631
    %v6860 = vunpack.c.l.b16 %v6632
    %v6861 = vunpack.c.l.b16 %v6633
    %v6862 = vunpack.c.l.b16 %v6634
    %v6863 = vunpack.c.l.b16 %v6635
    %v6864 = vunpack.c.l.b16 %v6636
    %v6865 = vunpack.c.l.b16 %v6637
    %v6866 = vunpack.c.l.b16 %v6638
    %v6867 = vunpack.c.l.b16 %v6639
    %v6868 = vunpack.c.l.b16 %v6640
    %v6869 = vunpack.c.l.b16 %v6641
    %v6870 = vunpack.c.l.b16 %v6642
    %v6871 = vunpack.c.l.b16 %v6643
    %v6872 = vunpack.c.l.b16 %v6644
    %v6873 = vunpack.c.l.b16 %v6645
    %v6874 = vunpack.c.l.b16 %v6646
    %v6875 = vunpack.c.l.b16 %v6647
    %v6876 = vunpack.c.l.b16 %v6648
    %v6877 = vunpack.c.l.b16 %v6649
    %v6878 = vunpack.c.l.b16 %v6650
    %v6879 = vunpack.c.l.b16 %v6651
    %v6880 = vunpack.c.l.b16 %v6652
    %v6881 = vunpack.c.l.b16 %v6653
    %v6882 = vunpack.c.l.b16 %v6654
    %v6883 = vunpack.c.l.b16 %v6655
    %v6884 = vunpack.c.l.b16 %v6656
    %v6885 = vunpack.c.l.b16 %v6657
    %v6886 = vunpack.c.l.b16 %v6658
    %v6887 = vunpack.c.l.b16 %v6659
    %v6888 = vpack.c.b16 %v6777, %v6776
    %v6889 = vpack.c.b16 %v6779, %v6778
    %v6890 = vpack.c.b16 %v6781, %v6780
    %v6891 = vpack.c.b16 %v6783, %v6782
    %v6892 = vpack.c.b16 %v6785, %v6784
    %v6893 = vpack.c.b16 %v6787, %v6786
    %v6894 = vpack.c.b16 %v6789, %v6788
    %v6895 = vpack.c.b16 %v6791, %v6790
    %v6896 = vpack.c.b16 %v6793, %v6792
    %v6897 = vpack.c.b16 %v6795, %v6794
    %v6898 = vpack.c.b16 %v6797, %v6796
    %v6899 = vpack.c.b16 %v6799, %v6798
    %v6900 = vpack.c.b16 %v6801, %v6800
    %v6901 = vpack.c.b16 %v6803, %v6802
    %v6902 = vpack.c.b16 %v6805, %v6804
    %v6903 = vpack.c.b16 %v6807, %v6806
    %v6904 = vpack.c.b16 %v6809, %v6808
    %v6905 = vpack.c.b16 %v6811, %v6810
    %v6906 = vpack.c.b16 %v6813, %v6812
    %v6907 = vpack.c.b16 %v6815, %v6814
    %v6908 = vpack.c.b16 %v6817, %v6816
    %v6909 = vpack.c.b16 %v6819, %v6818
    %v6910 = vpack.c.b16 %v6821, %v6820
    %v6911 = vpack.c.b16 %v6823, %v6822
    %v6912 = vpack.c.b16 %v6825, %v6824
    %v6913 = vpack.c.b16 %v6827, %v6826
    %v6914 = vpack.c.b16 %v6829, %v6828
    %v6915 = vpack.c.b16 %v6831, %v6830
    %v6916 = vpack.c.b16 %v6833, %v6832
    %v6917 = vpack.c.b16 %v6835, %v6834
    %v6918 = vpack.c.b16 %v6837, %v6836
    %v6919 = vpack.c.b16 %v6839, %v6838
    %v6920 = vpack.c.b16 %v6841, %v6840
    %v6921 = vpack.c.b16 %v6843, %v6842
    %v6922 = vpack.c.b16 %v6845, %v6844
    %v6923 = vpack.c.b16 %v6847, %v6846
    %v6924 = vpack.c.b16 %v6849, %v6848
    %v6925 = vpack.c.b16 %v6851, %v6850
    %v6926 = vpack.c.b16 %v6853, %v6852
    %v6927 = vpack.c.b16 %v6855, %v6854
    %v6928 = vpack.c.b16 %v6857, %v6856
    %v6929 = vpack.c.b16 %v6859, %v6858
    %v6930 = vpack.c.b16 %v6861, %v6860
    %v6931 = vpack.c.b16 %v6863, %v6862
    %v6932 = vpack.c.b16 %v6865, %v6864
    %v6933 = vpack.c.b16 %v6867, %v6866
    %v6934 = vpack.c.b16 %v6869, %v6868
    %v6935 = vpack.c.b16 %v6871, %v6870
    %v6936 = vpack.c.b16 %v6873, %v6872
    %v6937 = vpack.c.b16 %v6875, %v6874
    %v6938 = vpack.c.b16 %v6877, %v6876
    %v6939 = vpack.c.b16 %v6879, %v6878
    %v6940 = vpack.c.b16 %v6881, %v6880
    %v6941 = vpack.c.b16 %v6883, %v6882
    %v6942 = vpack.c.b16 %v6885, %v6884
    %v6943 = vpack.c.b16 %v6887, %v6886
    %7000 = vmatpush.bf16.msra.mxu0 %v6895
    %7001 = vmatpush.bf16.msra.mxu0 %v6894
    %7002 = vmatpush.bf16.msra.mxu0 %v6893
    %7003 = vmatpush.bf16.msra.mxu0 %v6892
    %7004 = vmatpush.bf16.msra.mxu0 %v6891
    %7005 = vmatpush.bf16.msra.mxu0 %v6890
    %7006 = vmatpush.bf16.msra.mxu0 %v6889
    %7007 = vmatpush.bf16.msra.mxu0 %v6888
    %7008 = vmatmul.bf16.gmra.mxu0 %v6541
    %v7009 = vpop.f32.mrf.mxu0
    %v7010 = vadd.f32 %v6662, %v7009
    %v7011 = vpop.f32.mrf.mxu0
    %v7012 = vadd.f32 %v6662, %v7011
    %7013 = vdwg.mxu0
    %7014 = vmatpush.bf16.msra.mxu0 %v6903
    %7015 = vmatpush.bf16.msra.mxu0 %v6902
    %7016 = vmatpush.bf16.msra.mxu0 %v6901
    %7017 = vmatpush.bf16.msra.mxu0 %v6900
    %7018 = vmatpush.bf16.msra.mxu0 %v6899
    %7019 = vmatpush.bf16.msra.mxu0 %v6898
    %7020 = vmatpush.bf16.msra.mxu0 %v6897
    %7021 = vmatpush.bf16.msra.mxu0 %v6896
    %7022 = vmatmul.bf16.gmra.mxu0 %v6542
    %v7023 = vpop.f32.mrf.mxu0
    %v7024 = vadd.f32 %v7010, %v7023
    %v7025 = vpop.f32.mrf.mxu0
    %v7026 = vadd.f32 %v7012, %v7025
    %7027 = vdwg.mxu0
    %7028 = vmatpush.bf16.msra.mxu0 %v6911
    %7029 = vmatpush.bf16.msra.mxu0 %v6910
    %7030 = vmatpush.bf16.msra.mxu0 %v6909
    %7031 = vmatpush.bf16.msra.mxu0 %v6908
    %7032 = vmatpush.bf16.msra.mxu0 %v6907
    %7033 = vmatpush.bf16.msra.mxu0 %v6906
    %7034 = vmatpush.bf16.msra.mxu0 %v6905
    %7035 = vmatpush.bf16.msra.mxu0 %v6904
    %7036 = vmatmul.bf16.gmra.mxu0 %v6543
    %v7037 = vpop.f32.mrf.mxu0
    %v7038 = vadd.f32 %v7024, %v7037
    %v7039 = vpop.f32.mrf.mxu0
    %v7040 = vadd.f32 %v7026, %v7039
    %7041 = vdwg.mxu0
    %7042 = vmatpush.bf16.msra.mxu0 %v6919
    %7043 = vmatpush.bf16.msra.mxu0 %v6918
    %7044 = vmatpush.bf16.msra.mxu0 %v6917
    %7045 = vmatpush.bf16.msra.mxu0 %v6916
    %7046 = vmatpush.bf16.msra.mxu0 %v6915
    %7047 = vmatpush.bf16.msra.mxu0 %v6914
    %7048 = vmatpush.bf16.msra.mxu0 %v6913
    %7049 = vmatpush.bf16.msra.mxu0 %v6912
    %7050 = vmatmul.bf16.gmra.mxu0 %v6544
    %v7051 = vpop.f32.mrf.mxu0
    %v7052 = vadd.f32 %v7038, %v7051
    %v7053 = vpop.f32.mrf.mxu0
    %v7054 = vadd.f32 %v7040, %v7053
    %7055 = vdwg.mxu0
    %7056 = vmatpush.bf16.msra.mxu0 %v6927
    %7057 = vmatpush.bf16.msra.mxu0 %v6926
    %7058 = vmatpush.bf16.msra.mxu0 %v6925
    %7059 = vmatpush.bf16.msra.mxu0 %v6924
    %7060 = vmatpush.bf16.msra.mxu0 %v6923
    %7061 = vmatpush.bf16.msra.mxu0 %v6922
    %7062 = vmatpush.bf16.msra.mxu0 %v6921
    %7063 = vmatpush.bf16.msra.mxu0 %v6920
    %7064 = vmatmul.bf16.gmra.mxu0 %v6545
    %v7065 = vpop.f32.mrf.mxu0
    %v7066 = vadd.f32 %v7052, %v7065
    %v7067 = vpop.f32.mrf.mxu0
    %v7068 = vadd.f32 %v7054, %v7067
    %7069 = vdwg.mxu0
    %7070 = vmatpush.bf16.msra.mxu0 %v6935
    %7071 = vmatpush.bf16.msra.mxu0 %v6934
    %7072 = vmatpush.bf16.msra.mxu0 %v6933
    %7073 = vmatpush.bf16.msra.mxu0 %v6932
    %7074 = vmatpush.bf16.msra.mxu0 %v6931
    %7075 = vmatpush.bf16.msra.mxu0 %v6930
    %7076 = vmatpush.bf16.msra.mxu0 %v6929
    %7077 = vmatpush.bf16.msra.mxu0 %v6928
    %7078 = vmatmul.bf16.gmra.mxu0 %v6546
    %v7079 = vpop.f32.mrf.mxu0
    %v7080 = vadd.f32 %v7066, %v7079
    %v7081 = vpop.f32.mrf.mxu0
    %v7082 = vadd.f32 %v7068, %v7081
    %7083 = vdwg.mxu0
    %7084 = vmatpush.bf16.msra.mxu0 %v6943
    %7085 = vmatpush.bf16.msra.mxu0 %v6942
    %7086 = vmatpush.bf16.msra.mxu0 %v6941
    %7087 = vmatpush.bf16.msra.mxu0 %v6940
    %7088 = vmatpush.bf16.msra.mxu0 %v6939
    %7089 = vmatpush.bf16.msra.mxu0 %v6938
    %7090 = vmatpush.bf16.msra.mxu0 %v6937
    %7091 = vmatpush.bf16.msra.mxu0 %v6936
    %7092 = vmatmul.bf16.gmra.mxu0 %v6547
    %v7093 = vpop.f32.mrf.mxu0
    %v7094 = vadd.f32 %v7080, %v7093
    %v7095 = vpop.f32.mrf.mxu0
    %v7096 = vadd.f32 %v7082, %v7095
    %7097 = vdwg.mxu0
    %7098 = vst [vmem:[#allocation14] sm:$0xff] %v7094
    %7099 = vst [vmem:[#allocation14 + $0x8] sm:$0xff] %v7096
    // Predicated region
    $region58: #{tpu_custom_call.1} parent=1 // pred_check
      _
    $region59: #{tpu_custom_call.1} parent=1 // pred_check_branch
      %7101 = sbr.rel (0) target = $region61
    $region60: #{tpu_custom_call.1} parent=1 // pred_region
      %7103 = vsyncadd [#allocation4], 0
      %s7104 = sshll.u32 [#allocation14], 4
      %s7105 = int_to_ptr.vmem [resolvable:$true] %s7104
      %s7106 = sshll.u32 %s7, 4
      %s7107 = int_to_ptr.hbm [resolvable:$true] %s7106
      %7112 = dma.vmem_to_hbm [thread:$0]  %s7105, 256, %s7107, [#allocation4], 128, 128, 8
    $region61: #{tpu_custom_call.1} parent=1 // pred_fallthru
      _
    // Predicated region
    $region62: #{tpu_custom_call.1} parent=1 // pred_check
      _
    $region63: #{tpu_custom_call.1} parent=1 // pred_check_branch
      %7114 = sbr.rel (0) target = $region65
    $region64: #{tpu_custom_call.1} parent=1 // pred_region
      %7116 = dma.done [#allocation4], 256
    $region65: #{tpu_custom_call.1} parent=1 // pred_fallthru
      _
    %7117 = vsyncpa [#allocation3], 1
    %7118 = vsyncpa [#allocation6], 1
    %7119 = vsyncpa [#allocation9], 1
    %7120 = vsyncpa [#allocation12], 1
    %7121 = vsyncpa [#allocation4], 1

</llo_original>
